<compile_context>
chip_gen: v6e
topology: v6e:2x2x1
jax: 0.10.0
libtpu: 0.0.40
codegen_flags: <defaults>
</compile_context>

<pallas_src>
import math

import jax
import jax.numpy as jnp
import numpy as np
from jax.experimental import pallas as pl
from jax.experimental.pallas import tpu as pltpu

# ---- hyperparameters (TransformerSOHPredictor defaults) ----------------------
INPUT_DIM = 1
SEQ_LEN = 5
MODEL_DIM = 64
NUM_HEADS = 4
NUM_LAYERS = 2
FF_DIM = 128
HEAD_DIM = MODEL_DIM // NUM_HEADS
HIDDEN = 64            # regressor hidden width
LN_EPS = 1e-5
OUT_LANES = 128        # replicate the scalar output over >=128 lanes (unmasked stores)
ROW_ALIGN = 16         # bf16 sublane pack -> keep TB a multiple of 16
DEFAULT_TB = 256       # batch tile: TB*SEQ_LEN rows >= 256 fills the v6e/v7x MXU
MAX_TB = 512           # cap for v7x (64 MiB VMEM per TensorCore)


def _layer_norm(x, g, b):
    mu = jnp.mean(x, axis=-1, keepdims=True)
    var = jnp.mean(jnp.square(x - mu), axis=-1, keepdims=True)
    return (x - mu) * jax.lax.rsqrt(var + LN_EPS) * g + b


def _mm(a, w_bf16):
    # bf16 MXU inputs, f32 accumulation; skip the cast if a is already bf16.
    a_bf = a if a.dtype == jnp.bfloat16 else a.astype(jnp.bfloat16)
    return jnp.dot(a_bf, w_bf16, preferred_element_type=jnp.float32)


# ---- Pallas kernel: forward pass for one batch tile ---------------------------
def transformer_soh_kernel(
    x_ref,                                   # (TB, S)             f32
    wp_ref, bp_ref,                          # (1, D)              f32
    wqkv_ref, bqkv_ref,                      # (L, D, 3D) bf16 / (L, 1, 3D) f32
    wo_ref, bo_ref,                          # (L, D, D)  bf16 / (L, 1, D)  f32
    ln1g_ref, ln1b_ref, ln2g_ref, ln2b_ref,  # (L, 1, D)           f32
    w1_ref, b1_ref,                          # (L, D, F)  bf16 / (L, 1, F)  f32
    w2_ref, b2_ref,                          # (L, F, D)  bf16 / (L, 1, D)  f32
    gg_ref,                                  # (D, D)              bf16 (head group-sum * scale)
    wr1_ref, br1_ref,                        # (S, D, HIDDEN) bf16 / (1, HIDDEN) f32
    wr2_ref, br2_ref,                        # (HIDDEN, OUT_LANES) bf16 / (1, OUT_LANES) f32
    o_ref,                                   # (TB, OUT_LANES)     f32
    sc_scr,                                  # (S*S*TB, D)         bf16 scratch (q_i*k_j products)
    attn_scr,                                # (S*TB, D)           bf16 scratch (per-pos attention out)
):
    TB = x_ref.shape[0]
    x = x_ref[...]                           # (TB, S)
    wp = wp_ref[...]                         # (1, D)
    bp = bp_ref[...]                         # (1, D)

    # input projection: K=1 matmul replaced by a VPU broadcast multiply-add.
    # Build the position-major activation slab h: row s*TB + b == (batch b, pos s).
    h = jnp.concatenate(
        [x[:, s:s + 1] * wp + bp for s in range(SEQ_LEN)], axis=0)   # (S*TB, D) f32

    gg = gg_ref[...]                         # (D, D) bf16

    for l in range(NUM_LAYERS):              # static unroll
        # ---- fused QKV projection: one M=(S*TB) matmul, N=3D=192 ----
        qkv = _mm(h, wqkv_ref[l]) + bqkv_ref[l]                       # (S*TB, 3D) f32
        q = qkv[:, 0:MODEL_DIM]
        k = qkv[:, MODEL_DIM:2 * MODEL_DIM]
        v = qkv[:, 2 * MODEL_DIM:3 * MODEL_DIM]

        qs = [q[i * TB:(i + 1) * TB, :] for i in range(SEQ_LEN)]
        ks = [k[i * TB:(i + 1) * TB, :] for i in range(SEQ_LEN)]
        vs = [v[i * TB:(i + 1) * TB, :] for i in range(SEQ_LEN)]

        # ---- batched score matmuls: all 25 q_i*k_j products -> one dot with GG ----
        # (q_i * k_j) @ GG sums lanes within each head and broadcasts the per-head
        # score back over that head's 16 lanes (scale folded into GG).
        for i in range(SEQ_LEN):
            for j in range(SEQ_LEN):
                row = (i * SEQ_LEN + j) * TB
                sc_scr[pl.ds(row, TB), :] = (qs[i] * ks[j]).astype(jnp.bfloat16)
        scores = jnp.dot(sc_scr[...], gg,
                         preferred_element_type=jnp.float32)         # (S*S*TB, D) f32

        # ---- softmax over the 5 key positions + PV accumulate (pure VPU/EUP) ----
        for i in range(SEQ_LEN):             # static unroll (5)
            s_ij = [scores[(i * SEQ_LEN + j) * TB:(i * SEQ_LEN + j + 1) * TB, :]
                    for j in range(SEQ_LEN)]                          # 5 x (TB, D)
            m = s_ij[0]
            for j in range(1, SEQ_LEN):
                m = jnp.maximum(m, s_ij[j])
            p_ij = [jnp.exp(s - m) for s in s_ij]
            den = p_ij[0]
            for j in range(1, SEQ_LEN):
                den = den + p_ij[j]
            inv = pl.reciprocal(den)                                  # exact; EUP has slack
            ctx = p_ij[0] * vs[0]
            for j in range(1, SEQ_LEN):
                ctx = ctx + p_ij[j] * vs[j]
            attn_scr[pl.ds(i * TB, TB), :] = (ctx * inv).astype(jnp.bfloat16)

        attn = _mm(attn_scr[...], wo_ref[l]) + bo_ref[l]              # (S*TB, D) f32

        # dropout is identity in eval mode; post-LN residual.
        h = _layer_norm(h + attn, ln1g_ref[l], ln1b_ref[l])

        # ---- feed-forward ----
        ff = jnp.maximum(_mm(h, w1_ref[l]) + b1_ref[l], 0.0)
        ff = _mm(ff, w2_ref[l]) + b2_ref[l]
        h = _layer_norm(h + ff, ln2g_ref[l], ln2b_ref[l])

    # ---- regressor: Flatten -> Linear(S*D, HIDDEN) -> ReLU -> Linear(HIDDEN, 1) ----
    # Flatten realized as sum_s h_s @ wr1[s] (each an M=TB matmul); cast h once.
    h_bf = h.astype(jnp.bfloat16)
    r = br1_ref[...]                                                  # (1, HIDDEN)
    for s in range(SEQ_LEN):
        r = r + _mm(h_bf[s * TB:(s + 1) * TB, :], wr1_ref[s])         # (TB, HIDDEN)
    r = jnp.maximum(r, 0.0)
    # Final Linear with wr2 replicated across OUT_LANES lanes -> lane-dense unmasked store.
    o_ref[...] = _mm(r, wr2_ref[...]) + br2_ref[...]                  # (TB, OUT_LANES)


# ---- wrapper ------------------------------------------------------------------
def _round_up(n, m):
    return ((n + m - 1) // m) * m


def _choose_tb(B, tb):
    tb = max(ROW_ALIGN, min(int(tb), MAX_TB))
    tb = _round_up(tb, ROW_ALIGN)
    # At least 2 grid tiles whenever the batch allows it (v7x has 2 TensorCores
    # sharding the "parallel" grid axis); rows stay a multiple of 16.
    half = _round_up(max(1, (B + 1) // 2), ROW_ALIGN)
    return min(tb, half)


def transformer_soh_forward(x, params, *, tb=DEFAULT_TB):
    B = x.shape[0]
    tb_eff = _choose_tb(B, tb)
    Bp = _round_up(B, tb_eff)
    num_tiles = Bp // tb_eff

    x2 = x.reshape(B, SEQ_LEN).astype(jnp.float32)
    if Bp != B:
        x2 = jnp.pad(x2, ((0, Bp - B), (0, 0)))

    bf = lambda a: a.astype(jnp.bfloat16)
    f32 = lambda a: a.astype(jnp.float32)

    # head "group-sum" matrix: GG[d, e] = 1/sqrt(HEAD_DIM) if head(d) == head(e) else 0.
    head_id = np.arange(MODEL_DIM) // HEAD_DIM
    gg = jnp.asarray(
        (head_id[:, None] == head_id[None, :]).astype(np.float32) / math.sqrt(HEAD_DIM))

    # fused QKV weights/biases: (L, D, 3D) / (L, 1, 3D)
    wqkv = jnp.concatenate([params["wq"], params["wk"], params["wv"]], axis=-1)
    bqkv = jnp.concatenate([params["bq"], params["bk"], params["bv"]], axis=-1)

    wr2t = jnp.tile(params["wr2"], (1, OUT_LANES))     # (HIDDEN, OUT_LANES)
    br2t = jnp.tile(params["br2"], (1, OUT_LANES))     # (1, OUT_LANES)

    weights = [
        f32(params["wp"]), f32(params["bp"]),
        bf(wqkv), f32(bqkv),
        bf(params["wo"]), f32(params["bo"]),
        f32(params["ln1g"]), f32(params["ln1b"]),
        f32(params["ln2g"]), f32(params["ln2b"]),
        bf(params["w1"]), f32(params["b1"]),
        bf(params["w2"]), f32(params["b2"]),
        bf(gg),
        bf(params["wr1"]), f32(params["br1"]),
        bf(wr2t), f32(br2t),
    ]

    def _full_spec(a):
        nd = a.ndim
        return pl.BlockSpec(a.shape, lambda i, nd=nd: (0,) * nd)

    in_specs = [pl.BlockSpec((tb_eff, SEQ_LEN), lambda i: (i, 0))]
    in_specs += [_full_spec(a) for a in weights]
    out_spec = pl.BlockSpec((tb_eff, OUT_LANES), lambda i: (i, 0))

    scratch_shapes = [
        pltpu.VMEM((SEQ_LEN * SEQ_LEN * tb_eff, MODEL_DIM), jnp.bfloat16),  # score products
        pltpu.VMEM((SEQ_LEN * tb_eff, MODEL_DIM), jnp.bfloat16),            # attention outputs
    ]

    # Explicit scoped-VMEM budget sized from the live intermediates (+headroom);
    # matters on v7x (64 MiB VMEM per TensorCore).
    live_bytes = tb_eff * (
        SEQ_LEN * SEQ_LEN * MODEL_DIM * (2 + 4)       # score scratch (bf16) + scores (f32)
        + SEQ_LEN * MODEL_DIM * (2 + 6 * 4)           # attn scratch + h/attn/ff/residual slabs
        + SEQ_LEN * 3 * MODEL_DIM * 4                 # fused qkv slab
    )
    vmem_limit = int(min(max(32 << 20, 2 * live_bytes + (8 << 20)), 48 << 20))

    # Advisory cost estimate (per padded batch element).
    flops_per_elem = (
        2 * SEQ_LEN * INPUT_DIM * MODEL_DIM
        + NUM_LAYERS * (
            2 * SEQ_LEN * MODEL_DIM * 3 * MODEL_DIM          # fused QKV
            + 2 * SEQ_LEN * SEQ_LEN * MODEL_DIM * MODEL_DIM  # scores @ GG
            + 8 * SEQ_LEN * SEQ_LEN * MODEL_DIM              # softmax / PV elementwise
            + 2 * SEQ_LEN * MODEL_DIM * MODEL_DIM            # out projection
            + 4 * SEQ_LEN * MODEL_DIM * FF_DIM               # FFN
            + 16 * SEQ_LEN * MODEL_DIM                       # LayerNorms + residuals
        )
        + 2 * SEQ_LEN * MODEL_DIM * HIDDEN + 2 * HIDDEN
    )
    bytes_accessed = (
        int(x2.size) * 4
        + sum(int(w.size) * w.dtype.itemsize for w in weights)
        + Bp * OUT_LANES * 4
    )
    cost = pl.CostEstimate(
        flops=int(Bp) * int(flops_per_elem),
        transcendentals=int(Bp) * NUM_LAYERS * SEQ_LEN * SEQ_LEN * MODEL_DIM,
        bytes_accessed=int(bytes_accessed),
    )

    out = pl.pallas_call(
        transformer_soh_kernel,
        out_shape=jax.ShapeDtypeStruct((Bp, OUT_LANES), jnp.float32),
        grid=(num_tiles,),
        in_specs=in_specs,
        out_specs=out_spec,
        scratch_shapes=scratch_shapes,
        compiler_params=pltpu.CompilerParams(
            dimension_semantics=("parallel",),
            vmem_limit_bytes=vmem_limit),
        cost_estimate=cost,
    )(x2, *weights)

    return out[:B, :1]                                  # (B, 1)


# ---- deterministic parameter init (synthetic; not a checkpoint load) ----------
def init_params(key):
    keys = jax.random.split(key, 18)
    it = iter(keys)
    s = 0.05

    def rnd(shape):
        return (s * jax.random.normal(next(it), shape)).astype(jnp.float32)

    L, D, F, S, H = NUM_LAYERS, MODEL_DIM, FF_DIM, SEQ_LEN, HIDDEN
    return {
        "wp": rnd((INPUT_DIM, D)), "bp": rnd((1, D)),
        "wq": rnd((L, D, D)), "bq": rnd((L, 1, D)),
        "wk": rnd((L, D, D)), "bk": rnd((L, 1, D)),
        "wv": rnd((L, D, D)), "bv": rnd((L, 1, D)),
        "wo": rnd((L, D, D)), "bo": rnd((L, 1, D)),
        "ln1g": jnp.ones((L, 1, D), jnp.float32),
        "ln1b": jnp.zeros((L, 1, D), jnp.float32),
        "ln2g": jnp.ones((L, 1, D), jnp.float32),
        "ln2b": jnp.zeros((L, 1, D), jnp.float32),
        "w1": rnd((L, D, F)), "b1": rnd((L, 1, F)),
        "w2": rnd((L, F, D)), "b2": rnd((L, 1, D)),
        "wr1": rnd((S, D, H)),        # flattened view == (S*D, HIDDEN)
        "br1": rnd((1, H)),
        "wr2": rnd((H, 1)), "br2": rnd((1, 1)),
    }


# ---- pure-JAX f32 reference for verification -----------------------------------
def reference_forward(x, p):
    B = x.shape[0]
    h = x @ p["wp"] + p["bp"][0]                         # (B, S, D)
    for l in range(NUM_LAYERS):
        q = h @ p["wq"][l] + p["bq"][l][0]
        k = h @ p["wk"][l] + p["bk"][l][0]
        v = h @ p["wv"][l] + p["bv"][l][0]
        qh = q.reshape(B, SEQ_LEN, NUM_HEADS, HEAD_DIM).transpose(0, 2, 1, 3)
        kh = k.reshape(B, SEQ_LEN, NUM_HEADS, HEAD_DIM).transpose(0, 2, 1, 3)
        vh = v.reshape(B, SEQ_LEN, NUM_HEADS, HEAD_DIM).transpose(0, 2, 1, 3)
        sc = jnp.einsum("bhqd,bhkd->bhqk", qh, kh) / math.sqrt(HEAD_DIM)
        a = jax.nn.softmax(sc, axis=-1)
        o = jnp.einsum("bhqk,bhkd->bhqd", a, vh).transpose(0, 2, 1, 3)
        o = o.reshape(B, SEQ_LEN, MODEL_DIM) @ p["wo"][l] + p["bo"][l][0]
        h = _layer_norm(h + o, p["ln1g"][l][0], p["ln1b"][l][0])
        ff = jax.nn.relu(h @ p["w1"][l] + p["b1"][l][0]) @ p["w2"][l] + p["b2"][l][0]
        h = _layer_norm(h + ff, p["ln2g"][l][0], p["ln2b"][l][0])
    flat = h.reshape(B, SEQ_LEN * MODEL_DIM)
    r = jax.nn.relu(flat @ p["wr1"].reshape(SEQ_LEN * MODEL_DIM, HIDDEN) + p["br1"][0])
    return r @ p["wr2"] + p["br2"][0]


if __name__ == "__main__":
    key = jax.random.PRNGKey(0)
    kx, kp = jax.random.split(key)

    B = 19  # non-multiple of the tile -> exercises padding + a 2-step parallel grid
    x = jax.random.normal(kx, (B, SEQ_LEN, INPUT_DIM), dtype=jnp.float32)
    params = init_params(kp)

    y = jax.block_until_ready(transformer_soh_forward(x, params))
    y_ref = jax.block_until_ready(reference_forward(x, params))

    # bf16 MXU inputs (f32 accumulation) -> relaxed tolerance.
    np.testing.assert_allclose(np.asarray(y), np.asarray(y_ref), rtol=2e-2, atol=2e-3)

    print("KERNEL_OK")
</pallas_src>

<mosaic_0001>
module attributes {stable_mosaic.version = 11 : i64} {
  func.func @transformer_soh_kernel(%arg0: i32, %arg1: memref<16x5xf32, #tpu.memory_space<vmem>>, %arg2: memref<1x64xf32, #tpu.memory_space<vmem>>, %arg3: memref<1x64xf32, #tpu.memory_space<vmem>>, %arg4: memref<2x64x192xbf16, #tpu.memory_space<vmem>>, %arg5: memref<2x1x192xf32, #tpu.memory_space<vmem>>, %arg6: memref<2x64x64xbf16, #tpu.memory_space<vmem>>, %arg7: memref<2x1x64xf32, #tpu.memory_space<vmem>>, %arg8: memref<2x1x64xf32, #tpu.memory_space<vmem>>, %arg9: memref<2x1x64xf32, #tpu.memory_space<vmem>>, %arg10: memref<2x1x64xf32, #tpu.memory_space<vmem>>, %arg11: memref<2x1x64xf32, #tpu.memory_space<vmem>>, %arg12: memref<2x64x128xbf16, #tpu.memory_space<vmem>>, %arg13: memref<2x1x128xf32, #tpu.memory_space<vmem>>, %arg14: memref<2x128x64xbf16, #tpu.memory_space<vmem>>, %arg15: memref<2x1x64xf32, #tpu.memory_space<vmem>>, %arg16: memref<64x64xbf16, #tpu.memory_space<vmem>>, %arg17: memref<5x64x64xbf16, #tpu.memory_space<vmem>>, %arg18: memref<1x64xf32, #tpu.memory_space<vmem>>, %arg19: memref<64x128xbf16, #tpu.memory_space<vmem>>, %arg20: memref<1x128xf32, #tpu.memory_space<vmem>>, %arg21: memref<16x128xf32, #tpu.memory_space<vmem>>, %arg22: memref<400x64xbf16, #tpu.memory_space<vmem>>, %arg23: memref<80x64xbf16, #tpu.memory_space<vmem>>) attributes {dimension_semantics = [#tpu.dimension_semantics<parallel>], iteration_bounds = array<i64: 2>, scalar_prefetch = 0 : i64, scratch_operands = 2 : i64, tpu.core_type = #tpu.core_type<tc>, window_params = [{transform_indices = @transform_0, window_bounds = array<i64: 16, 5>}, {pipeline_mode = #tpu.pipeline_mode<synchronous>, transform_indices = @transform_1, window_bounds = array<i64: 1, 64>}, {pipeline_mode = #tpu.pipeline_mode<synchronous>, transform_indices = @transform_2, window_bounds = array<i64: 1, 64>}, {pipeline_mode = #tpu.pipeline_mode<synchronous>, transform_indices = @transform_3, window_bounds = array<i64: 2, 64, 192>}, {pipeline_mode = #tpu.pipeline_mode<synchronous>, transform_indices = @transform_4, window_bounds = array<i64: 2, 1, 192>}, {pipeline_mode = #tpu.pipeline_mode<synchronous>, transform_indices = @transform_5, window_bounds = array<i64: 2, 64, 64>}, {pipeline_mode = #tpu.pipeline_mode<synchronous>, transform_indices = @transform_6, window_bounds = array<i64: 2, 1, 64>}, {pipeline_mode = #tpu.pipeline_mode<synchronous>, transform_indices = @transform_7, window_bounds = array<i64: 2, 1, 64>}, {pipeline_mode = #tpu.pipeline_mode<synchronous>, transform_indices = @transform_8, window_bounds = array<i64: 2, 1, 64>}, {pipeline_mode = #tpu.pipeline_mode<synchronous>, transform_indices = @transform_9, window_bounds = array<i64: 2, 1, 64>}, {pipeline_mode = #tpu.pipeline_mode<synchronous>, transform_indices = @transform_10, window_bounds = array<i64: 2, 1, 64>}, {pipeline_mode = #tpu.pipeline_mode<synchronous>, transform_indices = @transform_11, window_bounds = array<i64: 2, 64, 128>}, {pipeline_mode = #tpu.pipeline_mode<synchronous>, transform_indices = @transform_12, window_bounds = array<i64: 2, 1, 128>}, {pipeline_mode = #tpu.pipeline_mode<synchronous>, transform_indices = @transform_13, window_bounds = array<i64: 2, 128, 64>}, {pipeline_mode = #tpu.pipeline_mode<synchronous>, transform_indices = @transform_14, window_bounds = array<i64: 2, 1, 64>}, {pipeline_mode = #tpu.pipeline_mode<synchronous>, transform_indices = @transform_15, window_bounds = array<i64: 64, 64>}, {pipeline_mode = #tpu.pipeline_mode<synchronous>, transform_indices = @transform_16, window_bounds = array<i64: 5, 64, 64>}, {pipeline_mode = #tpu.pipeline_mode<synchronous>, transform_indices = @transform_17, window_bounds = array<i64: 1, 64>}, {pipeline_mode = #tpu.pipeline_mode<synchronous>, transform_indices = @transform_18, window_bounds = array<i64: 64, 128>}, {pipeline_mode = #tpu.pipeline_mode<synchronous>, transform_indices = @transform_19, window_bounds = array<i64: 1, 128>}, {transform_indices = @transform_20, window_bounds = array<i64: 16, 128>}]} {
    %c0 = arith.constant 0 : index
    %c0_0 = arith.constant 0 : index
    %0 = vector.load %arg1[%c0, %c0_0] : memref<16x5xf32, #tpu.memory_space<vmem>>, vector<16x5xf32>
    %c0_1 = arith.constant 0 : index
    %c0_2 = arith.constant 0 : index
    %1 = vector.load %arg2[%c0_1, %c0_2] : memref<1x64xf32, #tpu.memory_space<vmem>>, vector<1x64xf32>
    %c0_3 = arith.constant 0 : index
    %c0_4 = arith.constant 0 : index
    %2 = vector.load %arg3[%c0_3, %c0_4] : memref<1x64xf32, #tpu.memory_space<vmem>>, vector<1x64xf32>
    %3 = vector.extract_strided_slice %0 {offsets = [0, 0], sizes = [16, 1], strides = [1, 1]} : vector<16x5xf32> to vector<16x1xf32>
    %4 = vector.broadcast %3 : vector<16x1xf32> to vector<16x64xf32>
    %5 = vector.broadcast %1 : vector<1x64xf32> to vector<16x64xf32>
    %6 = arith.mulf %4, %5 : vector<16x64xf32>
    %7 = vector.broadcast %2 : vector<1x64xf32> to vector<16x64xf32>
    %8 = arith.addf %6, %7 : vector<16x64xf32>
    %9 = vector.extract_strided_slice %0 {offsets = [0, 1], sizes = [16, 1], strides = [1, 1]} : vector<16x5xf32> to vector<16x1xf32>
    %10 = vector.broadcast %9 : vector<16x1xf32> to vector<16x64xf32>
    %11 = vector.broadcast %1 : vector<1x64xf32> to vector<16x64xf32>
    %12 = arith.mulf %10, %11 : vector<16x64xf32>
    %13 = vector.broadcast %2 : vector<1x64xf32> to vector<16x64xf32>
    %14 = arith.addf %12, %13 : vector<16x64xf32>
    %15 = vector.extract_strided_slice %0 {offsets = [0, 2], sizes = [16, 1], strides = [1, 1]} : vector<16x5xf32> to vector<16x1xf32>
    %16 = vector.broadcast %15 : vector<16x1xf32> to vector<16x64xf32>
    %17 = vector.broadcast %1 : vector<1x64xf32> to vector<16x64xf32>
    %18 = arith.mulf %16, %17 : vector<16x64xf32>
    %19 = vector.broadcast %2 : vector<1x64xf32> to vector<16x64xf32>
    %20 = arith.addf %18, %19 : vector<16x64xf32>
    %21 = vector.extract_strided_slice %0 {offsets = [0, 3], sizes = [16, 1], strides = [1, 1]} : vector<16x5xf32> to vector<16x1xf32>
    %22 = vector.broadcast %21 : vector<16x1xf32> to vector<16x64xf32>
    %23 = vector.broadcast %1 : vector<1x64xf32> to vector<16x64xf32>
    %24 = arith.mulf %22, %23 : vector<16x64xf32>
    %25 = vector.broadcast %2 : vector<1x64xf32> to vector<16x64xf32>
    %26 = arith.addf %24, %25 : vector<16x64xf32>
    %27 = vector.extract_strided_slice %0 {offsets = [0, 4], sizes = [16, 1], strides = [1, 1]} : vector<16x5xf32> to vector<16x1xf32>
    %28 = vector.broadcast %27 : vector<16x1xf32> to vector<16x64xf32>
    %29 = vector.broadcast %1 : vector<1x64xf32> to vector<16x64xf32>
    %30 = arith.mulf %28, %29 : vector<16x64xf32>
    %31 = vector.broadcast %2 : vector<1x64xf32> to vector<16x64xf32>
    %32 = arith.addf %30, %31 : vector<16x64xf32>
    %33 = tpu.concatenate %8, %14, %20, %26, %32 in 0 : vector<16x64xf32>, vector<16x64xf32>, vector<16x64xf32>, vector<16x64xf32>, vector<16x64xf32> -> vector<80x64xf32>
    %c0_5 = arith.constant 0 : index
    %c0_6 = arith.constant 0 : index
    %34 = vector.load %arg16[%c0_5, %c0_6] : memref<64x64xbf16, #tpu.memory_space<vmem>>, vector<64x64xbf16>
    %c0_7 = arith.constant 0 : index
    %c0_8 = arith.constant 0 : index
    %c0_9 = arith.constant 0 : index
    %35 = vector.load %arg4[%c0_7, %c0_8, %c0_9] : memref<2x64x192xbf16, #tpu.memory_space<vmem>>, vector<1x64x192xbf16>
    %36 = vector.shape_cast %35 : vector<1x64x192xbf16> to vector<64x192xbf16>
    %37 = arith.truncf %33 : vector<80x64xf32> to vector<80x64xbf16>
    %cst = arith.constant dense<0.000000e+00> : vector<80x192xf32>
    %38 = tpu.matmul %37, %36, %cst {dimension_numbers = #tpu.dot_dimension_numbers<[1], [0], [0], [1], [0, 0, 1, 1], [], []>} : vector<80x64xbf16>, vector<64x192xbf16>, vector<80x192xf32> -> vector<80x192xf32>
    %c0_10 = arith.constant 0 : index
    %c0_11 = arith.constant 0 : index
    %c0_12 = arith.constant 0 : index
    %39 = vector.load %arg5[%c0_10, %c0_11, %c0_12] : memref<2x1x192xf32, #tpu.memory_space<vmem>>, vector<1x1x192xf32>
    %40 = vector.shape_cast %39 : vector<1x1x192xf32> to vector<1x192xf32>
    %41 = vector.broadcast %40 : vector<1x192xf32> to vector<80x192xf32>
    %42 = arith.addf %38, %41 : vector<80x192xf32>
    %43 = vector.extract_strided_slice %42 {offsets = [0, 0], sizes = [80, 64], strides = [1, 1]} : vector<80x192xf32> to vector<80x64xf32>
    %44 = vector.extract_strided_slice %42 {offsets = [0, 64], sizes = [80, 64], strides = [1, 1]} : vector<80x192xf32> to vector<80x64xf32>
    %45 = vector.extract_strided_slice %42 {offsets = [0, 128], sizes = [80, 64], strides = [1, 1]} : vector<80x192xf32> to vector<80x64xf32>
    %46 = vector.extract_strided_slice %43 {offsets = [0, 0], sizes = [16, 64], strides = [1, 1]} : vector<80x64xf32> to vector<16x64xf32>
    %47 = vector.extract_strided_slice %43 {offsets = [16, 0], sizes = [16, 64], strides = [1, 1]} : vector<80x64xf32> to vector<16x64xf32>
    %48 = vector.extract_strided_slice %43 {offsets = [32, 0], sizes = [16, 64], strides = [1, 1]} : vector<80x64xf32> to vector<16x64xf32>
    %49 = vector.extract_strided_slice %43 {offsets = [48, 0], sizes = [16, 64], strides = [1, 1]} : vector<80x64xf32> to vector<16x64xf32>
    %50 = vector.extract_strided_slice %43 {offsets = [64, 0], sizes = [16, 64], strides = [1, 1]} : vector<80x64xf32> to vector<16x64xf32>
    %51 = vector.extract_strided_slice %44 {offsets = [0, 0], sizes = [16, 64], strides = [1, 1]} : vector<80x64xf32> to vector<16x64xf32>
    %52 = vector.extract_strided_slice %44 {offsets = [16, 0], sizes = [16, 64], strides = [1, 1]} : vector<80x64xf32> to vector<16x64xf32>
    %53 = vector.extract_strided_slice %44 {offsets = [32, 0], sizes = [16, 64], strides = [1, 1]} : vector<80x64xf32> to vector<16x64xf32>
    %54 = vector.extract_strided_slice %44 {offsets = [48, 0], sizes = [16, 64], strides = [1, 1]} : vector<80x64xf32> to vector<16x64xf32>
    %55 = vector.extract_strided_slice %44 {offsets = [64, 0], sizes = [16, 64], strides = [1, 1]} : vector<80x64xf32> to vector<16x64xf32>
    %56 = vector.extract_strided_slice %45 {offsets = [0, 0], sizes = [16, 64], strides = [1, 1]} : vector<80x64xf32> to vector<16x64xf32>
    %57 = vector.extract_strided_slice %45 {offsets = [16, 0], sizes = [16, 64], strides = [1, 1]} : vector<80x64xf32> to vector<16x64xf32>
    %58 = vector.extract_strided_slice %45 {offsets = [32, 0], sizes = [16, 64], strides = [1, 1]} : vector<80x64xf32> to vector<16x64xf32>
    %59 = vector.extract_strided_slice %45 {offsets = [48, 0], sizes = [16, 64], strides = [1, 1]} : vector<80x64xf32> to vector<16x64xf32>
    %60 = vector.extract_strided_slice %45 {offsets = [64, 0], sizes = [16, 64], strides = [1, 1]} : vector<80x64xf32> to vector<16x64xf32>
    %61 = arith.mulf %46, %51 : vector<16x64xf32>
    %62 = arith.truncf %61 : vector<16x64xf32> to vector<16x64xbf16>
    %c0_13 = arith.constant 0 : index
    %c0_14 = arith.constant 0 : index
    %63 = vector.load %arg22[%c0_13, %c0_14] : memref<400x64xbf16, #tpu.memory_space<vmem>>, vector<16x64xbf16>
    tpu.vector_store %arg22[%c0_13, %c0_14], %62 {strides = array<i32>} : memref<400x64xbf16, #tpu.memory_space<vmem>>, vector<16x64xbf16>,
    %64 = arith.mulf %46, %52 : vector<16x64xf32>
    %65 = arith.truncf %64 : vector<16x64xf32> to vector<16x64xbf16>
    %c16 = arith.constant 16 : index
    %c0_15 = arith.constant 0 : index
    %66 = vector.load %arg22[%c16, %c0_15] : memref<400x64xbf16, #tpu.memory_space<vmem>>, vector<16x64xbf16>
    tpu.vector_store %arg22[%c16, %c0_15], %65 {strides = array<i32>} : memref<400x64xbf16, #tpu.memory_space<vmem>>, vector<16x64xbf16>,
    %67 = arith.mulf %46, %53 : vector<16x64xf32>
    %68 = arith.truncf %67 : vector<16x64xf32> to vector<16x64xbf16>
    %c32 = arith.constant 32 : index
    %c0_16 = arith.constant 0 : index
    %69 = vector.load %arg22[%c32, %c0_16] : memref<400x64xbf16, #tpu.memory_space<vmem>>, vector<16x64xbf16>
    tpu.vector_store %arg22[%c32, %c0_16], %68 {strides = array<i32>} : memref<400x64xbf16, #tpu.memory_space<vmem>>, vector<16x64xbf16>,
    %70 = arith.mulf %46, %54 : vector<16x64xf32>
    %71 = arith.truncf %70 : vector<16x64xf32> to vector<16x64xbf16>
    %c48 = arith.constant 48 : index
    %c0_17 = arith.constant 0 : index
    %72 = vector.load %arg22[%c48, %c0_17] : memref<400x64xbf16, #tpu.memory_space<vmem>>, vector<16x64xbf16>
    tpu.vector_store %arg22[%c48, %c0_17], %71 {strides = array<i32>} : memref<400x64xbf16, #tpu.memory_space<vmem>>, vector<16x64xbf16>,
    %73 = arith.mulf %46, %55 : vector<16x64xf32>
    %74 = arith.truncf %73 : vector<16x64xf32> to vector<16x64xbf16>
    %c64 = arith.constant 64 : index
    %c0_18 = arith.constant 0 : index
    %75 = vector.load %arg22[%c64, %c0_18] : memref<400x64xbf16, #tpu.memory_space<vmem>>, vector<16x64xbf16>
    tpu.vector_store %arg22[%c64, %c0_18], %74 {strides = array<i32>} : memref<400x64xbf16, #tpu.memory_space<vmem>>, vector<16x64xbf16>,
    %76 = arith.mulf %47, %51 : vector<16x64xf32>
    %77 = arith.truncf %76 : vector<16x64xf32> to vector<16x64xbf16>
    %c80 = arith.constant 80 : index
    %c0_19 = arith.constant 0 : index
    %78 = vector.load %arg22[%c80, %c0_19] : memref<400x64xbf16, #tpu.memory_space<vmem>>, vector<16x64xbf16>
    tpu.vector_store %arg22[%c80, %c0_19], %77 {strides = array<i32>} : memref<400x64xbf16, #tpu.memory_space<vmem>>, vector<16x64xbf16>,
    %79 = arith.mulf %47, %52 : vector<16x64xf32>
    %80 = arith.truncf %79 : vector<16x64xf32> to vector<16x64xbf16>
    %c96 = arith.constant 96 : index
    %c0_20 = arith.constant 0 : index
    %81 = vector.load %arg22[%c96, %c0_20] : memref<400x64xbf16, #tpu.memory_space<vmem>>, vector<16x64xbf16>
    tpu.vector_store %arg22[%c96, %c0_20], %80 {strides = array<i32>} : memref<400x64xbf16, #tpu.memory_space<vmem>>, vector<16x64xbf16>,
    %82 = arith.mulf %47, %53 : vector<16x64xf32>
    %83 = arith.truncf %82 : vector<16x64xf32> to vector<16x64xbf16>
    %c112 = arith.constant 112 : index
    %c0_21 = arith.constant 0 : index
    %84 = vector.load %arg22[%c112, %c0_21] : memref<400x64xbf16, #tpu.memory_space<vmem>>, vector<16x64xbf16>
    tpu.vector_store %arg22[%c112, %c0_21], %83 {strides = array<i32>} : memref<400x64xbf16, #tpu.memory_space<vmem>>, vector<16x64xbf16>,
    %85 = arith.mulf %47, %54 : vector<16x64xf32>
    %86 = arith.truncf %85 : vector<16x64xf32> to vector<16x64xbf16>
    %c128 = arith.constant 128 : index
    %c0_22 = arith.constant 0 : index
    %87 = vector.load %arg22[%c128, %c0_22] : memref<400x64xbf16, #tpu.memory_space<vmem>>, vector<16x64xbf16>
    tpu.vector_store %arg22[%c128, %c0_22], %86 {strides = array<i32>} : memref<400x64xbf16, #tpu.memory_space<vmem>>, vector<16x64xbf16>,
    %88 = arith.mulf %47, %55 : vector<16x64xf32>
    %89 = arith.truncf %88 : vector<16x64xf32> to vector<16x64xbf16>
    %c144 = arith.constant 144 : index
    %c0_23 = arith.constant 0 : index
    %90 = vector.load %arg22[%c144, %c0_23] : memref<400x64xbf16, #tpu.memory_space<vmem>>, vector<16x64xbf16>
    tpu.vector_store %arg22[%c144, %c0_23], %89 {strides = array<i32>} : memref<400x64xbf16, #tpu.memory_space<vmem>>, vector<16x64xbf16>,
    %91 = arith.mulf %48, %51 : vector<16x64xf32>
    %92 = arith.truncf %91 : vector<16x64xf32> to vector<16x64xbf16>
    %c160 = arith.constant 160 : index
    %c0_24 = arith.constant 0 : index
    %93 = vector.load %arg22[%c160, %c0_24] : memref<400x64xbf16, #tpu.memory_space<vmem>>, vector<16x64xbf16>
    tpu.vector_store %arg22[%c160, %c0_24], %92 {strides = array<i32>} : memref<400x64xbf16, #tpu.memory_space<vmem>>, vector<16x64xbf16>,
    %94 = arith.mulf %48, %52 : vector<16x64xf32>
    %95 = arith.truncf %94 : vector<16x64xf32> to vector<16x64xbf16>
    %c176 = arith.constant 176 : index
    %c0_25 = arith.constant 0 : index
    %96 = vector.load %arg22[%c176, %c0_25] : memref<400x64xbf16, #tpu.memory_space<vmem>>, vector<16x64xbf16>
    tpu.vector_store %arg22[%c176, %c0_25], %95 {strides = array<i32>} : memref<400x64xbf16, #tpu.memory_space<vmem>>, vector<16x64xbf16>,
    %97 = arith.mulf %48, %53 : vector<16x64xf32>
    %98 = arith.truncf %97 : vector<16x64xf32> to vector<16x64xbf16>
    %c192 = arith.constant 192 : index
    %c0_26 = arith.constant 0 : index
    %99 = vector.load %arg22[%c192, %c0_26] : memref<400x64xbf16, #tpu.memory_space<vmem>>, vector<16x64xbf16>
    tpu.vector_store %arg22[%c192, %c0_26], %98 {strides = array<i32>} : memref<400x64xbf16, #tpu.memory_space<vmem>>, vector<16x64xbf16>,
    %100 = arith.mulf %48, %54 : vector<16x64xf32>
    %101 = arith.truncf %100 : vector<16x64xf32> to vector<16x64xbf16>
    %c208 = arith.constant 208 : index
    %c0_27 = arith.constant 0 : index
    %102 = vector.load %arg22[%c208, %c0_27] : memref<400x64xbf16, #tpu.memory_space<vmem>>, vector<16x64xbf16>
    tpu.vector_store %arg22[%c208, %c0_27], %101 {strides = array<i32>} : memref<400x64xbf16, #tpu.memory_space<vmem>>, vector<16x64xbf16>,
    %103 = arith.mulf %48, %55 : vector<16x64xf32>
    %104 = arith.truncf %103 : vector<16x64xf32> to vector<16x64xbf16>
    %c224 = arith.constant 224 : index
    %c0_28 = arith.constant 0 : index
    %105 = vector.load %arg22[%c224, %c0_28] : memref<400x64xbf16, #tpu.memory_space<vmem>>, vector<16x64xbf16>
    tpu.vector_store %arg22[%c224, %c0_28], %104 {strides = array<i32>} : memref<400x64xbf16, #tpu.memory_space<vmem>>, vector<16x64xbf16>,
    %106 = arith.mulf %49, %51 : vector<16x64xf32>
    %107 = arith.truncf %106 : vector<16x64xf32> to vector<16x64xbf16>
    %c240 = arith.constant 240 : index
    %c0_29 = arith.constant 0 : index
    %108 = vector.load %arg22[%c240, %c0_29] : memref<400x64xbf16, #tpu.memory_space<vmem>>, vector<16x64xbf16>
    tpu.vector_store %arg22[%c240, %c0_29], %107 {strides = array<i32>} : memref<400x64xbf16, #tpu.memory_space<vmem>>, vector<16x64xbf16>,
    %109 = arith.mulf %49, %52 : vector<16x64xf32>
    %110 = arith.truncf %109 : vector<16x64xf32> to vector<16x64xbf16>
    %c256 = arith.constant 256 : index
    %c0_30 = arith.constant 0 : index
    %111 = vector.load %arg22[%c256, %c0_30] : memref<400x64xbf16, #tpu.memory_space<vmem>>, vector<16x64xbf16>
    tpu.vector_store %arg22[%c256, %c0_30], %110 {strides = array<i32>} : memref<400x64xbf16, #tpu.memory_space<vmem>>, vector<16x64xbf16>,
    %112 = arith.mulf %49, %53 : vector<16x64xf32>
    %113 = arith.truncf %112 : vector<16x64xf32> to vector<16x64xbf16>
    %c272 = arith.constant 272 : index
    %c0_31 = arith.constant 0 : index
    %114 = vector.load %arg22[%c272, %c0_31] : memref<400x64xbf16, #tpu.memory_space<vmem>>, vector<16x64xbf16>
    tpu.vector_store %arg22[%c272, %c0_31], %113 {strides = array<i32>} : memref<400x64xbf16, #tpu.memory_space<vmem>>, vector<16x64xbf16>,
    %115 = arith.mulf %49, %54 : vector<16x64xf32>
    %116 = arith.truncf %115 : vector<16x64xf32> to vector<16x64xbf16>
    %c288 = arith.constant 288 : index
    %c0_32 = arith.constant 0 : index
    %117 = vector.load %arg22[%c288, %c0_32] : memref<400x64xbf16, #tpu.memory_space<vmem>>, vector<16x64xbf16>
    tpu.vector_store %arg22[%c288, %c0_32], %116 {strides = array<i32>} : memref<400x64xbf16, #tpu.memory_space<vmem>>, vector<16x64xbf16>,
    %118 = arith.mulf %49, %55 : vector<16x64xf32>
    %119 = arith.truncf %118 : vector<16x64xf32> to vector<16x64xbf16>
    %c304 = arith.constant 304 : index
    %c0_33 = arith.constant 0 : index
    %120 = vector.load %arg22[%c304, %c0_33] : memref<400x64xbf16, #tpu.memory_space<vmem>>, vector<16x64xbf16>
    tpu.vector_store %arg22[%c304, %c0_33], %119 {strides = array<i32>} : memref<400x64xbf16, #tpu.memory_space<vmem>>, vector<16x64xbf16>,
    %121 = arith.mulf %50, %51 : vector<16x64xf32>
    %122 = arith.truncf %121 : vector<16x64xf32> to vector<16x64xbf16>
    %c320 = arith.constant 320 : index
    %c0_34 = arith.constant 0 : index
    %123 = vector.load %arg22[%c320, %c0_34] : memref<400x64xbf16, #tpu.memory_space<vmem>>, vector<16x64xbf16>
    tpu.vector_store %arg22[%c320, %c0_34], %122 {strides = array<i32>} : memref<400x64xbf16, #tpu.memory_space<vmem>>, vector<16x64xbf16>,
    %124 = arith.mulf %50, %52 : vector<16x64xf32>
    %125 = arith.truncf %124 : vector<16x64xf32> to vector<16x64xbf16>
    %c336 = arith.constant 336 : index
    %c0_35 = arith.constant 0 : index
    %126 = vector.load %arg22[%c336, %c0_35] : memref<400x64xbf16, #tpu.memory_space<vmem>>, vector<16x64xbf16>
    tpu.vector_store %arg22[%c336, %c0_35], %125 {strides = array<i32>} : memref<400x64xbf16, #tpu.memory_space<vmem>>, vector<16x64xbf16>,
    %127 = arith.mulf %50, %53 : vector<16x64xf32>
    %128 = arith.truncf %127 : vector<16x64xf32> to vector<16x64xbf16>
    %c352 = arith.constant 352 : index
    %c0_36 = arith.constant 0 : index
    %129 = vector.load %arg22[%c352, %c0_36] : memref<400x64xbf16, #tpu.memory_space<vmem>>, vector<16x64xbf16>
    tpu.vector_store %arg22[%c352, %c0_36], %128 {strides = array<i32>} : memref<400x64xbf16, #tpu.memory_space<vmem>>, vector<16x64xbf16>,
    %130 = arith.mulf %50, %54 : vector<16x64xf32>
    %131 = arith.truncf %130 : vector<16x64xf32> to vector<16x64xbf16>
    %c368 = arith.constant 368 : index
    %c0_37 = arith.constant 0 : index
    %132 = vector.load %arg22[%c368, %c0_37] : memref<400x64xbf16, #tpu.memory_space<vmem>>, vector<16x64xbf16>
    tpu.vector_store %arg22[%c368, %c0_37], %131 {strides = array<i32>} : memref<400x64xbf16, #tpu.memory_space<vmem>>, vector<16x64xbf16>,
    %133 = arith.mulf %50, %55 : vector<16x64xf32>
    %134 = arith.truncf %133 : vector<16x64xf32> to vector<16x64xbf16>
    %c384 = arith.constant 384 : index
    %c0_38 = arith.constant 0 : index
    %135 = vector.load %arg22[%c384, %c0_38] : memref<400x64xbf16, #tpu.memory_space<vmem>>, vector<16x64xbf16>
    tpu.vector_store %arg22[%c384, %c0_38], %134 {strides = array<i32>} : memref<400x64xbf16, #tpu.memory_space<vmem>>, vector<16x64xbf16>,
    %c0_39 = arith.constant 0 : index
    %c0_40 = arith.constant 0 : index
    %136 = vector.load %arg22[%c0_39, %c0_40] : memref<400x64xbf16, #tpu.memory_space<vmem>>, vector<400x64xbf16>
    %cst_41 = arith.constant dense<0.000000e+00> : vector<400x64xf32>
    %137 = tpu.matmul %136, %34, %cst_41 {dimension_numbers = #tpu.dot_dimension_numbers<[1], [0], [0], [1], [0, 0, 1, 1], [], []>} : vector<400x64xbf16>, vector<64x64xbf16>, vector<400x64xf32> -> vector<400x64xf32>
    %138 = vector.extract_strided_slice %137 {offsets = [0, 0], sizes = [16, 64], strides = [1, 1]} : vector<400x64xf32> to vector<16x64xf32>
    %139 = vector.extract_strided_slice %137 {offsets = [16, 0], sizes = [16, 64], strides = [1, 1]} : vector<400x64xf32> to vector<16x64xf32>
    %140 = vector.extract_strided_slice %137 {offsets = [32, 0], sizes = [16, 64], strides = [1, 1]} : vector<400x64xf32> to vector<16x64xf32>
    %141 = vector.extract_strided_slice %137 {offsets = [48, 0], sizes = [16, 64], strides = [1, 1]} : vector<400x64xf32> to vector<16x64xf32>
    %142 = vector.extract_strided_slice %137 {offsets = [64, 0], sizes = [16, 64], strides = [1, 1]} : vector<400x64xf32> to vector<16x64xf32>
    %143 = arith.maximumf %138, %139 : vector<16x64xf32>
    %144 = arith.maximumf %143, %140 : vector<16x64xf32>
    %145 = arith.maximumf %144, %141 : vector<16x64xf32>
    %146 = arith.maximumf %145, %142 : vector<16x64xf32>
    %147 = arith.subf %138, %146 : vector<16x64xf32>
    %148 = math.exp %147 : vector<16x64xf32>
    %149 = arith.subf %139, %146 : vector<16x64xf32>
    %150 = math.exp %149 : vector<16x64xf32>
    %151 = arith.subf %140, %146 : vector<16x64xf32>
    %152 = math.exp %151 : vector<16x64xf32>
    %153 = arith.subf %141, %146 : vector<16x64xf32>
    %154 = math.exp %153 : vector<16x64xf32>
    %155 = arith.subf %142, %146 : vector<16x64xf32>
    %156 = math.exp %155 : vector<16x64xf32>
    %157 = arith.addf %148, %150 : vector<16x64xf32>
    %158 = arith.addf %157, %152 : vector<16x64xf32>
    %159 = arith.addf %158, %154 : vector<16x64xf32>
    %160 = arith.addf %159, %156 : vector<16x64xf32>
    %161 = tpu.reciprocal %160 : vector<16x64xf32> -> vector<16x64xf32>
    %162 = arith.mulf %148, %56 : vector<16x64xf32>
    %163 = arith.mulf %150, %57 : vector<16x64xf32>
    %164 = arith.addf %162, %163 : vector<16x64xf32>
    %165 = arith.mulf %152, %58 : vector<16x64xf32>
    %166 = arith.addf %164, %165 : vector<16x64xf32>
    %167 = arith.mulf %154, %59 : vector<16x64xf32>
    %168 = arith.addf %166, %167 : vector<16x64xf32>
    %169 = arith.mulf %156, %60 : vector<16x64xf32>
    %170 = arith.addf %168, %169 : vector<16x64xf32>
    %171 = arith.mulf %170, %161 : vector<16x64xf32>
    %172 = arith.truncf %171 : vector<16x64xf32> to vector<16x64xbf16>
    %c0_42 = arith.constant 0 : index
    %c0_43 = arith.constant 0 : index
    %173 = vector.load %arg23[%c0_42, %c0_43] : memref<80x64xbf16, #tpu.memory_space<vmem>>, vector<16x64xbf16>
    tpu.vector_store %arg23[%c0_42, %c0_43], %172 {strides = array<i32>} : memref<80x64xbf16, #tpu.memory_space<vmem>>, vector<16x64xbf16>,
    %174 = vector.extract_strided_slice %137 {offsets = [80, 0], sizes = [16, 64], strides = [1, 1]} : vector<400x64xf32> to vector<16x64xf32>
    %175 = vector.extract_strided_slice %137 {offsets = [96, 0], sizes = [16, 64], strides = [1, 1]} : vector<400x64xf32> to vector<16x64xf32>
    %176 = vector.extract_strided_slice %137 {offsets = [112, 0], sizes = [16, 64], strides = [1, 1]} : vector<400x64xf32> to vector<16x64xf32>
    %177 = vector.extract_strided_slice %137 {offsets = [128, 0], sizes = [16, 64], strides = [1, 1]} : vector<400x64xf32> to vector<16x64xf32>
    %178 = vector.extract_strided_slice %137 {offsets = [144, 0], sizes = [16, 64], strides = [1, 1]} : vector<400x64xf32> to vector<16x64xf32>
    %179 = arith.maximumf %174, %175 : vector<16x64xf32>
    %180 = arith.maximumf %179, %176 : vector<16x64xf32>
    %181 = arith.maximumf %180, %177 : vector<16x64xf32>
    %182 = arith.maximumf %181, %178 : vector<16x64xf32>
    %183 = arith.subf %174, %182 : vector<16x64xf32>
    %184 = math.exp %183 : vector<16x64xf32>
    %185 = arith.subf %175, %182 : vector<16x64xf32>
    %186 = math.exp %185 : vector<16x64xf32>
    %187 = arith.subf %176, %182 : vector<16x64xf32>
    %188 = math.exp %187 : vector<16x64xf32>
    %189 = arith.subf %177, %182 : vector<16x64xf32>
    %190 = math.exp %189 : vector<16x64xf32>
    %191 = arith.subf %178, %182 : vector<16x64xf32>
    %192 = math.exp %191 : vector<16x64xf32>
    %193 = arith.addf %184, %186 : vector<16x64xf32>
    %194 = arith.addf %193, %188 : vector<16x64xf32>
    %195 = arith.addf %194, %190 : vector<16x64xf32>
    %196 = arith.addf %195, %192 : vector<16x64xf32>
    %197 = tpu.reciprocal %196 : vector<16x64xf32> -> vector<16x64xf32>
    %198 = arith.mulf %184, %56 : vector<16x64xf32>
    %199 = arith.mulf %186, %57 : vector<16x64xf32>
    %200 = arith.addf %198, %199 : vector<16x64xf32>
    %201 = arith.mulf %188, %58 : vector<16x64xf32>
    %202 = arith.addf %200, %201 : vector<16x64xf32>
    %203 = arith.mulf %190, %59 : vector<16x64xf32>
    %204 = arith.addf %202, %203 : vector<16x64xf32>
    %205 = arith.mulf %192, %60 : vector<16x64xf32>
    %206 = arith.addf %204, %205 : vector<16x64xf32>
    %207 = arith.mulf %206, %197 : vector<16x64xf32>
    %208 = arith.truncf %207 : vector<16x64xf32> to vector<16x64xbf16>
    %c16_44 = arith.constant 16 : index
    %c0_45 = arith.constant 0 : index
    %209 = vector.load %arg23[%c16_44, %c0_45] : memref<80x64xbf16, #tpu.memory_space<vmem>>, vector<16x64xbf16>
    tpu.vector_store %arg23[%c16_44, %c0_45], %208 {strides = array<i32>} : memref<80x64xbf16, #tpu.memory_space<vmem>>, vector<16x64xbf16>,
    %210 = vector.extract_strided_slice %137 {offsets = [160, 0], sizes = [16, 64], strides = [1, 1]} : vector<400x64xf32> to vector<16x64xf32>
    %211 = vector.extract_strided_slice %137 {offsets = [176, 0], sizes = [16, 64], strides = [1, 1]} : vector<400x64xf32> to vector<16x64xf32>
    %212 = vector.extract_strided_slice %137 {offsets = [192, 0], sizes = [16, 64], strides = [1, 1]} : vector<400x64xf32> to vector<16x64xf32>
    %213 = vector.extract_strided_slice %137 {offsets = [208, 0], sizes = [16, 64], strides = [1, 1]} : vector<400x64xf32> to vector<16x64xf32>
    %214 = vector.extract_strided_slice %137 {offsets = [224, 0], sizes = [16, 64], strides = [1, 1]} : vector<400x64xf32> to vector<16x64xf32>
    %215 = arith.maximumf %210, %211 : vector<16x64xf32>
    %216 = arith.maximumf %215, %212 : vector<16x64xf32>
    %217 = arith.maximumf %216, %213 : vector<16x64xf32>
    %218 = arith.maximumf %217, %214 : vector<16x64xf32>
    %219 = arith.subf %210, %218 : vector<16x64xf32>
    %220 = math.exp %219 : vector<16x64xf32>
    %221 = arith.subf %211, %218 : vector<16x64xf32>
    %222 = math.exp %221 : vector<16x64xf32>
    %223 = arith.subf %212, %218 : vector<16x64xf32>
    %224 = math.exp %223 : vector<16x64xf32>
    %225 = arith.subf %213, %218 : vector<16x64xf32>
    %226 = math.exp %225 : vector<16x64xf32>
    %227 = arith.subf %214, %218 : vector<16x64xf32>
    %228 = math.exp %227 : vector<16x64xf32>
    %229 = arith.addf %220, %222 : vector<16x64xf32>
    %230 = arith.addf %229, %224 : vector<16x64xf32>
    %231 = arith.addf %230, %226 : vector<16x64xf32>
    %232 = arith.addf %231, %228 : vector<16x64xf32>
    %233 = tpu.reciprocal %232 : vector<16x64xf32> -> vector<16x64xf32>
    %234 = arith.mulf %220, %56 : vector<16x64xf32>
    %235 = arith.mulf %222, %57 : vector<16x64xf32>
    %236 = arith.addf %234, %235 : vector<16x64xf32>
    %237 = arith.mulf %224, %58 : vector<16x64xf32>
    %238 = arith.addf %236, %237 : vector<16x64xf32>
    %239 = arith.mulf %226, %59 : vector<16x64xf32>
    %240 = arith.addf %238, %239 : vector<16x64xf32>
    %241 = arith.mulf %228, %60 : vector<16x64xf32>
    %242 = arith.addf %240, %241 : vector<16x64xf32>
    %243 = arith.mulf %242, %233 : vector<16x64xf32>
    %244 = arith.truncf %243 : vector<16x64xf32> to vector<16x64xbf16>
    %c32_46 = arith.constant 32 : index
    %c0_47 = arith.constant 0 : index
    %245 = vector.load %arg23[%c32_46, %c0_47] : memref<80x64xbf16, #tpu.memory_space<vmem>>, vector<16x64xbf16>
    tpu.vector_store %arg23[%c32_46, %c0_47], %244 {strides = array<i32>} : memref<80x64xbf16, #tpu.memory_space<vmem>>, vector<16x64xbf16>,
    %246 = vector.extract_strided_slice %137 {offsets = [240, 0], sizes = [16, 64], strides = [1, 1]} : vector<400x64xf32> to vector<16x64xf32>
    %247 = vector.extract_strided_slice %137 {offsets = [256, 0], sizes = [16, 64], strides = [1, 1]} : vector<400x64xf32> to vector<16x64xf32>
    %248 = vector.extract_strided_slice %137 {offsets = [272, 0], sizes = [16, 64], strides = [1, 1]} : vector<400x64xf32> to vector<16x64xf32>
    %249 = vector.extract_strided_slice %137 {offsets = [288, 0], sizes = [16, 64], strides = [1, 1]} : vector<400x64xf32> to vector<16x64xf32>
    %250 = vector.extract_strided_slice %137 {offsets = [304, 0], sizes = [16, 64], strides = [1, 1]} : vector<400x64xf32> to vector<16x64xf32>
    %251 = arith.maximumf %246, %247 : vector<16x64xf32>
    %252 = arith.maximumf %251, %248 : vector<16x64xf32>
    %253 = arith.maximumf %252, %249 : vector<16x64xf32>
    %254 = arith.maximumf %253, %250 : vector<16x64xf32>
    %255 = arith.subf %246, %254 : vector<16x64xf32>
    %256 = math.exp %255 : vector<16x64xf32>
    %257 = arith.subf %247, %254 : vector<16x64xf32>
    %258 = math.exp %257 : vector<16x64xf32>
    %259 = arith.subf %248, %254 : vector<16x64xf32>
    %260 = math.exp %259 : vector<16x64xf32>
    %261 = arith.subf %249, %254 : vector<16x64xf32>
    %262 = math.exp %261 : vector<16x64xf32>
    %263 = arith.subf %250, %254 : vector<16x64xf32>
    %264 = math.exp %263 : vector<16x64xf32>
    %265 = arith.addf %256, %258 : vector<16x64xf32>
    %266 = arith.addf %265, %260 : vector<16x64xf32>
    %267 = arith.addf %266, %262 : vector<16x64xf32>
    %268 = arith.addf %267, %264 : vector<16x64xf32>
    %269 = tpu.reciprocal %268 : vector<16x64xf32> -> vector<16x64xf32>
    %270 = arith.mulf %256, %56 : vector<16x64xf32>
    %271 = arith.mulf %258, %57 : vector<16x64xf32>
    %272 = arith.addf %270, %271 : vector<16x64xf32>
    %273 = arith.mulf %260, %58 : vector<16x64xf32>
    %274 = arith.addf %272, %273 : vector<16x64xf32>
    %275 = arith.mulf %262, %59 : vector<16x64xf32>
    %276 = arith.addf %274, %275 : vector<16x64xf32>
    %277 = arith.mulf %264, %60 : vector<16x64xf32>
    %278 = arith.addf %276, %277 : vector<16x64xf32>
    %279 = arith.mulf %278, %269 : vector<16x64xf32>
    %280 = arith.truncf %279 : vector<16x64xf32> to vector<16x64xbf16>
    %c48_48 = arith.constant 48 : index
    %c0_49 = arith.constant 0 : index
    %281 = vector.load %arg23[%c48_48, %c0_49] : memref<80x64xbf16, #tpu.memory_space<vmem>>, vector<16x64xbf16>
    tpu.vector_store %arg23[%c48_48, %c0_49], %280 {strides = array<i32>} : memref<80x64xbf16, #tpu.memory_space<vmem>>, vector<16x64xbf16>,
    %282 = vector.extract_strided_slice %137 {offsets = [320, 0], sizes = [16, 64], strides = [1, 1]} : vector<400x64xf32> to vector<16x64xf32>
    %283 = vector.extract_strided_slice %137 {offsets = [336, 0], sizes = [16, 64], strides = [1, 1]} : vector<400x64xf32> to vector<16x64xf32>
    %284 = vector.extract_strided_slice %137 {offsets = [352, 0], sizes = [16, 64], strides = [1, 1]} : vector<400x64xf32> to vector<16x64xf32>
    %285 = vector.extract_strided_slice %137 {offsets = [368, 0], sizes = [16, 64], strides = [1, 1]} : vector<400x64xf32> to vector<16x64xf32>
    %286 = vector.extract_strided_slice %137 {offsets = [384, 0], sizes = [16, 64], strides = [1, 1]} : vector<400x64xf32> to vector<16x64xf32>
    %287 = arith.maximumf %282, %283 : vector<16x64xf32>
    %288 = arith.maximumf %287, %284 : vector<16x64xf32>
    %289 = arith.maximumf %288, %285 : vector<16x64xf32>
    %290 = arith.maximumf %289, %286 : vector<16x64xf32>
    %291 = arith.subf %282, %290 : vector<16x64xf32>
    %292 = math.exp %291 : vector<16x64xf32>
    %293 = arith.subf %283, %290 : vector<16x64xf32>
    %294 = math.exp %293 : vector<16x64xf32>
    %295 = arith.subf %284, %290 : vector<16x64xf32>
    %296 = math.exp %295 : vector<16x64xf32>
    %297 = arith.subf %285, %290 : vector<16x64xf32>
    %298 = math.exp %297 : vector<16x64xf32>
    %299 = arith.subf %286, %290 : vector<16x64xf32>
    %300 = math.exp %299 : vector<16x64xf32>
    %301 = arith.addf %292, %294 : vector<16x64xf32>
    %302 = arith.addf %301, %296 : vector<16x64xf32>
    %303 = arith.addf %302, %298 : vector<16x64xf32>
    %304 = arith.addf %303, %300 : vector<16x64xf32>
    %305 = tpu.reciprocal %304 : vector<16x64xf32> -> vector<16x64xf32>
    %306 = arith.mulf %292, %56 : vector<16x64xf32>
    %307 = arith.mulf %294, %57 : vector<16x64xf32>
    %308 = arith.addf %306, %307 : vector<16x64xf32>
    %309 = arith.mulf %296, %58 : vector<16x64xf32>
    %310 = arith.addf %308, %309 : vector<16x64xf32>
    %311 = arith.mulf %298, %59 : vector<16x64xf32>
    %312 = arith.addf %310, %311 : vector<16x64xf32>
    %313 = arith.mulf %300, %60 : vector<16x64xf32>
    %314 = arith.addf %312, %313 : vector<16x64xf32>
    %315 = arith.mulf %314, %305 : vector<16x64xf32>
    %316 = arith.truncf %315 : vector<16x64xf32> to vector<16x64xbf16>
    %c64_50 = arith.constant 64 : index
    %c0_51 = arith.constant 0 : index
    %317 = vector.load %arg23[%c64_50, %c0_51] : memref<80x64xbf16, #tpu.memory_space<vmem>>, vector<16x64xbf16>
    tpu.vector_store %arg23[%c64_50, %c0_51], %316 {strides = array<i32>} : memref<80x64xbf16, #tpu.memory_space<vmem>>, vector<16x64xbf16>,
    %c0_52 = arith.constant 0 : index
    %c0_53 = arith.constant 0 : index
    %318 = vector.load %arg23[%c0_52, %c0_53] : memref<80x64xbf16, #tpu.memory_space<vmem>>, vector<80x64xbf16>
    %c0_54 = arith.constant 0 : index
    %c0_55 = arith.constant 0 : index
    %c0_56 = arith.constant 0 : index
    %319 = vector.load %arg6[%c0_54, %c0_55, %c0_56] : memref<2x64x64xbf16, #tpu.memory_space<vmem>>, vector<1x64x64xbf16>
    %320 = vector.shape_cast %319 : vector<1x64x64xbf16> to vector<64x64xbf16>
    %cst_57 = arith.constant dense<0.000000e+00> : vector<80x64xf32>
    %321 = tpu.matmul %318, %320, %cst_57 {dimension_numbers = #tpu.dot_dimension_numbers<[1], [0], [0], [1], [0, 0, 1, 1], [], []>} : vector<80x64xbf16>, vector<64x64xbf16>, vector<80x64xf32> -> vector<80x64xf32>
    %c0_58 = arith.constant 0 : index
    %c0_59 = arith.constant 0 : index
    %c0_60 = arith.constant 0 : index
    %322 = vector.load %arg7[%c0_58, %c0_59, %c0_60] : memref<2x1x64xf32, #tpu.memory_space<vmem>>, vector<1x1x64xf32>
    %323 = vector.shape_cast %322 : vector<1x1x64xf32> to vector<1x64xf32>
    %324 = vector.broadcast %323 : vector<1x64xf32> to vector<80x64xf32>
    %325 = arith.addf %321, %324 : vector<80x64xf32>
    %326 = arith.addf %33, %325 : vector<80x64xf32>
    %c0_61 = arith.constant 0 : index
    %c0_62 = arith.constant 0 : index
    %c0_63 = arith.constant 0 : index
    %327 = vector.load %arg8[%c0_61, %c0_62, %c0_63] : memref<2x1x64xf32, #tpu.memory_space<vmem>>, vector<1x1x64xf32>
    %328 = vector.shape_cast %327 : vector<1x1x64xf32> to vector<1x64xf32>
    %c0_64 = arith.constant 0 : index
    %c0_65 = arith.constant 0 : index
    %c0_66 = arith.constant 0 : index
    %329 = vector.load %arg9[%c0_64, %c0_65, %c0_66] : memref<2x1x64xf32, #tpu.memory_space<vmem>>, vector<1x1x64xf32>
    %330 = vector.shape_cast %329 : vector<1x1x64xf32> to vector<1x64xf32>
    %cst_67 = arith.constant dense<0.000000e+00> : vector<80xf32>
    %331 = vector.multi_reduction <add>, %326, %cst_67 [1] : vector<80x64xf32> to vector<80xf32>
    %332 = vector.shape_cast %331 : vector<80xf32> to vector<80x1xf32>
    %cst_68 = arith.constant 6.400000e+01 : f32
    %333 = vector.broadcast %cst_68 : f32 to vector<80x1xf32>
    %334 = arith.divf %332, %333 : vector<80x1xf32>
    %335 = vector.broadcast %334 : vector<80x1xf32> to vector<80x64xf32>
    %336 = arith.subf %326, %335 : vector<80x64xf32>
    %337 = arith.mulf %336, %336 : vector<80x64xf32>
    %cst_69 = arith.constant dense<0.000000e+00> : vector<80xf32>
    %338 = vector.multi_reduction <add>, %337, %cst_69 [1] : vector<80x64xf32> to vector<80xf32>
    %339 = vector.shape_cast %338 : vector<80xf32> to vector<80x1xf32>
    %cst_70 = arith.constant 6.400000e+01 : f32
    %340 = vector.broadcast %cst_70 : f32 to vector<80x1xf32>
    %341 = arith.divf %339, %340 : vector<80x1xf32>
    %342 = vector.broadcast %334 : vector<80x1xf32> to vector<80x64xf32>
    %343 = arith.subf %326, %342 : vector<80x64xf32>
    %cst_71 = arith.constant 9.99999974E-6 : f32
    %344 = vector.broadcast %cst_71 : f32 to vector<80x1xf32>
    %345 = arith.addf %341, %344 : vector<80x1xf32>
    %346 = math.rsqrt %345 : vector<80x1xf32>
    %347 = vector.broadcast %346 : vector<80x1xf32> to vector<80x64xf32>
    %348 = arith.mulf %343, %347 : vector<80x64xf32>
    %349 = vector.broadcast %328 : vector<1x64xf32> to vector<80x64xf32>
    %350 = arith.mulf %348, %349 : vector<80x64xf32>
    %351 = vector.broadcast %330 : vector<1x64xf32> to vector<80x64xf32>
    %352 = arith.addf %350, %351 : vector<80x64xf32>
    %c0_72 = arith.constant 0 : index
    %c0_73 = arith.constant 0 : index
    %c0_74 = arith.constant 0 : index
    %353 = vector.load %arg12[%c0_72, %c0_73, %c0_74] : memref<2x64x128xbf16, #tpu.memory_space<vmem>>, vector<1x64x128xbf16>
    %354 = vector.shape_cast %353 : vector<1x64x128xbf16> to vector<64x128xbf16>
    %355 = arith.truncf %352 : vector<80x64xf32> to vector<80x64xbf16>
    %cst_75 = arith.constant dense<0.000000e+00> : vector<80x128xf32>
    %356 = tpu.matmul %355, %354, %cst_75 {dimension_numbers = #tpu.dot_dimension_numbers<[1], [0], [0], [1], [0, 0, 1, 1], [], []>} : vector<80x64xbf16>, vector<64x128xbf16>, vector<80x128xf32> -> vector<80x128xf32>
    %c0_76 = arith.constant 0 : index
    %c0_77 = arith.constant 0 : index
    %c0_78 = arith.constant 0 : index
    %357 = vector.load %arg13[%c0_76, %c0_77, %c0_78] : memref<2x1x128xf32, #tpu.memory_space<vmem>>, vector<1x1x128xf32>
    %358 = vector.shape_cast %357 : vector<1x1x128xf32> to vector<1x128xf32>
    %359 = vector.broadcast %358 : vector<1x128xf32> to vector<80x128xf32>
    %360 = arith.addf %356, %359 : vector<80x128xf32>
    %cst_79 = arith.constant 0.000000e+00 : f32
    %361 = vector.broadcast %cst_79 : f32 to vector<80x128xf32>
    %362 = arith.maximumf %360, %361 : vector<80x128xf32>
    %c0_80 = arith.constant 0 : index
    %c0_81 = arith.constant 0 : index
    %c0_82 = arith.constant 0 : index
    %363 = vector.load %arg14[%c0_80, %c0_81, %c0_82] : memref<2x128x64xbf16, #tpu.memory_space<vmem>>, vector<1x128x64xbf16>
    %364 = vector.shape_cast %363 : vector<1x128x64xbf16> to vector<128x64xbf16>
    %365 = arith.truncf %362 : vector<80x128xf32> to vector<80x128xbf16>
    %cst_83 = arith.constant dense<0.000000e+00> : vector<80x64xf32>
    %366 = tpu.matmul %365, %364, %cst_83 {dimension_numbers = #tpu.dot_dimension_numbers<[1], [0], [0], [1], [0, 0, 1, 1], [], []>} : vector<80x128xbf16>, vector<128x64xbf16>, vector<80x64xf32> -> vector<80x64xf32>
    %c0_84 = arith.constant 0 : index
    %c0_85 = arith.constant 0 : index
    %c0_86 = arith.constant 0 : index
    %367 = vector.load %arg15[%c0_84, %c0_85, %c0_86] : memref<2x1x64xf32, #tpu.memory_space<vmem>>, vector<1x1x64xf32>
    %368 = vector.shape_cast %367 : vector<1x1x64xf32> to vector<1x64xf32>
    %369 = vector.broadcast %368 : vector<1x64xf32> to vector<80x64xf32>
    %370 = arith.addf %366, %369 : vector<80x64xf32>
    %371 = arith.addf %352, %370 : vector<80x64xf32>
    %c0_87 = arith.constant 0 : index
    %c0_88 = arith.constant 0 : index
    %c0_89 = arith.constant 0 : index
    %372 = vector.load %arg10[%c0_87, %c0_88, %c0_89] : memref<2x1x64xf32, #tpu.memory_space<vmem>>, vector<1x1x64xf32>
    %373 = vector.shape_cast %372 : vector<1x1x64xf32> to vector<1x64xf32>
    %c0_90 = arith.constant 0 : index
    %c0_91 = arith.constant 0 : index
    %c0_92 = arith.constant 0 : index
    %374 = vector.load %arg11[%c0_90, %c0_91, %c0_92] : memref<2x1x64xf32, #tpu.memory_space<vmem>>, vector<1x1x64xf32>
    %375 = vector.shape_cast %374 : vector<1x1x64xf32> to vector<1x64xf32>
    %cst_93 = arith.constant dense<0.000000e+00> : vector<80xf32>
    %376 = vector.multi_reduction <add>, %371, %cst_93 [1] : vector<80x64xf32> to vector<80xf32>
    %377 = vector.shape_cast %376 : vector<80xf32> to vector<80x1xf32>
    %cst_94 = arith.constant 6.400000e+01 : f32
    %378 = vector.broadcast %cst_94 : f32 to vector<80x1xf32>
    %379 = arith.divf %377, %378 : vector<80x1xf32>
    %380 = vector.broadcast %379 : vector<80x1xf32> to vector<80x64xf32>
    %381 = arith.subf %371, %380 : vector<80x64xf32>
    %382 = arith.mulf %381, %381 : vector<80x64xf32>
    %cst_95 = arith.constant dense<0.000000e+00> : vector<80xf32>
    %383 = vector.multi_reduction <add>, %382, %cst_95 [1] : vector<80x64xf32> to vector<80xf32>
    %384 = vector.shape_cast %383 : vector<80xf32> to vector<80x1xf32>
    %cst_96 = arith.constant 6.400000e+01 : f32
    %385 = vector.broadcast %cst_96 : f32 to vector<80x1xf32>
    %386 = arith.divf %384, %385 : vector<80x1xf32>
    %387 = vector.broadcast %379 : vector<80x1xf32> to vector<80x64xf32>
    %388 = arith.subf %371, %387 : vector<80x64xf32>
    %cst_97 = arith.constant 9.99999974E-6 : f32
    %389 = vector.broadcast %cst_97 : f32 to vector<80x1xf32>
    %390 = arith.addf %386, %389 : vector<80x1xf32>
    %391 = math.rsqrt %390 : vector<80x1xf32>
    %392 = vector.broadcast %391 : vector<80x1xf32> to vector<80x64xf32>
    %393 = arith.mulf %388, %392 : vector<80x64xf32>
    %394 = vector.broadcast %373 : vector<1x64xf32> to vector<80x64xf32>
    %395 = arith.mulf %393, %394 : vector<80x64xf32>
    %396 = vector.broadcast %375 : vector<1x64xf32> to vector<80x64xf32>
    %397 = arith.addf %395, %396 : vector<80x64xf32>
    %c1 = arith.constant 1 : index
    %c0_98 = arith.constant 0 : index
    %c0_99 = arith.constant 0 : index
    %398 = vector.load %arg4[%c1, %c0_98, %c0_99] : memref<2x64x192xbf16, #tpu.memory_space<vmem>>, vector<1x64x192xbf16>
    %399 = vector.shape_cast %398 : vector<1x64x192xbf16> to vector<64x192xbf16>
    %400 = arith.truncf %397 : vector<80x64xf32> to vector<80x64xbf16>
    %cst_100 = arith.constant dense<0.000000e+00> : vector<80x192xf32>
    %401 = tpu.matmul %400, %399, %cst_100 {dimension_numbers = #tpu.dot_dimension_numbers<[1], [0], [0], [1], [0, 0, 1, 1], [], []>} : vector<80x64xbf16>, vector<64x192xbf16>, vector<80x192xf32> -> vector<80x192xf32>
    %c1_101 = arith.constant 1 : index
    %c0_102 = arith.constant 0 : index
    %c0_103 = arith.constant 0 : index
    %402 = vector.load %arg5[%c1_101, %c0_102, %c0_103] : memref<2x1x192xf32, #tpu.memory_space<vmem>>, vector<1x1x192xf32>
    %403 = vector.shape_cast %402 : vector<1x1x192xf32> to vector<1x192xf32>
    %404 = vector.broadcast %403 : vector<1x192xf32> to vector<80x192xf32>
    %405 = arith.addf %401, %404 : vector<80x192xf32>
    %406 = vector.extract_strided_slice %405 {offsets = [0, 0], sizes = [80, 64], strides = [1, 1]} : vector<80x192xf32> to vector<80x64xf32>
    %407 = vector.extract_strided_slice %405 {offsets = [0, 64], sizes = [80, 64], strides = [1, 1]} : vector<80x192xf32> to vector<80x64xf32>
    %408 = vector.extract_strided_slice %405 {offsets = [0, 128], sizes = [80, 64], strides = [1, 1]} : vector<80x192xf32> to vector<80x64xf32>
    %409 = vector.extract_strided_slice %406 {offsets = [0, 0], sizes = [16, 64], strides = [1, 1]} : vector<80x64xf32> to vector<16x64xf32>
    %410 = vector.extract_strided_slice %406 {offsets = [16, 0], sizes = [16, 64], strides = [1, 1]} : vector<80x64xf32> to vector<16x64xf32>
    %411 = vector.extract_strided_slice %406 {offsets = [32, 0], sizes = [16, 64], strides = [1, 1]} : vector<80x64xf32> to vector<16x64xf32>
    %412 = vector.extract_strided_slice %406 {offsets = [48, 0], sizes = [16, 64], strides = [1, 1]} : vector<80x64xf32> to vector<16x64xf32>
    %413 = vector.extract_strided_slice %406 {offsets = [64, 0], sizes = [16, 64], strides = [1, 1]} : vector<80x64xf32> to vector<16x64xf32>
    %414 = vector.extract_strided_slice %407 {offsets = [0, 0], sizes = [16, 64], strides = [1, 1]} : vector<80x64xf32> to vector<16x64xf32>
    %415 = vector.extract_strided_slice %407 {offsets = [16, 0], sizes = [16, 64], strides = [1, 1]} : vector<80x64xf32> to vector<16x64xf32>
    %416 = vector.extract_strided_slice %407 {offsets = [32, 0], sizes = [16, 64], strides = [1, 1]} : vector<80x64xf32> to vector<16x64xf32>
    %417 = vector.extract_strided_slice %407 {offsets = [48, 0], sizes = [16, 64], strides = [1, 1]} : vector<80x64xf32> to vector<16x64xf32>
    %418 = vector.extract_strided_slice %407 {offsets = [64, 0], sizes = [16, 64], strides = [1, 1]} : vector<80x64xf32> to vector<16x64xf32>
    %419 = vector.extract_strided_slice %408 {offsets = [0, 0], sizes = [16, 64], strides = [1, 1]} : vector<80x64xf32> to vector<16x64xf32>
    %420 = vector.extract_strided_slice %408 {offsets = [16, 0], sizes = [16, 64], strides = [1, 1]} : vector<80x64xf32> to vector<16x64xf32>
    %421 = vector.extract_strided_slice %408 {offsets = [32, 0], sizes = [16, 64], strides = [1, 1]} : vector<80x64xf32> to vector<16x64xf32>
    %422 = vector.extract_strided_slice %408 {offsets = [48, 0], sizes = [16, 64], strides = [1, 1]} : vector<80x64xf32> to vector<16x64xf32>
    %423 = vector.extract_strided_slice %408 {offsets = [64, 0], sizes = [16, 64], strides = [1, 1]} : vector<80x64xf32> to vector<16x64xf32>
    %424 = arith.mulf %409, %414 : vector<16x64xf32>
    %425 = arith.truncf %424 : vector<16x64xf32> to vector<16x64xbf16>
    %c0_104 = arith.constant 0 : index
    %c0_105 = arith.constant 0 : index
    %426 = vector.load %arg22[%c0_104, %c0_105] : memref<400x64xbf16, #tpu.memory_space<vmem>>, vector<16x64xbf16>
    tpu.vector_store %arg22[%c0_104, %c0_105], %425 {strides = array<i32>} : memref<400x64xbf16, #tpu.memory_space<vmem>>, vector<16x64xbf16>,
    %427 = arith.mulf %409, %415 : vector<16x64xf32>
    %428 = arith.truncf %427 : vector<16x64xf32> to vector<16x64xbf16>
    %c16_106 = arith.constant 16 : index
    %c0_107 = arith.constant 0 : index
    %429 = vector.load %arg22[%c16_106, %c0_107] : memref<400x64xbf16, #tpu.memory_space<vmem>>, vector<16x64xbf16>
    tpu.vector_store %arg22[%c16_106, %c0_107], %428 {strides = array<i32>} : memref<400x64xbf16, #tpu.memory_space<vmem>>, vector<16x64xbf16>,
    %430 = arith.mulf %409, %416 : vector<16x64xf32>
    %431 = arith.truncf %430 : vector<16x64xf32> to vector<16x64xbf16>
    %c32_108 = arith.constant 32 : index
    %c0_109 = arith.constant 0 : index
    %432 = vector.load %arg22[%c32_108, %c0_109] : memref<400x64xbf16, #tpu.memory_space<vmem>>, vector<16x64xbf16>
    tpu.vector_store %arg22[%c32_108, %c0_109], %431 {strides = array<i32>} : memref<400x64xbf16, #tpu.memory_space<vmem>>, vector<16x64xbf16>,
    %433 = arith.mulf %409, %417 : vector<16x64xf32>
    %434 = arith.truncf %433 : vector<16x64xf32> to vector<16x64xbf16>
    %c48_110 = arith.constant 48 : index
    %c0_111 = arith.constant 0 : index
    %435 = vector.load %arg22[%c48_110, %c0_111] : memref<400x64xbf16, #tpu.memory_space<vmem>>, vector<16x64xbf16>
    tpu.vector_store %arg22[%c48_110, %c0_111], %434 {strides = array<i32>} : memref<400x64xbf16, #tpu.memory_space<vmem>>, vector<16x64xbf16>,
    %436 = arith.mulf %409, %418 : vector<16x64xf32>
    %437 = arith.truncf %436 : vector<16x64xf32> to vector<16x64xbf16>
    %c64_112 = arith.constant 64 : index
    %c0_113 = arith.constant 0 : index
    %438 = vector.load %arg22[%c64_112, %c0_113] : memref<400x64xbf16, #tpu.memory_space<vmem>>, vector<16x64xbf16>
    tpu.vector_store %arg22[%c64_112, %c0_113], %437 {strides = array<i32>} : memref<400x64xbf16, #tpu.memory_space<vmem>>, vector<16x64xbf16>,
    %439 = arith.mulf %410, %414 : vector<16x64xf32>
    %440 = arith.truncf %439 : vector<16x64xf32> to vector<16x64xbf16>
    %c80_114 = arith.constant 80 : index
    %c0_115 = arith.constant 0 : index
    %441 = vector.load %arg22[%c80_114, %c0_115] : memref<400x64xbf16, #tpu.memory_space<vmem>>, vector<16x64xbf16>
    tpu.vector_store %arg22[%c80_114, %c0_115], %440 {strides = array<i32>} : memref<400x64xbf16, #tpu.memory_space<vmem>>, vector<16x64xbf16>,
    %442 = arith.mulf %410, %415 : vector<16x64xf32>
    %443 = arith.truncf %442 : vector<16x64xf32> to vector<16x64xbf16>
    %c96_116 = arith.constant 96 : index
    %c0_117 = arith.constant 0 : index
    %444 = vector.load %arg22[%c96_116, %c0_117] : memref<400x64xbf16, #tpu.memory_space<vmem>>, vector<16x64xbf16>
    tpu.vector_store %arg22[%c96_116, %c0_117], %443 {strides = array<i32>} : memref<400x64xbf16, #tpu.memory_space<vmem>>, vector<16x64xbf16>,
    %445 = arith.mulf %410, %416 : vector<16x64xf32>
    %446 = arith.truncf %445 : vector<16x64xf32> to vector<16x64xbf16>
    %c112_118 = arith.constant 112 : index
    %c0_119 = arith.constant 0 : index
    %447 = vector.load %arg22[%c112_118, %c0_119] : memref<400x64xbf16, #tpu.memory_space<vmem>>, vector<16x64xbf16>
    tpu.vector_store %arg22[%c112_118, %c0_119], %446 {strides = array<i32>} : memref<400x64xbf16, #tpu.memory_space<vmem>>, vector<16x64xbf16>,
    %448 = arith.mulf %410, %417 : vector<16x64xf32>
    %449 = arith.truncf %448 : vector<16x64xf32> to vector<16x64xbf16>
    %c128_120 = arith.constant 128 : index
    %c0_121 = arith.constant 0 : index
    %450 = vector.load %arg22[%c128_120, %c0_121] : memref<400x64xbf16, #tpu.memory_space<vmem>>, vector<16x64xbf16>
    tpu.vector_store %arg22[%c128_120, %c0_121], %449 {strides = array<i32>} : memref<400x64xbf16, #tpu.memory_space<vmem>>, vector<16x64xbf16>,
    %451 = arith.mulf %410, %418 : vector<16x64xf32>
    %452 = arith.truncf %451 : vector<16x64xf32> to vector<16x64xbf16>
    %c144_122 = arith.constant 144 : index
    %c0_123 = arith.constant 0 : index
    %453 = vector.load %arg22[%c144_122, %c0_123] : memref<400x64xbf16, #tpu.memory_space<vmem>>, vector<16x64xbf16>
    tpu.vector_store %arg22[%c144_122, %c0_123], %452 {strides = array<i32>} : memref<400x64xbf16, #tpu.memory_space<vmem>>, vector<16x64xbf16>,
    %454 = arith.mulf %411, %414 : vector<16x64xf32>
    %455 = arith.truncf %454 : vector<16x64xf32> to vector<16x64xbf16>
    %c160_124 = arith.constant 160 : index
    %c0_125 = arith.constant 0 : index
    %456 = vector.load %arg22[%c160_124, %c0_125] : memref<400x64xbf16, #tpu.memory_space<vmem>>, vector<16x64xbf16>
    tpu.vector_store %arg22[%c160_124, %c0_125], %455 {strides = array<i32>} : memref<400x64xbf16, #tpu.memory_space<vmem>>, vector<16x64xbf16>,
    %457 = arith.mulf %411, %415 : vector<16x64xf32>
    %458 = arith.truncf %457 : vector<16x64xf32> to vector<16x64xbf16>
    %c176_126 = arith.constant 176 : index
    %c0_127 = arith.constant 0 : index
    %459 = vector.load %arg22[%c176_126, %c0_127] : memref<400x64xbf16, #tpu.memory_space<vmem>>, vector<16x64xbf16>
    tpu.vector_store %arg22[%c176_126, %c0_127], %458 {strides = array<i32>} : memref<400x64xbf16, #tpu.memory_space<vmem>>, vector<16x64xbf16>,
    %460 = arith.mulf %411, %416 : vector<16x64xf32>
    %461 = arith.truncf %460 : vector<16x64xf32> to vector<16x64xbf16>
    %c192_128 = arith.constant 192 : index
    %c0_129 = arith.constant 0 : index
    %462 = vector.load %arg22[%c192_128, %c0_129] : memref<400x64xbf16, #tpu.memory_space<vmem>>, vector<16x64xbf16>
    tpu.vector_store %arg22[%c192_128, %c0_129], %461 {strides = array<i32>} : memref<400x64xbf16, #tpu.memory_space<vmem>>, vector<16x64xbf16>,
    %463 = arith.mulf %411, %417 : vector<16x64xf32>
    %464 = arith.truncf %463 : vector<16x64xf32> to vector<16x64xbf16>
    %c208_130 = arith.constant 208 : index
    %c0_131 = arith.constant 0 : index
    %465 = vector.load %arg22[%c208_130, %c0_131] : memref<400x64xbf16, #tpu.memory_space<vmem>>, vector<16x64xbf16>
    tpu.vector_store %arg22[%c208_130, %c0_131], %464 {strides = array<i32>} : memref<400x64xbf16, #tpu.memory_space<vmem>>, vector<16x64xbf16>,
    %466 = arith.mulf %411, %418 : vector<16x64xf32>
    %467 = arith.truncf %466 : vector<16x64xf32> to vector<16x64xbf16>
    %c224_132 = arith.constant 224 : index
    %c0_133 = arith.constant 0 : index
    %468 = vector.load %arg22[%c224_132, %c0_133] : memref<400x64xbf16, #tpu.memory_space<vmem>>, vector<16x64xbf16>
    tpu.vector_store %arg22[%c224_132, %c0_133], %467 {strides = array<i32>} : memref<400x64xbf16, #tpu.memory_space<vmem>>, vector<16x64xbf16>,
    %469 = arith.mulf %412, %414 : vector<16x64xf32>
    %470 = arith.truncf %469 : vector<16x64xf32> to vector<16x64xbf16>
    %c240_134 = arith.constant 240 : index
    %c0_135 = arith.constant 0 : index
    %471 = vector.load %arg22[%c240_134, %c0_135] : memref<400x64xbf16, #tpu.memory_space<vmem>>, vector<16x64xbf16>
    tpu.vector_store %arg22[%c240_134, %c0_135], %470 {strides = array<i32>} : memref<400x64xbf16, #tpu.memory_space<vmem>>, vector<16x64xbf16>,
    %472 = arith.mulf %412, %415 : vector<16x64xf32>
    %473 = arith.truncf %472 : vector<16x64xf32> to vector<16x64xbf16>
    %c256_136 = arith.constant 256 : index
    %c0_137 = arith.constant 0 : index
    %474 = vector.load %arg22[%c256_136, %c0_137] : memref<400x64xbf16, #tpu.memory_space<vmem>>, vector<16x64xbf16>
    tpu.vector_store %arg22[%c256_136, %c0_137], %473 {strides = array<i32>} : memref<400x64xbf16, #tpu.memory_space<vmem>>, vector<16x64xbf16>,
    %475 = arith.mulf %412, %416 : vector<16x64xf32>
    %476 = arith.truncf %475 : vector<16x64xf32> to vector<16x64xbf16>
    %c272_138 = arith.constant 272 : index
    %c0_139 = arith.constant 0 : index
    %477 = vector.load %arg22[%c272_138, %c0_139] : memref<400x64xbf16, #tpu.memory_space<vmem>>, vector<16x64xbf16>
    tpu.vector_store %arg22[%c272_138, %c0_139], %476 {strides = array<i32>} : memref<400x64xbf16, #tpu.memory_space<vmem>>, vector<16x64xbf16>,
    %478 = arith.mulf %412, %417 : vector<16x64xf32>
    %479 = arith.truncf %478 : vector<16x64xf32> to vector<16x64xbf16>
    %c288_140 = arith.constant 288 : index
    %c0_141 = arith.constant 0 : index
    %480 = vector.load %arg22[%c288_140, %c0_141] : memref<400x64xbf16, #tpu.memory_space<vmem>>, vector<16x64xbf16>
    tpu.vector_store %arg22[%c288_140, %c0_141], %479 {strides = array<i32>} : memref<400x64xbf16, #tpu.memory_space<vmem>>, vector<16x64xbf16>,
    %481 = arith.mulf %412, %418 : vector<16x64xf32>
    %482 = arith.truncf %481 : vector<16x64xf32> to vector<16x64xbf16>
    %c304_142 = arith.constant 304 : index
    %c0_143 = arith.constant 0 : index
    %483 = vector.load %arg22[%c304_142, %c0_143] : memref<400x64xbf16, #tpu.memory_space<vmem>>, vector<16x64xbf16>
    tpu.vector_store %arg22[%c304_142, %c0_143], %482 {strides = array<i32>} : memref<400x64xbf16, #tpu.memory_space<vmem>>, vector<16x64xbf16>,
    %484 = arith.mulf %413, %414 : vector<16x64xf32>
    %485 = arith.truncf %484 : vector<16x64xf32> to vector<16x64xbf16>
    %c320_144 = arith.constant 320 : index
    %c0_145 = arith.constant 0 : index
    %486 = vector.load %arg22[%c320_144, %c0_145] : memref<400x64xbf16, #tpu.memory_space<vmem>>, vector<16x64xbf16>
    tpu.vector_store %arg22[%c320_144, %c0_145], %485 {strides = array<i32>} : memref<400x64xbf16, #tpu.memory_space<vmem>>, vector<16x64xbf16>,
    %487 = arith.mulf %413, %415 : vector<16x64xf32>
    %488 = arith.truncf %487 : vector<16x64xf32> to vector<16x64xbf16>
    %c336_146 = arith.constant 336 : index
    %c0_147 = arith.constant 0 : index
    %489 = vector.load %arg22[%c336_146, %c0_147] : memref<400x64xbf16, #tpu.memory_space<vmem>>, vector<16x64xbf16>
    tpu.vector_store %arg22[%c336_146, %c0_147], %488 {strides = array<i32>} : memref<400x64xbf16, #tpu.memory_space<vmem>>, vector<16x64xbf16>,
    %490 = arith.mulf %413, %416 : vector<16x64xf32>
    %491 = arith.truncf %490 : vector<16x64xf32> to vector<16x64xbf16>
    %c352_148 = arith.constant 352 : index
    %c0_149 = arith.constant 0 : index
    %492 = vector.load %arg22[%c352_148, %c0_149] : memref<400x64xbf16, #tpu.memory_space<vmem>>, vector<16x64xbf16>
    tpu.vector_store %arg22[%c352_148, %c0_149], %491 {strides = array<i32>} : memref<400x64xbf16, #tpu.memory_space<vmem>>, vector<16x64xbf16>,
    %493 = arith.mulf %413, %417 : vector<16x64xf32>
    %494 = arith.truncf %493 : vector<16x64xf32> to vector<16x64xbf16>
    %c368_150 = arith.constant 368 : index
    %c0_151 = arith.constant 0 : index
    %495 = vector.load %arg22[%c368_150, %c0_151] : memref<400x64xbf16, #tpu.memory_space<vmem>>, vector<16x64xbf16>
    tpu.vector_store %arg22[%c368_150, %c0_151], %494 {strides = array<i32>} : memref<400x64xbf16, #tpu.memory_space<vmem>>, vector<16x64xbf16>,
    %496 = arith.mulf %413, %418 : vector<16x64xf32>
    %497 = arith.truncf %496 : vector<16x64xf32> to vector<16x64xbf16>
    %c384_152 = arith.constant 384 : index
    %c0_153 = arith.constant 0 : index
    %498 = vector.load %arg22[%c384_152, %c0_153] : memref<400x64xbf16, #tpu.memory_space<vmem>>, vector<16x64xbf16>
    tpu.vector_store %arg22[%c384_152, %c0_153], %497 {strides = array<i32>} : memref<400x64xbf16, #tpu.memory_space<vmem>>, vector<16x64xbf16>,
    %c0_154 = arith.constant 0 : index
    %c0_155 = arith.constant 0 : index
    %499 = vector.load %arg22[%c0_154, %c0_155] : memref<400x64xbf16, #tpu.memory_space<vmem>>, vector<400x64xbf16>
    %cst_156 = arith.constant dense<0.000000e+00> : vector<400x64xf32>
    %500 = tpu.matmul %499, %34, %cst_156 {dimension_numbers = #tpu.dot_dimension_numbers<[1], [0], [0], [1], [0, 0, 1, 1], [], []>} : vector<400x64xbf16>, vector<64x64xbf16>, vector<400x64xf32> -> vector<400x64xf32>
    %501 = vector.extract_strided_slice %500 {offsets = [0, 0], sizes = [16, 64], strides = [1, 1]} : vector<400x64xf32> to vector<16x64xf32>
    %502 = vector.extract_strided_slice %500 {offsets = [16, 0], sizes = [16, 64], strides = [1, 1]} : vector<400x64xf32> to vector<16x64xf32>
    %503 = vector.extract_strided_slice %500 {offsets = [32, 0], sizes = [16, 64], strides = [1, 1]} : vector<400x64xf32> to vector<16x64xf32>
    %504 = vector.extract_strided_slice %500 {offsets = [48, 0], sizes = [16, 64], strides = [1, 1]} : vector<400x64xf32> to vector<16x64xf32>
    %505 = vector.extract_strided_slice %500 {offsets = [64, 0], sizes = [16, 64], strides = [1, 1]} : vector<400x64xf32> to vector<16x64xf32>
    %506 = arith.maximumf %501, %502 : vector<16x64xf32>
    %507 = arith.maximumf %506, %503 : vector<16x64xf32>
    %508 = arith.maximumf %507, %504 : vector<16x64xf32>
    %509 = arith.maximumf %508, %505 : vector<16x64xf32>
    %510 = arith.subf %501, %509 : vector<16x64xf32>
    %511 = math.exp %510 : vector<16x64xf32>
    %512 = arith.subf %502, %509 : vector<16x64xf32>
    %513 = math.exp %512 : vector<16x64xf32>
    %514 = arith.subf %503, %509 : vector<16x64xf32>
    %515 = math.exp %514 : vector<16x64xf32>
    %516 = arith.subf %504, %509 : vector<16x64xf32>
    %517 = math.exp %516 : vector<16x64xf32>
    %518 = arith.subf %505, %509 : vector<16x64xf32>
    %519 = math.exp %518 : vector<16x64xf32>
    %520 = arith.addf %511, %513 : vector<16x64xf32>
    %521 = arith.addf %520, %515 : vector<16x64xf32>
    %522 = arith.addf %521, %517 : vector<16x64xf32>
    %523 = arith.addf %522, %519 : vector<16x64xf32>
    %524 = tpu.reciprocal %523 : vector<16x64xf32> -> vector<16x64xf32>
    %525 = arith.mulf %511, %419 : vector<16x64xf32>
    %526 = arith.mulf %513, %420 : vector<16x64xf32>
    %527 = arith.addf %525, %526 : vector<16x64xf32>
    %528 = arith.mulf %515, %421 : vector<16x64xf32>
    %529 = arith.addf %527, %528 : vector<16x64xf32>
    %530 = arith.mulf %517, %422 : vector<16x64xf32>
    %531 = arith.addf %529, %530 : vector<16x64xf32>
    %532 = arith.mulf %519, %423 : vector<16x64xf32>
    %533 = arith.addf %531, %532 : vector<16x64xf32>
    %534 = arith.mulf %533, %524 : vector<16x64xf32>
    %535 = arith.truncf %534 : vector<16x64xf32> to vector<16x64xbf16>
    %c0_157 = arith.constant 0 : index
    %c0_158 = arith.constant 0 : index
    %536 = vector.load %arg23[%c0_157, %c0_158] : memref<80x64xbf16, #tpu.memory_space<vmem>>, vector<16x64xbf16>
    tpu.vector_store %arg23[%c0_157, %c0_158], %535 {strides = array<i32>} : memref<80x64xbf16, #tpu.memory_space<vmem>>, vector<16x64xbf16>,
    %537 = vector.extract_strided_slice %500 {offsets = [80, 0], sizes = [16, 64], strides = [1, 1]} : vector<400x64xf32> to vector<16x64xf32>
    %538 = vector.extract_strided_slice %500 {offsets = [96, 0], sizes = [16, 64], strides = [1, 1]} : vector<400x64xf32> to vector<16x64xf32>
    %539 = vector.extract_strided_slice %500 {offsets = [112, 0], sizes = [16, 64], strides = [1, 1]} : vector<400x64xf32> to vector<16x64xf32>
    %540 = vector.extract_strided_slice %500 {offsets = [128, 0], sizes = [16, 64], strides = [1, 1]} : vector<400x64xf32> to vector<16x64xf32>
    %541 = vector.extract_strided_slice %500 {offsets = [144, 0], sizes = [16, 64], strides = [1, 1]} : vector<400x64xf32> to vector<16x64xf32>
    %542 = arith.maximumf %537, %538 : vector<16x64xf32>
    %543 = arith.maximumf %542, %539 : vector<16x64xf32>
    %544 = arith.maximumf %543, %540 : vector<16x64xf32>
    %545 = arith.maximumf %544, %541 : vector<16x64xf32>
    %546 = arith.subf %537, %545 : vector<16x64xf32>
    %547 = math.exp %546 : vector<16x64xf32>
    %548 = arith.subf %538, %545 : vector<16x64xf32>
    %549 = math.exp %548 : vector<16x64xf32>
    %550 = arith.subf %539, %545 : vector<16x64xf32>
    %551 = math.exp %550 : vector<16x64xf32>
    %552 = arith.subf %540, %545 : vector<16x64xf32>
    %553 = math.exp %552 : vector<16x64xf32>
    %554 = arith.subf %541, %545 : vector<16x64xf32>
    %555 = math.exp %554 : vector<16x64xf32>
    %556 = arith.addf %547, %549 : vector<16x64xf32>
    %557 = arith.addf %556, %551 : vector<16x64xf32>
    %558 = arith.addf %557, %553 : vector<16x64xf32>
    %559 = arith.addf %558, %555 : vector<16x64xf32>
    %560 = tpu.reciprocal %559 : vector<16x64xf32> -> vector<16x64xf32>
    %561 = arith.mulf %547, %419 : vector<16x64xf32>
    %562 = arith.mulf %549, %420 : vector<16x64xf32>
    %563 = arith.addf %561, %562 : vector<16x64xf32>
    %564 = arith.mulf %551, %421 : vector<16x64xf32>
    %565 = arith.addf %563, %564 : vector<16x64xf32>
    %566 = arith.mulf %553, %422 : vector<16x64xf32>
    %567 = arith.addf %565, %566 : vector<16x64xf32>
    %568 = arith.mulf %555, %423 : vector<16x64xf32>
    %569 = arith.addf %567, %568 : vector<16x64xf32>
    %570 = arith.mulf %569, %560 : vector<16x64xf32>
    %571 = arith.truncf %570 : vector<16x64xf32> to vector<16x64xbf16>
    %c16_159 = arith.constant 16 : index
    %c0_160 = arith.constant 0 : index
    %572 = vector.load %arg23[%c16_159, %c0_160] : memref<80x64xbf16, #tpu.memory_space<vmem>>, vector<16x64xbf16>
    tpu.vector_store %arg23[%c16_159, %c0_160], %571 {strides = array<i32>} : memref<80x64xbf16, #tpu.memory_space<vmem>>, vector<16x64xbf16>,
    %573 = vector.extract_strided_slice %500 {offsets = [160, 0], sizes = [16, 64], strides = [1, 1]} : vector<400x64xf32> to vector<16x64xf32>
    %574 = vector.extract_strided_slice %500 {offsets = [176, 0], sizes = [16, 64], strides = [1, 1]} : vector<400x64xf32> to vector<16x64xf32>
    %575 = vector.extract_strided_slice %500 {offsets = [192, 0], sizes = [16, 64], strides = [1, 1]} : vector<400x64xf32> to vector<16x64xf32>
    %576 = vector.extract_strided_slice %500 {offsets = [208, 0], sizes = [16, 64], strides = [1, 1]} : vector<400x64xf32> to vector<16x64xf32>
    %577 = vector.extract_strided_slice %500 {offsets = [224, 0], sizes = [16, 64], strides = [1, 1]} : vector<400x64xf32> to vector<16x64xf32>
    %578 = arith.maximumf %573, %574 : vector<16x64xf32>
    %579 = arith.maximumf %578, %575 : vector<16x64xf32>
    %580 = arith.maximumf %579, %576 : vector<16x64xf32>
    %581 = arith.maximumf %580, %577 : vector<16x64xf32>
    %582 = arith.subf %573, %581 : vector<16x64xf32>
    %583 = math.exp %582 : vector<16x64xf32>
    %584 = arith.subf %574, %581 : vector<16x64xf32>
    %585 = math.exp %584 : vector<16x64xf32>
    %586 = arith.subf %575, %581 : vector<16x64xf32>
    %587 = math.exp %586 : vector<16x64xf32>
    %588 = arith.subf %576, %581 : vector<16x64xf32>
    %589 = math.exp %588 : vector<16x64xf32>
    %590 = arith.subf %577, %581 : vector<16x64xf32>
    %591 = math.exp %590 : vector<16x64xf32>
    %592 = arith.addf %583, %585 : vector<16x64xf32>
    %593 = arith.addf %592, %587 : vector<16x64xf32>
    %594 = arith.addf %593, %589 : vector<16x64xf32>
    %595 = arith.addf %594, %591 : vector<16x64xf32>
    %596 = tpu.reciprocal %595 : vector<16x64xf32> -> vector<16x64xf32>
    %597 = arith.mulf %583, %419 : vector<16x64xf32>
    %598 = arith.mulf %585, %420 : vector<16x64xf32>
    %599 = arith.addf %597, %598 : vector<16x64xf32>
    %600 = arith.mulf %587, %421 : vector<16x64xf32>
    %601 = arith.addf %599, %600 : vector<16x64xf32>
    %602 = arith.mulf %589, %422 : vector<16x64xf32>
    %603 = arith.addf %601, %602 : vector<16x64xf32>
    %604 = arith.mulf %591, %423 : vector<16x64xf32>
    %605 = arith.addf %603, %604 : vector<16x64xf32>
    %606 = arith.mulf %605, %596 : vector<16x64xf32>
    %607 = arith.truncf %606 : vector<16x64xf32> to vector<16x64xbf16>
    %c32_161 = arith.constant 32 : index
    %c0_162 = arith.constant 0 : index
    %608 = vector.load %arg23[%c32_161, %c0_162] : memref<80x64xbf16, #tpu.memory_space<vmem>>, vector<16x64xbf16>
    tpu.vector_store %arg23[%c32_161, %c0_162], %607 {strides = array<i32>} : memref<80x64xbf16, #tpu.memory_space<vmem>>, vector<16x64xbf16>,
    %609 = vector.extract_strided_slice %500 {offsets = [240, 0], sizes = [16, 64], strides = [1, 1]} : vector<400x64xf32> to vector<16x64xf32>
    %610 = vector.extract_strided_slice %500 {offsets = [256, 0], sizes = [16, 64], strides = [1, 1]} : vector<400x64xf32> to vector<16x64xf32>
    %611 = vector.extract_strided_slice %500 {offsets = [272, 0], sizes = [16, 64], strides = [1, 1]} : vector<400x64xf32> to vector<16x64xf32>
    %612 = vector.extract_strided_slice %500 {offsets = [288, 0], sizes = [16, 64], strides = [1, 1]} : vector<400x64xf32> to vector<16x64xf32>
    %613 = vector.extract_strided_slice %500 {offsets = [304, 0], sizes = [16, 64], strides = [1, 1]} : vector<400x64xf32> to vector<16x64xf32>
    %614 = arith.maximumf %609, %610 : vector<16x64xf32>
    %615 = arith.maximumf %614, %611 : vector<16x64xf32>
    %616 = arith.maximumf %615, %612 : vector<16x64xf32>
    %617 = arith.maximumf %616, %613 : vector<16x64xf32>
    %618 = arith.subf %609, %617 : vector<16x64xf32>
    %619 = math.exp %618 : vector<16x64xf32>
    %620 = arith.subf %610, %617 : vector<16x64xf32>
    %621 = math.exp %620 : vector<16x64xf32>
    %622 = arith.subf %611, %617 : vector<16x64xf32>
    %623 = math.exp %622 : vector<16x64xf32>
    %624 = arith.subf %612, %617 : vector<16x64xf32>
    %625 = math.exp %624 : vector<16x64xf32>
    %626 = arith.subf %613, %617 : vector<16x64xf32>
    %627 = math.exp %626 : vector<16x64xf32>
    %628 = arith.addf %619, %621 : vector<16x64xf32>
    %629 = arith.addf %628, %623 : vector<16x64xf32>
    %630 = arith.addf %629, %625 : vector<16x64xf32>
    %631 = arith.addf %630, %627 : vector<16x64xf32>
    %632 = tpu.reciprocal %631 : vector<16x64xf32> -> vector<16x64xf32>
    %633 = arith.mulf %619, %419 : vector<16x64xf32>
    %634 = arith.mulf %621, %420 : vector<16x64xf32>
    %635 = arith.addf %633, %634 : vector<16x64xf32>
    %636 = arith.mulf %623, %421 : vector<16x64xf32>
    %637 = arith.addf %635, %636 : vector<16x64xf32>
    %638 = arith.mulf %625, %422 : vector<16x64xf32>
    %639 = arith.addf %637, %638 : vector<16x64xf32>
    %640 = arith.mulf %627, %423 : vector<16x64xf32>
    %641 = arith.addf %639, %640 : vector<16x64xf32>
    %642 = arith.mulf %641, %632 : vector<16x64xf32>
    %643 = arith.truncf %642 : vector<16x64xf32> to vector<16x64xbf16>
    %c48_163 = arith.constant 48 : index
    %c0_164 = arith.constant 0 : index
    %644 = vector.load %arg23[%c48_163, %c0_164] : memref<80x64xbf16, #tpu.memory_space<vmem>>, vector<16x64xbf16>
    tpu.vector_store %arg23[%c48_163, %c0_164], %643 {strides = array<i32>} : memref<80x64xbf16, #tpu.memory_space<vmem>>, vector<16x64xbf16>,
    %645 = vector.extract_strided_slice %500 {offsets = [320, 0], sizes = [16, 64], strides = [1, 1]} : vector<400x64xf32> to vector<16x64xf32>
    %646 = vector.extract_strided_slice %500 {offsets = [336, 0], sizes = [16, 64], strides = [1, 1]} : vector<400x64xf32> to vector<16x64xf32>
    %647 = vector.extract_strided_slice %500 {offsets = [352, 0], sizes = [16, 64], strides = [1, 1]} : vector<400x64xf32> to vector<16x64xf32>
    %648 = vector.extract_strided_slice %500 {offsets = [368, 0], sizes = [16, 64], strides = [1, 1]} : vector<400x64xf32> to vector<16x64xf32>
    %649 = vector.extract_strided_slice %500 {offsets = [384, 0], sizes = [16, 64], strides = [1, 1]} : vector<400x64xf32> to vector<16x64xf32>
    %650 = arith.maximumf %645, %646 : vector<16x64xf32>
    %651 = arith.maximumf %650, %647 : vector<16x64xf32>
    %652 = arith.maximumf %651, %648 : vector<16x64xf32>
    %653 = arith.maximumf %652, %649 : vector<16x64xf32>
    %654 = arith.subf %645, %653 : vector<16x64xf32>
    %655 = math.exp %654 : vector<16x64xf32>
    %656 = arith.subf %646, %653 : vector<16x64xf32>
    %657 = math.exp %656 : vector<16x64xf32>
    %658 = arith.subf %647, %653 : vector<16x64xf32>
    %659 = math.exp %658 : vector<16x64xf32>
    %660 = arith.subf %648, %653 : vector<16x64xf32>
    %661 = math.exp %660 : vector<16x64xf32>
    %662 = arith.subf %649, %653 : vector<16x64xf32>
    %663 = math.exp %662 : vector<16x64xf32>
    %664 = arith.addf %655, %657 : vector<16x64xf32>
    %665 = arith.addf %664, %659 : vector<16x64xf32>
    %666 = arith.addf %665, %661 : vector<16x64xf32>
    %667 = arith.addf %666, %663 : vector<16x64xf32>
    %668 = tpu.reciprocal %667 : vector<16x64xf32> -> vector<16x64xf32>
    %669 = arith.mulf %655, %419 : vector<16x64xf32>
    %670 = arith.mulf %657, %420 : vector<16x64xf32>
    %671 = arith.addf %669, %670 : vector<16x64xf32>
    %672 = arith.mulf %659, %421 : vector<16x64xf32>
    %673 = arith.addf %671, %672 : vector<16x64xf32>
    %674 = arith.mulf %661, %422 : vector<16x64xf32>
    %675 = arith.addf %673, %674 : vector<16x64xf32>
    %676 = arith.mulf %663, %423 : vector<16x64xf32>
    %677 = arith.addf %675, %676 : vector<16x64xf32>
    %678 = arith.mulf %677, %668 : vector<16x64xf32>
    %679 = arith.truncf %678 : vector<16x64xf32> to vector<16x64xbf16>
    %c64_165 = arith.constant 64 : index
    %c0_166 = arith.constant 0 : index
    %680 = vector.load %arg23[%c64_165, %c0_166] : memref<80x64xbf16, #tpu.memory_space<vmem>>, vector<16x64xbf16>
    tpu.vector_store %arg23[%c64_165, %c0_166], %679 {strides = array<i32>} : memref<80x64xbf16, #tpu.memory_space<vmem>>, vector<16x64xbf16>,
    %c0_167 = arith.constant 0 : index
    %c0_168 = arith.constant 0 : index
    %681 = vector.load %arg23[%c0_167, %c0_168] : memref<80x64xbf16, #tpu.memory_space<vmem>>, vector<80x64xbf16>
    %c1_169 = arith.constant 1 : index
    %c0_170 = arith.constant 0 : index
    %c0_171 = arith.constant 0 : index
    %682 = vector.load %arg6[%c1_169, %c0_170, %c0_171] : memref<2x64x64xbf16, #tpu.memory_space<vmem>>, vector<1x64x64xbf16>
    %683 = vector.shape_cast %682 : vector<1x64x64xbf16> to vector<64x64xbf16>
    %cst_172 = arith.constant dense<0.000000e+00> : vector<80x64xf32>
    %684 = tpu.matmul %681, %683, %cst_172 {dimension_numbers = #tpu.dot_dimension_numbers<[1], [0], [0], [1], [0, 0, 1, 1], [], []>} : vector<80x64xbf16>, vector<64x64xbf16>, vector<80x64xf32> -> vector<80x64xf32>
    %c1_173 = arith.constant 1 : index
    %c0_174 = arith.constant 0 : index
    %c0_175 = arith.constant 0 : index
    %685 = vector.load %arg7[%c1_173, %c0_174, %c0_175] : memref<2x1x64xf32, #tpu.memory_space<vmem>>, vector<1x1x64xf32>
    %686 = vector.shape_cast %685 : vector<1x1x64xf32> to vector<1x64xf32>
    %687 = vector.broadcast %686 : vector<1x64xf32> to vector<80x64xf32>
    %688 = arith.addf %684, %687 : vector<80x64xf32>
    %689 = arith.addf %397, %688 : vector<80x64xf32>
    %c1_176 = arith.constant 1 : index
    %c0_177 = arith.constant 0 : index
    %c0_178 = arith.constant 0 : index
    %690 = vector.load %arg8[%c1_176, %c0_177, %c0_178] : memref<2x1x64xf32, #tpu.memory_space<vmem>>, vector<1x1x64xf32>
    %691 = vector.shape_cast %690 : vector<1x1x64xf32> to vector<1x64xf32>
    %c1_179 = arith.constant 1 : index
    %c0_180 = arith.constant 0 : index
    %c0_181 = arith.constant 0 : index
    %692 = vector.load %arg9[%c1_179, %c0_180, %c0_181] : memref<2x1x64xf32, #tpu.memory_space<vmem>>, vector<1x1x64xf32>
    %693 = vector.shape_cast %692 : vector<1x1x64xf32> to vector<1x64xf32>
    %cst_182 = arith.constant dense<0.000000e+00> : vector<80xf32>
    %694 = vector.multi_reduction <add>, %689, %cst_182 [1] : vector<80x64xf32> to vector<80xf32>
    %695 = vector.shape_cast %694 : vector<80xf32> to vector<80x1xf32>
    %cst_183 = arith.constant 6.400000e+01 : f32
    %696 = vector.broadcast %cst_183 : f32 to vector<80x1xf32>
    %697 = arith.divf %695, %696 : vector<80x1xf32>
    %698 = vector.broadcast %697 : vector<80x1xf32> to vector<80x64xf32>
    %699 = arith.subf %689, %698 : vector<80x64xf32>
    %700 = arith.mulf %699, %699 : vector<80x64xf32>
    %cst_184 = arith.constant dense<0.000000e+00> : vector<80xf32>
    %701 = vector.multi_reduction <add>, %700, %cst_184 [1] : vector<80x64xf32> to vector<80xf32>
    %702 = vector.shape_cast %701 : vector<80xf32> to vector<80x1xf32>
    %cst_185 = arith.constant 6.400000e+01 : f32
    %703 = vector.broadcast %cst_185 : f32 to vector<80x1xf32>
    %704 = arith.divf %702, %703 : vector<80x1xf32>
    %705 = vector.broadcast %697 : vector<80x1xf32> to vector<80x64xf32>
    %706 = arith.subf %689, %705 : vector<80x64xf32>
    %cst_186 = arith.constant 9.99999974E-6 : f32
    %707 = vector.broadcast %cst_186 : f32 to vector<80x1xf32>
    %708 = arith.addf %704, %707 : vector<80x1xf32>
    %709 = math.rsqrt %708 : vector<80x1xf32>
    %710 = vector.broadcast %709 : vector<80x1xf32> to vector<80x64xf32>
    %711 = arith.mulf %706, %710 : vector<80x64xf32>
    %712 = vector.broadcast %691 : vector<1x64xf32> to vector<80x64xf32>
    %713 = arith.mulf %711, %712 : vector<80x64xf32>
    %714 = vector.broadcast %693 : vector<1x64xf32> to vector<80x64xf32>
    %715 = arith.addf %713, %714 : vector<80x64xf32>
    %c1_187 = arith.constant 1 : index
    %c0_188 = arith.constant 0 : index
    %c0_189 = arith.constant 0 : index
    %716 = vector.load %arg12[%c1_187, %c0_188, %c0_189] : memref<2x64x128xbf16, #tpu.memory_space<vmem>>, vector<1x64x128xbf16>
    %717 = vector.shape_cast %716 : vector<1x64x128xbf16> to vector<64x128xbf16>
    %718 = arith.truncf %715 : vector<80x64xf32> to vector<80x64xbf16>
    %cst_190 = arith.constant dense<0.000000e+00> : vector<80x128xf32>
    %719 = tpu.matmul %718, %717, %cst_190 {dimension_numbers = #tpu.dot_dimension_numbers<[1], [0], [0], [1], [0, 0, 1, 1], [], []>} : vector<80x64xbf16>, vector<64x128xbf16>, vector<80x128xf32> -> vector<80x128xf32>
    %c1_191 = arith.constant 1 : index
    %c0_192 = arith.constant 0 : index
    %c0_193 = arith.constant 0 : index
    %720 = vector.load %arg13[%c1_191, %c0_192, %c0_193] : memref<2x1x128xf32, #tpu.memory_space<vmem>>, vector<1x1x128xf32>
    %721 = vector.shape_cast %720 : vector<1x1x128xf32> to vector<1x128xf32>
    %722 = vector.broadcast %721 : vector<1x128xf32> to vector<80x128xf32>
    %723 = arith.addf %719, %722 : vector<80x128xf32>
    %cst_194 = arith.constant 0.000000e+00 : f32
    %724 = vector.broadcast %cst_194 : f32 to vector<80x128xf32>
    %725 = arith.maximumf %723, %724 : vector<80x128xf32>
    %c1_195 = arith.constant 1 : index
    %c0_196 = arith.constant 0 : index
    %c0_197 = arith.constant 0 : index
    %726 = vector.load %arg14[%c1_195, %c0_196, %c0_197] : memref<2x128x64xbf16, #tpu.memory_space<vmem>>, vector<1x128x64xbf16>
    %727 = vector.shape_cast %726 : vector<1x128x64xbf16> to vector<128x64xbf16>
    %728 = arith.truncf %725 : vector<80x128xf32> to vector<80x128xbf16>
    %cst_198 = arith.constant dense<0.000000e+00> : vector<80x64xf32>
    %729 = tpu.matmul %728, %727, %cst_198 {dimension_numbers = #tpu.dot_dimension_numbers<[1], [0], [0], [1], [0, 0, 1, 1], [], []>} : vector<80x128xbf16>, vector<128x64xbf16>, vector<80x64xf32> -> vector<80x64xf32>
    %c1_199 = arith.constant 1 : index
    %c0_200 = arith.constant 0 : index
    %c0_201 = arith.constant 0 : index
    %730 = vector.load %arg15[%c1_199, %c0_200, %c0_201] : memref<2x1x64xf32, #tpu.memory_space<vmem>>, vector<1x1x64xf32>
    %731 = vector.shape_cast %730 : vector<1x1x64xf32> to vector<1x64xf32>
    %732 = vector.broadcast %731 : vector<1x64xf32> to vector<80x64xf32>
    %733 = arith.addf %729, %732 : vector<80x64xf32>
    %734 = arith.addf %715, %733 : vector<80x64xf32>
    %c1_202 = arith.constant 1 : index
    %c0_203 = arith.constant 0 : index
    %c0_204 = arith.constant 0 : index
    %735 = vector.load %arg10[%c1_202, %c0_203, %c0_204] : memref<2x1x64xf32, #tpu.memory_space<vmem>>, vector<1x1x64xf32>
    %736 = vector.shape_cast %735 : vector<1x1x64xf32> to vector<1x64xf32>
    %c1_205 = arith.constant 1 : index
    %c0_206 = arith.constant 0 : index
    %c0_207 = arith.constant 0 : index
    %737 = vector.load %arg11[%c1_205, %c0_206, %c0_207] : memref<2x1x64xf32, #tpu.memory_space<vmem>>, vector<1x1x64xf32>
    %738 = vector.shape_cast %737 : vector<1x1x64xf32> to vector<1x64xf32>
    %cst_208 = arith.constant dense<0.000000e+00> : vector<80xf32>
    %739 = vector.multi_reduction <add>, %734, %cst_208 [1] : vector<80x64xf32> to vector<80xf32>
    %740 = vector.shape_cast %739 : vector<80xf32> to vector<80x1xf32>
    %cst_209 = arith.constant 6.400000e+01 : f32
    %741 = vector.broadcast %cst_209 : f32 to vector<80x1xf32>
    %742 = arith.divf %740, %741 : vector<80x1xf32>
    %743 = vector.broadcast %742 : vector<80x1xf32> to vector<80x64xf32>
    %744 = arith.subf %734, %743 : vector<80x64xf32>
    %745 = arith.mulf %744, %744 : vector<80x64xf32>
    %cst_210 = arith.constant dense<0.000000e+00> : vector<80xf32>
    %746 = vector.multi_reduction <add>, %745, %cst_210 [1] : vector<80x64xf32> to vector<80xf32>
    %747 = vector.shape_cast %746 : vector<80xf32> to vector<80x1xf32>
    %cst_211 = arith.constant 6.400000e+01 : f32
    %748 = vector.broadcast %cst_211 : f32 to vector<80x1xf32>
    %749 = arith.divf %747, %748 : vector<80x1xf32>
    %750 = vector.broadcast %742 : vector<80x1xf32> to vector<80x64xf32>
    %751 = arith.subf %734, %750 : vector<80x64xf32>
    %cst_212 = arith.constant 9.99999974E-6 : f32
    %752 = vector.broadcast %cst_212 : f32 to vector<80x1xf32>
    %753 = arith.addf %749, %752 : vector<80x1xf32>
    %754 = math.rsqrt %753 : vector<80x1xf32>
    %755 = vector.broadcast %754 : vector<80x1xf32> to vector<80x64xf32>
    %756 = arith.mulf %751, %755 : vector<80x64xf32>
    %757 = vector.broadcast %736 : vector<1x64xf32> to vector<80x64xf32>
    %758 = arith.mulf %756, %757 : vector<80x64xf32>
    %759 = vector.broadcast %738 : vector<1x64xf32> to vector<80x64xf32>
    %760 = arith.addf %758, %759 : vector<80x64xf32>
    %761 = arith.truncf %760 : vector<80x64xf32> to vector<80x64xbf16>
    %c0_213 = arith.constant 0 : index
    %c0_214 = arith.constant 0 : index
    %762 = vector.load %arg18[%c0_213, %c0_214] : memref<1x64xf32, #tpu.memory_space<vmem>>, vector<1x64xf32>
    %763 = vector.extract_strided_slice %761 {offsets = [0, 0], sizes = [16, 64], strides = [1, 1]} : vector<80x64xbf16> to vector<16x64xbf16>
    %c0_215 = arith.constant 0 : index
    %c0_216 = arith.constant 0 : index
    %c0_217 = arith.constant 0 : index
    %764 = vector.load %arg17[%c0_215, %c0_216, %c0_217] : memref<5x64x64xbf16, #tpu.memory_space<vmem>>, vector<1x64x64xbf16>
    %765 = vector.shape_cast %764 : vector<1x64x64xbf16> to vector<64x64xbf16>
    %cst_218 = arith.constant dense<0.000000e+00> : vector<16x64xf32>
    %766 = tpu.matmul %763, %765, %cst_218 {dimension_numbers = #tpu.dot_dimension_numbers<[1], [0], [0], [1], [0, 0, 1, 1], [], []>} : vector<16x64xbf16>, vector<64x64xbf16>, vector<16x64xf32> -> vector<16x64xf32>
    %767 = vector.broadcast %762 : vector<1x64xf32> to vector<16x64xf32>
    %768 = arith.addf %767, %766 : vector<16x64xf32>
    %769 = vector.extract_strided_slice %761 {offsets = [16, 0], sizes = [16, 64], strides = [1, 1]} : vector<80x64xbf16> to vector<16x64xbf16>
    %c1_219 = arith.constant 1 : index
    %c0_220 = arith.constant 0 : index
    %c0_221 = arith.constant 0 : index
    %770 = vector.load %arg17[%c1_219, %c0_220, %c0_221] : memref<5x64x64xbf16, #tpu.memory_space<vmem>>, vector<1x64x64xbf16>
    %771 = vector.shape_cast %770 : vector<1x64x64xbf16> to vector<64x64xbf16>
    %cst_222 = arith.constant dense<0.000000e+00> : vector<16x64xf32>
    %772 = tpu.matmul %769, %771, %cst_222 {dimension_numbers = #tpu.dot_dimension_numbers<[1], [0], [0], [1], [0, 0, 1, 1], [], []>} : vector<16x64xbf16>, vector<64x64xbf16>, vector<16x64xf32> -> vector<16x64xf32>
    %773 = arith.addf %768, %772 : vector<16x64xf32>
    %774 = vector.extract_strided_slice %761 {offsets = [32, 0], sizes = [16, 64], strides = [1, 1]} : vector<80x64xbf16> to vector<16x64xbf16>
    %c2 = arith.constant 2 : index
    %c0_223 = arith.constant 0 : index
    %c0_224 = arith.constant 0 : index
    %775 = vector.load %arg17[%c2, %c0_223, %c0_224] : memref<5x64x64xbf16, #tpu.memory_space<vmem>>, vector<1x64x64xbf16>
    %776 = vector.shape_cast %775 : vector<1x64x64xbf16> to vector<64x64xbf16>
    %cst_225 = arith.constant dense<0.000000e+00> : vector<16x64xf32>
    %777 = tpu.matmul %774, %776, %cst_225 {dimension_numbers = #tpu.dot_dimension_numbers<[1], [0], [0], [1], [0, 0, 1, 1], [], []>} : vector<16x64xbf16>, vector<64x64xbf16>, vector<16x64xf32> -> vector<16x64xf32>
    %778 = arith.addf %773, %777 : vector<16x64xf32>
    %779 = vector.extract_strided_slice %761 {offsets = [48, 0], sizes = [16, 64], strides = [1, 1]} : vector<80x64xbf16> to vector<16x64xbf16>
    %c3 = arith.constant 3 : index
    %c0_226 = arith.constant 0 : index
    %c0_227 = arith.constant 0 : index
    %780 = vector.load %arg17[%c3, %c0_226, %c0_227] : memref<5x64x64xbf16, #tpu.memory_space<vmem>>, vector<1x64x64xbf16>
    %781 = vector.shape_cast %780 : vector<1x64x64xbf16> to vector<64x64xbf16>
    %cst_228 = arith.constant dense<0.000000e+00> : vector<16x64xf32>
    %782 = tpu.matmul %779, %781, %cst_228 {dimension_numbers = #tpu.dot_dimension_numbers<[1], [0], [0], [1], [0, 0, 1, 1], [], []>} : vector<16x64xbf16>, vector<64x64xbf16>, vector<16x64xf32> -> vector<16x64xf32>
    %783 = arith.addf %778, %782 : vector<16x64xf32>
    %784 = vector.extract_strided_slice %761 {offsets = [64, 0], sizes = [16, 64], strides = [1, 1]} : vector<80x64xbf16> to vector<16x64xbf16>
    %c4 = arith.constant 4 : index
    %c0_229 = arith.constant 0 : index
    %c0_230 = arith.constant 0 : index
    %785 = vector.load %arg17[%c4, %c0_229, %c0_230] : memref<5x64x64xbf16, #tpu.memory_space<vmem>>, vector<1x64x64xbf16>
    %786 = vector.shape_cast %785 : vector<1x64x64xbf16> to vector<64x64xbf16>
    %cst_231 = arith.constant dense<0.000000e+00> : vector<16x64xf32>
    %787 = tpu.matmul %784, %786, %cst_231 {dimension_numbers = #tpu.dot_dimension_numbers<[1], [0], [0], [1], [0, 0, 1, 1], [], []>} : vector<16x64xbf16>, vector<64x64xbf16>, vector<16x64xf32> -> vector<16x64xf32>
    %788 = arith.addf %783, %787 : vector<16x64xf32>
    %cst_232 = arith.constant 0.000000e+00 : f32
    %789 = vector.broadcast %cst_232 : f32 to vector<16x64xf32>
    %790 = arith.maximumf %788, %789 : vector<16x64xf32>
    %c0_233 = arith.constant 0 : index
    %c0_234 = arith.constant 0 : index
    %791 = vector.load %arg19[%c0_233, %c0_234] : memref<64x128xbf16, #tpu.memory_space<vmem>>, vector<64x128xbf16>
    %792 = arith.truncf %790 : vector<16x64xf32> to vector<16x64xbf16>
    %cst_235 = arith.constant dense<0.000000e+00> : vector<16x128xf32>
    %793 = tpu.matmul %792, %791, %cst_235 {dimension_numbers = #tpu.dot_dimension_numbers<[1], [0], [0], [1], [0, 0, 1, 1], [], []>} : vector<16x64xbf16>, vector<64x128xbf16>, vector<16x128xf32> -> vector<16x128xf32>
    %c0_236 = arith.constant 0 : index
    %c0_237 = arith.constant 0 : index
    %794 = vector.load %arg20[%c0_236, %c0_237] : memref<1x128xf32, #tpu.memory_space<vmem>>, vector<1x128xf32>
    %795 = vector.broadcast %794 : vector<1x128xf32> to vector<16x128xf32>
    %796 = arith.addf %793, %795 : vector<16x128xf32>
    %c0_238 = arith.constant 0 : index
    %c0_239 = arith.constant 0 : index
    %797 = vector.load %arg21[%c0_238, %c0_239] : memref<16x128xf32, #tpu.memory_space<vmem>>, vector<16x128xf32>
    tpu.vector_store %arg21[%c0_238, %c0_239], %796 {strides = array<i32>} : memref<16x128xf32, #tpu.memory_space<vmem>>, vector<16x128xf32>,
    return
  }
  func.func @transform_0(%arg0: i32) -> (i32, i32) {
    %c0_i32 = arith.constant 0 : i32
    %c0_i32_0 = arith.constant 0 : i32
    return %arg0, %c0_i32 : i32, i32
  }
  func.func @transform_1(%arg0: i32) -> (i32, i32) {
    %c0_i32 = arith.constant 0 : i32
    %c0_i32_0 = arith.constant 0 : i32
    %c0_i32_1 = arith.constant 0 : i32
    return %c0_i32, %c0_i32_0 : i32, i32
  }
  func.func @transform_2(%arg0: i32) -> (i32, i32) {
    %c0_i32 = arith.constant 0 : i32
    %c0_i32_0 = arith.constant 0 : i32
    %c0_i32_1 = arith.constant 0 : i32
    return %c0_i32, %c0_i32_0 : i32, i32
  }
  func.func @transform_3(%arg0: i32) -> (i32, i32, i32) {
    %c0_i32 = arith.constant 0 : i32
    %c0_i32_0 = arith.constant 0 : i32
    %c0_i32_1 = arith.constant 0 : i32
    %c0_i32_2 = arith.constant 0 : i32
    return %c0_i32, %c0_i32_0, %c0_i32_1 : i32, i32, i32
  }
  func.func @transform_4(%arg0: i32) -> (i32, i32, i32) {
    %c0_i32 = arith.constant 0 : i32
    %c0_i32_0 = arith.constant 0 : i32
    %c0_i32_1 = arith.constant 0 : i32
    %c0_i32_2 = arith.constant 0 : i32
    return %c0_i32, %c0_i32_0, %c0_i32_1 : i32, i32, i32
  }
  func.func @transform_5(%arg0: i32) -> (i32, i32, i32) {
    %c0_i32 = arith.constant 0 : i32
    %c0_i32_0 = arith.constant 0 : i32
    %c0_i32_1 = arith.constant 0 : i32
    %c0_i32_2 = arith.constant 0 : i32
    return %c0_i32, %c0_i32_0, %c0_i32_1 : i32, i32, i32
  }
  func.func @transform_6(%arg0: i32) -> (i32, i32, i32) {
    %c0_i32 = arith.constant 0 : i32
    %c0_i32_0 = arith.constant 0 : i32
    %c0_i32_1 = arith.constant 0 : i32
    %c0_i32_2 = arith.constant 0 : i32
    return %c0_i32, %c0_i32_0, %c0_i32_1 : i32, i32, i32
  }
  func.func @transform_7(%arg0: i32) -> (i32, i32, i32) {
    %c0_i32 = arith.constant 0 : i32
    %c0_i32_0 = arith.constant 0 : i32
    %c0_i32_1 = arith.constant 0 : i32
    %c0_i32_2 = arith.constant 0 : i32
    return %c0_i32, %c0_i32_0, %c0_i32_1 : i32, i32, i32
  }
  func.func @transform_8(%arg0: i32) -> (i32, i32, i32) {
    %c0_i32 = arith.constant 0 : i32
    %c0_i32_0 = arith.constant 0 : i32
    %c0_i32_1 = arith.constant 0 : i32
    %c0_i32_2 = arith.constant 0 : i32
    return %c0_i32, %c0_i32_0, %c0_i32_1 : i32, i32, i32
  }
  func.func @transform_9(%arg0: i32) -> (i32, i32, i32) {
    %c0_i32 = arith.constant 0 : i32
    %c0_i32_0 = arith.constant 0 : i32
    %c0_i32_1 = arith.constant 0 : i32
    %c0_i32_2 = arith.constant 0 : i32
    return %c0_i32, %c0_i32_0, %c0_i32_1 : i32, i32, i32
  }
  func.func @transform_10(%arg0: i32) -> (i32, i32, i32) {
    %c0_i32 = arith.constant 0 : i32
    %c0_i32_0 = arith.constant 0 : i32
    %c0_i32_1 = arith.constant 0 : i32
    %c0_i32_2 = arith.constant 0 : i32
    return %c0_i32, %c0_i32_0, %c0_i32_1 : i32, i32, i32
  }
  func.func @transform_11(%arg0: i32) -> (i32, i32, i32) {
    %c0_i32 = arith.constant 0 : i32
    %c0_i32_0 = arith.constant 0 : i32
    %c0_i32_1 = arith.constant 0 : i32
    %c0_i32_2 = arith.constant 0 : i32
    return %c0_i32, %c0_i32_0, %c0_i32_1 : i32, i32, i32
  }
  func.func @transform_12(%arg0: i32) -> (i32, i32, i32) {
    %c0_i32 = arith.constant 0 : i32
    %c0_i32_0 = arith.constant 0 : i32
    %c0_i32_1 = arith.constant 0 : i32
    %c0_i32_2 = arith.constant 0 : i32
    return %c0_i32, %c0_i32_0, %c0_i32_1 : i32, i32, i32
  }
  func.func @transform_13(%arg0: i32) -> (i32, i32, i32) {
    %c0_i32 = arith.constant 0 : i32
    %c0_i32_0 = arith.constant 0 : i32
    %c0_i32_1 = arith.constant 0 : i32
    %c0_i32_2 = arith.constant 0 : i32
    return %c0_i32, %c0_i32_0, %c0_i32_1 : i32, i32, i32
  }
  func.func @transform_14(%arg0: i32) -> (i32, i32, i32) {
    %c0_i32 = arith.constant 0 : i32
    %c0_i32_0 = arith.constant 0 : i32
    %c0_i32_1 = arith.constant 0 : i32
    %c0_i32_2 = arith.constant 0 : i32
    return %c0_i32, %c0_i32_0, %c0_i32_1 : i32, i32, i32
  }
  func.func @transform_15(%arg0: i32) -> (i32, i32) {
    %c0_i32 = arith.constant 0 : i32
    %c0_i32_0 = arith.constant 0 : i32
    %c0_i32_1 = arith.constant 0 : i32
    return %c0_i32, %c0_i32_0 : i32, i32
  }
  func.func @transform_16(%arg0: i32) -> (i32, i32, i32) {
    %c0_i32 = arith.constant 0 : i32
    %c0_i32_0 = arith.constant 0 : i32
    %c0_i32_1 = arith.constant 0 : i32
    %c0_i32_2 = arith.constant 0 : i32
    return %c0_i32, %c0_i32_0, %c0_i32_1 : i32, i32, i32
  }
  func.func @transform_17(%arg0: i32) -> (i32, i32) {
    %c0_i32 = arith.constant 0 : i32
    %c0_i32_0 = arith.constant 0 : i32
    %c0_i32_1 = arith.constant 0 : i32
    return %c0_i32, %c0_i32_0 : i32, i32
  }
  func.func @transform_18(%arg0: i32) -> (i32, i32) {
    %c0_i32 = arith.constant 0 : i32
    %c0_i32_0 = arith.constant 0 : i32
    %c0_i32_1 = arith.constant 0 : i32
    return %c0_i32, %c0_i32_0 : i32, i32
  }
  func.func @transform_19(%arg0: i32) -> (i32, i32) {
    %c0_i32 = arith.constant 0 : i32
    %c0_i32_0 = arith.constant 0 : i32
    %c0_i32_1 = arith.constant 0 : i32
    return %c0_i32, %c0_i32_0 : i32, i32
  }
  func.func @transform_20(%arg0: i32) -> (i32, i32) {
    %c0_i32 = arith.constant 0 : i32
    %c0_i32_0 = arith.constant 0 : i32
    return %arg0, %c0_i32 : i32, i32
  }
}

</mosaic_0001>

<llo_original>
// kernel: tpu_custom_call.1
$region0: #{tpu_custom_call.1}
  #allocation0 [shape = 'u32[]', space=smem, size = 0x4, offset = 0x4, fixed_abs, tag = 'smem constant byte address 0x4 - core index']
  #allocation1 [shape = 'u32[144,128]{1,0:T(1,128)}', space=vmem, size = 0x12000, scoped, tag = 'internal scratch']
  #allocation2 [shape = 'bf16[400,64]{1,0:T(8,128)(2,1)}', space=vmem, size = 0x19000, scoped, tag = 'scratch operand']
  #allocation3 [shape = 'bf16[80,64]{1,0:T(8,128)(2,1)}', space=vmem, size = 0x5000, scoped, tag = 'scratch operand']
  %s0 = inlined_call_operand.vmem [shape: f32[32,5], index: 0, kind: input, shape index: {}]
  %s1 = inlined_call_operand.vmem [shape: f32[1,64], index: 1, kind: input, shape index: {}]
  %s2 = inlined_call_operand.hbm [shape: f32[1,64], index: 2, kind: input, shape index: {}]
  %s3 = inlined_call_operand.hbm [shape: bf16[2,64,192], index: 3, kind: input, shape index: {}]
  %s4 = inlined_call_operand.vmem [shape: f32[2,1,192], index: 4, kind: input, shape index: {}]
  %s5 = inlined_call_operand.vmem [shape: bf16[2,64,64], index: 5, kind: input, shape index: {}]
  %s6 = inlined_call_operand.hbm [shape: f32[2,1,64], index: 6, kind: input, shape index: {}]
  %s7 = inlined_call_operand.hbm [shape: f32[2,1,64], index: 7, kind: input, shape index: {}]
  %s8 = inlined_call_operand.hbm [shape: f32[2,1,64], index: 8, kind: input, shape index: {}]
  %s9 = inlined_call_operand.hbm [shape: f32[2,1,64], index: 9, kind: input, shape index: {}]
  %s10 = inlined_call_operand.hbm [shape: f32[2,1,64], index: 10, kind: input, shape index: {}]
  %s11 = inlined_call_operand.hbm [shape: bf16[2,64,128], index: 11, kind: input, shape index: {}]
  %s12 = inlined_call_operand.hbm [shape: f32[2,1,128], index: 12, kind: input, shape index: {}]
  %s13 = inlined_call_operand.vmem [shape: bf16[2,128,64], index: 13, kind: input, shape index: {}]
  %s14 = inlined_call_operand.hbm [shape: f32[2,1,64], index: 14, kind: input, shape index: {}]
  %s15 = inlined_call_operand.vmem [shape: bf16[64,64], index: 15, kind: input, shape index: {}]
  %s16 = inlined_call_operand.vmem [shape: bf16[5,64,64], index: 16, kind: input, shape index: {}]
  %s17 = inlined_call_operand.hbm [shape: f32[1,64], index: 17, kind: input, shape index: {}]
  %s18 = inlined_call_operand.hbm [shape: bf16[64,128], index: 18, kind: input, shape index: {}]
  %s19 = inlined_call_operand.vmem [shape: f32[1,128], index: 19, kind: input, shape index: {}]
  %s20 = inlined_call_operand.hbm [shape: f32[32,128], index: 20, kind: output, shape index: {}]
  %s21 = sld [smem:[#allocation0]]
  $region161: #{tpu_custom_call.1} parent=0
    _
  %s23 = ssub.s32 1, %s21
  %s24 = scalar_select 0, %s23, %s21
  $region1: #{tpu_custom_call.1} parent=0
    #allocation4 [shape = 'u8[512]{0}', space=vmem, size = 0x400, scoped, tag = 'input window, operand 2, single buffered']
    #allocation5 [shape = 's32[2]{0}', space=sflag, size = 0x8, scoped, tag = 'scoped memory for tpu_custom_call.1']
    #allocation6 [shape = 's32[2]{0}', space=sflag, size = 0x8, scoped, tag = 'scoped memory for tpu_custom_call.1']
    #allocation7 [shape = 'u8[65536]{0}', space=vmem, size = 0x10000, scoped, tag = 'input window, operand 3, single buffered']
    #allocation8 [shape = 's32[1]{0}', space=sflag, size = 0x4, scoped, tag = 'scoped memory for tpu_custom_call.1']
    #allocation9 [shape = 'u8[1024]{0}', space=vmem, size = 0x400, scoped, tag = 'input window, operand 6, single buffered']
    #allocation10 [shape = 'u8[1024]{0}', space=vmem, size = 0x400, scoped, tag = 'input window, operand 7, single buffered']
    #allocation11 [shape = 's32[1]{0}', space=sflag, size = 0x4, scoped, tag = 'scoped memory for tpu_custom_call.1']
    #allocation12 [shape = 'u8[1024]{0}', space=vmem, size = 0x400, scoped, tag = 'input window, operand 8, single buffered']
    #allocation13 [shape = 'u8[1024]{0}', space=vmem, size = 0x400, scoped, tag = 'input window, operand 9, single buffered']
    #allocation14 [shape = 's32[1]{0}', space=sflag, size = 0x4, scoped, tag = 'scoped memory for tpu_custom_call.1']
    #allocation15 [shape = 'u8[1024]{0}', space=vmem, size = 0x400, scoped, tag = 'input window, operand 10, single buffered']
    #allocation16 [shape = 'u8[32768]{0}', space=vmem, size = 0x8000, scoped, tag = 'input window, operand 11, single buffered']
    #allocation17 [shape = 's32[1]{0}', space=sflag, size = 0x4, scoped, tag = 'scoped memory for tpu_custom_call.1']
    #allocation18 [shape = 'u8[1024]{0}', space=vmem, size = 0x400, scoped, tag = 'input window, operand 12, single buffered']
    #allocation19 [shape = 'u8[1024]{0}', space=vmem, size = 0x400, scoped, tag = 'input window, operand 14, single buffered']
    #allocation20 [shape = 's32[1]{0}', space=sflag, size = 0x4, scoped, tag = 'scoped memory for tpu_custom_call.1']
    #allocation21 [shape = 'u8[512]{0}', space=vmem, size = 0x400, scoped, tag = 'input window, operand 17, single buffered']
    #allocation22 [shape = 'u8[16384]{0}', space=vmem, size = 0x4000, scoped, tag = 'input window, operand 18, single buffered']
    #allocation23 [shape = 's32[1]{0}', space=sflag, size = 0x4, scoped, tag = 'scoped memory for tpu_custom_call.1']
    #allocation24 [shape = 'u8[16384]{0}', space=vmem, size = 0x4000, scoped, tag = 'output window, operand 0']
    %25 = vsyncpa [#allocation5], 0
    %26 = vsyncpa [#allocation8], 0
    %27 = vsyncpa [#allocation11], 0
    %28 = vsyncpa [#allocation14], 0
    %29 = vsyncpa [#allocation17], 0
    %30 = vsyncpa [#allocation20], 0
    %31 = vsyncpa [#allocation23], 0
    %32 = vsyncpa [#allocation6], 0
    %s33 = scalar_lea.sflag [#allocation6], 1
    %34 = vsyncpa %s33, 0
    loop: start=0, step=1, limit=4
    $region2: #{tpu_custom_call.1} parent=1 // loop_pre_header
      _
    $region3: #{tpu_custom_call.1} parent=1 // loop_header
      %s36 = sphi 0, %s40
      %p37 = scmp.ge.s32.totalorder %s36, 4
      %s46 = sphi 0, %s48
      %s49 = sphi 0, %s46
      %s50 = sphi 0, %s49
      %s66 = sphi 0, %s50
      %s70 = sphi 0, %s70
      %s72 = sphi 0, %s70
      %s73 = sphi 0, %s72
      %s87 = sphi 0, %s73
      %s91 = sphi 0, %s91
      %s93 = sphi 0, %s91
      %s94 = sphi 0, %s93
      %s108 = sphi 0, %s94
      %s112 = sphi 0, %s112
      %s114 = sphi 0, %s112
      %s115 = sphi 0, %s114
      %s129 = sphi 0, %s115
      %s133 = sphi 0, %s133
      %s135 = sphi 0, %s133
      %s136 = sphi 0, %s135
      %s150 = sphi 0, %s136
      %s154 = sphi 0, %s154
      %s156 = sphi 0, %s154
      %s157 = sphi 0, %s156
      %s171 = sphi 0, %s157
      %s175 = sphi 0, %s175
      %s177 = sphi 0, %s175
      %s178 = sphi 0, %s177
      %s192 = sphi 0, %s178
      %s196 = sphi 0, %s196
      %s198 = sphi 0, %s196
      %s199 = sphi 0, %s198
      %s213 = sphi 0, %s199
      %s217 = sphi 0, %s217
      %s219 = sphi 0, %s217
      %s220 = sphi 0, %s219
      %s234 = sphi 0, %s220
      %s238 = sphi 0, %s238
      %s240 = sphi 0, %s238
      %s241 = sphi 0, %s240
      %s255 = sphi 0, %s241
      %s259 = sphi 0, %s259
      %s261 = sphi 0, %s259
      %s262 = sphi 0, %s261
      %s276 = sphi 0, %s262
      %s280 = sphi 0, %s280
      %s282 = sphi 0, %s280
      %s283 = sphi 0, %s282
      %s297 = sphi 0, %s283
      %s301 = sphi 0, %s301
      %s303 = sphi 0, %s301
      %s304 = sphi 0, %s303
      %s318 = sphi 0, %s304
      %s322 = sphi 0, %s322
      %s324 = sphi 0, %s322
      %s325 = sphi 0, %s324
      %s339 = sphi 0, %s325
      %s343 = sphi 0, %s343
      %s345 = sphi 0, %s343
      %s346 = sphi 0, %s345
      %s360 = sphi 0, %s346
      %s364 = sphi 0, %s364
      %s366 = sphi 0, %s364
      %s367 = sphi 0, %s366
      %s381 = sphi 0, %s367
      %s385 = sphi 0, %s385
      %s387 = sphi 0, %s385
      %s388 = sphi 0, %s387
      %s402 = sphi 0, %s388
      %s406 = sphi 0, %s406
      %s408 = sphi 0, %s406
      %s409 = sphi 0, %s408
      %s423 = sphi 0, %s409
      %s427 = sphi 0, %s427
      %s429 = sphi 0, %s427
      %s430 = sphi 0, %s429
      %s444 = sphi 0, %s430
      %s448 = sphi 0, %s448
      %s450 = sphi 0, %s448
      %s451 = sphi 0, %s450
      %s465 = sphi 0, %s451
      %s471 = sphi 0, %s473
      %s474 = sphi 0, %s471
      %s475 = sphi 0, %s474
      %s491 = sphi 0, %s475
    $region4: #{tpu_custom_call.1} parent=1 // loop_header_branch
      %39 = sbr.rel (%p37) target = $region8
    $region5: #{tpu_custom_call.1} parent=1 // loop_body
      %s41 = ssub.s32 %s36, 1
      %s42 = ssub.s32 %s36, 2
      %s43 = sadd.s32 %s36, 1
      %s44 = ssub.s32 %s36, %s43
      %p45 = scmp.eq.s32.totalorder %s44, 0
      %s47 = sadd.s32 %s46, 1
      %s48 = scalar_select %p45, %s46, %s47
      %p51 = pneg %p45
      %p52 = scmp.eq.s32.totalorder %s36, 1
      %p53 = por %p51, %p52
      %p54 = scmp.ne.s32.totalorder %s46, %s49
      %p55 = scmp.eq.s32.totalorder %s36, 0
      %p56 = por %p54, %p55
      %p57 = scmp.ne.s32.totalorder %s46, %s49
      %p58 = scmp.eq.s32.totalorder %s41, 1
      %p59 = por %p57, %p58
      %p60 = scmp.ne.s32.totalorder %s49, %s50
      %p61 = scmp.eq.s32.totalorder %s41, 0
      %p62 = por %p60, %p61
      %p63 = scmp.ne.s32.totalorder %s49, %s50
      %p64 = scmp.eq.s32.totalorder %s42, 1
      %p65 = por %p63, %p64
      %p67 = scmp.ne.s32.totalorder %s50, %s66
      %p68 = scmp.eq.s32.totalorder %s42, 0
      %p69 = por %p67, %p68
      %s71 = sadd.s32 %s70, 1
      %p74 = scmp.eq.s32.totalorder %s36, 1
      %p75 = scmp.ne.s32.totalorder %s70, %s72
      %p76 = scmp.eq.s32.totalorder %s36, 0
      %p77 = por %p75, %p76
      %p78 = scmp.ne.s32.totalorder %s70, %s72
      %p79 = scmp.eq.s32.totalorder %s41, 1
      %p80 = por %p78, %p79
      %p81 = scmp.ne.s32.totalorder %s72, %s73
      %p82 = scmp.eq.s32.totalorder %s41, 0
      %p83 = por %p81, %p82
      %p84 = scmp.ne.s32.totalorder %s72, %s73
      %p85 = scmp.eq.s32.totalorder %s42, 1
      %p86 = por %p84, %p85
      %p88 = scmp.ne.s32.totalorder %s73, %s87
      %p89 = scmp.eq.s32.totalorder %s42, 0
      %p90 = por %p88, %p89
      %s92 = sadd.s32 %s91, 1
      %p95 = scmp.eq.s32.totalorder %s36, 1
      %p96 = scmp.ne.s32.totalorder %s91, %s93
      %p97 = scmp.eq.s32.totalorder %s36, 0
      %p98 = por %p96, %p97
      %p99 = scmp.ne.s32.totalorder %s91, %s93
      %p100 = scmp.eq.s32.totalorder %s41, 1
      %p101 = por %p99, %p100
      %p102 = scmp.ne.s32.totalorder %s93, %s94
      %p103 = scmp.eq.s32.totalorder %s41, 0
      %p104 = por %p102, %p103
      %p105 = scmp.ne.s32.totalorder %s93, %s94
      %p106 = scmp.eq.s32.totalorder %s42, 1
      %p107 = por %p105, %p106
      %p109 = scmp.ne.s32.totalorder %s94, %s108
      %p110 = scmp.eq.s32.totalorder %s42, 0
      %p111 = por %p109, %p110
      %s113 = sadd.s32 %s112, 1
      %p116 = scmp.eq.s32.totalorder %s36, 1
      %p117 = scmp.ne.s32.totalorder %s112, %s114
      %p118 = scmp.eq.s32.totalorder %s36, 0
      %p119 = por %p117, %p118
      %p120 = scmp.ne.s32.totalorder %s112, %s114
      %p121 = scmp.eq.s32.totalorder %s41, 1
      %p122 = por %p120, %p121
      %p123 = scmp.ne.s32.totalorder %s114, %s115
      %p124 = scmp.eq.s32.totalorder %s41, 0
      %p125 = por %p123, %p124
      %p126 = scmp.ne.s32.totalorder %s114, %s115
      %p127 = scmp.eq.s32.totalorder %s42, 1
      %p128 = por %p126, %p127
      %p130 = scmp.ne.s32.totalorder %s115, %s129
      %p131 = scmp.eq.s32.totalorder %s42, 0
      %p132 = por %p130, %p131
      %s134 = sadd.s32 %s133, 1
      %p137 = scmp.eq.s32.totalorder %s36, 1
      %p138 = scmp.ne.s32.totalorder %s133, %s135
      %p139 = scmp.eq.s32.totalorder %s36, 0
      %p140 = por %p138, %p139
      %p141 = scmp.ne.s32.totalorder %s133, %s135
      %p142 = scmp.eq.s32.totalorder %s41, 1
      %p143 = por %p141, %p142
      %p144 = scmp.ne.s32.totalorder %s135, %s136
      %p145 = scmp.eq.s32.totalorder %s41, 0
      %p146 = por %p144, %p145
      %p147 = scmp.ne.s32.totalorder %s135, %s136
      %p148 = scmp.eq.s32.totalorder %s42, 1
      %p149 = por %p147, %p148
      %p151 = scmp.ne.s32.totalorder %s136, %s150
      %p152 = scmp.eq.s32.totalorder %s42, 0
      %p153 = por %p151, %p152
      %s155 = sadd.s32 %s154, 1
      %p158 = scmp.eq.s32.totalorder %s36, 1
      %p159 = scmp.ne.s32.totalorder %s154, %s156
      %p160 = scmp.eq.s32.totalorder %s36, 0
      %p161 = por %p159, %p160
      %p162 = scmp.ne.s32.totalorder %s154, %s156
      %p163 = scmp.eq.s32.totalorder %s41, 1
      %p164 = por %p162, %p163
      %p165 = scmp.ne.s32.totalorder %s156, %s157
      %p166 = scmp.eq.s32.totalorder %s41, 0
      %p167 = por %p165, %p166
      %p168 = scmp.ne.s32.totalorder %s156, %s157
      %p169 = scmp.eq.s32.totalorder %s42, 1
      %p170 = por %p168, %p169
      %p172 = scmp.ne.s32.totalorder %s157, %s171
      %p173 = scmp.eq.s32.totalorder %s42, 0
      %p174 = por %p172, %p173
      %s176 = sadd.s32 %s175, 1
      %p179 = scmp.eq.s32.totalorder %s36, 1
      %p180 = scmp.ne.s32.totalorder %s175, %s177
      %p181 = scmp.eq.s32.totalorder %s36, 0
      %p182 = por %p180, %p181
      %p183 = scmp.ne.s32.totalorder %s175, %s177
      %p184 = scmp.eq.s32.totalorder %s41, 1
      %p185 = por %p183, %p184
      %p186 = scmp.ne.s32.totalorder %s177, %s178
      %p187 = scmp.eq.s32.totalorder %s41, 0
      %p188 = por %p186, %p187
      %p189 = scmp.ne.s32.totalorder %s177, %s178
      %p190 = scmp.eq.s32.totalorder %s42, 1
      %p191 = por %p189, %p190
      %p193 = scmp.ne.s32.totalorder %s178, %s192
      %p194 = scmp.eq.s32.totalorder %s42, 0
      %p195 = por %p193, %p194
      %s197 = sadd.s32 %s196, 1
      %p200 = scmp.eq.s32.totalorder %s36, 1
      %p201 = scmp.ne.s32.totalorder %s196, %s198
      %p202 = scmp.eq.s32.totalorder %s36, 0
      %p203 = por %p201, %p202
      %p204 = scmp.ne.s32.totalorder %s196, %s198
      %p205 = scmp.eq.s32.totalorder %s41, 1
      %p206 = por %p204, %p205
      %p207 = scmp.ne.s32.totalorder %s198, %s199
      %p208 = scmp.eq.s32.totalorder %s41, 0
      %p209 = por %p207, %p208
      %p210 = scmp.ne.s32.totalorder %s198, %s199
      %p211 = scmp.eq.s32.totalorder %s42, 1
      %p212 = por %p210, %p211
      %p214 = scmp.ne.s32.totalorder %s199, %s213
      %p215 = scmp.eq.s32.totalorder %s42, 0
      %p216 = por %p214, %p215
      %s218 = sadd.s32 %s217, 1
      %p221 = scmp.eq.s32.totalorder %s36, 1
      %p222 = scmp.ne.s32.totalorder %s217, %s219
      %p223 = scmp.eq.s32.totalorder %s36, 0
      %p224 = por %p222, %p223
      %p225 = scmp.ne.s32.totalorder %s217, %s219
      %p226 = scmp.eq.s32.totalorder %s41, 1
      %p227 = por %p225, %p226
      %p228 = scmp.ne.s32.totalorder %s219, %s220
      %p229 = scmp.eq.s32.totalorder %s41, 0
      %p230 = por %p228, %p229
      %p231 = scmp.ne.s32.totalorder %s219, %s220
      %p232 = scmp.eq.s32.totalorder %s42, 1
      %p233 = por %p231, %p232
      %p235 = scmp.ne.s32.totalorder %s220, %s234
      %p236 = scmp.eq.s32.totalorder %s42, 0
      %p237 = por %p235, %p236
      %s239 = sadd.s32 %s238, 1
      %p242 = scmp.eq.s32.totalorder %s36, 1
      %p243 = scmp.ne.s32.totalorder %s238, %s240
      %p244 = scmp.eq.s32.totalorder %s36, 0
      %p245 = por %p243, %p244
      %p246 = scmp.ne.s32.totalorder %s238, %s240
      %p247 = scmp.eq.s32.totalorder %s41, 1
      %p248 = por %p246, %p247
      %p249 = scmp.ne.s32.totalorder %s240, %s241
      %p250 = scmp.eq.s32.totalorder %s41, 0
      %p251 = por %p249, %p250
      %p252 = scmp.ne.s32.totalorder %s240, %s241
      %p253 = scmp.eq.s32.totalorder %s42, 1
      %p254 = por %p252, %p253
      %p256 = scmp.ne.s32.totalorder %s241, %s255
      %p257 = scmp.eq.s32.totalorder %s42, 0
      %p258 = por %p256, %p257
      %s260 = sadd.s32 %s259, 1
      %p263 = scmp.eq.s32.totalorder %s36, 1
      %p264 = scmp.ne.s32.totalorder %s259, %s261
      %p265 = scmp.eq.s32.totalorder %s36, 0
      %p266 = por %p264, %p265
      %p267 = scmp.ne.s32.totalorder %s259, %s261
      %p268 = scmp.eq.s32.totalorder %s41, 1
      %p269 = por %p267, %p268
      %p270 = scmp.ne.s32.totalorder %s261, %s262
      %p271 = scmp.eq.s32.totalorder %s41, 0
      %p272 = por %p270, %p271
      %p273 = scmp.ne.s32.totalorder %s261, %s262
      %p274 = scmp.eq.s32.totalorder %s42, 1
      %p275 = por %p273, %p274
      %p277 = scmp.ne.s32.totalorder %s262, %s276
      %p278 = scmp.eq.s32.totalorder %s42, 0
      %p279 = por %p277, %p278
      %s281 = sadd.s32 %s280, 1
      %p284 = scmp.eq.s32.totalorder %s36, 1
      %p285 = scmp.ne.s32.totalorder %s280, %s282
      %p286 = scmp.eq.s32.totalorder %s36, 0
      %p287 = por %p285, %p286
      %p288 = scmp.ne.s32.totalorder %s280, %s282
      %p289 = scmp.eq.s32.totalorder %s41, 1
      %p290 = por %p288, %p289
      %p291 = scmp.ne.s32.totalorder %s282, %s283
      %p292 = scmp.eq.s32.totalorder %s41, 0
      %p293 = por %p291, %p292
      %p294 = scmp.ne.s32.totalorder %s282, %s283
      %p295 = scmp.eq.s32.totalorder %s42, 1
      %p296 = por %p294, %p295
      %p298 = scmp.ne.s32.totalorder %s283, %s297
      %p299 = scmp.eq.s32.totalorder %s42, 0
      %p300 = por %p298, %p299
      %s302 = sadd.s32 %s301, 1
      %p305 = scmp.eq.s32.totalorder %s36, 1
      %p306 = scmp.ne.s32.totalorder %s301, %s303
      %p307 = scmp.eq.s32.totalorder %s36, 0
      %p308 = por %p306, %p307
      %p309 = scmp.ne.s32.totalorder %s301, %s303
      %p310 = scmp.eq.s32.totalorder %s41, 1
      %p311 = por %p309, %p310
      %p312 = scmp.ne.s32.totalorder %s303, %s304
      %p313 = scmp.eq.s32.totalorder %s41, 0
      %p314 = por %p312, %p313
      %p315 = scmp.ne.s32.totalorder %s303, %s304
      %p316 = scmp.eq.s32.totalorder %s42, 1
      %p317 = por %p315, %p316
      %p319 = scmp.ne.s32.totalorder %s304, %s318
      %p320 = scmp.eq.s32.totalorder %s42, 0
      %p321 = por %p319, %p320
      %s323 = sadd.s32 %s322, 1
      %p326 = scmp.eq.s32.totalorder %s36, 1
      %p327 = scmp.ne.s32.totalorder %s322, %s324
      %p328 = scmp.eq.s32.totalorder %s36, 0
      %p329 = por %p327, %p328
      %p330 = scmp.ne.s32.totalorder %s322, %s324
      %p331 = scmp.eq.s32.totalorder %s41, 1
      %p332 = por %p330, %p331
      %p333 = scmp.ne.s32.totalorder %s324, %s325
      %p334 = scmp.eq.s32.totalorder %s41, 0
      %p335 = por %p333, %p334
      %p336 = scmp.ne.s32.totalorder %s324, %s325
      %p337 = scmp.eq.s32.totalorder %s42, 1
      %p338 = por %p336, %p337
      %p340 = scmp.ne.s32.totalorder %s325, %s339
      %p341 = scmp.eq.s32.totalorder %s42, 0
      %p342 = por %p340, %p341
      %s344 = sadd.s32 %s343, 1
      %p347 = scmp.eq.s32.totalorder %s36, 1
      %p348 = scmp.ne.s32.totalorder %s343, %s345
      %p349 = scmp.eq.s32.totalorder %s36, 0
      %p350 = por %p348, %p349
      %p351 = scmp.ne.s32.totalorder %s343, %s345
      %p352 = scmp.eq.s32.totalorder %s41, 1
      %p353 = por %p351, %p352
      %p354 = scmp.ne.s32.totalorder %s345, %s346
      %p355 = scmp.eq.s32.totalorder %s41, 0
      %p356 = por %p354, %p355
      %p357 = scmp.ne.s32.totalorder %s345, %s346
      %p358 = scmp.eq.s32.totalorder %s42, 1
      %p359 = por %p357, %p358
      %p361 = scmp.ne.s32.totalorder %s346, %s360
      %p362 = scmp.eq.s32.totalorder %s42, 0
      %p363 = por %p361, %p362
      %s365 = sadd.s32 %s364, 1
      %p368 = scmp.eq.s32.totalorder %s36, 1
      %p369 = scmp.ne.s32.totalorder %s364, %s366
      %p370 = scmp.eq.s32.totalorder %s36, 0
      %p371 = por %p369, %p370
      %p372 = scmp.ne.s32.totalorder %s364, %s366
      %p373 = scmp.eq.s32.totalorder %s41, 1
      %p374 = por %p372, %p373
      %p375 = scmp.ne.s32.totalorder %s366, %s367
      %p376 = scmp.eq.s32.totalorder %s41, 0
      %p377 = por %p375, %p376
      %p378 = scmp.ne.s32.totalorder %s366, %s367
      %p379 = scmp.eq.s32.totalorder %s42, 1
      %p380 = por %p378, %p379
      %p382 = scmp.ne.s32.totalorder %s367, %s381
      %p383 = scmp.eq.s32.totalorder %s42, 0
      %p384 = por %p382, %p383
      %s386 = sadd.s32 %s385, 1
      %p389 = scmp.eq.s32.totalorder %s36, 1
      %p390 = scmp.ne.s32.totalorder %s385, %s387
      %p391 = scmp.eq.s32.totalorder %s36, 0
      %p392 = por %p390, %p391
      %p393 = scmp.ne.s32.totalorder %s385, %s387
      %p394 = scmp.eq.s32.totalorder %s41, 1
      %p395 = por %p393, %p394
      %p396 = scmp.ne.s32.totalorder %s387, %s388
      %p397 = scmp.eq.s32.totalorder %s41, 0
      %p398 = por %p396, %p397
      %p399 = scmp.ne.s32.totalorder %s387, %s388
      %p400 = scmp.eq.s32.totalorder %s42, 1
      %p401 = por %p399, %p400
      %p403 = scmp.ne.s32.totalorder %s388, %s402
      %p404 = scmp.eq.s32.totalorder %s42, 0
      %p405 = por %p403, %p404
      %s407 = sadd.s32 %s406, 1
      %p410 = scmp.eq.s32.totalorder %s36, 1
      %p411 = scmp.ne.s32.totalorder %s406, %s408
      %p412 = scmp.eq.s32.totalorder %s36, 0
      %p413 = por %p411, %p412
      %p414 = scmp.ne.s32.totalorder %s406, %s408
      %p415 = scmp.eq.s32.totalorder %s41, 1
      %p416 = por %p414, %p415
      %p417 = scmp.ne.s32.totalorder %s408, %s409
      %p418 = scmp.eq.s32.totalorder %s41, 0
      %p419 = por %p417, %p418
      %p420 = scmp.ne.s32.totalorder %s408, %s409
      %p421 = scmp.eq.s32.totalorder %s42, 1
      %p422 = por %p420, %p421
      %p424 = scmp.ne.s32.totalorder %s409, %s423
      %p425 = scmp.eq.s32.totalorder %s42, 0
      %p426 = por %p424, %p425
      %s428 = sadd.s32 %s427, 1
      %p431 = scmp.eq.s32.totalorder %s36, 1
      %p432 = scmp.ne.s32.totalorder %s427, %s429
      %p433 = scmp.eq.s32.totalorder %s36, 0
      %p434 = por %p432, %p433
      %p435 = scmp.ne.s32.totalorder %s427, %s429
      %p436 = scmp.eq.s32.totalorder %s41, 1
      %p437 = por %p435, %p436
      %p438 = scmp.ne.s32.totalorder %s429, %s430
      %p439 = scmp.eq.s32.totalorder %s41, 0
      %p440 = por %p438, %p439
      %p441 = scmp.ne.s32.totalorder %s429, %s430
      %p442 = scmp.eq.s32.totalorder %s42, 1
      %p443 = por %p441, %p442
      %p445 = scmp.ne.s32.totalorder %s430, %s444
      %p446 = scmp.eq.s32.totalorder %s42, 0
      %p447 = por %p445, %p446
      %s449 = sadd.s32 %s448, 1
      %p452 = scmp.eq.s32.totalorder %s36, 1
      %p453 = scmp.ne.s32.totalorder %s448, %s450
      %p454 = scmp.eq.s32.totalorder %s36, 0
      %p455 = por %p453, %p454
      %p456 = scmp.ne.s32.totalorder %s448, %s450
      %p457 = scmp.eq.s32.totalorder %s41, 1
      %p458 = por %p456, %p457
      %p459 = scmp.ne.s32.totalorder %s450, %s451
      %p460 = scmp.eq.s32.totalorder %s41, 0
      %p461 = por %p459, %p460
      %p462 = scmp.ne.s32.totalorder %s450, %s451
      %p463 = scmp.eq.s32.totalorder %s42, 1
      %p464 = por %p462, %p463
      %p466 = scmp.ne.s32.totalorder %s451, %s465
      %p467 = scmp.eq.s32.totalorder %s42, 0
      %p468 = por %p466, %p467
      %s469 = ssub.s32 %s36, %s43
      %p470 = scmp.eq.s32.totalorder %s469, 0
      %s472 = sadd.s32 %s471, 1
      %s473 = scalar_select %p470, %s471, %s472
      %p476 = pneg %p470
      %p477 = scmp.eq.s32.totalorder %s36, 1
      %p478 = por %p476, %p477
      %p479 = scmp.ne.s32.totalorder %s471, %s474
      %p480 = scmp.eq.s32.totalorder %s36, 0
      %p481 = por %p479, %p480
      %p482 = scmp.ne.s32.totalorder %s471, %s474
      %p483 = scmp.eq.s32.totalorder %s41, 1
      %p484 = por %p482, %p483
      %p485 = scmp.ne.s32.totalorder %s474, %s475
      %p486 = scmp.eq.s32.totalorder %s41, 0
      %p487 = por %p485, %p486
      %p488 = scmp.ne.s32.totalorder %s474, %s475
      %p489 = scmp.eq.s32.totalorder %s42, 1
      %p490 = por %p488, %p489
      %p492 = scmp.ne.s32.totalorder %s475, %s491
      %p493 = scmp.eq.s32.totalorder %s42, 0
      %p494 = por %p492, %p493
      %p495 = scmp.le.s32.totalorder 1, %s36
      %p496 = scmp.lt.s32.totalorder %s36, 3
      %p497 = pnand %p495, %p496
      %p498 = pneg %p497
      // Predicated region
      $region9: #{tpu_custom_call.1} parent=5 // pred_check
        _
      $region10: #{tpu_custom_call.1} parent=5 // pred_check_branch
        %500 = sbr.rel (%p497) target = $region12
      $region11: #{tpu_custom_call.1} parent=5 // pred_region
        %s501 = ssub.s32 %s36, 1
        // Predicated region
        $region13: #{tpu_custom_call.1} parent=11 // pred_check
          %p502 = pneg %p83
        $region14: #{tpu_custom_call.1} parent=11 // pred_check_branch
          %504 = sbr.rel (%p502) target = $region16
        $region15: #{tpu_custom_call.1} parent=11 // pred_region
          _
        $region16: #{tpu_custom_call.1} parent=11 // pred_fallthru
          _
        // Predicated region
        $region17: #{tpu_custom_call.1} parent=11 // pred_check
          %p505 = pneg %p104
        $region18: #{tpu_custom_call.1} parent=11 // pred_check_branch
          %507 = sbr.rel (%p505) target = $region20
        $region19: #{tpu_custom_call.1} parent=11 // pred_region
          %s509 = ssub.s32 16, 16
          %510 = vsyncadd [#allocation5], %s509
          %s512 = sshll.u32 [#allocation4], 4
          %s513 = int_to_ptr.vmem [resolvable:$true] %s512
          %515 = dma.hbm_to_vmem [thread:$0]  %s2, 16, %s513, [#allocation5]
        $region20: #{tpu_custom_call.1} parent=11 // pred_fallthru
          _
        // Predicated region
        $region21: #{tpu_custom_call.1} parent=11 // pred_check
          %p516 = pneg %p125
        $region22: #{tpu_custom_call.1} parent=11 // pred_check_branch
          %518 = sbr.rel (%p516) target = $region24
        $region23: #{tpu_custom_call.1} parent=11 // pred_region
          %s520 = ssub.s32 2048, 2048
          %521 = vsyncadd [#allocation8], %s520
          %s522 = sshll.u32 [#allocation7], 4
          %s523 = int_to_ptr.vmem [resolvable:$true] %s522
          %528 = dma.hbm_to_vmem [thread:$0]  %s3, 2048, %s523, [#allocation8], 128, 128, 8
        $region24: #{tpu_custom_call.1} parent=11 // pred_fallthru
          _
        // Predicated region
        $region25: #{tpu_custom_call.1} parent=11 // pred_check
          %p529 = pneg %p146
        $region26: #{tpu_custom_call.1} parent=11 // pred_check_branch
          %531 = sbr.rel (%p529) target = $region28
        $region27: #{tpu_custom_call.1} parent=11 // pred_region
          _
        $region28: #{tpu_custom_call.1} parent=11 // pred_fallthru
          _
        // Predicated region
        $region29: #{tpu_custom_call.1} parent=11 // pred_check
          %p532 = pneg %p167
        $region30: #{tpu_custom_call.1} parent=11 // pred_check_branch
          %534 = sbr.rel (%p532) target = $region32
        $region31: #{tpu_custom_call.1} parent=11 // pred_region
          _
        $region32: #{tpu_custom_call.1} parent=11 // pred_fallthru
          _
        // Predicated region
        $region33: #{tpu_custom_call.1} parent=11 // pred_check
          %p535 = pneg %p188
        $region34: #{tpu_custom_call.1} parent=11 // pred_check_branch
          %537 = sbr.rel (%p535) target = $region36
        $region35: #{tpu_custom_call.1} parent=11 // pred_region
          %s539 = ssub.s32 32, 32
          %540 = vsyncadd [#allocation8], %s539
          %s541 = sshll.u32 [#allocation9], 4
          %s542 = int_to_ptr.vmem [resolvable:$true] %s541
          %547 = dma.hbm_to_vmem [thread:$0]  %s6, 32, %s542, [#allocation8], 16, 16, 1
        $region36: #{tpu_custom_call.1} parent=11 // pred_fallthru
          _
        // Predicated region
        $region37: #{tpu_custom_call.1} parent=11 // pred_check
          %p548 = pneg %p209
        $region38: #{tpu_custom_call.1} parent=11 // pred_check_branch
          %550 = sbr.rel (%p548) target = $region40
        $region39: #{tpu_custom_call.1} parent=11 // pred_region
          %s552 = ssub.s32 32, 32
          %553 = vsyncadd [#allocation11], %s552
          %s554 = sshll.u32 [#allocation10], 4
          %s555 = int_to_ptr.vmem [resolvable:$true] %s554
          %560 = dma.hbm_to_vmem [thread:$0]  %s7, 32, %s555, [#allocation11], 16, 16, 1
        $region40: #{tpu_custom_call.1} parent=11 // pred_fallthru
          _
        // Predicated region
        $region41: #{tpu_custom_call.1} parent=11 // pred_check
          %p561 = pneg %p230
        $region42: #{tpu_custom_call.1} parent=11 // pred_check_branch
          %563 = sbr.rel (%p561) target = $region44
        $region43: #{tpu_custom_call.1} parent=11 // pred_region
          %s565 = ssub.s32 32, 32
          %566 = vsyncadd [#allocation11], %s565
          %s567 = sshll.u32 [#allocation12], 4
          %s568 = int_to_ptr.vmem [resolvable:$true] %s567
          %573 = dma.hbm_to_vmem [thread:$0]  %s8, 32, %s568, [#allocation11], 16, 16, 1
        $region44: #{tpu_custom_call.1} parent=11 // pred_fallthru
          _
        // Predicated region
        $region45: #{tpu_custom_call.1} parent=11 // pred_check
          %p574 = pneg %p251
        $region46: #{tpu_custom_call.1} parent=11 // pred_check_branch
          %576 = sbr.rel (%p574) target = $region48
        $region47: #{tpu_custom_call.1} parent=11 // pred_region
          %s578 = ssub.s32 32, 32
          %579 = vsyncadd [#allocation14], %s578
          %s580 = sshll.u32 [#allocation13], 4
          %s581 = int_to_ptr.vmem [resolvable:$true] %s580
          %586 = dma.hbm_to_vmem [thread:$0]  %s9, 32, %s581, [#allocation14], 16, 16, 1
        $region48: #{tpu_custom_call.1} parent=11 // pred_fallthru
          _
        // Predicated region
        $region49: #{tpu_custom_call.1} parent=11 // pred_check
          %p587 = pneg %p272
        $region50: #{tpu_custom_call.1} parent=11 // pred_check_branch
          %589 = sbr.rel (%p587) target = $region52
        $region51: #{tpu_custom_call.1} parent=11 // pred_region
          %s591 = ssub.s32 32, 32
          %592 = vsyncadd [#allocation14], %s591
          %s593 = sshll.u32 [#allocation15], 4
          %s594 = int_to_ptr.vmem [resolvable:$true] %s593
          %599 = dma.hbm_to_vmem [thread:$0]  %s10, 32, %s594, [#allocation14], 16, 16, 1
        $region52: #{tpu_custom_call.1} parent=11 // pred_fallthru
          _
        // Predicated region
        $region53: #{tpu_custom_call.1} parent=11 // pred_check
          %p600 = pneg %p293
        $region54: #{tpu_custom_call.1} parent=11 // pred_check_branch
          %602 = sbr.rel (%p600) target = $region56
        $region55: #{tpu_custom_call.1} parent=11 // pred_region
          %s604 = ssub.s32 1024, 1024
          %605 = vsyncadd [#allocation17], %s604
          %s606 = sshll.u32 [#allocation16], 4
          %s607 = int_to_ptr.vmem [resolvable:$true] %s606
          %612 = dma.hbm_to_vmem [thread:$0]  %s11, 1024, %s607, [#allocation17], 64, 64, 4
        $region56: #{tpu_custom_call.1} parent=11 // pred_fallthru
          _
        // Predicated region
        $region57: #{tpu_custom_call.1} parent=11 // pred_check
          %p613 = pneg %p314
        $region58: #{tpu_custom_call.1} parent=11 // pred_check_branch
          %615 = sbr.rel (%p613) target = $region60
        $region59: #{tpu_custom_call.1} parent=11 // pred_region
          %s617 = ssub.s32 32, 32
          %618 = vsyncadd [#allocation17], %s617
          %s619 = sshll.u32 [#allocation18], 4
          %s620 = int_to_ptr.vmem [resolvable:$true] %s619
          %625 = dma.hbm_to_vmem [thread:$0]  %s12, 32, %s620, [#allocation17], 16, 16, 1
        $region60: #{tpu_custom_call.1} parent=11 // pred_fallthru
          _
        // Predicated region
        $region61: #{tpu_custom_call.1} parent=11 // pred_check
          %p626 = pneg %p335
        $region62: #{tpu_custom_call.1} parent=11 // pred_check_branch
          %628 = sbr.rel (%p626) target = $region64
        $region63: #{tpu_custom_call.1} parent=11 // pred_region
          _
        $region64: #{tpu_custom_call.1} parent=11 // pred_fallthru
          _
        // Predicated region
        $region65: #{tpu_custom_call.1} parent=11 // pred_check
          %p629 = pneg %p356
        $region66: #{tpu_custom_call.1} parent=11 // pred_check_branch
          %631 = sbr.rel (%p629) target = $region68
        $region67: #{tpu_custom_call.1} parent=11 // pred_region
          %s633 = ssub.s32 32, 32
          %634 = vsyncadd [#allocation20], %s633
          %s635 = sshll.u32 [#allocation19], 4
          %s636 = int_to_ptr.vmem [resolvable:$true] %s635
          %641 = dma.hbm_to_vmem [thread:$0]  %s14, 32, %s636, [#allocation20], 16, 16, 1
        $region68: #{tpu_custom_call.1} parent=11 // pred_fallthru
          _
        // Predicated region
        $region69: #{tpu_custom_call.1} parent=11 // pred_check
          %p642 = pneg %p377
        $region70: #{tpu_custom_call.1} parent=11 // pred_check_branch
          %644 = sbr.rel (%p642) target = $region72
        $region71: #{tpu_custom_call.1} parent=11 // pred_region
          _
        $region72: #{tpu_custom_call.1} parent=11 // pred_fallthru
          _
        // Predicated region
        $region73: #{tpu_custom_call.1} parent=11 // pred_check
          %p645 = pneg %p398
        $region74: #{tpu_custom_call.1} parent=11 // pred_check_branch
          %647 = sbr.rel (%p645) target = $region76
        $region75: #{tpu_custom_call.1} parent=11 // pred_region
          _
        $region76: #{tpu_custom_call.1} parent=11 // pred_fallthru
          _
        // Predicated region
        $region77: #{tpu_custom_call.1} parent=11 // pred_check
          %p648 = pneg %p419
        $region78: #{tpu_custom_call.1} parent=11 // pred_check_branch
          %650 = sbr.rel (%p648) target = $region80
        $region79: #{tpu_custom_call.1} parent=11 // pred_region
          %s652 = ssub.s32 16, 16
          %653 = vsyncadd [#allocation20], %s652
          %s655 = sshll.u32 [#allocation21], 4
          %s656 = int_to_ptr.vmem [resolvable:$true] %s655
          %658 = dma.hbm_to_vmem [thread:$0]  %s17, 16, %s656, [#allocation20]
        $region80: #{tpu_custom_call.1} parent=11 // pred_fallthru
          _
        // Predicated region
        $region81: #{tpu_custom_call.1} parent=11 // pred_check
          %p659 = pneg %p440
        $region82: #{tpu_custom_call.1} parent=11 // pred_check_branch
          %661 = sbr.rel (%p659) target = $region84
        $region83: #{tpu_custom_call.1} parent=11 // pred_region
          %s663 = ssub.s32 512, 512
          %664 = vsyncadd [#allocation23], %s663
          %s665 = sshll.u32 [#allocation22], 4
          %s666 = int_to_ptr.vmem [resolvable:$true] %s665
          %671 = dma.hbm_to_vmem [thread:$0]  %s18, 512, %s666, [#allocation23], 64, 64, 4
        $region84: #{tpu_custom_call.1} parent=11 // pred_fallthru
          _
        // Predicated region
        $region85: #{tpu_custom_call.1} parent=11 // pred_check
          %p672 = pneg %p461
        $region86: #{tpu_custom_call.1} parent=11 // pred_check_branch
          %674 = sbr.rel (%p672) target = $region88
        $region87: #{tpu_custom_call.1} parent=11 // pred_region
          _
        $region88: #{tpu_custom_call.1} parent=11 // pred_fallthru
          _
      $region12: #{tpu_custom_call.1} parent=5 // pred_fallthru
        _
      %p675 = scmp.lt.s32.totalorder %s36, 2
      // Predicated region
      $region89: #{tpu_custom_call.1} parent=5 // pred_check
        %p676 = pneg %p675
      $region90: #{tpu_custom_call.1} parent=5 // pred_check_branch
        %678 = sbr.rel (%p676) target = $region92
      $region91: #{tpu_custom_call.1} parent=5 // pred_region
        // Predicated region
        $region93: #{tpu_custom_call.1} parent=91 // pred_check
          %p679 = pneg %p56
        $region94: #{tpu_custom_call.1} parent=91 // pred_check_branch
          %681 = sbr.rel (%p679) target = $region96
        $region95: #{tpu_custom_call.1} parent=91 // pred_region
          %s682 = smul.u32 2, %s36
          %p683 = scmp.lt.s32.totalorder %s682, 3
          %s684 = scalar_select %p683, %s682, 3
          %s685 = smul.addr %s684, 8
          %s686 = scalar_lea.vmem %s0, %s685
          %s687 = smul.u32 2, %s36
        $region96: #{tpu_custom_call.1} parent=91 // pred_fallthru
          _
      $region92: #{tpu_custom_call.1} parent=5 // pred_fallthru
        _
      %p688 = scmp.le.s32.totalorder 1, %s36
      %p689 = scmp.lt.s32.totalorder %s36, 3
      %p690 = pnand %p688, %p689
      %p691 = pneg %p690
      // Predicated region
      $region97: #{tpu_custom_call.1} parent=5 // pred_check
        _
      $region98: #{tpu_custom_call.1} parent=5 // pred_check_branch
        %693 = sbr.rel (%p690) target = $region100
      $region99: #{tpu_custom_call.1} parent=5 // pred_region
        %s694 = ssub.s32 %s36, 1
        // Predicated region
        $region101: #{tpu_custom_call.1} parent=99 // pred_check
          %p695 = pneg %p104
        $region102: #{tpu_custom_call.1} parent=99 // pred_check_branch
          %697 = sbr.rel (%p695) target = $region104
        $region103: #{tpu_custom_call.1} parent=99 // pred_region
          %698 = dma.done [#allocation5], 16
        $region104: #{tpu_custom_call.1} parent=99 // pred_fallthru
          _
        // Predicated region
        $region105: #{tpu_custom_call.1} parent=99 // pred_check
          %p699 = pneg %p125
        $region106: #{tpu_custom_call.1} parent=99 // pred_check_branch
          %701 = sbr.rel (%p699) target = $region108
        $region107: #{tpu_custom_call.1} parent=99 // pred_region
          %702 = dma.done [#allocation8], 2048
        $region108: #{tpu_custom_call.1} parent=99 // pred_fallthru
          _
        // Predicated region
        $region109: #{tpu_custom_call.1} parent=99 // pred_check
          %p703 = pneg %p188
        $region110: #{tpu_custom_call.1} parent=99 // pred_check_branch
          %705 = sbr.rel (%p703) target = $region112
        $region111: #{tpu_custom_call.1} parent=99 // pred_region
          %706 = dma.done [#allocation8], 32
        $region112: #{tpu_custom_call.1} parent=99 // pred_fallthru
          _
        // Predicated region
        $region113: #{tpu_custom_call.1} parent=99 // pred_check
          %p707 = pneg %p209
        $region114: #{tpu_custom_call.1} parent=99 // pred_check_branch
          %709 = sbr.rel (%p707) target = $region116
        $region115: #{tpu_custom_call.1} parent=99 // pred_region
          %710 = dma.done [#allocation11], 32
        $region116: #{tpu_custom_call.1} parent=99 // pred_fallthru
          _
        // Predicated region
        $region117: #{tpu_custom_call.1} parent=99 // pred_check
          %p711 = pneg %p230
        $region118: #{tpu_custom_call.1} parent=99 // pred_check_branch
          %713 = sbr.rel (%p711) target = $region120
        $region119: #{tpu_custom_call.1} parent=99 // pred_region
          %714 = dma.done [#allocation11], 32
        $region120: #{tpu_custom_call.1} parent=99 // pred_fallthru
          _
        // Predicated region
        $region121: #{tpu_custom_call.1} parent=99 // pred_check
          %p715 = pneg %p251
        $region122: #{tpu_custom_call.1} parent=99 // pred_check_branch
          %717 = sbr.rel (%p715) target = $region124
        $region123: #{tpu_custom_call.1} parent=99 // pred_region
          %718 = dma.done [#allocation14], 32
        $region124: #{tpu_custom_call.1} parent=99 // pred_fallthru
          _
        // Predicated region
        $region125: #{tpu_custom_call.1} parent=99 // pred_check
          %p719 = pneg %p272
        $region126: #{tpu_custom_call.1} parent=99 // pred_check_branch
          %721 = sbr.rel (%p719) target = $region128
        $region127: #{tpu_custom_call.1} parent=99 // pred_region
          %722 = dma.done [#allocation14], 32
        $region128: #{tpu_custom_call.1} parent=99 // pred_fallthru
          _
        // Predicated region
        $region129: #{tpu_custom_call.1} parent=99 // pred_check
          %p723 = pneg %p293
        $region130: #{tpu_custom_call.1} parent=99 // pred_check_branch
          %725 = sbr.rel (%p723) target = $region132
        $region131: #{tpu_custom_call.1} parent=99 // pred_region
          %726 = dma.done [#allocation17], 1024
        $region132: #{tpu_custom_call.1} parent=99 // pred_fallthru
          _
        // Predicated region
        $region133: #{tpu_custom_call.1} parent=99 // pred_check
          %p727 = pneg %p314
        $region134: #{tpu_custom_call.1} parent=99 // pred_check_branch
          %729 = sbr.rel (%p727) target = $region136
        $region135: #{tpu_custom_call.1} parent=99 // pred_region
          %730 = dma.done [#allocation17], 32
        $region136: #{tpu_custom_call.1} parent=99 // pred_fallthru
          _
        // Predicated region
        $region137: #{tpu_custom_call.1} parent=99 // pred_check
          %p731 = pneg %p356
        $region138: #{tpu_custom_call.1} parent=99 // pred_check_branch
          %733 = sbr.rel (%p731) target = $region140
        $region139: #{tpu_custom_call.1} parent=99 // pred_region
          %734 = dma.done [#allocation20], 32
        $region140: #{tpu_custom_call.1} parent=99 // pred_fallthru
          _
        // Predicated region
        $region141: #{tpu_custom_call.1} parent=99 // pred_check
          %p735 = pneg %p419
        $region142: #{tpu_custom_call.1} parent=99 // pred_check_branch
          %737 = sbr.rel (%p735) target = $region144
        $region143: #{tpu_custom_call.1} parent=99 // pred_region
          %738 = dma.done [#allocation20], 16
        $region144: #{tpu_custom_call.1} parent=99 // pred_fallthru
          _
        // Predicated region
        $region145: #{tpu_custom_call.1} parent=99 // pred_check
          %p739 = pneg %p440
        $region146: #{tpu_custom_call.1} parent=99 // pred_check_branch
          %741 = sbr.rel (%p739) target = $region148
        $region147: #{tpu_custom_call.1} parent=99 // pred_region
          %742 = dma.done [#allocation23], 512
        $region148: #{tpu_custom_call.1} parent=99 // pred_fallthru
          _
        %s743 = smul.u32 2, %s41
        %p744 = scmp.lt.s32.totalorder %s743, 3
        %s745 = scalar_select %p744, %s743, 3
        %s746 = smul.addr %s745, 8
        %s747 = scalar_lea.vmem %s0, %s746
        %p748 = pneg %p62
        %p749 = pneg %p59
        %p750 = pneg %p83
        %p751 = pneg %p80
        %p752 = pneg %p104
        %p753 = pneg %p101
        %p754 = pneg %p125
        %p755 = pneg %p122
        %p756 = pneg %p146
        %p757 = pneg %p143
        %p758 = pneg %p167
        %p759 = pneg %p164
        %p760 = pneg %p188
        %p761 = pneg %p185
        %p762 = pneg %p209
        %p763 = pneg %p206
        %p764 = pneg %p230
        %p765 = pneg %p227
        %p766 = pneg %p251
        %p767 = pneg %p248
        %p768 = pneg %p272
        %p769 = pneg %p269
        %p770 = pneg %p293
        %p771 = pneg %p290
        %p772 = pneg %p314
        %p773 = pneg %p311
        %p774 = pneg %p335
        %p775 = pneg %p332
        %p776 = pneg %p356
        %p777 = pneg %p353
        %p778 = pneg %p377
        %p779 = pneg %p374
        %p780 = pneg %p398
        %p781 = pneg %p395
        %p782 = pneg %p419
        %p783 = pneg %p416
        %p784 = pneg %p440
        %p785 = pneg %p437
        %p786 = pneg %p461
        %p787 = pneg %p458
        %p788 = pneg %p487
        %p789 = pneg %p484
        %s790 = sand.u32 %s474, 1
        %s791 = scalar_lea.sflag [#allocation6], %s790
        %s792 = sand.u32 %s474, 1
        %s793 = smul.addr %s792, 16
        %s794 = scalar_lea.vmem [#allocation24], %s793
        %s795 = smul.u32 2, %s41
        %p796 = scmp.lt.s32.totalorder %s795, 3
        %s797 = scalar_select %p796, %s795, 3
        %s798 = smul.addr %s797, 8
        %s799 = scalar_lea.vmem %s0, %s798
        %s800 = smul.u32 2, %s41
        %s801 = smul.u32 2, %s41
        %v803 = vld [vmem:[%s799] sm:$0xff]
        %v804 = vld [vmem:[%s799 + $0x8] sm:$0xff]
        %v805 = vld [vmem:[%s1] sm:$0x1]
        %v806 = vld [vmem:[#allocation4] sm:$0x1]
        %808 = vset.pattern.permute.xlu0 0
        %809 = vperm.xlu0 %808, %v803
        %v810 = vpop.permute.xlu0 %809
        %813 = vset.pattern.permute.xlu0 0
        %814 = vperm.xlu0 %813, %v804
        %v815 = vpop.permute.xlu0 %814
        %v818 = vlaneseq
        %v819 = vshrl.u32 %v818, 7
        %v820 = vsub.s32 0, %v819
        %v821 = vrot.slane %v805, %v820
        %v823 = vmul.f32 %v810, %v821
        %v824 = vmul.f32 %v815, %v821
        %v826 = vlaneseq
        %v827 = vshrl.u32 %v826, 7
        %v828 = vsub.s32 0, %v827
        %v829 = vrot.slane %v806, %v828
        %v831 = vadd.f32 %v823, %v829
        %v832 = vadd.f32 %v824, %v829
        %833 = vset.pattern.permute.xlu0 1
        %834 = vperm.xlu0 %833, %v803
        %v835 = vpop.permute.xlu0 %834
        %837 = vset.pattern.permute.xlu0 1
        %838 = vperm.xlu0 %837, %v804
        %v839 = vpop.permute.xlu0 %838
        %v841 = vmul.f32 %v835, %v821
        %v842 = vmul.f32 %v839, %v821
        %v843 = vadd.f32 %v841, %v829
        %v844 = vadd.f32 %v842, %v829
        %845 = vset.pattern.permute.xlu0 2
        %846 = vperm.xlu0 %845, %v803
        %v847 = vpop.permute.xlu0 %846
        %849 = vset.pattern.permute.xlu0 2
        %850 = vperm.xlu0 %849, %v804
        %v851 = vpop.permute.xlu0 %850
        %v853 = vmul.f32 %v847, %v821
        %v854 = vmul.f32 %v851, %v821
        %v855 = vadd.f32 %v853, %v829
        %v856 = vadd.f32 %v854, %v829
        %857 = vset.pattern.permute.xlu0 3
        %858 = vperm.xlu0 %857, %v803
        %v859 = vpop.permute.xlu0 %858
        %861 = vset.pattern.permute.xlu0 3
        %862 = vperm.xlu0 %861, %v804
        %v863 = vpop.permute.xlu0 %862
        %v865 = vmul.f32 %v859, %v821
        %v866 = vmul.f32 %v863, %v821
        %v867 = vadd.f32 %v865, %v829
        %v868 = vadd.f32 %v866, %v829
        %869 = vset.pattern.permute.xlu0 4
        %870 = vperm.xlu0 %869, %v803
        %v871 = vpop.permute.xlu0 %870
        %873 = vset.pattern.permute.xlu0 4
        %874 = vperm.xlu0 %873, %v804
        %v875 = vpop.permute.xlu0 %874
        %v877 = vmul.f32 %v871, %v821
        %v878 = vmul.f32 %v875, %v821
        %v879 = vadd.f32 %v877, %v829
        %v880 = vadd.f32 %v878, %v829
        %v881 = vld [vmem:[%s15] sm:$0xf]
        %v882 = vld [vmem:[%s15 + $0x4] sm:$0xf]
        %v883 = vld [vmem:[%s15 + $0x8] sm:$0xf]
        %v884 = vld [vmem:[%s15 + $0xc] sm:$0xf]
        %v885 = vld [vmem:[%s15 + $0x10] sm:$0xf]
        %v886 = vld [vmem:[%s15 + $0x14] sm:$0xf]
        %v887 = vld [vmem:[%s15 + $0x18] sm:$0xf]
        %v888 = vld [vmem:[%s15 + $0x1c] sm:$0xf]
        %v889 = vld [vmem:[#allocation7] sm:$0xff]
        %v890 = vld [vmem:[#allocation7 + $0x8] sm:$0xff]
        %v891 = vld [vmem:[#allocation7 + $0x10] sm:$0xff]
        %v892 = vld [vmem:[#allocation7 + $0x18] sm:$0xff]
        %v893 = vld [vmem:[#allocation7 + $0x20] sm:$0xff]
        %v894 = vld [vmem:[#allocation7 + $0x28] sm:$0xff]
        %v895 = vld [vmem:[#allocation7 + $0x30] sm:$0xff]
        %v896 = vld [vmem:[#allocation7 + $0x38] sm:$0xff]
        %v897 = vpack.c.bf16 %v832, %v831
        %v898 = vpack.c.bf16 %v844, %v843
        %v899 = vpack.c.bf16 %v856, %v855
        %v900 = vpack.c.bf16 %v868, %v867
        %v901 = vpack.c.bf16 %v880, %v879
        %v902 = vld [vmem:[%s4] sm:$0x3]
        %v904 = vlaneseq
        %v905 = vshrl.u32 %v904, 7
        %v906 = vsub.s32 0, %v905
        %v907 = vrot.slane %v902, %v906
        %v908 = vlaneseq
        %v909 = vshrl.u32 %v908, 7
        %v910 = vsub.s32 1, %v909
        %v911 = vrot.slane %v902, %v910
        %v922 = vunpack.c.l.b16 %v889
        %v923 = vunpack.c.h.b16 %v889
        %v924 = vunpack.c.l.b16 %v890
        %v925 = vunpack.c.h.b16 %v890
        %v926 = vunpack.c.l.b16 %v891
        %v927 = vunpack.c.h.b16 %v891
        %v928 = vunpack.c.l.b16 %v892
        %v929 = vunpack.c.h.b16 %v892
        %v930 = vunpack.c.l.b16 %v893
        %v931 = vunpack.c.h.b16 %v893
        %v932 = vunpack.c.l.b16 %v894
        %v933 = vunpack.c.h.b16 %v894
        %v934 = vunpack.c.l.b16 %v895
        %v935 = vunpack.c.h.b16 %v895
        %v936 = vunpack.c.l.b16 %v896
        %v937 = vunpack.c.h.b16 %v896
        %v938 = vpack.c.b16 %v924, %v922
        %v939 = vpack.c.b16 %v925, %v923
        %v940 = vpack.c.b16 %v928, %v926
        %v941 = vpack.c.b16 %v929, %v927
        %v942 = vpack.c.b16 %v932, %v930
        %v943 = vpack.c.b16 %v933, %v931
        %v944 = vpack.c.b16 %v936, %v934
        %v945 = vpack.c.b16 %v937, %v935
        %vm954 = vcmask 523264
        %v956 = vsel %vm954, %v897, 0
        %v959 = vsel %vm954, %v898, 0
        %v962 = vsel %vm954, %v899, 0
        %v965 = vsel %vm954, %v900, 0
        %v968 = vsel %vm954, %v901, 0
        %970 = vmatprep.subr.bf16.mxu0 0
        %971 = vmatpush1.bf16.msra.mxu0 0
        %972 = vmatprep.subr.bf16.mxu0 0
        %973 = vmatpush1.bf16.msra.mxu0 0
        %974 = vmatprep.subr.bf16.mxu0 0
        %975 = vmatpush1.bf16.msra.mxu0 0
        %976 = vmatprep.subr.bf16.mxu0 0
        %977 = vmatpush1.bf16.msra.mxu0 0
        %978 = vmatprep.subr.bf16.mxu0 %v945
        %979 = vmatpush1.bf16.msra.mxu0 %v944
        %980 = vmatprep.subr.bf16.mxu0 %v943
        %981 = vmatpush1.bf16.msra.mxu0 %v942
        %982 = vmatprep.subr.bf16.mxu0 %v941
        %983 = vmatpush1.bf16.msra.mxu0 %v940
        %984 = vmatprep.subr.bf16.mxu0 %v939
        %985 = vmatpush1.bf16.msra.mxu0 %v938
        %986 = vmatprep.subr.bf16.mxu0 0
        %987 = vmatpush2.bf16.msra.mxu0 0
        %988 = vmatprep.subr.bf16.mxu0 0
        %989 = vmatpush2.bf16.msra.mxu0 0
        %990 = vmatprep.subr.bf16.mxu0 0
        %991 = vmatpush2.bf16.msra.mxu0 0
        %992 = vmatprep.subr.bf16.mxu0 0
        %993 = vmatpush2.bf16.msra.mxu0 0
        %994 = vmatprep.subr.bf16.mxu0 0
        %995 = vmatpush2.bf16.msra.mxu0 0
        %996 = vmatprep.subr.bf16.mxu0 0
        %997 = vmatpush2.bf16.msra.mxu0 0
        %998 = vmatprep.subr.bf16.mxu0 0
        %999 = vmatpush2.bf16.msra.mxu0 0
        %1000 = vmatprep.subr.bf16.mxu0 0
        %1001 = vmatpush2.bf16.msra.mxu0 0
        %1002 = vmatprep.mubr.bf16.mxu0 0
        %1003 = vmatmul.mubr.bf16.gmra.mxu0 %v956
        %v1004 = vpop.f32.mrf.mxu0
        %v1005 = vadd.f32 %v907, %v1004
        %v1006 = vpop.f32.mrf.mxu0
        %v1007 = vadd.f32 %v911, %v1006
        %v1008 = vpop.f32.mrf.mxu0
        %v1009 = vadd.f32 %v907, %v1008
        %v1010 = vpop.f32.mrf.mxu0
        %v1011 = vadd.f32 %v911, %v1010
        %1012 = vmatprep.mubr.bf16.mxu0 0
        %1013 = vmatmul.mubr.bf16.gmra.mxu0 %v959
        %v1014 = vpop.f32.mrf.mxu0
        %v1015 = vadd.f32 %v907, %v1014
        %v1016 = vpop.f32.mrf.mxu0
        %v1017 = vadd.f32 %v911, %v1016
        %v1018 = vpop.f32.mrf.mxu0
        %v1019 = vadd.f32 %v907, %v1018
        %v1020 = vpop.f32.mrf.mxu0
        %v1021 = vadd.f32 %v911, %v1020
        %1022 = vmatprep.mubr.bf16.mxu0 0
        %1023 = vmatmul.mubr.bf16.gmra.mxu0 %v962
        %v1024 = vpop.f32.mrf.mxu0
        %v1025 = vadd.f32 %v907, %v1024
        %v1026 = vpop.f32.mrf.mxu0
        %v1027 = vadd.f32 %v911, %v1026
        %v1028 = vpop.f32.mrf.mxu0
        %v1029 = vadd.f32 %v907, %v1028
        %v1030 = vpop.f32.mrf.mxu0
        %v1031 = vadd.f32 %v911, %v1030
        %1032 = vmatprep.mubr.bf16.mxu0 0
        %1033 = vmatmul.mubr.bf16.gmra.mxu0 %v965
        %v1034 = vpop.f32.mrf.mxu0
        %v1035 = vadd.f32 %v907, %v1034
        %v1036 = vpop.f32.mrf.mxu0
        %v1037 = vadd.f32 %v911, %v1036
        %v1038 = vpop.f32.mrf.mxu0
        %v1039 = vadd.f32 %v907, %v1038
        %v1040 = vpop.f32.mrf.mxu0
        %v1041 = vadd.f32 %v911, %v1040
        %1042 = vmatprep.mubr.bf16.mxu0 0
        %1043 = vmatmul.mubr.bf16.gmra.mxu0 %v968
        %v1044 = vpop.f32.mrf.mxu0
        %v1045 = vadd.f32 %v907, %v1044
        %v1046 = vpop.f32.mrf.mxu0
        %v1047 = vadd.f32 %v911, %v1046
        %v1048 = vpop.f32.mrf.mxu0
        %v1049 = vadd.f32 %v907, %v1048
        %v1050 = vpop.f32.mrf.mxu0
        %v1051 = vadd.f32 %v911, %v1050
        %1052 = vdwg.mxu0
        %1055 = vrot.lane.b32.xlu0 %v1005, 64
        %v1056 = vpop.permute.xlu0 %1055
        %1057 = vrot.lane.b32.xlu0 %v1009, 64
        %v1058 = vpop.permute.xlu0 %1057
        %v1061 = vmul.f32 %v1005, %v1056
        %v1062 = vmul.f32 %v1009, %v1058
        %v1063 = vpack.c.bf16 %v1062, %v1061
        %v1065 = vunpack.c.l.b16 %v1063
        %v1066 = vunpack.c.h.b16 %v1063
        %v1067 = vpack.c.b16 %v1065, %v1065
        %v1068 = vpack.c.b16 %v1066, %v1066
        %vm1071 = vcmask 519168
        %1072 = vst.msk [vmem:[#allocation2] sm:$0xf] %vm1071, %v1067
        %1073 = vst.msk [vmem:[#allocation2 + $0x4] sm:$0xf] %vm1071, %v1068
        %1076 = vrot.lane.b32.xlu0 %v1015, 64
        %v1077 = vpop.permute.xlu0 %1076
        %1078 = vrot.lane.b32.xlu0 %v1019, 64
        %v1079 = vpop.permute.xlu0 %1078
        %v1082 = vmul.f32 %v1005, %v1077
        %v1083 = vmul.f32 %v1009, %v1079
        %v1084 = vpack.c.bf16 %v1083, %v1082
        %v1086 = vunpack.c.l.b16 %v1084
        %v1087 = vunpack.c.h.b16 %v1084
        %v1088 = vpack.c.b16 %v1086, %v1086
        %v1089 = vpack.c.b16 %v1087, %v1087
        %1092 = vst.msk [vmem:[#allocation2 + $0x8] sm:$0xf] %vm1071, %v1088
        %1093 = vst.msk [vmem:[#allocation2 + $0xc] sm:$0xf] %vm1071, %v1089
        %1096 = vrot.lane.b32.xlu0 %v1025, 64
        %v1097 = vpop.permute.xlu0 %1096
        %1098 = vrot.lane.b32.xlu0 %v1029, 64
        %v1099 = vpop.permute.xlu0 %1098
        %v1102 = vmul.f32 %v1005, %v1097
        %v1103 = vmul.f32 %v1009, %v1099
        %v1104 = vpack.c.bf16 %v1103, %v1102
        %v1106 = vunpack.c.l.b16 %v1104
        %v1107 = vunpack.c.h.b16 %v1104
        %v1108 = vpack.c.b16 %v1106, %v1106
        %v1109 = vpack.c.b16 %v1107, %v1107
        %1112 = vst.msk [vmem:[#allocation2 + $0x10] sm:$0xf] %vm1071, %v1108
        %1113 = vst.msk [vmem:[#allocation2 + $0x14] sm:$0xf] %vm1071, %v1109
        %1116 = vrot.lane.b32.xlu0 %v1035, 64
        %v1117 = vpop.permute.xlu0 %1116
        %1118 = vrot.lane.b32.xlu0 %v1039, 64
        %v1119 = vpop.permute.xlu0 %1118
        %v1122 = vmul.f32 %v1005, %v1117
        %v1123 = vmul.f32 %v1009, %v1119
        %v1124 = vpack.c.bf16 %v1123, %v1122
        %v1126 = vunpack.c.l.b16 %v1124
        %v1127 = vunpack.c.h.b16 %v1124
        %v1128 = vpack.c.b16 %v1126, %v1126
        %v1129 = vpack.c.b16 %v1127, %v1127
        %1132 = vst.msk [vmem:[#allocation2 + $0x18] sm:$0xf] %vm1071, %v1128
        %1133 = vst.msk [vmem:[#allocation2 + $0x1c] sm:$0xf] %vm1071, %v1129
        %1136 = vrot.lane.b32.xlu0 %v1045, 64
        %v1137 = vpop.permute.xlu0 %1136
        %1138 = vrot.lane.b32.xlu0 %v1049, 64
        %v1139 = vpop.permute.xlu0 %1138
        %v1142 = vmul.f32 %v1005, %v1137
        %v1143 = vmul.f32 %v1009, %v1139
        %v1144 = vpack.c.bf16 %v1143, %v1142
        %v1146 = vunpack.c.l.b16 %v1144
        %v1147 = vunpack.c.h.b16 %v1144
        %v1148 = vpack.c.b16 %v1146, %v1146
        %v1149 = vpack.c.b16 %v1147, %v1147
        %1152 = vst.msk [vmem:[#allocation2 + $0x20] sm:$0xf] %vm1071, %v1148
        %1153 = vst.msk [vmem:[#allocation2 + $0x24] sm:$0xf] %vm1071, %v1149
        %v1154 = vmul.f32 %v1015, %v1056
        %v1155 = vmul.f32 %v1019, %v1058
        %v1156 = vpack.c.bf16 %v1155, %v1154
        %v1158 = vunpack.c.l.b16 %v1156
        %v1159 = vunpack.c.h.b16 %v1156
        %v1160 = vpack.c.b16 %v1158, %v1158
        %v1161 = vpack.c.b16 %v1159, %v1159
        %1164 = vst.msk [vmem:[#allocation2 + $0x28] sm:$0xf] %vm1071, %v1160
        %1165 = vst.msk [vmem:[#allocation2 + $0x2c] sm:$0xf] %vm1071, %v1161
        %v1166 = vmul.f32 %v1015, %v1077
        %v1167 = vmul.f32 %v1019, %v1079
        %v1168 = vpack.c.bf16 %v1167, %v1166
        %v1170 = vunpack.c.l.b16 %v1168
        %v1171 = vunpack.c.h.b16 %v1168
        %v1172 = vpack.c.b16 %v1170, %v1170
        %v1173 = vpack.c.b16 %v1171, %v1171
        %1176 = vst.msk [vmem:[#allocation2 + $0x30] sm:$0xf] %vm1071, %v1172
        %1177 = vst.msk [vmem:[#allocation2 + $0x34] sm:$0xf] %vm1071, %v1173
        %v1178 = vmul.f32 %v1015, %v1097
        %v1179 = vmul.f32 %v1019, %v1099
        %v1180 = vpack.c.bf16 %v1179, %v1178
        %v1182 = vunpack.c.l.b16 %v1180
        %v1183 = vunpack.c.h.b16 %v1180
        %v1184 = vpack.c.b16 %v1182, %v1182
        %v1185 = vpack.c.b16 %v1183, %v1183
        %1188 = vst.msk [vmem:[#allocation2 + $0x38] sm:$0xf] %vm1071, %v1184
        %1189 = vst.msk [vmem:[#allocation2 + $0x3c] sm:$0xf] %vm1071, %v1185
        %v1190 = vmul.f32 %v1015, %v1117
        %v1191 = vmul.f32 %v1019, %v1119
        %v1192 = vpack.c.bf16 %v1191, %v1190
        %v1194 = vunpack.c.l.b16 %v1192
        %v1195 = vunpack.c.h.b16 %v1192
        %v1196 = vpack.c.b16 %v1194, %v1194
        %v1197 = vpack.c.b16 %v1195, %v1195
        %1200 = vst.msk [vmem:[#allocation2 + $0x40] sm:$0xf] %vm1071, %v1196
        %1201 = vst.msk [vmem:[#allocation2 + $0x44] sm:$0xf] %vm1071, %v1197
        %v1202 = vmul.f32 %v1015, %v1137
        %v1203 = vmul.f32 %v1019, %v1139
        %v1204 = vpack.c.bf16 %v1203, %v1202
        %v1206 = vunpack.c.l.b16 %v1204
        %v1207 = vunpack.c.h.b16 %v1204
        %v1208 = vpack.c.b16 %v1206, %v1206
        %v1209 = vpack.c.b16 %v1207, %v1207
        %1212 = vst.msk [vmem:[#allocation2 + $0x48] sm:$0xf] %vm1071, %v1208
        %1213 = vst.msk [vmem:[#allocation2 + $0x4c] sm:$0xf] %vm1071, %v1209
        %v1214 = vmul.f32 %v1025, %v1056
        %v1215 = vmul.f32 %v1029, %v1058
        %v1216 = vpack.c.bf16 %v1215, %v1214
        %v1218 = vunpack.c.l.b16 %v1216
        %v1219 = vunpack.c.h.b16 %v1216
        %v1220 = vpack.c.b16 %v1218, %v1218
        %v1221 = vpack.c.b16 %v1219, %v1219
        %1224 = vst.msk [vmem:[#allocation2 + $0x50] sm:$0xf] %vm1071, %v1220
        %1225 = vst.msk [vmem:[#allocation2 + $0x54] sm:$0xf] %vm1071, %v1221
        %v1226 = vmul.f32 %v1025, %v1077
        %v1227 = vmul.f32 %v1029, %v1079
        %v1228 = vpack.c.bf16 %v1227, %v1226
        %v1230 = vunpack.c.l.b16 %v1228
        %v1231 = vunpack.c.h.b16 %v1228
        %v1232 = vpack.c.b16 %v1230, %v1230
        %v1233 = vpack.c.b16 %v1231, %v1231
        %1236 = vst.msk [vmem:[#allocation2 + $0x58] sm:$0xf] %vm1071, %v1232
        %1237 = vst.msk [vmem:[#allocation2 + $0x5c] sm:$0xf] %vm1071, %v1233
        %v1238 = vmul.f32 %v1025, %v1097
        %v1239 = vmul.f32 %v1029, %v1099
        %v1240 = vpack.c.bf16 %v1239, %v1238
        %v1242 = vunpack.c.l.b16 %v1240
        %v1243 = vunpack.c.h.b16 %v1240
        %v1244 = vpack.c.b16 %v1242, %v1242
        %v1245 = vpack.c.b16 %v1243, %v1243
        %1248 = vst.msk [vmem:[#allocation2 + $0x60] sm:$0xf] %vm1071, %v1244
        %1249 = vst.msk [vmem:[#allocation2 + $0x64] sm:$0xf] %vm1071, %v1245
        %v1250 = vmul.f32 %v1025, %v1117
        %v1251 = vmul.f32 %v1029, %v1119
        %v1252 = vpack.c.bf16 %v1251, %v1250
        %v1254 = vunpack.c.l.b16 %v1252
        %v1255 = vunpack.c.h.b16 %v1252
        %v1256 = vpack.c.b16 %v1254, %v1254
        %v1257 = vpack.c.b16 %v1255, %v1255
        %1260 = vst.msk [vmem:[#allocation2 + $0x68] sm:$0xf] %vm1071, %v1256
        %1261 = vst.msk [vmem:[#allocation2 + $0x6c] sm:$0xf] %vm1071, %v1257
        %v1262 = vmul.f32 %v1025, %v1137
        %v1263 = vmul.f32 %v1029, %v1139
        %v1264 = vpack.c.bf16 %v1263, %v1262
        %v1266 = vunpack.c.l.b16 %v1264
        %v1267 = vunpack.c.h.b16 %v1264
        %v1268 = vpack.c.b16 %v1266, %v1266
        %v1269 = vpack.c.b16 %v1267, %v1267
        %1272 = vst.msk [vmem:[#allocation2 + $0x70] sm:$0xf] %vm1071, %v1268
        %1273 = vst.msk [vmem:[#allocation2 + $0x74] sm:$0xf] %vm1071, %v1269
        %v1274 = vmul.f32 %v1035, %v1056
        %v1275 = vmul.f32 %v1039, %v1058
        %v1276 = vpack.c.bf16 %v1275, %v1274
        %v1278 = vunpack.c.l.b16 %v1276
        %v1279 = vunpack.c.h.b16 %v1276
        %v1280 = vpack.c.b16 %v1278, %v1278
        %v1281 = vpack.c.b16 %v1279, %v1279
        %1284 = vst.msk [vmem:[#allocation2 + $0x78] sm:$0xf] %vm1071, %v1280
        %1285 = vst.msk [vmem:[#allocation2 + $0x7c] sm:$0xf] %vm1071, %v1281
        %v1286 = vmul.f32 %v1035, %v1077
        %v1287 = vmul.f32 %v1039, %v1079
        %v1288 = vpack.c.bf16 %v1287, %v1286
        %v1290 = vunpack.c.l.b16 %v1288
        %v1291 = vunpack.c.h.b16 %v1288
        %v1292 = vpack.c.b16 %v1290, %v1290
        %v1293 = vpack.c.b16 %v1291, %v1291
        %1296 = vst.msk [vmem:[#allocation2 + $0x80] sm:$0xf] %vm1071, %v1292
        %1297 = vst.msk [vmem:[#allocation2 + $0x84] sm:$0xf] %vm1071, %v1293
        %v1298 = vmul.f32 %v1035, %v1097
        %v1299 = vmul.f32 %v1039, %v1099
        %v1300 = vpack.c.bf16 %v1299, %v1298
        %v1302 = vunpack.c.l.b16 %v1300
        %v1303 = vunpack.c.h.b16 %v1300
        %v1304 = vpack.c.b16 %v1302, %v1302
        %v1305 = vpack.c.b16 %v1303, %v1303
        %1308 = vst.msk [vmem:[#allocation2 + $0x88] sm:$0xf] %vm1071, %v1304
        %1309 = vst.msk [vmem:[#allocation2 + $0x8c] sm:$0xf] %vm1071, %v1305
        %v1310 = vmul.f32 %v1035, %v1117
        %v1311 = vmul.f32 %v1039, %v1119
        %v1312 = vpack.c.bf16 %v1311, %v1310
        %v1314 = vunpack.c.l.b16 %v1312
        %v1315 = vunpack.c.h.b16 %v1312
        %v1316 = vpack.c.b16 %v1314, %v1314
        %v1317 = vpack.c.b16 %v1315, %v1315
        %1320 = vst.msk [vmem:[#allocation2 + $0x90] sm:$0xf] %vm1071, %v1316
        %1321 = vst.msk [vmem:[#allocation2 + $0x94] sm:$0xf] %vm1071, %v1317
        %v1322 = vmul.f32 %v1035, %v1137
        %v1323 = vmul.f32 %v1039, %v1139
        %v1324 = vpack.c.bf16 %v1323, %v1322
        %v1326 = vunpack.c.l.b16 %v1324
        %v1327 = vunpack.c.h.b16 %v1324
        %v1328 = vpack.c.b16 %v1326, %v1326
        %v1329 = vpack.c.b16 %v1327, %v1327
        %1332 = vst.msk [vmem:[#allocation2 + $0x98] sm:$0xf] %vm1071, %v1328
        %1333 = vst.msk [vmem:[#allocation2 + $0x9c] sm:$0xf] %vm1071, %v1329
        %v1334 = vmul.f32 %v1045, %v1056
        %v1335 = vmul.f32 %v1049, %v1058
        %v1336 = vpack.c.bf16 %v1335, %v1334
        %v1338 = vunpack.c.l.b16 %v1336
        %v1339 = vunpack.c.h.b16 %v1336
        %v1340 = vpack.c.b16 %v1338, %v1338
        %v1341 = vpack.c.b16 %v1339, %v1339
        %1344 = vst.msk [vmem:[#allocation2 + $0xa0] sm:$0xf] %vm1071, %v1340
        %1345 = vst.msk [vmem:[#allocation2 + $0xa4] sm:$0xf] %vm1071, %v1341
        %v1346 = vmul.f32 %v1045, %v1077
        %v1347 = vmul.f32 %v1049, %v1079
        %v1348 = vpack.c.bf16 %v1347, %v1346
        %v1350 = vunpack.c.l.b16 %v1348
        %v1351 = vunpack.c.h.b16 %v1348
        %v1352 = vpack.c.b16 %v1350, %v1350
        %v1353 = vpack.c.b16 %v1351, %v1351
        %1356 = vst.msk [vmem:[#allocation2 + $0xa8] sm:$0xf] %vm1071, %v1352
        %1357 = vst.msk [vmem:[#allocation2 + $0xac] sm:$0xf] %vm1071, %v1353
        %v1358 = vmul.f32 %v1045, %v1097
        %v1359 = vmul.f32 %v1049, %v1099
        %v1360 = vpack.c.bf16 %v1359, %v1358
        %v1362 = vunpack.c.l.b16 %v1360
        %v1363 = vunpack.c.h.b16 %v1360
        %v1364 = vpack.c.b16 %v1362, %v1362
        %v1365 = vpack.c.b16 %v1363, %v1363
        %1368 = vst.msk [vmem:[#allocation2 + $0xb0] sm:$0xf] %vm1071, %v1364
        %1369 = vst.msk [vmem:[#allocation2 + $0xb4] sm:$0xf] %vm1071, %v1365
        %v1370 = vmul.f32 %v1045, %v1117
        %v1371 = vmul.f32 %v1049, %v1119
        %v1372 = vpack.c.bf16 %v1371, %v1370
        %v1374 = vunpack.c.l.b16 %v1372
        %v1375 = vunpack.c.h.b16 %v1372
        %v1376 = vpack.c.b16 %v1374, %v1374
        %v1377 = vpack.c.b16 %v1375, %v1375
        %1380 = vst.msk [vmem:[#allocation2 + $0xb8] sm:$0xf] %vm1071, %v1376
        %1381 = vst.msk [vmem:[#allocation2 + $0xbc] sm:$0xf] %vm1071, %v1377
        %v1382 = vmul.f32 %v1045, %v1137
        %v1383 = vmul.f32 %v1049, %v1139
        %v1384 = vpack.c.bf16 %v1383, %v1382
        %v1386 = vunpack.c.l.b16 %v1384
        %v1387 = vunpack.c.h.b16 %v1384
        %v1388 = vpack.c.b16 %v1386, %v1386
        %v1389 = vpack.c.b16 %v1387, %v1387
        %1392 = vst.msk [vmem:[#allocation2 + $0xc0] sm:$0xf] %vm1071, %v1388
        %1393 = vst.msk [vmem:[#allocation2 + $0xc4] sm:$0xf] %vm1071, %v1389
        %v1394 = vld [vmem:[#allocation2] sm:$0xf]
        %v1395 = vld [vmem:[#allocation2 + $0x4] sm:$0xf]
        %v1396 = vld [vmem:[#allocation2 + $0x8] sm:$0xf]
        %v1397 = vld [vmem:[#allocation2 + $0xc] sm:$0xf]
        %v1398 = vld [vmem:[#allocation2 + $0x10] sm:$0xf]
        %v1399 = vld [vmem:[#allocation2 + $0x14] sm:$0xf]
        %v1400 = vld [vmem:[#allocation2 + $0x18] sm:$0xf]
        %v1401 = vld [vmem:[#allocation2 + $0x1c] sm:$0xf]
        %v1402 = vld [vmem:[#allocation2 + $0x20] sm:$0xf]
        %v1403 = vld [vmem:[#allocation2 + $0x24] sm:$0xf]
        %v1404 = vld [vmem:[#allocation2 + $0x28] sm:$0xf]
        %v1405 = vld [vmem:[#allocation2 + $0x2c] sm:$0xf]
        %v1406 = vld [vmem:[#allocation2 + $0x30] sm:$0xf]
        %v1407 = vld [vmem:[#allocation2 + $0x34] sm:$0xf]
        %v1408 = vld [vmem:[#allocation2 + $0x38] sm:$0xf]
        %v1409 = vld [vmem:[#allocation2 + $0x3c] sm:$0xf]
        %v1410 = vld [vmem:[#allocation2 + $0x40] sm:$0xf]
        %v1411 = vld [vmem:[#allocation2 + $0x44] sm:$0xf]
        %v1412 = vld [vmem:[#allocation2 + $0x48] sm:$0xf]
        %v1413 = vld [vmem:[#allocation2 + $0x4c] sm:$0xf]
        %v1414 = vld [vmem:[#allocation2 + $0x50] sm:$0xf]
        %v1415 = vld [vmem:[#allocation2 + $0x54] sm:$0xf]
        %v1416 = vld [vmem:[#allocation2 + $0x58] sm:$0xf]
        %v1417 = vld [vmem:[#allocation2 + $0x5c] sm:$0xf]
        %v1418 = vld [vmem:[#allocation2 + $0x60] sm:$0xf]
        %v1419 = vld [vmem:[#allocation2 + $0x64] sm:$0xf]
        %v1420 = vld [vmem:[#allocation2 + $0x68] sm:$0xf]
        %v1421 = vld [vmem:[#allocation2 + $0x6c] sm:$0xf]
        %v1422 = vld [vmem:[#allocation2 + $0x70] sm:$0xf]
        %v1423 = vld [vmem:[#allocation2 + $0x74] sm:$0xf]
        %v1424 = vld [vmem:[#allocation2 + $0x78] sm:$0xf]
        %v1425 = vld [vmem:[#allocation2 + $0x7c] sm:$0xf]
        %v1426 = vld [vmem:[#allocation2 + $0x80] sm:$0xf]
        %v1427 = vld [vmem:[#allocation2 + $0x84] sm:$0xf]
        %v1428 = vld [vmem:[#allocation2 + $0x88] sm:$0xf]
        %v1429 = vld [vmem:[#allocation2 + $0x8c] sm:$0xf]
        %v1430 = vld [vmem:[#allocation2 + $0x90] sm:$0xf]
        %v1431 = vld [vmem:[#allocation2 + $0x94] sm:$0xf]
        %v1432 = vld [vmem:[#allocation2 + $0x98] sm:$0xf]
        %v1433 = vld [vmem:[#allocation2 + $0x9c] sm:$0xf]
        %v1434 = vld [vmem:[#allocation2 + $0xa0] sm:$0xf]
        %v1435 = vld [vmem:[#allocation2 + $0xa4] sm:$0xf]
        %v1436 = vld [vmem:[#allocation2 + $0xa8] sm:$0xf]
        %v1437 = vld [vmem:[#allocation2 + $0xac] sm:$0xf]
        %v1438 = vld [vmem:[#allocation2 + $0xb0] sm:$0xf]
        %v1439 = vld [vmem:[#allocation2 + $0xb4] sm:$0xf]
        %v1440 = vld [vmem:[#allocation2 + $0xb8] sm:$0xf]
        %v1441 = vld [vmem:[#allocation2 + $0xbc] sm:$0xf]
        %v1442 = vld [vmem:[#allocation2 + $0xc0] sm:$0xf]
        %v1443 = vld [vmem:[#allocation2 + $0xc4] sm:$0xf]
        %v1494 = vunpack.c.l.b16 %v1394
        %v1495 = vunpack.c.l.b16 %v1395
        %v1496 = vunpack.c.l.b16 %v1396
        %v1497 = vunpack.c.l.b16 %v1397
        %v1498 = vunpack.c.l.b16 %v1398
        %v1499 = vunpack.c.l.b16 %v1399
        %v1500 = vunpack.c.l.b16 %v1400
        %v1501 = vunpack.c.l.b16 %v1401
        %v1502 = vunpack.c.l.b16 %v1402
        %v1503 = vunpack.c.l.b16 %v1403
        %v1504 = vunpack.c.l.b16 %v1404
        %v1505 = vunpack.c.l.b16 %v1405
        %v1506 = vunpack.c.l.b16 %v1406
        %v1507 = vunpack.c.l.b16 %v1407
        %v1508 = vunpack.c.l.b16 %v1408
        %v1509 = vunpack.c.l.b16 %v1409
        %v1510 = vunpack.c.l.b16 %v1410
        %v1511 = vunpack.c.l.b16 %v1411
        %v1512 = vunpack.c.l.b16 %v1412
        %v1513 = vunpack.c.l.b16 %v1413
        %v1514 = vunpack.c.l.b16 %v1414
        %v1515 = vunpack.c.l.b16 %v1415
        %v1516 = vunpack.c.l.b16 %v1416
        %v1517 = vunpack.c.l.b16 %v1417
        %v1518 = vunpack.c.l.b16 %v1418
        %v1519 = vunpack.c.l.b16 %v1419
        %v1520 = vunpack.c.l.b16 %v1420
        %v1521 = vunpack.c.l.b16 %v1421
        %v1522 = vunpack.c.l.b16 %v1422
        %v1523 = vunpack.c.l.b16 %v1423
        %v1524 = vunpack.c.l.b16 %v1424
        %v1525 = vunpack.c.l.b16 %v1425
        %v1526 = vunpack.c.l.b16 %v1426
        %v1527 = vunpack.c.l.b16 %v1427
        %v1528 = vunpack.c.l.b16 %v1428
        %v1529 = vunpack.c.l.b16 %v1429
        %v1530 = vunpack.c.l.b16 %v1430
        %v1531 = vunpack.c.l.b16 %v1431
        %v1532 = vunpack.c.l.b16 %v1432
        %v1533 = vunpack.c.l.b16 %v1433
        %v1534 = vunpack.c.l.b16 %v1434
        %v1535 = vunpack.c.l.b16 %v1435
        %v1536 = vunpack.c.l.b16 %v1436
        %v1537 = vunpack.c.l.b16 %v1437
        %v1538 = vunpack.c.l.b16 %v1438
        %v1539 = vunpack.c.l.b16 %v1439
        %v1540 = vunpack.c.l.b16 %v1440
        %v1541 = vunpack.c.l.b16 %v1441
        %v1542 = vunpack.c.l.b16 %v1442
        %v1543 = vunpack.c.l.b16 %v1443
        %v1544 = vpack.c.b16 %v1495, %v1494
        %v1545 = vpack.c.b16 %v1497, %v1496
        %v1546 = vpack.c.b16 %v1499, %v1498
        %v1547 = vpack.c.b16 %v1501, %v1500
        %v1548 = vpack.c.b16 %v1503, %v1502
        %v1549 = vpack.c.b16 %v1505, %v1504
        %v1550 = vpack.c.b16 %v1507, %v1506
        %v1551 = vpack.c.b16 %v1509, %v1508
        %v1552 = vpack.c.b16 %v1511, %v1510
        %v1553 = vpack.c.b16 %v1513, %v1512
        %v1554 = vpack.c.b16 %v1515, %v1514
        %v1555 = vpack.c.b16 %v1517, %v1516
        %v1556 = vpack.c.b16 %v1519, %v1518
        %v1557 = vpack.c.b16 %v1521, %v1520
        %v1558 = vpack.c.b16 %v1523, %v1522
        %v1559 = vpack.c.b16 %v1525, %v1524
        %v1560 = vpack.c.b16 %v1527, %v1526
        %v1561 = vpack.c.b16 %v1529, %v1528
        %v1562 = vpack.c.b16 %v1531, %v1530
        %v1563 = vpack.c.b16 %v1533, %v1532
        %v1564 = vpack.c.b16 %v1535, %v1534
        %v1565 = vpack.c.b16 %v1537, %v1536
        %v1566 = vpack.c.b16 %v1539, %v1538
        %v1567 = vpack.c.b16 %v1541, %v1540
        %v1568 = vpack.c.b16 %v1543, %v1542
        %v1577 = vunpack.c.l.b16 %v881
        %v1578 = vunpack.c.l.b16 %v882
        %v1579 = vunpack.c.l.b16 %v883
        %v1580 = vunpack.c.l.b16 %v884
        %v1581 = vunpack.c.l.b16 %v885
        %v1582 = vunpack.c.l.b16 %v886
        %v1583 = vunpack.c.l.b16 %v887
        %v1584 = vunpack.c.l.b16 %v888
        %v1585 = vpack.c.b16 %v1578, %v1577
        %v1586 = vpack.c.b16 %v1580, %v1579
        %v1587 = vpack.c.b16 %v1582, %v1581
        %v1588 = vpack.c.b16 %v1584, %v1583
        %v1594 = vsel %vm954, %v1544, 0
        %v1597 = vsel %vm954, %v1545, 0
        %v1600 = vsel %vm954, %v1546, 0
        %v1603 = vsel %vm954, %v1547, 0
        %v1606 = vsel %vm954, %v1548, 0
        %v1609 = vsel %vm954, %v1549, 0
        %v1612 = vsel %vm954, %v1550, 0
        %v1615 = vsel %vm954, %v1551, 0
        %v1618 = vsel %vm954, %v1552, 0
        %v1621 = vsel %vm954, %v1553, 0
        %v1624 = vsel %vm954, %v1554, 0
        %v1627 = vsel %vm954, %v1555, 0
        %v1630 = vsel %vm954, %v1556, 0
        %v1633 = vsel %vm954, %v1557, 0
        %v1636 = vsel %vm954, %v1558, 0
        %v1639 = vsel %vm954, %v1559, 0
        %v1642 = vsel %vm954, %v1560, 0
        %v1645 = vsel %vm954, %v1561, 0
        %v1648 = vsel %vm954, %v1562, 0
        %v1651 = vsel %vm954, %v1563, 0
        %v1654 = vsel %vm954, %v1564, 0
        %v1657 = vsel %vm954, %v1565, 0
        %v1660 = vsel %vm954, %v1566, 0
        %v1663 = vsel %vm954, %v1567, 0
        %v1666 = vsel %vm954, %v1568, 0
        %1668 = vmatprep.subr.bf16.mxu0 0
        %1669 = vmatpush1.bf16.msra.mxu0 0
        %1670 = vmatprep.subr.bf16.mxu0 0
        %1671 = vmatpush1.bf16.msra.mxu0 0
        %1672 = vmatprep.subr.bf16.mxu0 0
        %1673 = vmatpush1.bf16.msra.mxu0 0
        %1674 = vmatprep.subr.bf16.mxu0 0
        %1675 = vmatpush1.bf16.msra.mxu0 0
        %1676 = vmatprep.subr.bf16.mxu0 0
        %1677 = vmatpush1.bf16.msra.mxu0 %v1588
        %1678 = vmatprep.subr.bf16.mxu0 0
        %1679 = vmatpush1.bf16.msra.mxu0 %v1587
        %1680 = vmatprep.subr.bf16.mxu0 0
        %1681 = vmatpush1.bf16.msra.mxu0 %v1586
        %1682 = vmatprep.subr.bf16.mxu0 0
        %1683 = vmatpush1.bf16.msra.mxu0 %v1585
        %1684 = vmatprep.subr.bf16.mxu0 0
        %1685 = vmatpush2.bf16.msra.mxu0 0
        %1686 = vmatprep.subr.bf16.mxu0 0
        %1687 = vmatpush2.bf16.msra.mxu0 0
        %1688 = vmatprep.subr.bf16.mxu0 0
        %1689 = vmatpush2.bf16.msra.mxu0 0
        %1690 = vmatprep.subr.bf16.mxu0 0
        %1691 = vmatpush2.bf16.msra.mxu0 0
        %1692 = vmatprep.subr.bf16.mxu0 0
        %1693 = vmatpush2.bf16.msra.mxu0 0
        %1694 = vmatprep.subr.bf16.mxu0 0
        %1695 = vmatpush2.bf16.msra.mxu0 0
        %1696 = vmatprep.subr.bf16.mxu0 0
        %1697 = vmatpush2.bf16.msra.mxu0 0
        %1698 = vmatprep.subr.bf16.mxu0 0
        %1699 = vmatpush2.bf16.msra.mxu0 0
        %1700 = vmatprep.mubr.bf16.mxu0 0
        %1701 = vmatmul.mubr.bf16.gmra.mxu0 %v1594
        %v1702 = vpop.f32.mrf.mxu0
        %v1703 = vadd.f32 0.0, %v1702
        %v1704 = vpop.f32.mrf.mxu0
        %v1705 = vpop.f32.mrf.mxu0
        %v1706 = vadd.f32 0.0, %v1705
        %v1707 = vpop.f32.mrf.mxu0
        %1708 = vmatprep.mubr.bf16.mxu0 0
        %1709 = vmatmul.mubr.bf16.gmra.mxu0 %v1597
        %v1710 = vpop.f32.mrf.mxu0
        %v1711 = vadd.f32 0.0, %v1710
        %v1712 = vpop.f32.mrf.mxu0
        %v1713 = vpop.f32.mrf.mxu0
        %v1714 = vadd.f32 0.0, %v1713
        %v1715 = vpop.f32.mrf.mxu0
        %1716 = vmatprep.mubr.bf16.mxu0 0
        %1717 = vmatmul.mubr.bf16.gmra.mxu0 %v1600
        %v1718 = vpop.f32.mrf.mxu0
        %v1719 = vadd.f32 0.0, %v1718
        %v1720 = vpop.f32.mrf.mxu0
        %v1721 = vpop.f32.mrf.mxu0
        %v1722 = vadd.f32 0.0, %v1721
        %v1723 = vpop.f32.mrf.mxu0
        %1724 = vmatprep.mubr.bf16.mxu0 0
        %1725 = vmatmul.mubr.bf16.gmra.mxu0 %v1603
        %v1726 = vpop.f32.mrf.mxu0
        %v1727 = vadd.f32 0.0, %v1726
        %v1728 = vpop.f32.mrf.mxu0
        %v1729 = vpop.f32.mrf.mxu0
        %v1730 = vadd.f32 0.0, %v1729
        %v1731 = vpop.f32.mrf.mxu0
        %1732 = vmatprep.mubr.bf16.mxu0 0
        %1733 = vmatmul.mubr.bf16.gmra.mxu0 %v1606
        %v1734 = vpop.f32.mrf.mxu0
        %v1735 = vadd.f32 0.0, %v1734
        %v1736 = vpop.f32.mrf.mxu0
        %v1737 = vpop.f32.mrf.mxu0
        %v1738 = vadd.f32 0.0, %v1737
        %v1739 = vpop.f32.mrf.mxu0
        %1740 = vmatprep.mubr.bf16.mxu0 0
        %1741 = vmatmul.mubr.bf16.gmra.mxu0 %v1609
        %v1742 = vpop.f32.mrf.mxu0
        %v1743 = vadd.f32 0.0, %v1742
        %v1744 = vpop.f32.mrf.mxu0
        %v1745 = vpop.f32.mrf.mxu0
        %v1746 = vadd.f32 0.0, %v1745
        %v1747 = vpop.f32.mrf.mxu0
        %1748 = vmatprep.mubr.bf16.mxu0 0
        %1749 = vmatmul.mubr.bf16.gmra.mxu0 %v1612
        %v1750 = vpop.f32.mrf.mxu0
        %v1751 = vadd.f32 0.0, %v1750
        %v1752 = vpop.f32.mrf.mxu0
        %v1753 = vpop.f32.mrf.mxu0
        %v1754 = vadd.f32 0.0, %v1753
        %v1755 = vpop.f32.mrf.mxu0
        %1756 = vmatprep.mubr.bf16.mxu0 0
        %1757 = vmatmul.mubr.bf16.gmra.mxu0 %v1615
        %v1758 = vpop.f32.mrf.mxu0
        %v1759 = vadd.f32 0.0, %v1758
        %v1760 = vpop.f32.mrf.mxu0
        %v1761 = vpop.f32.mrf.mxu0
        %v1762 = vadd.f32 0.0, %v1761
        %v1763 = vpop.f32.mrf.mxu0
        %1764 = vmatprep.mubr.bf16.mxu0 0
        %1765 = vmatmul.mubr.bf16.gmra.mxu0 %v1618
        %v1766 = vpop.f32.mrf.mxu0
        %v1767 = vadd.f32 0.0, %v1766
        %v1768 = vpop.f32.mrf.mxu0
        %v1769 = vpop.f32.mrf.mxu0
        %v1770 = vadd.f32 0.0, %v1769
        %v1771 = vpop.f32.mrf.mxu0
        %1772 = vmatprep.mubr.bf16.mxu0 0
        %1773 = vmatmul.mubr.bf16.gmra.mxu0 %v1621
        %v1774 = vpop.f32.mrf.mxu0
        %v1775 = vadd.f32 0.0, %v1774
        %v1776 = vpop.f32.mrf.mxu0
        %v1777 = vpop.f32.mrf.mxu0
        %v1778 = vadd.f32 0.0, %v1777
        %v1779 = vpop.f32.mrf.mxu0
        %1780 = vmatprep.mubr.bf16.mxu0 0
        %1781 = vmatmul.mubr.bf16.gmra.mxu0 %v1624
        %v1782 = vpop.f32.mrf.mxu0
        %v1783 = vadd.f32 0.0, %v1782
        %v1784 = vpop.f32.mrf.mxu0
        %v1785 = vpop.f32.mrf.mxu0
        %v1786 = vadd.f32 0.0, %v1785
        %v1787 = vpop.f32.mrf.mxu0
        %1788 = vmatprep.mubr.bf16.mxu0 0
        %1789 = vmatmul.mubr.bf16.gmra.mxu0 %v1627
        %v1790 = vpop.f32.mrf.mxu0
        %v1791 = vadd.f32 0.0, %v1790
        %v1792 = vpop.f32.mrf.mxu0
        %v1793 = vpop.f32.mrf.mxu0
        %v1794 = vadd.f32 0.0, %v1793
        %v1795 = vpop.f32.mrf.mxu0
        %1796 = vmatprep.mubr.bf16.mxu0 0
        %1797 = vmatmul.mubr.bf16.gmra.mxu0 %v1630
        %v1798 = vpop.f32.mrf.mxu0
        %v1799 = vadd.f32 0.0, %v1798
        %v1800 = vpop.f32.mrf.mxu0
        %v1801 = vpop.f32.mrf.mxu0
        %v1802 = vadd.f32 0.0, %v1801
        %v1803 = vpop.f32.mrf.mxu0
        %1804 = vmatprep.mubr.bf16.mxu0 0
        %1805 = vmatmul.mubr.bf16.gmra.mxu0 %v1633
        %v1806 = vpop.f32.mrf.mxu0
        %v1807 = vadd.f32 0.0, %v1806
        %v1808 = vpop.f32.mrf.mxu0
        %v1809 = vpop.f32.mrf.mxu0
        %v1810 = vadd.f32 0.0, %v1809
        %v1811 = vpop.f32.mrf.mxu0
        %1812 = vmatprep.mubr.bf16.mxu0 0
        %1813 = vmatmul.mubr.bf16.gmra.mxu0 %v1636
        %v1814 = vpop.f32.mrf.mxu0
        %v1815 = vadd.f32 0.0, %v1814
        %v1816 = vpop.f32.mrf.mxu0
        %v1817 = vpop.f32.mrf.mxu0
        %v1818 = vadd.f32 0.0, %v1817
        %v1819 = vpop.f32.mrf.mxu0
        %1820 = vmatprep.mubr.bf16.mxu0 0
        %1821 = vmatmul.mubr.bf16.gmra.mxu0 %v1639
        %v1822 = vpop.f32.mrf.mxu0
        %v1823 = vadd.f32 0.0, %v1822
        %v1824 = vpop.f32.mrf.mxu0
        %v1825 = vpop.f32.mrf.mxu0
        %v1826 = vadd.f32 0.0, %v1825
        %v1827 = vpop.f32.mrf.mxu0
        %1828 = vmatprep.mubr.bf16.mxu0 0
        %1829 = vmatmul.mubr.bf16.gmra.mxu0 %v1642
        %v1830 = vpop.f32.mrf.mxu0
        %v1831 = vadd.f32 0.0, %v1830
        %v1832 = vpop.f32.mrf.mxu0
        %v1833 = vpop.f32.mrf.mxu0
        %v1834 = vadd.f32 0.0, %v1833
        %v1835 = vpop.f32.mrf.mxu0
        %1836 = vmatprep.mubr.bf16.mxu0 0
        %1837 = vmatmul.mubr.bf16.gmra.mxu0 %v1645
        %v1838 = vpop.f32.mrf.mxu0
        %v1839 = vadd.f32 0.0, %v1838
        %v1840 = vpop.f32.mrf.mxu0
        %v1841 = vpop.f32.mrf.mxu0
        %v1842 = vadd.f32 0.0, %v1841
        %v1843 = vpop.f32.mrf.mxu0
        %1844 = vmatprep.mubr.bf16.mxu0 0
        %1845 = vmatmul.mubr.bf16.gmra.mxu0 %v1648
        %v1846 = vpop.f32.mrf.mxu0
        %v1847 = vadd.f32 0.0, %v1846
        %v1848 = vpop.f32.mrf.mxu0
        %v1849 = vpop.f32.mrf.mxu0
        %v1850 = vadd.f32 0.0, %v1849
        %v1851 = vpop.f32.mrf.mxu0
        %1852 = vmatprep.mubr.bf16.mxu0 0
        %1853 = vmatmul.mubr.bf16.gmra.mxu0 %v1651
        %v1854 = vpop.f32.mrf.mxu0
        %v1855 = vadd.f32 0.0, %v1854
        %v1856 = vpop.f32.mrf.mxu0
        %v1857 = vpop.f32.mrf.mxu0
        %v1858 = vadd.f32 0.0, %v1857
        %v1859 = vpop.f32.mrf.mxu0
        %1860 = vmatprep.mubr.bf16.mxu0 0
        %1861 = vmatmul.mubr.bf16.gmra.mxu0 %v1654
        %v1862 = vpop.f32.mrf.mxu0
        %v1863 = vadd.f32 0.0, %v1862
        %v1864 = vpop.f32.mrf.mxu0
        %v1865 = vpop.f32.mrf.mxu0
        %v1866 = vadd.f32 0.0, %v1865
        %v1867 = vpop.f32.mrf.mxu0
        %1868 = vmatprep.mubr.bf16.mxu0 0
        %1869 = vmatmul.mubr.bf16.gmra.mxu0 %v1657
        %v1870 = vpop.f32.mrf.mxu0
        %v1871 = vadd.f32 0.0, %v1870
        %v1872 = vpop.f32.mrf.mxu0
        %v1873 = vpop.f32.mrf.mxu0
        %v1874 = vadd.f32 0.0, %v1873
        %v1875 = vpop.f32.mrf.mxu0
        %1876 = vmatprep.mubr.bf16.mxu0 0
        %1877 = vmatmul.mubr.bf16.gmra.mxu0 %v1660
        %v1878 = vpop.f32.mrf.mxu0
        %v1879 = vadd.f32 0.0, %v1878
        %v1880 = vpop.f32.mrf.mxu0
        %v1881 = vpop.f32.mrf.mxu0
        %v1882 = vadd.f32 0.0, %v1881
        %v1883 = vpop.f32.mrf.mxu0
        %1884 = vmatprep.mubr.bf16.mxu0 0
        %1885 = vmatmul.mubr.bf16.gmra.mxu0 %v1663
        %v1886 = vpop.f32.mrf.mxu0
        %v1887 = vadd.f32 0.0, %v1886
        %v1888 = vpop.f32.mrf.mxu0
        %v1889 = vpop.f32.mrf.mxu0
        %v1890 = vadd.f32 0.0, %v1889
        %v1891 = vpop.f32.mrf.mxu0
        %1892 = vmatprep.mubr.bf16.mxu0 0
        %1893 = vmatmul.mubr.bf16.gmra.mxu0 %v1666
        %v1894 = vpop.f32.mrf.mxu0
        %v1895 = vadd.f32 0.0, %v1894
        %v1896 = vpop.f32.mrf.mxu0
        %v1897 = vpop.f32.mrf.mxu0
        %v1898 = vadd.f32 0.0, %v1897
        %v1899 = vpop.f32.mrf.mxu0
        %1900 = vdwg.mxu0
        %v1901 = vmax.f32 %v1703, %v1711
        %v1902 = vmax.f32 %v1706, %v1714
        %v1903 = vmax.f32 %v1901, %v1719
        %v1904 = vmax.f32 %v1902, %v1722
        %v1905 = vmax.f32 %v1903, %v1727
        %v1906 = vmax.f32 %v1904, %v1730
        %v1907 = vmax.f32 %v1905, %v1735
        %v1908 = vmax.f32 %v1906, %v1738
        %v1909 = vsub.f32 %v1703, %v1907
        %v1910 = vsub.f32 %v1706, %v1908
        %v1911 = vmul.f32 %v1909, 1.442695
        %v1912 = vpow.pop %v1911
        %v1913 = vmul.f32 %v1910, 1.442695
        %v1914 = vpow.pop %v1913
        %v1915 = vsub.f32 %v1711, %v1907
        %v1916 = vsub.f32 %v1714, %v1908
        %v1917 = vmul.f32 %v1915, 1.442695
        %v1918 = vpow.pop %v1917
        %v1919 = vmul.f32 %v1916, 1.442695
        %v1920 = vpow.pop %v1919
        %v1921 = vsub.f32 %v1719, %v1907
        %v1922 = vsub.f32 %v1722, %v1908
        %v1923 = vmul.f32 %v1921, 1.442695
        %v1924 = vpow.pop %v1923
        %v1925 = vmul.f32 %v1922, 1.442695
        %v1926 = vpow.pop %v1925
        %v1927 = vsub.f32 %v1727, %v1907
        %v1928 = vsub.f32 %v1730, %v1908
        %v1929 = vmul.f32 %v1927, 1.442695
        %v1930 = vpow.pop %v1929
        %v1931 = vmul.f32 %v1928, 1.442695
        %v1932 = vpow.pop %v1931
        %v1933 = vsub.f32 %v1735, %v1907
        %v1934 = vsub.f32 %v1738, %v1908
        %v1935 = vmul.f32 %v1933, 1.442695
        %v1936 = vpow.pop %v1935
        %v1937 = vmul.f32 %v1934, 1.442695
        %v1938 = vpow.pop %v1937
        %v1939 = vadd.f32 %v1912, %v1918
        %v1940 = vadd.f32 %v1914, %v1920
        %v1941 = vadd.f32 %v1939, %v1924
        %v1942 = vadd.f32 %v1940, %v1926
        %v1943 = vadd.f32 %v1941, %v1930
        %v1944 = vadd.f32 %v1942, %v1932
        %v1945 = vadd.f32 %v1943, %v1936
        %v1946 = vadd.f32 %v1944, %v1938
        %v1947 = vrcp.pop %v1945
        %v1948 = vrcp.pop %v1946
        %v1949 = vmul.f32 %v1912, %v1007
        %v1950 = vmul.f32 %v1914, %v1011
        %v1951 = vmul.f32 %v1918, %v1017
        %v1952 = vmul.f32 %v1920, %v1021
        %v1953 = vadd.f32 %v1949, %v1951
        %v1954 = vadd.f32 %v1950, %v1952
        %v1955 = vmul.f32 %v1924, %v1027
        %v1956 = vmul.f32 %v1926, %v1031
        %v1957 = vadd.f32 %v1953, %v1955
        %v1958 = vadd.f32 %v1954, %v1956
        %v1959 = vmul.f32 %v1930, %v1037
        %v1960 = vmul.f32 %v1932, %v1041
        %v1961 = vadd.f32 %v1957, %v1959
        %v1962 = vadd.f32 %v1958, %v1960
        %v1963 = vmul.f32 %v1936, %v1047
        %v1964 = vmul.f32 %v1938, %v1051
        %v1965 = vadd.f32 %v1961, %v1963
        %v1966 = vadd.f32 %v1962, %v1964
        %v1967 = vmul.f32 %v1965, %v1947
        %v1968 = vmul.f32 %v1966, %v1948
        %v1969 = vpack.c.bf16 %v1968, %v1967
        %v1971 = vunpack.c.l.b16 %v1969
        %v1972 = vunpack.c.h.b16 %v1969
        %v1973 = vpack.c.b16 %v1971, %v1971
        %v1974 = vpack.c.b16 %v1972, %v1972
        %1977 = vst.msk [vmem:[#allocation3] sm:$0xf] %vm1071, %v1973
        %1978 = vst.msk [vmem:[#allocation3 + $0x4] sm:$0xf] %vm1071, %v1974
        %v1979 = vmax.f32 %v1743, %v1751
        %v1980 = vmax.f32 %v1746, %v1754
        %v1981 = vmax.f32 %v1979, %v1759
        %v1982 = vmax.f32 %v1980, %v1762
        %v1983 = vmax.f32 %v1981, %v1767
        %v1984 = vmax.f32 %v1982, %v1770
        %v1985 = vmax.f32 %v1983, %v1775
        %v1986 = vmax.f32 %v1984, %v1778
        %v1987 = vsub.f32 %v1743, %v1985
        %v1988 = vsub.f32 %v1746, %v1986
        %v1989 = vmul.f32 %v1987, 1.442695
        %v1990 = vpow.pop %v1989
        %v1991 = vmul.f32 %v1988, 1.442695
        %v1992 = vpow.pop %v1991
        %v1993 = vsub.f32 %v1751, %v1985
        %v1994 = vsub.f32 %v1754, %v1986
        %v1995 = vmul.f32 %v1993, 1.442695
        %v1996 = vpow.pop %v1995
        %v1997 = vmul.f32 %v1994, 1.442695
        %v1998 = vpow.pop %v1997
        %v1999 = vsub.f32 %v1759, %v1985
        %v2000 = vsub.f32 %v1762, %v1986
        %v2001 = vmul.f32 %v1999, 1.442695
        %v2002 = vpow.pop %v2001
        %v2003 = vmul.f32 %v2000, 1.442695
        %v2004 = vpow.pop %v2003
        %v2005 = vsub.f32 %v1767, %v1985
        %v2006 = vsub.f32 %v1770, %v1986
        %v2007 = vmul.f32 %v2005, 1.442695
        %v2008 = vpow.pop %v2007
        %v2009 = vmul.f32 %v2006, 1.442695
        %v2010 = vpow.pop %v2009
        %v2011 = vsub.f32 %v1775, %v1985
        %v2012 = vsub.f32 %v1778, %v1986
        %v2013 = vmul.f32 %v2011, 1.442695
        %v2014 = vpow.pop %v2013
        %v2015 = vmul.f32 %v2012, 1.442695
        %v2016 = vpow.pop %v2015
        %v2017 = vadd.f32 %v1990, %v1996
        %v2018 = vadd.f32 %v1992, %v1998
        %v2019 = vadd.f32 %v2017, %v2002
        %v2020 = vadd.f32 %v2018, %v2004
        %v2021 = vadd.f32 %v2019, %v2008
        %v2022 = vadd.f32 %v2020, %v2010
        %v2023 = vadd.f32 %v2021, %v2014
        %v2024 = vadd.f32 %v2022, %v2016
        %v2025 = vrcp.pop %v2023
        %v2026 = vrcp.pop %v2024
        %v2027 = vmul.f32 %v1990, %v1007
        %v2028 = vmul.f32 %v1992, %v1011
        %v2029 = vmul.f32 %v1996, %v1017
        %v2030 = vmul.f32 %v1998, %v1021
        %v2031 = vadd.f32 %v2027, %v2029
        %v2032 = vadd.f32 %v2028, %v2030
        %v2033 = vmul.f32 %v2002, %v1027
        %v2034 = vmul.f32 %v2004, %v1031
        %v2035 = vadd.f32 %v2031, %v2033
        %v2036 = vadd.f32 %v2032, %v2034
        %v2037 = vmul.f32 %v2008, %v1037
        %v2038 = vmul.f32 %v2010, %v1041
        %v2039 = vadd.f32 %v2035, %v2037
        %v2040 = vadd.f32 %v2036, %v2038
        %v2041 = vmul.f32 %v2014, %v1047
        %v2042 = vmul.f32 %v2016, %v1051
        %v2043 = vadd.f32 %v2039, %v2041
        %v2044 = vadd.f32 %v2040, %v2042
        %v2045 = vmul.f32 %v2043, %v2025
        %v2046 = vmul.f32 %v2044, %v2026
        %v2047 = vpack.c.bf16 %v2046, %v2045
        %v2049 = vunpack.c.l.b16 %v2047
        %v2050 = vunpack.c.h.b16 %v2047
        %v2051 = vpack.c.b16 %v2049, %v2049
        %v2052 = vpack.c.b16 %v2050, %v2050
        %2055 = vst.msk [vmem:[#allocation3 + $0x8] sm:$0xf] %vm1071, %v2051
        %2056 = vst.msk [vmem:[#allocation3 + $0xc] sm:$0xf] %vm1071, %v2052
        %v2057 = vmax.f32 %v1783, %v1791
        %v2058 = vmax.f32 %v1786, %v1794
        %v2059 = vmax.f32 %v2057, %v1799
        %v2060 = vmax.f32 %v2058, %v1802
        %v2061 = vmax.f32 %v2059, %v1807
        %v2062 = vmax.f32 %v2060, %v1810
        %v2063 = vmax.f32 %v2061, %v1815
        %v2064 = vmax.f32 %v2062, %v1818
        %v2065 = vsub.f32 %v1783, %v2063
        %v2066 = vsub.f32 %v1786, %v2064
        %v2067 = vmul.f32 %v2065, 1.442695
        %v2068 = vpow.pop %v2067
        %v2069 = vmul.f32 %v2066, 1.442695
        %v2070 = vpow.pop %v2069
        %v2071 = vsub.f32 %v1791, %v2063
        %v2072 = vsub.f32 %v1794, %v2064
        %v2073 = vmul.f32 %v2071, 1.442695
        %v2074 = vpow.pop %v2073
        %v2075 = vmul.f32 %v2072, 1.442695
        %v2076 = vpow.pop %v2075
        %v2077 = vsub.f32 %v1799, %v2063
        %v2078 = vsub.f32 %v1802, %v2064
        %v2079 = vmul.f32 %v2077, 1.442695
        %v2080 = vpow.pop %v2079
        %v2081 = vmul.f32 %v2078, 1.442695
        %v2082 = vpow.pop %v2081
        %v2083 = vsub.f32 %v1807, %v2063
        %v2084 = vsub.f32 %v1810, %v2064
        %v2085 = vmul.f32 %v2083, 1.442695
        %v2086 = vpow.pop %v2085
        %v2087 = vmul.f32 %v2084, 1.442695
        %v2088 = vpow.pop %v2087
        %v2089 = vsub.f32 %v1815, %v2063
        %v2090 = vsub.f32 %v1818, %v2064
        %v2091 = vmul.f32 %v2089, 1.442695
        %v2092 = vpow.pop %v2091
        %v2093 = vmul.f32 %v2090, 1.442695
        %v2094 = vpow.pop %v2093
        %v2095 = vadd.f32 %v2068, %v2074
        %v2096 = vadd.f32 %v2070, %v2076
        %v2097 = vadd.f32 %v2095, %v2080
        %v2098 = vadd.f32 %v2096, %v2082
        %v2099 = vadd.f32 %v2097, %v2086
        %v2100 = vadd.f32 %v2098, %v2088
        %v2101 = vadd.f32 %v2099, %v2092
        %v2102 = vadd.f32 %v2100, %v2094
        %v2103 = vrcp.pop %v2101
        %v2104 = vrcp.pop %v2102
        %v2105 = vmul.f32 %v2068, %v1007
        %v2106 = vmul.f32 %v2070, %v1011
        %v2107 = vmul.f32 %v2074, %v1017
        %v2108 = vmul.f32 %v2076, %v1021
        %v2109 = vadd.f32 %v2105, %v2107
        %v2110 = vadd.f32 %v2106, %v2108
        %v2111 = vmul.f32 %v2080, %v1027
        %v2112 = vmul.f32 %v2082, %v1031
        %v2113 = vadd.f32 %v2109, %v2111
        %v2114 = vadd.f32 %v2110, %v2112
        %v2115 = vmul.f32 %v2086, %v1037
        %v2116 = vmul.f32 %v2088, %v1041
        %v2117 = vadd.f32 %v2113, %v2115
        %v2118 = vadd.f32 %v2114, %v2116
        %v2119 = vmul.f32 %v2092, %v1047
        %v2120 = vmul.f32 %v2094, %v1051
        %v2121 = vadd.f32 %v2117, %v2119
        %v2122 = vadd.f32 %v2118, %v2120
        %v2123 = vmul.f32 %v2121, %v2103
        %v2124 = vmul.f32 %v2122, %v2104
        %v2125 = vpack.c.bf16 %v2124, %v2123
        %v2127 = vunpack.c.l.b16 %v2125
        %v2128 = vunpack.c.h.b16 %v2125
        %v2129 = vpack.c.b16 %v2127, %v2127
        %v2130 = vpack.c.b16 %v2128, %v2128
        %2133 = vst.msk [vmem:[#allocation3 + $0x10] sm:$0xf] %vm1071, %v2129
        %2134 = vst.msk [vmem:[#allocation3 + $0x14] sm:$0xf] %vm1071, %v2130
        %v2135 = vmax.f32 %v1823, %v1831
        %v2136 = vmax.f32 %v1826, %v1834
        %v2137 = vmax.f32 %v2135, %v1839
        %v2138 = vmax.f32 %v2136, %v1842
        %v2139 = vmax.f32 %v2137, %v1847
        %v2140 = vmax.f32 %v2138, %v1850
        %v2141 = vmax.f32 %v2139, %v1855
        %v2142 = vmax.f32 %v2140, %v1858
        %v2143 = vsub.f32 %v1823, %v2141
        %v2144 = vsub.f32 %v1826, %v2142
        %v2145 = vmul.f32 %v2143, 1.442695
        %v2146 = vpow.pop %v2145
        %v2147 = vmul.f32 %v2144, 1.442695
        %v2148 = vpow.pop %v2147
        %v2149 = vsub.f32 %v1831, %v2141
        %v2150 = vsub.f32 %v1834, %v2142
        %v2151 = vmul.f32 %v2149, 1.442695
        %v2152 = vpow.pop %v2151
        %v2153 = vmul.f32 %v2150, 1.442695
        %v2154 = vpow.pop %v2153
        %v2155 = vsub.f32 %v1839, %v2141
        %v2156 = vsub.f32 %v1842, %v2142
        %v2157 = vmul.f32 %v2155, 1.442695
        %v2158 = vpow.pop %v2157
        %v2159 = vmul.f32 %v2156, 1.442695
        %v2160 = vpow.pop %v2159
        %v2161 = vsub.f32 %v1847, %v2141
        %v2162 = vsub.f32 %v1850, %v2142
        %v2163 = vmul.f32 %v2161, 1.442695
        %v2164 = vpow.pop %v2163
        %v2165 = vmul.f32 %v2162, 1.442695
        %v2166 = vpow.pop %v2165
        %v2167 = vsub.f32 %v1855, %v2141
        %v2168 = vsub.f32 %v1858, %v2142
        %v2169 = vmul.f32 %v2167, 1.442695
        %v2170 = vpow.pop %v2169
        %v2171 = vmul.f32 %v2168, 1.442695
        %v2172 = vpow.pop %v2171
        %v2173 = vadd.f32 %v2146, %v2152
        %v2174 = vadd.f32 %v2148, %v2154
        %v2175 = vadd.f32 %v2173, %v2158
        %v2176 = vadd.f32 %v2174, %v2160
        %v2177 = vadd.f32 %v2175, %v2164
        %v2178 = vadd.f32 %v2176, %v2166
        %v2179 = vadd.f32 %v2177, %v2170
        %v2180 = vadd.f32 %v2178, %v2172
        %v2181 = vrcp.pop %v2179
        %v2182 = vrcp.pop %v2180
        %v2183 = vmul.f32 %v2146, %v1007
        %v2184 = vmul.f32 %v2148, %v1011
        %v2185 = vmul.f32 %v2152, %v1017
        %v2186 = vmul.f32 %v2154, %v1021
        %v2187 = vadd.f32 %v2183, %v2185
        %v2188 = vadd.f32 %v2184, %v2186
        %v2189 = vmul.f32 %v2158, %v1027
        %v2190 = vmul.f32 %v2160, %v1031
        %v2191 = vadd.f32 %v2187, %v2189
        %v2192 = vadd.f32 %v2188, %v2190
        %v2193 = vmul.f32 %v2164, %v1037
        %v2194 = vmul.f32 %v2166, %v1041
        %v2195 = vadd.f32 %v2191, %v2193
        %v2196 = vadd.f32 %v2192, %v2194
        %v2197 = vmul.f32 %v2170, %v1047
        %v2198 = vmul.f32 %v2172, %v1051
        %v2199 = vadd.f32 %v2195, %v2197
        %v2200 = vadd.f32 %v2196, %v2198
        %v2201 = vmul.f32 %v2199, %v2181
        %v2202 = vmul.f32 %v2200, %v2182
        %v2203 = vpack.c.bf16 %v2202, %v2201
        %v2205 = vunpack.c.l.b16 %v2203
        %v2206 = vunpack.c.h.b16 %v2203
        %v2207 = vpack.c.b16 %v2205, %v2205
        %v2208 = vpack.c.b16 %v2206, %v2206
        %2211 = vst.msk [vmem:[#allocation3 + $0x18] sm:$0xf] %vm1071, %v2207
        %2212 = vst.msk [vmem:[#allocation3 + $0x1c] sm:$0xf] %vm1071, %v2208
        %v2213 = vmax.f32 %v1863, %v1871
        %v2214 = vmax.f32 %v1866, %v1874
        %v2215 = vmax.f32 %v2213, %v1879
        %v2216 = vmax.f32 %v2214, %v1882
        %v2217 = vmax.f32 %v2215, %v1887
        %v2218 = vmax.f32 %v2216, %v1890
        %v2219 = vmax.f32 %v2217, %v1895
        %v2220 = vmax.f32 %v2218, %v1898
        %v2221 = vsub.f32 %v1863, %v2219
        %v2222 = vsub.f32 %v1866, %v2220
        %v2223 = vmul.f32 %v2221, 1.442695
        %v2224 = vpow.pop %v2223
        %v2225 = vmul.f32 %v2222, 1.442695
        %v2226 = vpow.pop %v2225
        %v2227 = vsub.f32 %v1871, %v2219
        %v2228 = vsub.f32 %v1874, %v2220
        %v2229 = vmul.f32 %v2227, 1.442695
        %v2230 = vpow.pop %v2229
        %v2231 = vmul.f32 %v2228, 1.442695
        %v2232 = vpow.pop %v2231
        %v2233 = vsub.f32 %v1879, %v2219
        %v2234 = vsub.f32 %v1882, %v2220
        %v2235 = vmul.f32 %v2233, 1.442695
        %v2236 = vpow.pop %v2235
        %v2237 = vmul.f32 %v2234, 1.442695
        %v2238 = vpow.pop %v2237
        %v2239 = vsub.f32 %v1887, %v2219
        %v2240 = vsub.f32 %v1890, %v2220
        %v2241 = vmul.f32 %v2239, 1.442695
        %v2242 = vpow.pop %v2241
        %v2243 = vmul.f32 %v2240, 1.442695
        %v2244 = vpow.pop %v2243
        %v2245 = vsub.f32 %v1895, %v2219
        %v2246 = vsub.f32 %v1898, %v2220
        %v2247 = vmul.f32 %v2245, 1.442695
        %v2248 = vpow.pop %v2247
        %v2249 = vmul.f32 %v2246, 1.442695
        %v2250 = vpow.pop %v2249
        %v2251 = vadd.f32 %v2224, %v2230
        %v2252 = vadd.f32 %v2226, %v2232
        %v2253 = vadd.f32 %v2251, %v2236
        %v2254 = vadd.f32 %v2252, %v2238
        %v2255 = vadd.f32 %v2253, %v2242
        %v2256 = vadd.f32 %v2254, %v2244
        %v2257 = vadd.f32 %v2255, %v2248
        %v2258 = vadd.f32 %v2256, %v2250
        %v2259 = vrcp.pop %v2257
        %v2260 = vrcp.pop %v2258
        %v2261 = vmul.f32 %v2224, %v1007
        %v2262 = vmul.f32 %v2226, %v1011
        %v2263 = vmul.f32 %v2230, %v1017
        %v2264 = vmul.f32 %v2232, %v1021
        %v2265 = vadd.f32 %v2261, %v2263
        %v2266 = vadd.f32 %v2262, %v2264
        %v2267 = vmul.f32 %v2236, %v1027
        %v2268 = vmul.f32 %v2238, %v1031
        %v2269 = vadd.f32 %v2265, %v2267
        %v2270 = vadd.f32 %v2266, %v2268
        %v2271 = vmul.f32 %v2242, %v1037
        %v2272 = vmul.f32 %v2244, %v1041
        %v2273 = vadd.f32 %v2269, %v2271
        %v2274 = vadd.f32 %v2270, %v2272
        %v2275 = vmul.f32 %v2248, %v1047
        %v2276 = vmul.f32 %v2250, %v1051
        %v2277 = vadd.f32 %v2273, %v2275
        %v2278 = vadd.f32 %v2274, %v2276
        %v2279 = vmul.f32 %v2277, %v2259
        %v2280 = vmul.f32 %v2278, %v2260
        %v2281 = vpack.c.bf16 %v2280, %v2279
        %v2283 = vunpack.c.l.b16 %v2281
        %v2284 = vunpack.c.h.b16 %v2281
        %v2285 = vpack.c.b16 %v2283, %v2283
        %v2286 = vpack.c.b16 %v2284, %v2284
        %2289 = vst.msk [vmem:[#allocation3 + $0x20] sm:$0xf] %vm1071, %v2285
        %2290 = vst.msk [vmem:[#allocation3 + $0x24] sm:$0xf] %vm1071, %v2286
        %v2291 = vld [vmem:[#allocation3] sm:$0xf]
        %v2292 = vld [vmem:[#allocation3 + $0x4] sm:$0xf]
        %v2293 = vld [vmem:[#allocation3 + $0x8] sm:$0xf]
        %v2294 = vld [vmem:[#allocation3 + $0xc] sm:$0xf]
        %v2295 = vld [vmem:[#allocation3 + $0x10] sm:$0xf]
        %v2296 = vld [vmem:[#allocation3 + $0x14] sm:$0xf]
        %v2297 = vld [vmem:[#allocation3 + $0x18] sm:$0xf]
        %v2298 = vld [vmem:[#allocation3 + $0x1c] sm:$0xf]
        %v2299 = vld [vmem:[#allocation3 + $0x20] sm:$0xf]
        %v2300 = vld [vmem:[#allocation3 + $0x24] sm:$0xf]
        %v2301 = vld [vmem:[%s5] sm:$0xf]
        %v2302 = vld [vmem:[%s5 + $0x4] sm:$0xf]
        %v2303 = vld [vmem:[%s5 + $0x8] sm:$0xf]
        %v2304 = vld [vmem:[%s5 + $0xc] sm:$0xf]
        %v2305 = vld [vmem:[%s5 + $0x10] sm:$0xf]
        %v2306 = vld [vmem:[%s5 + $0x14] sm:$0xf]
        %v2307 = vld [vmem:[%s5 + $0x18] sm:$0xf]
        %v2308 = vld [vmem:[%s5 + $0x1c] sm:$0xf]
        %v2309 = vld [vmem:[#allocation9] sm:$0x1]
        %v2311 = vlaneseq
        %v2312 = vshrl.u32 %v2311, 7
        %v2313 = vsub.s32 0, %v2312
        %v2314 = vrot.slane %v2309, %v2313
        %v2326 = vunpack.c.l.b16 %v2291
        %v2327 = vunpack.c.l.b16 %v2292
        %v2328 = vunpack.c.l.b16 %v2293
        %v2329 = vunpack.c.l.b16 %v2294
        %v2330 = vunpack.c.l.b16 %v2295
        %v2331 = vunpack.c.l.b16 %v2296
        %v2332 = vunpack.c.l.b16 %v2297
        %v2333 = vunpack.c.l.b16 %v2298
        %v2334 = vunpack.c.l.b16 %v2299
        %v2335 = vunpack.c.l.b16 %v2300
        %v2336 = vpack.c.b16 %v2327, %v2326
        %v2337 = vpack.c.b16 %v2329, %v2328
        %v2338 = vpack.c.b16 %v2331, %v2330
        %v2339 = vpack.c.b16 %v2333, %v2332
        %v2340 = vpack.c.b16 %v2335, %v2334
        %v2349 = vunpack.c.l.b16 %v2301
        %v2350 = vunpack.c.l.b16 %v2302
        %v2351 = vunpack.c.l.b16 %v2303
        %v2352 = vunpack.c.l.b16 %v2304
        %v2353 = vunpack.c.l.b16 %v2305
        %v2354 = vunpack.c.l.b16 %v2306
        %v2355 = vunpack.c.l.b16 %v2307
        %v2356 = vunpack.c.l.b16 %v2308
        %v2357 = vpack.c.b16 %v2350, %v2349
        %v2358 = vpack.c.b16 %v2352, %v2351
        %v2359 = vpack.c.b16 %v2354, %v2353
        %v2360 = vpack.c.b16 %v2356, %v2355
        %v2366 = vsel %vm954, %v2336, 0
        %v2369 = vsel %vm954, %v2337, 0
        %v2372 = vsel %vm954, %v2338, 0
        %v2375 = vsel %vm954, %v2339, 0
        %v2378 = vsel %vm954, %v2340, 0
        %2380 = vmatprep.subr.bf16.mxu0 0
        %2381 = vmatpush1.bf16.msra.mxu0 0
        %2382 = vmatprep.subr.bf16.mxu0 0
        %2383 = vmatpush1.bf16.msra.mxu0 0
        %2384 = vmatprep.subr.bf16.mxu0 0
        %2385 = vmatpush1.bf16.msra.mxu0 0
        %2386 = vmatprep.subr.bf16.mxu0 0
        %2387 = vmatpush1.bf16.msra.mxu0 0
        %2388 = vmatprep.subr.bf16.mxu0 0
        %2389 = vmatpush1.bf16.msra.mxu0 %v2360
        %2390 = vmatprep.subr.bf16.mxu0 0
        %2391 = vmatpush1.bf16.msra.mxu0 %v2359
        %2392 = vmatprep.subr.bf16.mxu0 0
        %2393 = vmatpush1.bf16.msra.mxu0 %v2358
        %2394 = vmatprep.subr.bf16.mxu0 0
        %2395 = vmatpush1.bf16.msra.mxu0 %v2357
        %2396 = vmatprep.subr.bf16.mxu0 0
        %2397 = vmatpush2.bf16.msra.mxu0 0
        %2398 = vmatprep.subr.bf16.mxu0 0
        %2399 = vmatpush2.bf16.msra.mxu0 0
        %2400 = vmatprep.subr.bf16.mxu0 0
        %2401 = vmatpush2.bf16.msra.mxu0 0
        %2402 = vmatprep.subr.bf16.mxu0 0
        %2403 = vmatpush2.bf16.msra.mxu0 0
        %2404 = vmatprep.subr.bf16.mxu0 0
        %2405 = vmatpush2.bf16.msra.mxu0 0
        %2406 = vmatprep.subr.bf16.mxu0 0
        %2407 = vmatpush2.bf16.msra.mxu0 0
        %2408 = vmatprep.subr.bf16.mxu0 0
        %2409 = vmatpush2.bf16.msra.mxu0 0
        %2410 = vmatprep.subr.bf16.mxu0 0
        %2411 = vmatpush2.bf16.msra.mxu0 0
        %2412 = vmatprep.mubr.bf16.mxu0 0
        %2413 = vmatmul.mubr.bf16.gmra.mxu0 %v2366
        %v2414 = vpop.f32.mrf.mxu0
        %v2415 = vadd.f32 %v2314, %v2414
        %v2416 = vpop.f32.mrf.mxu0
        %v2417 = vpop.f32.mrf.mxu0
        %v2418 = vadd.f32 %v2314, %v2417
        %v2419 = vpop.f32.mrf.mxu0
        %2420 = vmatprep.mubr.bf16.mxu0 0
        %2421 = vmatmul.mubr.bf16.gmra.mxu0 %v2369
        %v2422 = vpop.f32.mrf.mxu0
        %v2423 = vadd.f32 %v2314, %v2422
        %v2424 = vpop.f32.mrf.mxu0
        %v2425 = vpop.f32.mrf.mxu0
        %v2426 = vadd.f32 %v2314, %v2425
        %v2427 = vpop.f32.mrf.mxu0
        %2428 = vmatprep.mubr.bf16.mxu0 0
        %2429 = vmatmul.mubr.bf16.gmra.mxu0 %v2372
        %v2430 = vpop.f32.mrf.mxu0
        %v2431 = vadd.f32 %v2314, %v2430
        %v2432 = vpop.f32.mrf.mxu0
        %v2433 = vpop.f32.mrf.mxu0
        %v2434 = vadd.f32 %v2314, %v2433
        %v2435 = vpop.f32.mrf.mxu0
        %2436 = vmatprep.mubr.bf16.mxu0 0
        %2437 = vmatmul.mubr.bf16.gmra.mxu0 %v2375
        %v2438 = vpop.f32.mrf.mxu0
        %v2439 = vadd.f32 %v2314, %v2438
        %v2440 = vpop.f32.mrf.mxu0
        %v2441 = vpop.f32.mrf.mxu0
        %v2442 = vadd.f32 %v2314, %v2441
        %v2443 = vpop.f32.mrf.mxu0
        %2444 = vmatprep.mubr.bf16.mxu0 0
        %2445 = vmatmul.mubr.bf16.gmra.mxu0 %v2378
        %v2446 = vpop.f32.mrf.mxu0
        %v2447 = vadd.f32 %v2314, %v2446
        %v2448 = vpop.f32.mrf.mxu0
        %v2449 = vpop.f32.mrf.mxu0
        %v2450 = vadd.f32 %v2314, %v2449
        %v2451 = vpop.f32.mrf.mxu0
        %2452 = vdwg.mxu0
        %v2453 = vadd.f32 %v831, %v2415
        %v2454 = vadd.f32 %v832, %v2418
        %v2455 = vadd.f32 %v843, %v2423
        %v2456 = vadd.f32 %v844, %v2426
        %v2457 = vadd.f32 %v855, %v2431
        %v2458 = vadd.f32 %v856, %v2434
        %v2459 = vadd.f32 %v867, %v2439
        %v2460 = vadd.f32 %v868, %v2442
        %v2461 = vadd.f32 %v879, %v2447
        %v2462 = vadd.f32 %v880, %v2450
        %v2463 = vld [vmem:[#allocation10] sm:$0x1]
        %v2464 = vld [vmem:[#allocation12] sm:$0x1]
        %v2465 = vsel %vm954, %v2453, 0.0
        %2466 = vadd.xlane.f32.xlu0 %v2465
        %v2467 = vpop.xlane.xlu0 %2466
        %v2468 = vsel %vm954, %v2454, 0.0
        %2469 = vadd.xlane.f32.xlu0 %v2468
        %v2470 = vpop.xlane.xlu0 %2469
        %v2471 = vsel %vm954, %v2455, 0.0
        %2472 = vadd.xlane.f32.xlu0 %v2471
        %v2473 = vpop.xlane.xlu0 %2472
        %v2474 = vsel %vm954, %v2456, 0.0
        %2475 = vadd.xlane.f32.xlu0 %v2474
        %v2476 = vpop.xlane.xlu0 %2475
        %v2477 = vsel %vm954, %v2457, 0.0
        %2478 = vadd.xlane.f32.xlu0 %v2477
        %v2479 = vpop.xlane.xlu0 %2478
        %v2480 = vsel %vm954, %v2458, 0.0
        %2481 = vadd.xlane.f32.xlu0 %v2480
        %v2482 = vpop.xlane.xlu0 %2481
        %v2483 = vsel %vm954, %v2459, 0.0
        %2484 = vadd.xlane.f32.xlu0 %v2483
        %v2485 = vpop.xlane.xlu0 %2484
        %v2486 = vsel %vm954, %v2460, 0.0
        %2487 = vadd.xlane.f32.xlu0 %v2486
        %v2488 = vpop.xlane.xlu0 %2487
        %v2489 = vsel %vm954, %v2461, 0.0
        %2490 = vadd.xlane.f32.xlu0 %v2489
        %v2491 = vpop.xlane.xlu0 %2490
        %v2492 = vsel %vm954, %v2462, 0.0
        %2493 = vadd.xlane.f32.xlu0 %v2492
        %v2494 = vpop.xlane.xlu0 %2493
        %v2495 = vrcp.pop 64.0
        %v2496 = vmul.f32 %v2467, %v2495
        %v2497 = vmul.f32 %v2470, %v2495
        %v2498 = vmul.f32 %v2473, %v2495
        %v2499 = vmul.f32 %v2476, %v2495
        %v2500 = vmul.f32 %v2479, %v2495
        %v2501 = vmul.f32 %v2482, %v2495
        %v2502 = vmul.f32 %v2485, %v2495
        %v2503 = vmul.f32 %v2488, %v2495
        %v2504 = vmul.f32 %v2491, %v2495
        %v2505 = vmul.f32 %v2494, %v2495
        %v2506 = vsub.f32 %v2453, %v2496
        %v2507 = vsub.f32 %v2454, %v2497
        %v2508 = vsub.f32 %v2455, %v2498
        %v2509 = vsub.f32 %v2456, %v2499
        %v2510 = vsub.f32 %v2457, %v2500
        %v2511 = vsub.f32 %v2458, %v2501
        %v2512 = vsub.f32 %v2459, %v2502
        %v2513 = vsub.f32 %v2460, %v2503
        %v2514 = vsub.f32 %v2461, %v2504
        %v2515 = vsub.f32 %v2462, %v2505
        %v2516 = vmul.f32 %v2506, %v2506
        %v2517 = vmul.f32 %v2507, %v2507
        %v2518 = vmul.f32 %v2508, %v2508
        %v2519 = vmul.f32 %v2509, %v2509
        %v2520 = vmul.f32 %v2510, %v2510
        %v2521 = vmul.f32 %v2511, %v2511
        %v2522 = vmul.f32 %v2512, %v2512
        %v2523 = vmul.f32 %v2513, %v2513
        %v2524 = vmul.f32 %v2514, %v2514
        %v2525 = vmul.f32 %v2515, %v2515
        %v2526 = vsel %vm954, %v2516, 0.0
        %2527 = vadd.xlane.f32.xlu0 %v2526
        %v2528 = vpop.xlane.xlu0 %2527
        %v2529 = vsel %vm954, %v2517, 0.0
        %2530 = vadd.xlane.f32.xlu0 %v2529
        %v2531 = vpop.xlane.xlu0 %2530
        %v2532 = vsel %vm954, %v2518, 0.0
        %2533 = vadd.xlane.f32.xlu0 %v2532
        %v2534 = vpop.xlane.xlu0 %2533
        %v2535 = vsel %vm954, %v2519, 0.0
        %2536 = vadd.xlane.f32.xlu0 %v2535
        %v2537 = vpop.xlane.xlu0 %2536
        %v2538 = vsel %vm954, %v2520, 0.0
        %2539 = vadd.xlane.f32.xlu0 %v2538
        %v2540 = vpop.xlane.xlu0 %2539
        %v2541 = vsel %vm954, %v2521, 0.0
        %2542 = vadd.xlane.f32.xlu0 %v2541
        %v2543 = vpop.xlane.xlu0 %2542
        %v2544 = vsel %vm954, %v2522, 0.0
        %2545 = vadd.xlane.f32.xlu0 %v2544
        %v2546 = vpop.xlane.xlu0 %2545
        %v2547 = vsel %vm954, %v2523, 0.0
        %2548 = vadd.xlane.f32.xlu0 %v2547
        %v2549 = vpop.xlane.xlu0 %2548
        %v2550 = vsel %vm954, %v2524, 0.0
        %2551 = vadd.xlane.f32.xlu0 %v2550
        %v2552 = vpop.xlane.xlu0 %2551
        %v2553 = vsel %vm954, %v2525, 0.0
        %2554 = vadd.xlane.f32.xlu0 %v2553
        %v2555 = vpop.xlane.xlu0 %2554
        %v2556 = vmul.f32 %v2528, %v2495
        %v2557 = vmul.f32 %v2531, %v2495
        %v2558 = vmul.f32 %v2534, %v2495
        %v2559 = vmul.f32 %v2537, %v2495
        %v2560 = vmul.f32 %v2540, %v2495
        %v2561 = vmul.f32 %v2543, %v2495
        %v2562 = vmul.f32 %v2546, %v2495
        %v2563 = vmul.f32 %v2549, %v2495
        %v2564 = vmul.f32 %v2552, %v2495
        %v2565 = vmul.f32 %v2555, %v2495
        %v2566 = vadd.f32 %v2556, 1e-05
        %v2567 = vadd.f32 %v2557, 1e-05
        %v2568 = vadd.f32 %v2558, 1e-05
        %v2569 = vadd.f32 %v2559, 1e-05
        %v2570 = vadd.f32 %v2560, 1e-05
        %v2571 = vadd.f32 %v2561, 1e-05
        %v2572 = vadd.f32 %v2562, 1e-05
        %v2573 = vadd.f32 %v2563, 1e-05
        %v2574 = vadd.f32 %v2564, 1e-05
        %v2575 = vadd.f32 %v2565, 1e-05
        %v2576 = vrsqrt.pop %v2566
        %v2577 = vrsqrt.pop %v2567
        %v2578 = vrsqrt.pop %v2568
        %v2579 = vrsqrt.pop %v2569
        %v2580 = vrsqrt.pop %v2570
        %v2581 = vrsqrt.pop %v2571
        %v2582 = vrsqrt.pop %v2572
        %v2583 = vrsqrt.pop %v2573
        %v2584 = vrsqrt.pop %v2574
        %v2585 = vrsqrt.pop %v2575
        %v2586 = vmul.f32 %v2506, %v2576
        %v2587 = vmul.f32 %v2507, %v2577
        %v2588 = vmul.f32 %v2508, %v2578
        %v2589 = vmul.f32 %v2509, %v2579
        %v2590 = vmul.f32 %v2510, %v2580
        %v2591 = vmul.f32 %v2511, %v2581
        %v2592 = vmul.f32 %v2512, %v2582
        %v2593 = vmul.f32 %v2513, %v2583
        %v2594 = vmul.f32 %v2514, %v2584
        %v2595 = vmul.f32 %v2515, %v2585
        %v2597 = vlaneseq
        %v2598 = vshrl.u32 %v2597, 7
        %v2599 = vsub.s32 0, %v2598
        %v2600 = vrot.slane %v2463, %v2599
        %v2602 = vmul.f32 %v2586, %v2600
        %v2603 = vmul.f32 %v2587, %v2600
        %v2604 = vmul.f32 %v2588, %v2600
        %v2605 = vmul.f32 %v2589, %v2600
        %v2606 = vmul.f32 %v2590, %v2600
        %v2607 = vmul.f32 %v2591, %v2600
        %v2608 = vmul.f32 %v2592, %v2600
        %v2609 = vmul.f32 %v2593, %v2600
        %v2610 = vmul.f32 %v2594, %v2600
        %v2611 = vmul.f32 %v2595, %v2600
        %v2613 = vlaneseq
        %v2614 = vshrl.u32 %v2613, 7
        %v2615 = vsub.s32 0, %v2614
        %v2616 = vrot.slane %v2464, %v2615
        %v2618 = vadd.f32 %v2602, %v2616
        %v2619 = vadd.f32 %v2603, %v2616
        %v2620 = vadd.f32 %v2604, %v2616
        %v2621 = vadd.f32 %v2605, %v2616
        %v2622 = vadd.f32 %v2606, %v2616
        %v2623 = vadd.f32 %v2607, %v2616
        %v2624 = vadd.f32 %v2608, %v2616
        %v2625 = vadd.f32 %v2609, %v2616
        %v2626 = vadd.f32 %v2610, %v2616
        %v2627 = vadd.f32 %v2611, %v2616
        %v2628 = vld [vmem:[#allocation16] sm:$0xf]
        %v2629 = vld [vmem:[#allocation16 + $0x4] sm:$0xf]
        %v2630 = vld [vmem:[#allocation16 + $0x8] sm:$0xf]
        %v2631 = vld [vmem:[#allocation16 + $0xc] sm:$0xf]
        %v2632 = vld [vmem:[#allocation16 + $0x10] sm:$0xf]
        %v2633 = vld [vmem:[#allocation16 + $0x14] sm:$0xf]
        %v2634 = vld [vmem:[#allocation16 + $0x18] sm:$0xf]
        %v2635 = vld [vmem:[#allocation16 + $0x1c] sm:$0xf]
        %v2636 = vpack.c.bf16 %v2619, %v2618
        %v2637 = vpack.c.bf16 %v2621, %v2620
        %v2638 = vpack.c.bf16 %v2623, %v2622
        %v2639 = vpack.c.bf16 %v2625, %v2624
        %v2640 = vpack.c.bf16 %v2627, %v2626
        %v2641 = vld [vmem:[#allocation18] sm:$0x1]
        %v2643 = vlaneseq
        %v2644 = vshrl.u32 %v2643, 7
        %v2645 = vsub.s32 0, %v2644
        %v2646 = vrot.slane %v2641, %v2645
        %v2656 = vunpack.c.l.b16 %v2628
        %v2657 = vunpack.c.l.b16 %v2629
        %v2658 = vunpack.c.l.b16 %v2630
        %v2659 = vunpack.c.l.b16 %v2631
        %v2660 = vunpack.c.l.b16 %v2632
        %v2661 = vunpack.c.l.b16 %v2633
        %v2662 = vunpack.c.l.b16 %v2634
        %v2663 = vunpack.c.l.b16 %v2635
        %v2664 = vpack.c.b16 %v2657, %v2656
        %v2665 = vpack.c.b16 %v2659, %v2658
        %v2666 = vpack.c.b16 %v2661, %v2660
        %v2667 = vpack.c.b16 %v2663, %v2662
        %v2673 = vsel %vm954, %v2636, 0
        %v2676 = vsel %vm954, %v2637, 0
        %v2679 = vsel %vm954, %v2638, 0
        %v2682 = vsel %vm954, %v2639, 0
        %v2685 = vsel %vm954, %v2640, 0
        %2687 = vmatprep.subr.bf16.mxu0 0
        %2688 = vmatpush1.bf16.msra.mxu0 0
        %2689 = vmatprep.subr.bf16.mxu0 0
        %2690 = vmatpush1.bf16.msra.mxu0 0
        %2691 = vmatprep.subr.bf16.mxu0 0
        %2692 = vmatpush1.bf16.msra.mxu0 0
        %2693 = vmatprep.subr.bf16.mxu0 0
        %2694 = vmatpush1.bf16.msra.mxu0 0
        %2695 = vmatprep.subr.bf16.mxu0 0
        %2696 = vmatpush1.bf16.msra.mxu0 %v2667
        %2697 = vmatprep.subr.bf16.mxu0 0
        %2698 = vmatpush1.bf16.msra.mxu0 %v2666
        %2699 = vmatprep.subr.bf16.mxu0 0
        %2700 = vmatpush1.bf16.msra.mxu0 %v2665
        %2701 = vmatprep.subr.bf16.mxu0 0
        %2702 = vmatpush1.bf16.msra.mxu0 %v2664
        %2703 = vmatprep.subr.bf16.mxu0 0
        %2704 = vmatpush2.bf16.msra.mxu0 0
        %2705 = vmatprep.subr.bf16.mxu0 0
        %2706 = vmatpush2.bf16.msra.mxu0 0
        %2707 = vmatprep.subr.bf16.mxu0 0
        %2708 = vmatpush2.bf16.msra.mxu0 0
        %2709 = vmatprep.subr.bf16.mxu0 0
        %2710 = vmatpush2.bf16.msra.mxu0 0
        %2711 = vmatprep.subr.bf16.mxu0 0
        %2712 = vmatpush2.bf16.msra.mxu0 0
        %2713 = vmatprep.subr.bf16.mxu0 0
        %2714 = vmatpush2.bf16.msra.mxu0 0
        %2715 = vmatprep.subr.bf16.mxu0 0
        %2716 = vmatpush2.bf16.msra.mxu0 0
        %2717 = vmatprep.subr.bf16.mxu0 0
        %2718 = vmatpush2.bf16.msra.mxu0 0
        %2719 = vmatprep.mubr.bf16.mxu0 0
        %2720 = vmatmul.mubr.bf16.gmra.mxu0 %v2673
        %v2721 = vpop.f32.mrf.mxu0
        %v2722 = vadd.f32 %v2646, %v2721
        %v2723 = vpop.f32.mrf.mxu0
        %v2724 = vpop.f32.mrf.mxu0
        %v2725 = vadd.f32 %v2646, %v2724
        %v2726 = vpop.f32.mrf.mxu0
        %2727 = vmatprep.mubr.bf16.mxu0 0
        %2728 = vmatmul.mubr.bf16.gmra.mxu0 %v2676
        %v2729 = vpop.f32.mrf.mxu0
        %v2730 = vadd.f32 %v2646, %v2729
        %v2731 = vpop.f32.mrf.mxu0
        %v2732 = vpop.f32.mrf.mxu0
        %v2733 = vadd.f32 %v2646, %v2732
        %v2734 = vpop.f32.mrf.mxu0
        %2735 = vmatprep.mubr.bf16.mxu0 0
        %2736 = vmatmul.mubr.bf16.gmra.mxu0 %v2679
        %v2737 = vpop.f32.mrf.mxu0
        %v2738 = vadd.f32 %v2646, %v2737
        %v2739 = vpop.f32.mrf.mxu0
        %v2740 = vpop.f32.mrf.mxu0
        %v2741 = vadd.f32 %v2646, %v2740
        %v2742 = vpop.f32.mrf.mxu0
        %2743 = vmatprep.mubr.bf16.mxu0 0
        %2744 = vmatmul.mubr.bf16.gmra.mxu0 %v2682
        %v2745 = vpop.f32.mrf.mxu0
        %v2746 = vadd.f32 %v2646, %v2745
        %v2747 = vpop.f32.mrf.mxu0
        %v2748 = vpop.f32.mrf.mxu0
        %v2749 = vadd.f32 %v2646, %v2748
        %v2750 = vpop.f32.mrf.mxu0
        %2751 = vmatprep.mubr.bf16.mxu0 0
        %2752 = vmatmul.mubr.bf16.gmra.mxu0 %v2685
        %v2753 = vpop.f32.mrf.mxu0
        %v2754 = vadd.f32 %v2646, %v2753
        %v2755 = vpop.f32.mrf.mxu0
        %v2756 = vpop.f32.mrf.mxu0
        %v2757 = vadd.f32 %v2646, %v2756
        %v2758 = vpop.f32.mrf.mxu0
        %2759 = vdwg.mxu0
        %v2760 = vmax.f32 %v2722, 0.0
        %v2761 = vmax.f32 %v2725, 0.0
        %v2762 = vmax.f32 %v2730, 0.0
        %v2763 = vmax.f32 %v2733, 0.0
        %v2764 = vmax.f32 %v2738, 0.0
        %v2765 = vmax.f32 %v2741, 0.0
        %v2766 = vmax.f32 %v2746, 0.0
        %v2767 = vmax.f32 %v2749, 0.0
        %v2768 = vmax.f32 %v2754, 0.0
        %v2769 = vmax.f32 %v2757, 0.0
        %v2770 = vld [vmem:[%s13] sm:$0xf]
        %v2771 = vld [vmem:[%s13 + $0x4] sm:$0xf]
        %v2772 = vld [vmem:[%s13 + $0x8] sm:$0xf]
        %v2773 = vld [vmem:[%s13 + $0xc] sm:$0xf]
        %v2774 = vld [vmem:[%s13 + $0x10] sm:$0xf]
        %v2775 = vld [vmem:[%s13 + $0x14] sm:$0xf]
        %v2776 = vld [vmem:[%s13 + $0x18] sm:$0xf]
        %v2777 = vld [vmem:[%s13 + $0x1c] sm:$0xf]
        %v2778 = vld [vmem:[%s13 + $0x20] sm:$0xf]
        %v2779 = vld [vmem:[%s13 + $0x24] sm:$0xf]
        %v2780 = vld [vmem:[%s13 + $0x28] sm:$0xf]
        %v2781 = vld [vmem:[%s13 + $0x2c] sm:$0xf]
        %v2782 = vld [vmem:[%s13 + $0x30] sm:$0xf]
        %v2783 = vld [vmem:[%s13 + $0x34] sm:$0xf]
        %v2784 = vld [vmem:[%s13 + $0x38] sm:$0xf]
        %v2785 = vld [vmem:[%s13 + $0x3c] sm:$0xf]
        %v2786 = vpack.c.bf16 %v2761, %v2760
        %v2787 = vpack.c.bf16 %v2763, %v2762
        %v2788 = vpack.c.bf16 %v2765, %v2764
        %v2789 = vpack.c.bf16 %v2767, %v2766
        %v2790 = vpack.c.bf16 %v2769, %v2768
        %v2791 = vld [vmem:[#allocation19] sm:$0x1]
        %v2793 = vlaneseq
        %v2794 = vshrl.u32 %v2793, 7
        %v2795 = vsub.s32 0, %v2794
        %v2796 = vrot.slane %v2791, %v2795
        %v2814 = vunpack.c.l.b16 %v2770
        %v2815 = vunpack.c.l.b16 %v2771
        %v2816 = vunpack.c.l.b16 %v2772
        %v2817 = vunpack.c.l.b16 %v2773
        %v2818 = vunpack.c.l.b16 %v2774
        %v2819 = vunpack.c.l.b16 %v2775
        %v2820 = vunpack.c.l.b16 %v2776
        %v2821 = vunpack.c.l.b16 %v2777
        %v2822 = vunpack.c.l.b16 %v2778
        %v2823 = vunpack.c.l.b16 %v2779
        %v2824 = vunpack.c.l.b16 %v2780
        %v2825 = vunpack.c.l.b16 %v2781
        %v2826 = vunpack.c.l.b16 %v2782
        %v2827 = vunpack.c.l.b16 %v2783
        %v2828 = vunpack.c.l.b16 %v2784
        %v2829 = vunpack.c.l.b16 %v2785
        %v2830 = vpack.c.b16 %v2815, %v2814
        %v2831 = vpack.c.b16 %v2817, %v2816
        %v2832 = vpack.c.b16 %v2819, %v2818
        %v2833 = vpack.c.b16 %v2821, %v2820
        %v2834 = vpack.c.b16 %v2823, %v2822
        %v2835 = vpack.c.b16 %v2825, %v2824
        %v2836 = vpack.c.b16 %v2827, %v2826
        %v2837 = vpack.c.b16 %v2829, %v2828
        %2846 = vmatprep.subr.bf16.mxu0 0
        %2847 = vmatpush1.bf16.msra.mxu0 %v2837
        %2848 = vmatprep.subr.bf16.mxu0 0
        %2849 = vmatpush1.bf16.msra.mxu0 %v2836
        %2850 = vmatprep.subr.bf16.mxu0 0
        %2851 = vmatpush1.bf16.msra.mxu0 %v2835
        %2852 = vmatprep.subr.bf16.mxu0 0
        %2853 = vmatpush1.bf16.msra.mxu0 %v2834
        %2854 = vmatprep.subr.bf16.mxu0 0
        %2855 = vmatpush1.bf16.msra.mxu0 %v2833
        %2856 = vmatprep.subr.bf16.mxu0 0
        %2857 = vmatpush1.bf16.msra.mxu0 %v2832
        %2858 = vmatprep.subr.bf16.mxu0 0
        %2859 = vmatpush1.bf16.msra.mxu0 %v2831
        %2860 = vmatprep.subr.bf16.mxu0 0
        %2861 = vmatpush1.bf16.msra.mxu0 %v2830
        %2862 = vmatprep.subr.bf16.mxu0 0
        %2863 = vmatpush2.bf16.msra.mxu0 0
        %2864 = vmatprep.subr.bf16.mxu0 0
        %2865 = vmatpush2.bf16.msra.mxu0 0
        %2866 = vmatprep.subr.bf16.mxu0 0
        %2867 = vmatpush2.bf16.msra.mxu0 0
        %2868 = vmatprep.subr.bf16.mxu0 0
        %2869 = vmatpush2.bf16.msra.mxu0 0
        %2870 = vmatprep.subr.bf16.mxu0 0
        %2871 = vmatpush2.bf16.msra.mxu0 0
        %2872 = vmatprep.subr.bf16.mxu0 0
        %2873 = vmatpush2.bf16.msra.mxu0 0
        %2874 = vmatprep.subr.bf16.mxu0 0
        %2875 = vmatpush2.bf16.msra.mxu0 0
        %2876 = vmatprep.subr.bf16.mxu0 0
        %2877 = vmatpush2.bf16.msra.mxu0 0
        %2878 = vmatprep.mubr.bf16.mxu0 0
        %2879 = vmatmul.mubr.bf16.gmra.mxu0 %v2786
        %v2880 = vpop.f32.mrf.mxu0
        %v2881 = vadd.f32 %v2796, %v2880
        %v2882 = vpop.f32.mrf.mxu0
        %v2883 = vpop.f32.mrf.mxu0
        %v2884 = vadd.f32 %v2796, %v2883
        %v2885 = vpop.f32.mrf.mxu0
        %2886 = vmatprep.mubr.bf16.mxu0 0
        %2887 = vmatmul.mubr.bf16.gmra.mxu0 %v2787
        %v2888 = vpop.f32.mrf.mxu0
        %v2889 = vadd.f32 %v2796, %v2888
        %v2890 = vpop.f32.mrf.mxu0
        %v2891 = vpop.f32.mrf.mxu0
        %v2892 = vadd.f32 %v2796, %v2891
        %v2893 = vpop.f32.mrf.mxu0
        %2894 = vmatprep.mubr.bf16.mxu0 0
        %2895 = vmatmul.mubr.bf16.gmra.mxu0 %v2788
        %v2896 = vpop.f32.mrf.mxu0
        %v2897 = vadd.f32 %v2796, %v2896
        %v2898 = vpop.f32.mrf.mxu0
        %v2899 = vpop.f32.mrf.mxu0
        %v2900 = vadd.f32 %v2796, %v2899
        %v2901 = vpop.f32.mrf.mxu0
        %2902 = vmatprep.mubr.bf16.mxu0 0
        %2903 = vmatmul.mubr.bf16.gmra.mxu0 %v2789
        %v2904 = vpop.f32.mrf.mxu0
        %v2905 = vadd.f32 %v2796, %v2904
        %v2906 = vpop.f32.mrf.mxu0
        %v2907 = vpop.f32.mrf.mxu0
        %v2908 = vadd.f32 %v2796, %v2907
        %v2909 = vpop.f32.mrf.mxu0
        %2910 = vmatprep.mubr.bf16.mxu0 0
        %2911 = vmatmul.mubr.bf16.gmra.mxu0 %v2790
        %v2912 = vpop.f32.mrf.mxu0
        %v2913 = vadd.f32 %v2796, %v2912
        %v2914 = vpop.f32.mrf.mxu0
        %v2915 = vpop.f32.mrf.mxu0
        %v2916 = vadd.f32 %v2796, %v2915
        %v2917 = vpop.f32.mrf.mxu0
        %2918 = vdwg.mxu0
        %v2919 = vadd.f32 %v2618, %v2881
        %v2920 = vadd.f32 %v2619, %v2884
        %v2921 = vadd.f32 %v2620, %v2889
        %v2922 = vadd.f32 %v2621, %v2892
        %v2923 = vadd.f32 %v2622, %v2897
        %v2924 = vadd.f32 %v2623, %v2900
        %v2925 = vadd.f32 %v2624, %v2905
        %v2926 = vadd.f32 %v2625, %v2908
        %v2927 = vadd.f32 %v2626, %v2913
        %v2928 = vadd.f32 %v2627, %v2916
        %v2929 = vld [vmem:[#allocation13] sm:$0x1]
        %v2930 = vld [vmem:[#allocation15] sm:$0x1]
        %v2931 = vsel %vm954, %v2919, 0.0
        %2932 = vadd.xlane.f32.xlu0 %v2931
        %v2933 = vpop.xlane.xlu0 %2932
        %v2934 = vsel %vm954, %v2920, 0.0
        %2935 = vadd.xlane.f32.xlu0 %v2934
        %v2936 = vpop.xlane.xlu0 %2935
        %v2937 = vsel %vm954, %v2921, 0.0
        %2938 = vadd.xlane.f32.xlu0 %v2937
        %v2939 = vpop.xlane.xlu0 %2938
        %v2940 = vsel %vm954, %v2922, 0.0
        %2941 = vadd.xlane.f32.xlu0 %v2940
        %v2942 = vpop.xlane.xlu0 %2941
        %v2943 = vsel %vm954, %v2923, 0.0
        %2944 = vadd.xlane.f32.xlu0 %v2943
        %v2945 = vpop.xlane.xlu0 %2944
        %v2946 = vsel %vm954, %v2924, 0.0
        %2947 = vadd.xlane.f32.xlu0 %v2946
        %v2948 = vpop.xlane.xlu0 %2947
        %v2949 = vsel %vm954, %v2925, 0.0
        %2950 = vadd.xlane.f32.xlu0 %v2949
        %v2951 = vpop.xlane.xlu0 %2950
        %v2952 = vsel %vm954, %v2926, 0.0
        %2953 = vadd.xlane.f32.xlu0 %v2952
        %v2954 = vpop.xlane.xlu0 %2953
        %v2955 = vsel %vm954, %v2927, 0.0
        %2956 = vadd.xlane.f32.xlu0 %v2955
        %v2957 = vpop.xlane.xlu0 %2956
        %v2958 = vsel %vm954, %v2928, 0.0
        %2959 = vadd.xlane.f32.xlu0 %v2958
        %v2960 = vpop.xlane.xlu0 %2959
        %v2961 = vmul.f32 %v2933, %v2495
        %v2962 = vmul.f32 %v2936, %v2495
        %v2963 = vmul.f32 %v2939, %v2495
        %v2964 = vmul.f32 %v2942, %v2495
        %v2965 = vmul.f32 %v2945, %v2495
        %v2966 = vmul.f32 %v2948, %v2495
        %v2967 = vmul.f32 %v2951, %v2495
        %v2968 = vmul.f32 %v2954, %v2495
        %v2969 = vmul.f32 %v2957, %v2495
        %v2970 = vmul.f32 %v2960, %v2495
        %v2971 = vsub.f32 %v2919, %v2961
        %v2972 = vsub.f32 %v2920, %v2962
        %v2973 = vsub.f32 %v2921, %v2963
        %v2974 = vsub.f32 %v2922, %v2964
        %v2975 = vsub.f32 %v2923, %v2965
        %v2976 = vsub.f32 %v2924, %v2966
        %v2977 = vsub.f32 %v2925, %v2967
        %v2978 = vsub.f32 %v2926, %v2968
        %v2979 = vsub.f32 %v2927, %v2969
        %v2980 = vsub.f32 %v2928, %v2970
        %v2981 = vmul.f32 %v2971, %v2971
        %v2982 = vmul.f32 %v2972, %v2972
        %v2983 = vmul.f32 %v2973, %v2973
        %v2984 = vmul.f32 %v2974, %v2974
        %v2985 = vmul.f32 %v2975, %v2975
        %v2986 = vmul.f32 %v2976, %v2976
        %v2987 = vmul.f32 %v2977, %v2977
        %v2988 = vmul.f32 %v2978, %v2978
        %v2989 = vmul.f32 %v2979, %v2979
        %v2990 = vmul.f32 %v2980, %v2980
        %v2991 = vsel %vm954, %v2981, 0.0
        %2992 = vadd.xlane.f32.xlu0 %v2991
        %v2993 = vpop.xlane.xlu0 %2992
        %v2994 = vsel %vm954, %v2982, 0.0
        %2995 = vadd.xlane.f32.xlu0 %v2994
        %v2996 = vpop.xlane.xlu0 %2995
        %v2997 = vsel %vm954, %v2983, 0.0
        %2998 = vadd.xlane.f32.xlu0 %v2997
        %v2999 = vpop.xlane.xlu0 %2998
        %v3000 = vsel %vm954, %v2984, 0.0
        %3001 = vadd.xlane.f32.xlu0 %v3000
        %v3002 = vpop.xlane.xlu0 %3001
        %v3003 = vsel %vm954, %v2985, 0.0
        %3004 = vadd.xlane.f32.xlu0 %v3003
        %v3005 = vpop.xlane.xlu0 %3004
        %v3006 = vsel %vm954, %v2986, 0.0
        %3007 = vadd.xlane.f32.xlu0 %v3006
        %v3008 = vpop.xlane.xlu0 %3007
        %v3009 = vsel %vm954, %v2987, 0.0
        %3010 = vadd.xlane.f32.xlu0 %v3009
        %v3011 = vpop.xlane.xlu0 %3010
        %v3012 = vsel %vm954, %v2988, 0.0
        %3013 = vadd.xlane.f32.xlu0 %v3012
        %v3014 = vpop.xlane.xlu0 %3013
        %v3015 = vsel %vm954, %v2989, 0.0
        %3016 = vadd.xlane.f32.xlu0 %v3015
        %v3017 = vpop.xlane.xlu0 %3016
        %v3018 = vsel %vm954, %v2990, 0.0
        %3019 = vadd.xlane.f32.xlu0 %v3018
        %v3020 = vpop.xlane.xlu0 %3019
        %v3021 = vmul.f32 %v2993, %v2495
        %v3022 = vmul.f32 %v2996, %v2495
        %v3023 = vmul.f32 %v2999, %v2495
        %v3024 = vmul.f32 %v3002, %v2495
        %v3025 = vmul.f32 %v3005, %v2495
        %v3026 = vmul.f32 %v3008, %v2495
        %v3027 = vmul.f32 %v3011, %v2495
        %v3028 = vmul.f32 %v3014, %v2495
        %v3029 = vmul.f32 %v3017, %v2495
        %v3030 = vmul.f32 %v3020, %v2495
        %v3031 = vadd.f32 %v3021, 1e-05
        %v3032 = vadd.f32 %v3022, 1e-05
        %v3033 = vadd.f32 %v3023, 1e-05
        %v3034 = vadd.f32 %v3024, 1e-05
        %v3035 = vadd.f32 %v3025, 1e-05
        %v3036 = vadd.f32 %v3026, 1e-05
        %v3037 = vadd.f32 %v3027, 1e-05
        %v3038 = vadd.f32 %v3028, 1e-05
        %v3039 = vadd.f32 %v3029, 1e-05
        %v3040 = vadd.f32 %v3030, 1e-05
        %v3041 = vrsqrt.pop %v3031
        %v3042 = vrsqrt.pop %v3032
        %v3043 = vrsqrt.pop %v3033
        %v3044 = vrsqrt.pop %v3034
        %v3045 = vrsqrt.pop %v3035
        %v3046 = vrsqrt.pop %v3036
        %v3047 = vrsqrt.pop %v3037
        %v3048 = vrsqrt.pop %v3038
        %v3049 = vrsqrt.pop %v3039
        %v3050 = vrsqrt.pop %v3040
        %v3051 = vmul.f32 %v2971, %v3041
        %v3052 = vmul.f32 %v2972, %v3042
        %v3053 = vmul.f32 %v2973, %v3043
        %v3054 = vmul.f32 %v2974, %v3044
        %v3055 = vmul.f32 %v2975, %v3045
        %v3056 = vmul.f32 %v2976, %v3046
        %v3057 = vmul.f32 %v2977, %v3047
        %v3058 = vmul.f32 %v2978, %v3048
        %v3059 = vmul.f32 %v2979, %v3049
        %v3060 = vmul.f32 %v2980, %v3050
        %v3062 = vlaneseq
        %v3063 = vshrl.u32 %v3062, 7
        %v3064 = vsub.s32 0, %v3063
        %v3065 = vrot.slane %v2929, %v3064
        %v3067 = vmul.f32 %v3051, %v3065
        %v3068 = vmul.f32 %v3052, %v3065
        %v3069 = vmul.f32 %v3053, %v3065
        %v3070 = vmul.f32 %v3054, %v3065
        %v3071 = vmul.f32 %v3055, %v3065
        %v3072 = vmul.f32 %v3056, %v3065
        %v3073 = vmul.f32 %v3057, %v3065
        %v3074 = vmul.f32 %v3058, %v3065
        %v3075 = vmul.f32 %v3059, %v3065
        %v3076 = vmul.f32 %v3060, %v3065
        %v3078 = vlaneseq
        %v3079 = vshrl.u32 %v3078, 7
        %v3080 = vsub.s32 0, %v3079
        %v3081 = vrot.slane %v2930, %v3080
        %v3083 = vadd.f32 %v3067, %v3081
        %v3084 = vadd.f32 %v3068, %v3081
        %v3085 = vadd.f32 %v3069, %v3081
        %v3086 = vadd.f32 %v3070, %v3081
        %v3087 = vadd.f32 %v3071, %v3081
        %v3088 = vadd.f32 %v3072, %v3081
        %v3089 = vadd.f32 %v3073, %v3081
        %v3090 = vadd.f32 %v3074, %v3081
        %v3091 = vadd.f32 %v3075, %v3081
        %v3092 = vadd.f32 %v3076, %v3081
        %s3093 = scalar_lea.vmem [#allocation7], 64
        %v3094 = vld [vmem:[%s3093] sm:$0xff]
        %v3095 = vld [vmem:[%s3093 + $0x8] sm:$0xff]
        %v3096 = vld [vmem:[%s3093 + $0x10] sm:$0xff]
        %v3097 = vld [vmem:[%s3093 + $0x18] sm:$0xff]
        %v3098 = vld [vmem:[%s3093 + $0x20] sm:$0xff]
        %v3099 = vld [vmem:[%s3093 + $0x28] sm:$0xff]
        %v3100 = vld [vmem:[%s3093 + $0x30] sm:$0xff]
        %v3101 = vld [vmem:[%s3093 + $0x38] sm:$0xff]
        %v3102 = vpack.c.bf16 %v3084, %v3083
        %v3103 = vpack.c.bf16 %v3086, %v3085
        %v3104 = vpack.c.bf16 %v3088, %v3087
        %v3105 = vpack.c.bf16 %v3090, %v3089
        %v3106 = vpack.c.bf16 %v3092, %v3091
        %s3107 = scalar_lea.vmem %s4, 2
        %v3108 = vld [vmem:[%s3107] sm:$0x3]
        %v3110 = vlaneseq
        %v3111 = vshrl.u32 %v3110, 7
        %v3112 = vsub.s32 0, %v3111
        %v3113 = vrot.slane %v3108, %v3112
        %v3114 = vlaneseq
        %v3115 = vshrl.u32 %v3114, 7
        %v3116 = vsub.s32 1, %v3115
        %v3117 = vrot.slane %v3108, %v3116
        %v3128 = vunpack.c.l.b16 %v3094
        %v3129 = vunpack.c.h.b16 %v3094
        %v3130 = vunpack.c.l.b16 %v3095
        %v3131 = vunpack.c.h.b16 %v3095
        %v3132 = vunpack.c.l.b16 %v3096
        %v3133 = vunpack.c.h.b16 %v3096
        %v3134 = vunpack.c.l.b16 %v3097
        %v3135 = vunpack.c.h.b16 %v3097
        %v3136 = vunpack.c.l.b16 %v3098
        %v3137 = vunpack.c.h.b16 %v3098
        %v3138 = vunpack.c.l.b16 %v3099
        %v3139 = vunpack.c.h.b16 %v3099
        %v3140 = vunpack.c.l.b16 %v3100
        %v3141 = vunpack.c.h.b16 %v3100
        %v3142 = vunpack.c.l.b16 %v3101
        %v3143 = vunpack.c.h.b16 %v3101
        %v3144 = vpack.c.b16 %v3130, %v3128
        %v3145 = vpack.c.b16 %v3131, %v3129
        %v3146 = vpack.c.b16 %v3134, %v3132
        %v3147 = vpack.c.b16 %v3135, %v3133
        %v3148 = vpack.c.b16 %v3138, %v3136
        %v3149 = vpack.c.b16 %v3139, %v3137
        %v3150 = vpack.c.b16 %v3142, %v3140
        %v3151 = vpack.c.b16 %v3143, %v3141
        %v3161 = vsel %vm954, %v3102, 0
        %v3164 = vsel %vm954, %v3103, 0
        %v3167 = vsel %vm954, %v3104, 0
        %v3170 = vsel %vm954, %v3105, 0
        %v3173 = vsel %vm954, %v3106, 0
        %3175 = vmatprep.subr.bf16.mxu0 0
        %3176 = vmatpush1.bf16.msra.mxu0 0
        %3177 = vmatprep.subr.bf16.mxu0 0
        %3178 = vmatpush1.bf16.msra.mxu0 0
        %3179 = vmatprep.subr.bf16.mxu0 0
        %3180 = vmatpush1.bf16.msra.mxu0 0
        %3181 = vmatprep.subr.bf16.mxu0 0
        %3182 = vmatpush1.bf16.msra.mxu0 0
        %3183 = vmatprep.subr.bf16.mxu0 %v3151
        %3184 = vmatpush1.bf16.msra.mxu0 %v3150
        %3185 = vmatprep.subr.bf16.mxu0 %v3149
        %3186 = vmatpush1.bf16.msra.mxu0 %v3148
        %3187 = vmatprep.subr.bf16.mxu0 %v3147
        %3188 = vmatpush1.bf16.msra.mxu0 %v3146
        %3189 = vmatprep.subr.bf16.mxu0 %v3145
        %3190 = vmatpush1.bf16.msra.mxu0 %v3144
        %3191 = vmatprep.subr.bf16.mxu0 0
        %3192 = vmatpush2.bf16.msra.mxu0 0
        %3193 = vmatprep.subr.bf16.mxu0 0
        %3194 = vmatpush2.bf16.msra.mxu0 0
        %3195 = vmatprep.subr.bf16.mxu0 0
        %3196 = vmatpush2.bf16.msra.mxu0 0
        %3197 = vmatprep.subr.bf16.mxu0 0
        %3198 = vmatpush2.bf16.msra.mxu0 0
        %3199 = vmatprep.subr.bf16.mxu0 0
        %3200 = vmatpush2.bf16.msra.mxu0 0
        %3201 = vmatprep.subr.bf16.mxu0 0
        %3202 = vmatpush2.bf16.msra.mxu0 0
        %3203 = vmatprep.subr.bf16.mxu0 0
        %3204 = vmatpush2.bf16.msra.mxu0 0
        %3205 = vmatprep.subr.bf16.mxu0 0
        %3206 = vmatpush2.bf16.msra.mxu0 0
        %3207 = vmatprep.mubr.bf16.mxu0 0
        %3208 = vmatmul.mubr.bf16.gmra.mxu0 %v3161
        %v3209 = vpop.f32.mrf.mxu0
        %v3210 = vadd.f32 %v3113, %v3209
        %v3211 = vpop.f32.mrf.mxu0
        %v3212 = vadd.f32 %v3117, %v3211
        %v3213 = vpop.f32.mrf.mxu0
        %v3214 = vadd.f32 %v3113, %v3213
        %v3215 = vpop.f32.mrf.mxu0
        %v3216 = vadd.f32 %v3117, %v3215
        %3217 = vmatprep.mubr.bf16.mxu0 0
        %3218 = vmatmul.mubr.bf16.gmra.mxu0 %v3164
        %v3219 = vpop.f32.mrf.mxu0
        %v3220 = vadd.f32 %v3113, %v3219
        %v3221 = vpop.f32.mrf.mxu0
        %v3222 = vadd.f32 %v3117, %v3221
        %v3223 = vpop.f32.mrf.mxu0
        %v3224 = vadd.f32 %v3113, %v3223
        %v3225 = vpop.f32.mrf.mxu0
        %v3226 = vadd.f32 %v3117, %v3225
        %3227 = vmatprep.mubr.bf16.mxu0 0
        %3228 = vmatmul.mubr.bf16.gmra.mxu0 %v3167
        %v3229 = vpop.f32.mrf.mxu0
        %v3230 = vadd.f32 %v3113, %v3229
        %v3231 = vpop.f32.mrf.mxu0
        %v3232 = vadd.f32 %v3117, %v3231
        %v3233 = vpop.f32.mrf.mxu0
        %v3234 = vadd.f32 %v3113, %v3233
        %v3235 = vpop.f32.mrf.mxu0
        %v3236 = vadd.f32 %v3117, %v3235
        %3237 = vmatprep.mubr.bf16.mxu0 0
        %3238 = vmatmul.mubr.bf16.gmra.mxu0 %v3170
        %v3239 = vpop.f32.mrf.mxu0
        %v3240 = vadd.f32 %v3113, %v3239
        %v3241 = vpop.f32.mrf.mxu0
        %v3242 = vadd.f32 %v3117, %v3241
        %v3243 = vpop.f32.mrf.mxu0
        %v3244 = vadd.f32 %v3113, %v3243
        %v3245 = vpop.f32.mrf.mxu0
        %v3246 = vadd.f32 %v3117, %v3245
        %3247 = vmatprep.mubr.bf16.mxu0 0
        %3248 = vmatmul.mubr.bf16.gmra.mxu0 %v3173
        %v3249 = vpop.f32.mrf.mxu0
        %v3250 = vadd.f32 %v3113, %v3249
        %v3251 = vpop.f32.mrf.mxu0
        %v3252 = vadd.f32 %v3117, %v3251
        %v3253 = vpop.f32.mrf.mxu0
        %v3254 = vadd.f32 %v3113, %v3253
        %v3255 = vpop.f32.mrf.mxu0
        %v3256 = vadd.f32 %v3117, %v3255
        %3257 = vdwg.mxu0
        %3260 = vrot.lane.b32.xlu0 %v3210, 64
        %v3261 = vpop.permute.xlu0 %3260
        %3262 = vrot.lane.b32.xlu0 %v3214, 64
        %v3263 = vpop.permute.xlu0 %3262
        %v3266 = vmul.f32 %v3210, %v3261
        %v3267 = vmul.f32 %v3214, %v3263
        %v3268 = vpack.c.bf16 %v3267, %v3266
        %v3270 = vunpack.c.l.b16 %v3268
        %v3271 = vunpack.c.h.b16 %v3268
        %v3272 = vpack.c.b16 %v3270, %v3270
        %v3273 = vpack.c.b16 %v3271, %v3271
        %3276 = vst.msk [vmem:[#allocation2] sm:$0xf] %vm1071, %v3272
        %3277 = vst.msk [vmem:[#allocation2 + $0x4] sm:$0xf] %vm1071, %v3273
        %3280 = vrot.lane.b32.xlu0 %v3220, 64
        %v3281 = vpop.permute.xlu0 %3280
        %3282 = vrot.lane.b32.xlu0 %v3224, 64
        %v3283 = vpop.permute.xlu0 %3282
        %v3286 = vmul.f32 %v3210, %v3281
        %v3287 = vmul.f32 %v3214, %v3283
        %v3288 = vpack.c.bf16 %v3287, %v3286
        %v3290 = vunpack.c.l.b16 %v3288
        %v3291 = vunpack.c.h.b16 %v3288
        %v3292 = vpack.c.b16 %v3290, %v3290
        %v3293 = vpack.c.b16 %v3291, %v3291
        %3296 = vst.msk [vmem:[#allocation2 + $0x8] sm:$0xf] %vm1071, %v3292
        %3297 = vst.msk [vmem:[#allocation2 + $0xc] sm:$0xf] %vm1071, %v3293
        %3300 = vrot.lane.b32.xlu0 %v3230, 64
        %v3301 = vpop.permute.xlu0 %3300
        %3302 = vrot.lane.b32.xlu0 %v3234, 64
        %v3303 = vpop.permute.xlu0 %3302
        %v3306 = vmul.f32 %v3210, %v3301
        %v3307 = vmul.f32 %v3214, %v3303
        %v3308 = vpack.c.bf16 %v3307, %v3306
        %v3310 = vunpack.c.l.b16 %v3308
        %v3311 = vunpack.c.h.b16 %v3308
        %v3312 = vpack.c.b16 %v3310, %v3310
        %v3313 = vpack.c.b16 %v3311, %v3311
        %3316 = vst.msk [vmem:[#allocation2 + $0x10] sm:$0xf] %vm1071, %v3312
        %3317 = vst.msk [vmem:[#allocation2 + $0x14] sm:$0xf] %vm1071, %v3313
        %3320 = vrot.lane.b32.xlu0 %v3240, 64
        %v3321 = vpop.permute.xlu0 %3320
        %3322 = vrot.lane.b32.xlu0 %v3244, 64
        %v3323 = vpop.permute.xlu0 %3322
        %v3326 = vmul.f32 %v3210, %v3321
        %v3327 = vmul.f32 %v3214, %v3323
        %v3328 = vpack.c.bf16 %v3327, %v3326
        %v3330 = vunpack.c.l.b16 %v3328
        %v3331 = vunpack.c.h.b16 %v3328
        %v3332 = vpack.c.b16 %v3330, %v3330
        %v3333 = vpack.c.b16 %v3331, %v3331
        %3336 = vst.msk [vmem:[#allocation2 + $0x18] sm:$0xf] %vm1071, %v3332
        %3337 = vst.msk [vmem:[#allocation2 + $0x1c] sm:$0xf] %vm1071, %v3333
        %3340 = vrot.lane.b32.xlu0 %v3250, 64
        %v3341 = vpop.permute.xlu0 %3340
        %3342 = vrot.lane.b32.xlu0 %v3254, 64
        %v3343 = vpop.permute.xlu0 %3342
        %v3346 = vmul.f32 %v3210, %v3341
        %v3347 = vmul.f32 %v3214, %v3343
        %v3348 = vpack.c.bf16 %v3347, %v3346
        %v3350 = vunpack.c.l.b16 %v3348
        %v3351 = vunpack.c.h.b16 %v3348
        %v3352 = vpack.c.b16 %v3350, %v3350
        %v3353 = vpack.c.b16 %v3351, %v3351
        %3356 = vst.msk [vmem:[#allocation2 + $0x20] sm:$0xf] %vm1071, %v3352
        %3357 = vst.msk [vmem:[#allocation2 + $0x24] sm:$0xf] %vm1071, %v3353
        %v3358 = vmul.f32 %v3220, %v3261
        %v3359 = vmul.f32 %v3224, %v3263
        %v3360 = vpack.c.bf16 %v3359, %v3358
        %v3362 = vunpack.c.l.b16 %v3360
        %v3363 = vunpack.c.h.b16 %v3360
        %v3364 = vpack.c.b16 %v3362, %v3362
        %v3365 = vpack.c.b16 %v3363, %v3363
        %3368 = vst.msk [vmem:[#allocation2 + $0x28] sm:$0xf] %vm1071, %v3364
        %3369 = vst.msk [vmem:[#allocation2 + $0x2c] sm:$0xf] %vm1071, %v3365
        %v3370 = vmul.f32 %v3220, %v3281
        %v3371 = vmul.f32 %v3224, %v3283
        %v3372 = vpack.c.bf16 %v3371, %v3370
        %v3374 = vunpack.c.l.b16 %v3372
        %v3375 = vunpack.c.h.b16 %v3372
        %v3376 = vpack.c.b16 %v3374, %v3374
        %v3377 = vpack.c.b16 %v3375, %v3375
        %3380 = vst.msk [vmem:[#allocation2 + $0x30] sm:$0xf] %vm1071, %v3376
        %3381 = vst.msk [vmem:[#allocation2 + $0x34] sm:$0xf] %vm1071, %v3377
        %v3382 = vmul.f32 %v3220, %v3301
        %v3383 = vmul.f32 %v3224, %v3303
        %v3384 = vpack.c.bf16 %v3383, %v3382
        %v3386 = vunpack.c.l.b16 %v3384
        %v3387 = vunpack.c.h.b16 %v3384
        %v3388 = vpack.c.b16 %v3386, %v3386
        %v3389 = vpack.c.b16 %v3387, %v3387
        %3392 = vst.msk [vmem:[#allocation2 + $0x38] sm:$0xf] %vm1071, %v3388
        %3393 = vst.msk [vmem:[#allocation2 + $0x3c] sm:$0xf] %vm1071, %v3389
        %v3394 = vmul.f32 %v3220, %v3321
        %v3395 = vmul.f32 %v3224, %v3323
        %v3396 = vpack.c.bf16 %v3395, %v3394
        %v3398 = vunpack.c.l.b16 %v3396
        %v3399 = vunpack.c.h.b16 %v3396
        %v3400 = vpack.c.b16 %v3398, %v3398
        %v3401 = vpack.c.b16 %v3399, %v3399
        %3404 = vst.msk [vmem:[#allocation2 + $0x40] sm:$0xf] %vm1071, %v3400
        %3405 = vst.msk [vmem:[#allocation2 + $0x44] sm:$0xf] %vm1071, %v3401
        %v3406 = vmul.f32 %v3220, %v3341
        %v3407 = vmul.f32 %v3224, %v3343
        %v3408 = vpack.c.bf16 %v3407, %v3406
        %v3410 = vunpack.c.l.b16 %v3408
        %v3411 = vunpack.c.h.b16 %v3408
        %v3412 = vpack.c.b16 %v3410, %v3410
        %v3413 = vpack.c.b16 %v3411, %v3411
        %3416 = vst.msk [vmem:[#allocation2 + $0x48] sm:$0xf] %vm1071, %v3412
        %3417 = vst.msk [vmem:[#allocation2 + $0x4c] sm:$0xf] %vm1071, %v3413
        %v3418 = vmul.f32 %v3230, %v3261
        %v3419 = vmul.f32 %v3234, %v3263
        %v3420 = vpack.c.bf16 %v3419, %v3418
        %v3422 = vunpack.c.l.b16 %v3420
        %v3423 = vunpack.c.h.b16 %v3420
        %v3424 = vpack.c.b16 %v3422, %v3422
        %v3425 = vpack.c.b16 %v3423, %v3423
        %3428 = vst.msk [vmem:[#allocation2 + $0x50] sm:$0xf] %vm1071, %v3424
        %3429 = vst.msk [vmem:[#allocation2 + $0x54] sm:$0xf] %vm1071, %v3425
        %v3430 = vmul.f32 %v3230, %v3281
        %v3431 = vmul.f32 %v3234, %v3283
        %v3432 = vpack.c.bf16 %v3431, %v3430
        %v3434 = vunpack.c.l.b16 %v3432
        %v3435 = vunpack.c.h.b16 %v3432
        %v3436 = vpack.c.b16 %v3434, %v3434
        %v3437 = vpack.c.b16 %v3435, %v3435
        %3440 = vst.msk [vmem:[#allocation2 + $0x58] sm:$0xf] %vm1071, %v3436
        %3441 = vst.msk [vmem:[#allocation2 + $0x5c] sm:$0xf] %vm1071, %v3437
        %v3442 = vmul.f32 %v3230, %v3301
        %v3443 = vmul.f32 %v3234, %v3303
        %v3444 = vpack.c.bf16 %v3443, %v3442
        %v3446 = vunpack.c.l.b16 %v3444
        %v3447 = vunpack.c.h.b16 %v3444
        %v3448 = vpack.c.b16 %v3446, %v3446
        %v3449 = vpack.c.b16 %v3447, %v3447
        %3452 = vst.msk [vmem:[#allocation2 + $0x60] sm:$0xf] %vm1071, %v3448
        %3453 = vst.msk [vmem:[#allocation2 + $0x64] sm:$0xf] %vm1071, %v3449
        %v3454 = vmul.f32 %v3230, %v3321
        %v3455 = vmul.f32 %v3234, %v3323
        %v3456 = vpack.c.bf16 %v3455, %v3454
        %v3458 = vunpack.c.l.b16 %v3456
        %v3459 = vunpack.c.h.b16 %v3456
        %v3460 = vpack.c.b16 %v3458, %v3458
        %v3461 = vpack.c.b16 %v3459, %v3459
        %3464 = vst.msk [vmem:[#allocation2 + $0x68] sm:$0xf] %vm1071, %v3460
        %3465 = vst.msk [vmem:[#allocation2 + $0x6c] sm:$0xf] %vm1071, %v3461
        %v3466 = vmul.f32 %v3230, %v3341
        %v3467 = vmul.f32 %v3234, %v3343
        %v3468 = vpack.c.bf16 %v3467, %v3466
        %v3470 = vunpack.c.l.b16 %v3468
        %v3471 = vunpack.c.h.b16 %v3468
        %v3472 = vpack.c.b16 %v3470, %v3470
        %v3473 = vpack.c.b16 %v3471, %v3471
        %3476 = vst.msk [vmem:[#allocation2 + $0x70] sm:$0xf] %vm1071, %v3472
        %3477 = vst.msk [vmem:[#allocation2 + $0x74] sm:$0xf] %vm1071, %v3473
        %v3478 = vmul.f32 %v3240, %v3261
        %v3479 = vmul.f32 %v3244, %v3263
        %v3480 = vpack.c.bf16 %v3479, %v3478
        %v3482 = vunpack.c.l.b16 %v3480
        %v3483 = vunpack.c.h.b16 %v3480
        %v3484 = vpack.c.b16 %v3482, %v3482
        %v3485 = vpack.c.b16 %v3483, %v3483
        %3488 = vst.msk [vmem:[#allocation2 + $0x78] sm:$0xf] %vm1071, %v3484
        %3489 = vst.msk [vmem:[#allocation2 + $0x7c] sm:$0xf] %vm1071, %v3485
        %v3490 = vmul.f32 %v3240, %v3281
        %v3491 = vmul.f32 %v3244, %v3283
        %v3492 = vpack.c.bf16 %v3491, %v3490
        %v3494 = vunpack.c.l.b16 %v3492
        %v3495 = vunpack.c.h.b16 %v3492
        %v3496 = vpack.c.b16 %v3494, %v3494
        %v3497 = vpack.c.b16 %v3495, %v3495
        %3500 = vst.msk [vmem:[#allocation2 + $0x80] sm:$0xf] %vm1071, %v3496
        %3501 = vst.msk [vmem:[#allocation2 + $0x84] sm:$0xf] %vm1071, %v3497
        %v3502 = vmul.f32 %v3240, %v3301
        %v3503 = vmul.f32 %v3244, %v3303
        %v3504 = vpack.c.bf16 %v3503, %v3502
        %v3506 = vunpack.c.l.b16 %v3504
        %v3507 = vunpack.c.h.b16 %v3504
        %v3508 = vpack.c.b16 %v3506, %v3506
        %v3509 = vpack.c.b16 %v3507, %v3507
        %3512 = vst.msk [vmem:[#allocation2 + $0x88] sm:$0xf] %vm1071, %v3508
        %3513 = vst.msk [vmem:[#allocation2 + $0x8c] sm:$0xf] %vm1071, %v3509
        %v3514 = vmul.f32 %v3240, %v3321
        %v3515 = vmul.f32 %v3244, %v3323
        %v3516 = vpack.c.bf16 %v3515, %v3514
        %v3518 = vunpack.c.l.b16 %v3516
        %v3519 = vunpack.c.h.b16 %v3516
        %v3520 = vpack.c.b16 %v3518, %v3518
        %v3521 = vpack.c.b16 %v3519, %v3519
        %3524 = vst.msk [vmem:[#allocation2 + $0x90] sm:$0xf] %vm1071, %v3520
        %3525 = vst.msk [vmem:[#allocation2 + $0x94] sm:$0xf] %vm1071, %v3521
        %v3526 = vmul.f32 %v3240, %v3341
        %v3527 = vmul.f32 %v3244, %v3343
        %v3528 = vpack.c.bf16 %v3527, %v3526
        %v3530 = vunpack.c.l.b16 %v3528
        %v3531 = vunpack.c.h.b16 %v3528
        %v3532 = vpack.c.b16 %v3530, %v3530
        %v3533 = vpack.c.b16 %v3531, %v3531
        %3536 = vst.msk [vmem:[#allocation2 + $0x98] sm:$0xf] %vm1071, %v3532
        %3537 = vst.msk [vmem:[#allocation2 + $0x9c] sm:$0xf] %vm1071, %v3533
        %v3538 = vmul.f32 %v3250, %v3261
        %v3539 = vmul.f32 %v3254, %v3263
        %v3540 = vpack.c.bf16 %v3539, %v3538
        %v3542 = vunpack.c.l.b16 %v3540
        %v3543 = vunpack.c.h.b16 %v3540
        %v3544 = vpack.c.b16 %v3542, %v3542
        %v3545 = vpack.c.b16 %v3543, %v3543
        %3548 = vst.msk [vmem:[#allocation2 + $0xa0] sm:$0xf] %vm1071, %v3544
        %3549 = vst.msk [vmem:[#allocation2 + $0xa4] sm:$0xf] %vm1071, %v3545
        %v3550 = vmul.f32 %v3250, %v3281
        %v3551 = vmul.f32 %v3254, %v3283
        %v3552 = vpack.c.bf16 %v3551, %v3550
        %v3554 = vunpack.c.l.b16 %v3552
        %v3555 = vunpack.c.h.b16 %v3552
        %v3556 = vpack.c.b16 %v3554, %v3554
        %v3557 = vpack.c.b16 %v3555, %v3555
        %3560 = vst.msk [vmem:[#allocation2 + $0xa8] sm:$0xf] %vm1071, %v3556
        %3561 = vst.msk [vmem:[#allocation2 + $0xac] sm:$0xf] %vm1071, %v3557
        %v3562 = vmul.f32 %v3250, %v3301
        %v3563 = vmul.f32 %v3254, %v3303
        %v3564 = vpack.c.bf16 %v3563, %v3562
        %v3566 = vunpack.c.l.b16 %v3564
        %v3567 = vunpack.c.h.b16 %v3564
        %v3568 = vpack.c.b16 %v3566, %v3566
        %v3569 = vpack.c.b16 %v3567, %v3567
        %3572 = vst.msk [vmem:[#allocation2 + $0xb0] sm:$0xf] %vm1071, %v3568
        %3573 = vst.msk [vmem:[#allocation2 + $0xb4] sm:$0xf] %vm1071, %v3569
        %v3574 = vmul.f32 %v3250, %v3321
        %v3575 = vmul.f32 %v3254, %v3323
        %v3576 = vpack.c.bf16 %v3575, %v3574
        %v3578 = vunpack.c.l.b16 %v3576
        %v3579 = vunpack.c.h.b16 %v3576
        %v3580 = vpack.c.b16 %v3578, %v3578
        %v3581 = vpack.c.b16 %v3579, %v3579
        %3584 = vst.msk [vmem:[#allocation2 + $0xb8] sm:$0xf] %vm1071, %v3580
        %3585 = vst.msk [vmem:[#allocation2 + $0xbc] sm:$0xf] %vm1071, %v3581
        %v3586 = vmul.f32 %v3250, %v3341
        %v3587 = vmul.f32 %v3254, %v3343
        %v3588 = vpack.c.bf16 %v3587, %v3586
        %v3590 = vunpack.c.l.b16 %v3588
        %v3591 = vunpack.c.h.b16 %v3588
        %v3592 = vpack.c.b16 %v3590, %v3590
        %v3593 = vpack.c.b16 %v3591, %v3591
        %3596 = vst.msk [vmem:[#allocation2 + $0xc0] sm:$0xf] %vm1071, %v3592
        %3597 = vst.msk [vmem:[#allocation2 + $0xc4] sm:$0xf] %vm1071, %v3593
        %v3598 = vld [vmem:[#allocation2] sm:$0xf]
        %v3599 = vld [vmem:[#allocation2 + $0x4] sm:$0xf]
        %v3600 = vld [vmem:[#allocation2 + $0x8] sm:$0xf]
        %v3601 = vld [vmem:[#allocation2 + $0xc] sm:$0xf]
        %v3602 = vld [vmem:[#allocation2 + $0x10] sm:$0xf]
        %v3603 = vld [vmem:[#allocation2 + $0x14] sm:$0xf]
        %v3604 = vld [vmem:[#allocation2 + $0x18] sm:$0xf]
        %v3605 = vld [vmem:[#allocation2 + $0x1c] sm:$0xf]
        %v3606 = vld [vmem:[#allocation2 + $0x20] sm:$0xf]
        %v3607 = vld [vmem:[#allocation2 + $0x24] sm:$0xf]
        %v3608 = vld [vmem:[#allocation2 + $0x28] sm:$0xf]
        %v3609 = vld [vmem:[#allocation2 + $0x2c] sm:$0xf]
        %v3610 = vld [vmem:[#allocation2 + $0x30] sm:$0xf]
        %v3611 = vld [vmem:[#allocation2 + $0x34] sm:$0xf]
        %v3612 = vld [vmem:[#allocation2 + $0x38] sm:$0xf]
        %v3613 = vld [vmem:[#allocation2 + $0x3c] sm:$0xf]
        %v3614 = vld [vmem:[#allocation2 + $0x40] sm:$0xf]
        %v3615 = vld [vmem:[#allocation2 + $0x44] sm:$0xf]
        %v3616 = vld [vmem:[#allocation2 + $0x48] sm:$0xf]
        %v3617 = vld [vmem:[#allocation2 + $0x4c] sm:$0xf]
        %v3618 = vld [vmem:[#allocation2 + $0x50] sm:$0xf]
        %v3619 = vld [vmem:[#allocation2 + $0x54] sm:$0xf]
        %v3620 = vld [vmem:[#allocation2 + $0x58] sm:$0xf]
        %v3621 = vld [vmem:[#allocation2 + $0x5c] sm:$0xf]
        %v3622 = vld [vmem:[#allocation2 + $0x60] sm:$0xf]
        %v3623 = vld [vmem:[#allocation2 + $0x64] sm:$0xf]
        %v3624 = vld [vmem:[#allocation2 + $0x68] sm:$0xf]
        %v3625 = vld [vmem:[#allocation2 + $0x6c] sm:$0xf]
        %v3626 = vld [vmem:[#allocation2 + $0x70] sm:$0xf]
        %v3627 = vld [vmem:[#allocation2 + $0x74] sm:$0xf]
        %v3628 = vld [vmem:[#allocation2 + $0x78] sm:$0xf]
        %v3629 = vld [vmem:[#allocation2 + $0x7c] sm:$0xf]
        %v3630 = vld [vmem:[#allocation2 + $0x80] sm:$0xf]
        %v3631 = vld [vmem:[#allocation2 + $0x84] sm:$0xf]
        %v3632 = vld [vmem:[#allocation2 + $0x88] sm:$0xf]
        %v3633 = vld [vmem:[#allocation2 + $0x8c] sm:$0xf]
        %v3634 = vld [vmem:[#allocation2 + $0x90] sm:$0xf]
        %v3635 = vld [vmem:[#allocation2 + $0x94] sm:$0xf]
        %v3636 = vld [vmem:[#allocation2 + $0x98] sm:$0xf]
        %v3637 = vld [vmem:[#allocation2 + $0x9c] sm:$0xf]
        %v3638 = vld [vmem:[#allocation2 + $0xa0] sm:$0xf]
        %v3639 = vld [vmem:[#allocation2 + $0xa4] sm:$0xf]
        %v3640 = vld [vmem:[#allocation2 + $0xa8] sm:$0xf]
        %v3641 = vld [vmem:[#allocation2 + $0xac] sm:$0xf]
        %v3642 = vld [vmem:[#allocation2 + $0xb0] sm:$0xf]
        %v3643 = vld [vmem:[#allocation2 + $0xb4] sm:$0xf]
        %v3644 = vld [vmem:[#allocation2 + $0xb8] sm:$0xf]
        %v3645 = vld [vmem:[#allocation2 + $0xbc] sm:$0xf]
        %v3646 = vld [vmem:[#allocation2 + $0xc0] sm:$0xf]
        %v3647 = vld [vmem:[#allocation2 + $0xc4] sm:$0xf]
        %v3698 = vunpack.c.l.b16 %v3598
        %v3699 = vunpack.c.l.b16 %v3599
        %v3700 = vunpack.c.l.b16 %v3600
        %v3701 = vunpack.c.l.b16 %v3601
        %v3702 = vunpack.c.l.b16 %v3602
        %v3703 = vunpack.c.l.b16 %v3603
        %v3704 = vunpack.c.l.b16 %v3604
        %v3705 = vunpack.c.l.b16 %v3605
        %v3706 = vunpack.c.l.b16 %v3606
        %v3707 = vunpack.c.l.b16 %v3607
        %v3708 = vunpack.c.l.b16 %v3608
        %v3709 = vunpack.c.l.b16 %v3609
        %v3710 = vunpack.c.l.b16 %v3610
        %v3711 = vunpack.c.l.b16 %v3611
        %v3712 = vunpack.c.l.b16 %v3612
        %v3713 = vunpack.c.l.b16 %v3613
        %v3714 = vunpack.c.l.b16 %v3614
        %v3715 = vunpack.c.l.b16 %v3615
        %v3716 = vunpack.c.l.b16 %v3616
        %v3717 = vunpack.c.l.b16 %v3617
        %v3718 = vunpack.c.l.b16 %v3618
        %v3719 = vunpack.c.l.b16 %v3619
        %v3720 = vunpack.c.l.b16 %v3620
        %v3721 = vunpack.c.l.b16 %v3621
        %v3722 = vunpack.c.l.b16 %v3622
        %v3723 = vunpack.c.l.b16 %v3623
        %v3724 = vunpack.c.l.b16 %v3624
        %v3725 = vunpack.c.l.b16 %v3625
        %v3726 = vunpack.c.l.b16 %v3626
        %v3727 = vunpack.c.l.b16 %v3627
        %v3728 = vunpack.c.l.b16 %v3628
        %v3729 = vunpack.c.l.b16 %v3629
        %v3730 = vunpack.c.l.b16 %v3630
        %v3731 = vunpack.c.l.b16 %v3631
        %v3732 = vunpack.c.l.b16 %v3632
        %v3733 = vunpack.c.l.b16 %v3633
        %v3734 = vunpack.c.l.b16 %v3634
        %v3735 = vunpack.c.l.b16 %v3635
        %v3736 = vunpack.c.l.b16 %v3636
        %v3737 = vunpack.c.l.b16 %v3637
        %v3738 = vunpack.c.l.b16 %v3638
        %v3739 = vunpack.c.l.b16 %v3639
        %v3740 = vunpack.c.l.b16 %v3640
        %v3741 = vunpack.c.l.b16 %v3641
        %v3742 = vunpack.c.l.b16 %v3642
        %v3743 = vunpack.c.l.b16 %v3643
        %v3744 = vunpack.c.l.b16 %v3644
        %v3745 = vunpack.c.l.b16 %v3645
        %v3746 = vunpack.c.l.b16 %v3646
        %v3747 = vunpack.c.l.b16 %v3647
        %v3748 = vpack.c.b16 %v3699, %v3698
        %v3749 = vpack.c.b16 %v3701, %v3700
        %v3750 = vpack.c.b16 %v3703, %v3702
        %v3751 = vpack.c.b16 %v3705, %v3704
        %v3752 = vpack.c.b16 %v3707, %v3706
        %v3753 = vpack.c.b16 %v3709, %v3708
        %v3754 = vpack.c.b16 %v3711, %v3710
        %v3755 = vpack.c.b16 %v3713, %v3712
        %v3756 = vpack.c.b16 %v3715, %v3714
        %v3757 = vpack.c.b16 %v3717, %v3716
        %v3758 = vpack.c.b16 %v3719, %v3718
        %v3759 = vpack.c.b16 %v3721, %v3720
        %v3760 = vpack.c.b16 %v3723, %v3722
        %v3761 = vpack.c.b16 %v3725, %v3724
        %v3762 = vpack.c.b16 %v3727, %v3726
        %v3763 = vpack.c.b16 %v3729, %v3728
        %v3764 = vpack.c.b16 %v3731, %v3730
        %v3765 = vpack.c.b16 %v3733, %v3732
        %v3766 = vpack.c.b16 %v3735, %v3734
        %v3767 = vpack.c.b16 %v3737, %v3736
        %v3768 = vpack.c.b16 %v3739, %v3738
        %v3769 = vpack.c.b16 %v3741, %v3740
        %v3770 = vpack.c.b16 %v3743, %v3742
        %v3771 = vpack.c.b16 %v3745, %v3744
        %v3772 = vpack.c.b16 %v3747, %v3746
        %v3774 = vsel %vm954, %v3748, 0
        %v3777 = vsel %vm954, %v3749, 0
        %v3780 = vsel %vm954, %v3750, 0
        %v3783 = vsel %vm954, %v3751, 0
        %v3786 = vsel %vm954, %v3752, 0
        %v3789 = vsel %vm954, %v3753, 0
        %v3792 = vsel %vm954, %v3754, 0
        %v3795 = vsel %vm954, %v3755, 0
        %v3798 = vsel %vm954, %v3756, 0
        %v3801 = vsel %vm954, %v3757, 0
        %v3804 = vsel %vm954, %v3758, 0
        %v3807 = vsel %vm954, %v3759, 0
        %v3810 = vsel %vm954, %v3760, 0
        %v3813 = vsel %vm954, %v3761, 0
        %v3816 = vsel %vm954, %v3762, 0
        %v3819 = vsel %vm954, %v3763, 0
        %v3822 = vsel %vm954, %v3764, 0
        %v3825 = vsel %vm954, %v3765, 0
        %v3828 = vsel %vm954, %v3766, 0
        %v3831 = vsel %vm954, %v3767, 0
        %v3834 = vsel %vm954, %v3768, 0
        %v3837 = vsel %vm954, %v3769, 0
        %v3840 = vsel %vm954, %v3770, 0
        %v3843 = vsel %vm954, %v3771, 0
        %v3846 = vsel %vm954, %v3772, 0
        %3848 = vmatprep.subr.bf16.mxu0 0
        %3849 = vmatpush1.bf16.msra.mxu0 0
        %3850 = vmatprep.subr.bf16.mxu0 0
        %3851 = vmatpush1.bf16.msra.mxu0 0
        %3852 = vmatprep.subr.bf16.mxu0 0
        %3853 = vmatpush1.bf16.msra.mxu0 0
        %3854 = vmatprep.subr.bf16.mxu0 0
        %3855 = vmatpush1.bf16.msra.mxu0 0
        %3856 = vmatprep.subr.bf16.mxu0 0
        %3857 = vmatpush1.bf16.msra.mxu0 %v1588
        %3858 = vmatprep.subr.bf16.mxu0 0
        %3859 = vmatpush1.bf16.msra.mxu0 %v1587
        %3860 = vmatprep.subr.bf16.mxu0 0
        %3861 = vmatpush1.bf16.msra.mxu0 %v1586
        %3862 = vmatprep.subr.bf16.mxu0 0
        %3863 = vmatpush1.bf16.msra.mxu0 %v1585
        %3864 = vmatprep.subr.bf16.mxu0 0
        %3865 = vmatpush2.bf16.msra.mxu0 0
        %3866 = vmatprep.subr.bf16.mxu0 0
        %3867 = vmatpush2.bf16.msra.mxu0 0
        %3868 = vmatprep.subr.bf16.mxu0 0
        %3869 = vmatpush2.bf16.msra.mxu0 0
        %3870 = vmatprep.subr.bf16.mxu0 0
        %3871 = vmatpush2.bf16.msra.mxu0 0
        %3872 = vmatprep.subr.bf16.mxu0 0
        %3873 = vmatpush2.bf16.msra.mxu0 0
        %3874 = vmatprep.subr.bf16.mxu0 0
        %3875 = vmatpush2.bf16.msra.mxu0 0
        %3876 = vmatprep.subr.bf16.mxu0 0
        %3877 = vmatpush2.bf16.msra.mxu0 0
        %3878 = vmatprep.subr.bf16.mxu0 0
        %3879 = vmatpush2.bf16.msra.mxu0 0
        %3880 = vmatprep.mubr.bf16.mxu0 0
        %3881 = vmatmul.mubr.bf16.gmra.mxu0 %v3774
        %v3882 = vpop.f32.mrf.mxu0
        %v3883 = vadd.f32 0.0, %v3882
        %v3884 = vpop.f32.mrf.mxu0
        %v3885 = vpop.f32.mrf.mxu0
        %v3886 = vadd.f32 0.0, %v3885
        %v3887 = vpop.f32.mrf.mxu0
        %3888 = vmatprep.mubr.bf16.mxu0 0
        %3889 = vmatmul.mubr.bf16.gmra.mxu0 %v3777
        %v3890 = vpop.f32.mrf.mxu0
        %v3891 = vadd.f32 0.0, %v3890
        %v3892 = vpop.f32.mrf.mxu0
        %v3893 = vpop.f32.mrf.mxu0
        %v3894 = vadd.f32 0.0, %v3893
        %v3895 = vpop.f32.mrf.mxu0
        %3896 = vmatprep.mubr.bf16.mxu0 0
        %3897 = vmatmul.mubr.bf16.gmra.mxu0 %v3780
        %v3898 = vpop.f32.mrf.mxu0
        %v3899 = vadd.f32 0.0, %v3898
        %v3900 = vpop.f32.mrf.mxu0
        %v3901 = vpop.f32.mrf.mxu0
        %v3902 = vadd.f32 0.0, %v3901
        %v3903 = vpop.f32.mrf.mxu0
        %3904 = vmatprep.mubr.bf16.mxu0 0
        %3905 = vmatmul.mubr.bf16.gmra.mxu0 %v3783
        %v3906 = vpop.f32.mrf.mxu0
        %v3907 = vadd.f32 0.0, %v3906
        %v3908 = vpop.f32.mrf.mxu0
        %v3909 = vpop.f32.mrf.mxu0
        %v3910 = vadd.f32 0.0, %v3909
        %v3911 = vpop.f32.mrf.mxu0
        %3912 = vmatprep.mubr.bf16.mxu0 0
        %3913 = vmatmul.mubr.bf16.gmra.mxu0 %v3786
        %v3914 = vpop.f32.mrf.mxu0
        %v3915 = vadd.f32 0.0, %v3914
        %v3916 = vpop.f32.mrf.mxu0
        %v3917 = vpop.f32.mrf.mxu0
        %v3918 = vadd.f32 0.0, %v3917
        %v3919 = vpop.f32.mrf.mxu0
        %3920 = vmatprep.mubr.bf16.mxu0 0
        %3921 = vmatmul.mubr.bf16.gmra.mxu0 %v3789
        %v3922 = vpop.f32.mrf.mxu0
        %v3923 = vadd.f32 0.0, %v3922
        %v3924 = vpop.f32.mrf.mxu0
        %v3925 = vpop.f32.mrf.mxu0
        %v3926 = vadd.f32 0.0, %v3925
        %v3927 = vpop.f32.mrf.mxu0
        %3928 = vmatprep.mubr.bf16.mxu0 0
        %3929 = vmatmul.mubr.bf16.gmra.mxu0 %v3792
        %v3930 = vpop.f32.mrf.mxu0
        %v3931 = vadd.f32 0.0, %v3930
        %v3932 = vpop.f32.mrf.mxu0
        %v3933 = vpop.f32.mrf.mxu0
        %v3934 = vadd.f32 0.0, %v3933
        %v3935 = vpop.f32.mrf.mxu0
        %3936 = vmatprep.mubr.bf16.mxu0 0
        %3937 = vmatmul.mubr.bf16.gmra.mxu0 %v3795
        %v3938 = vpop.f32.mrf.mxu0
        %v3939 = vadd.f32 0.0, %v3938
        %v3940 = vpop.f32.mrf.mxu0
        %v3941 = vpop.f32.mrf.mxu0
        %v3942 = vadd.f32 0.0, %v3941
        %v3943 = vpop.f32.mrf.mxu0
        %3944 = vmatprep.mubr.bf16.mxu0 0
        %3945 = vmatmul.mubr.bf16.gmra.mxu0 %v3798
        %v3946 = vpop.f32.mrf.mxu0
        %v3947 = vadd.f32 0.0, %v3946
        %v3948 = vpop.f32.mrf.mxu0
        %v3949 = vpop.f32.mrf.mxu0
        %v3950 = vadd.f32 0.0, %v3949
        %v3951 = vpop.f32.mrf.mxu0
        %3952 = vmatprep.mubr.bf16.mxu0 0
        %3953 = vmatmul.mubr.bf16.gmra.mxu0 %v3801
        %v3954 = vpop.f32.mrf.mxu0
        %v3955 = vadd.f32 0.0, %v3954
        %v3956 = vpop.f32.mrf.mxu0
        %v3957 = vpop.f32.mrf.mxu0
        %v3958 = vadd.f32 0.0, %v3957
        %v3959 = vpop.f32.mrf.mxu0
        %3960 = vmatprep.mubr.bf16.mxu0 0
        %3961 = vmatmul.mubr.bf16.gmra.mxu0 %v3804
        %v3962 = vpop.f32.mrf.mxu0
        %v3963 = vadd.f32 0.0, %v3962
        %v3964 = vpop.f32.mrf.mxu0
        %v3965 = vpop.f32.mrf.mxu0
        %v3966 = vadd.f32 0.0, %v3965
        %v3967 = vpop.f32.mrf.mxu0
        %3968 = vmatprep.mubr.bf16.mxu0 0
        %3969 = vmatmul.mubr.bf16.gmra.mxu0 %v3807
        %v3970 = vpop.f32.mrf.mxu0
        %v3971 = vadd.f32 0.0, %v3970
        %v3972 = vpop.f32.mrf.mxu0
        %v3973 = vpop.f32.mrf.mxu0
        %v3974 = vadd.f32 0.0, %v3973
        %v3975 = vpop.f32.mrf.mxu0
        %3976 = vmatprep.mubr.bf16.mxu0 0
        %3977 = vmatmul.mubr.bf16.gmra.mxu0 %v3810
        %v3978 = vpop.f32.mrf.mxu0
        %v3979 = vadd.f32 0.0, %v3978
        %v3980 = vpop.f32.mrf.mxu0
        %v3981 = vpop.f32.mrf.mxu0
        %v3982 = vadd.f32 0.0, %v3981
        %v3983 = vpop.f32.mrf.mxu0
        %3984 = vmatprep.mubr.bf16.mxu0 0
        %3985 = vmatmul.mubr.bf16.gmra.mxu0 %v3813
        %v3986 = vpop.f32.mrf.mxu0
        %v3987 = vadd.f32 0.0, %v3986
        %v3988 = vpop.f32.mrf.mxu0
        %v3989 = vpop.f32.mrf.mxu0
        %v3990 = vadd.f32 0.0, %v3989
        %v3991 = vpop.f32.mrf.mxu0
        %3992 = vmatprep.mubr.bf16.mxu0 0
        %3993 = vmatmul.mubr.bf16.gmra.mxu0 %v3816
        %v3994 = vpop.f32.mrf.mxu0
        %v3995 = vadd.f32 0.0, %v3994
        %v3996 = vpop.f32.mrf.mxu0
        %v3997 = vpop.f32.mrf.mxu0
        %v3998 = vadd.f32 0.0, %v3997
        %v3999 = vpop.f32.mrf.mxu0
        %4000 = vmatprep.mubr.bf16.mxu0 0
        %4001 = vmatmul.mubr.bf16.gmra.mxu0 %v3819
        %v4002 = vpop.f32.mrf.mxu0
        %v4003 = vadd.f32 0.0, %v4002
        %v4004 = vpop.f32.mrf.mxu0
        %v4005 = vpop.f32.mrf.mxu0
        %v4006 = vadd.f32 0.0, %v4005
        %v4007 = vpop.f32.mrf.mxu0
        %4008 = vmatprep.mubr.bf16.mxu0 0
        %4009 = vmatmul.mubr.bf16.gmra.mxu0 %v3822
        %v4010 = vpop.f32.mrf.mxu0
        %v4011 = vadd.f32 0.0, %v4010
        %v4012 = vpop.f32.mrf.mxu0
        %v4013 = vpop.f32.mrf.mxu0
        %v4014 = vadd.f32 0.0, %v4013
        %v4015 = vpop.f32.mrf.mxu0
        %4016 = vmatprep.mubr.bf16.mxu0 0
        %4017 = vmatmul.mubr.bf16.gmra.mxu0 %v3825
        %v4018 = vpop.f32.mrf.mxu0
        %v4019 = vadd.f32 0.0, %v4018
        %v4020 = vpop.f32.mrf.mxu0
        %v4021 = vpop.f32.mrf.mxu0
        %v4022 = vadd.f32 0.0, %v4021
        %v4023 = vpop.f32.mrf.mxu0
        %4024 = vmatprep.mubr.bf16.mxu0 0
        %4025 = vmatmul.mubr.bf16.gmra.mxu0 %v3828
        %v4026 = vpop.f32.mrf.mxu0
        %v4027 = vadd.f32 0.0, %v4026
        %v4028 = vpop.f32.mrf.mxu0
        %v4029 = vpop.f32.mrf.mxu0
        %v4030 = vadd.f32 0.0, %v4029
        %v4031 = vpop.f32.mrf.mxu0
        %4032 = vmatprep.mubr.bf16.mxu0 0
        %4033 = vmatmul.mubr.bf16.gmra.mxu0 %v3831
        %v4034 = vpop.f32.mrf.mxu0
        %v4035 = vadd.f32 0.0, %v4034
        %v4036 = vpop.f32.mrf.mxu0
        %v4037 = vpop.f32.mrf.mxu0
        %v4038 = vadd.f32 0.0, %v4037
        %v4039 = vpop.f32.mrf.mxu0
        %4040 = vmatprep.mubr.bf16.mxu0 0
        %4041 = vmatmul.mubr.bf16.gmra.mxu0 %v3834
        %v4042 = vpop.f32.mrf.mxu0
        %v4043 = vadd.f32 0.0, %v4042
        %v4044 = vpop.f32.mrf.mxu0
        %v4045 = vpop.f32.mrf.mxu0
        %v4046 = vadd.f32 0.0, %v4045
        %v4047 = vpop.f32.mrf.mxu0
        %4048 = vmatprep.mubr.bf16.mxu0 0
        %4049 = vmatmul.mubr.bf16.gmra.mxu0 %v3837
        %v4050 = vpop.f32.mrf.mxu0
        %v4051 = vadd.f32 0.0, %v4050
        %v4052 = vpop.f32.mrf.mxu0
        %v4053 = vpop.f32.mrf.mxu0
        %v4054 = vadd.f32 0.0, %v4053
        %v4055 = vpop.f32.mrf.mxu0
        %4056 = vmatprep.mubr.bf16.mxu0 0
        %4057 = vmatmul.mubr.bf16.gmra.mxu0 %v3840
        %v4058 = vpop.f32.mrf.mxu0
        %v4059 = vadd.f32 0.0, %v4058
        %v4060 = vpop.f32.mrf.mxu0
        %v4061 = vpop.f32.mrf.mxu0
        %v4062 = vadd.f32 0.0, %v4061
        %v4063 = vpop.f32.mrf.mxu0
        %4064 = vmatprep.mubr.bf16.mxu0 0
        %4065 = vmatmul.mubr.bf16.gmra.mxu0 %v3843
        %v4066 = vpop.f32.mrf.mxu0
        %v4067 = vadd.f32 0.0, %v4066
        %v4068 = vpop.f32.mrf.mxu0
        %v4069 = vpop.f32.mrf.mxu0
        %v4070 = vadd.f32 0.0, %v4069
        %v4071 = vpop.f32.mrf.mxu0
        %4072 = vmatprep.mubr.bf16.mxu0 0
        %4073 = vmatmul.mubr.bf16.gmra.mxu0 %v3846
        %v4074 = vpop.f32.mrf.mxu0
        %v4075 = vadd.f32 0.0, %v4074
        %v4076 = vpop.f32.mrf.mxu0
        %v4077 = vpop.f32.mrf.mxu0
        %v4078 = vadd.f32 0.0, %v4077
        %v4079 = vpop.f32.mrf.mxu0
        %4080 = vdwg.mxu0
        %v4081 = vmax.f32 %v3883, %v3891
        %v4082 = vmax.f32 %v3886, %v3894
        %v4083 = vmax.f32 %v4081, %v3899
        %v4084 = vmax.f32 %v4082, %v3902
        %v4085 = vmax.f32 %v4083, %v3907
        %v4086 = vmax.f32 %v4084, %v3910
        %v4087 = vmax.f32 %v4085, %v3915
        %v4088 = vmax.f32 %v4086, %v3918
        %v4089 = vsub.f32 %v3883, %v4087
        %v4090 = vsub.f32 %v3886, %v4088
        %v4091 = vmul.f32 %v4089, 1.442695
        %v4092 = vpow.pop %v4091
        %v4093 = vmul.f32 %v4090, 1.442695
        %v4094 = vpow.pop %v4093
        %v4095 = vsub.f32 %v3891, %v4087
        %v4096 = vsub.f32 %v3894, %v4088
        %v4097 = vmul.f32 %v4095, 1.442695
        %v4098 = vpow.pop %v4097
        %v4099 = vmul.f32 %v4096, 1.442695
        %v4100 = vpow.pop %v4099
        %v4101 = vsub.f32 %v3899, %v4087
        %v4102 = vsub.f32 %v3902, %v4088
        %v4103 = vmul.f32 %v4101, 1.442695
        %v4104 = vpow.pop %v4103
        %v4105 = vmul.f32 %v4102, 1.442695
        %v4106 = vpow.pop %v4105
        %v4107 = vsub.f32 %v3907, %v4087
        %v4108 = vsub.f32 %v3910, %v4088
        %v4109 = vmul.f32 %v4107, 1.442695
        %v4110 = vpow.pop %v4109
        %v4111 = vmul.f32 %v4108, 1.442695
        %v4112 = vpow.pop %v4111
        %v4113 = vsub.f32 %v3915, %v4087
        %v4114 = vsub.f32 %v3918, %v4088
        %v4115 = vmul.f32 %v4113, 1.442695
        %v4116 = vpow.pop %v4115
        %v4117 = vmul.f32 %v4114, 1.442695
        %v4118 = vpow.pop %v4117
        %v4119 = vadd.f32 %v4092, %v4098
        %v4120 = vadd.f32 %v4094, %v4100
        %v4121 = vadd.f32 %v4119, %v4104
        %v4122 = vadd.f32 %v4120, %v4106
        %v4123 = vadd.f32 %v4121, %v4110
        %v4124 = vadd.f32 %v4122, %v4112
        %v4125 = vadd.f32 %v4123, %v4116
        %v4126 = vadd.f32 %v4124, %v4118
        %v4127 = vrcp.pop %v4125
        %v4128 = vrcp.pop %v4126
        %v4129 = vmul.f32 %v4092, %v3212
        %v4130 = vmul.f32 %v4094, %v3216
        %v4131 = vmul.f32 %v4098, %v3222
        %v4132 = vmul.f32 %v4100, %v3226
        %v4133 = vadd.f32 %v4129, %v4131
        %v4134 = vadd.f32 %v4130, %v4132
        %v4135 = vmul.f32 %v4104, %v3232
        %v4136 = vmul.f32 %v4106, %v3236
        %v4137 = vadd.f32 %v4133, %v4135
        %v4138 = vadd.f32 %v4134, %v4136
        %v4139 = vmul.f32 %v4110, %v3242
        %v4140 = vmul.f32 %v4112, %v3246
        %v4141 = vadd.f32 %v4137, %v4139
        %v4142 = vadd.f32 %v4138, %v4140
        %v4143 = vmul.f32 %v4116, %v3252
        %v4144 = vmul.f32 %v4118, %v3256
        %v4145 = vadd.f32 %v4141, %v4143
        %v4146 = vadd.f32 %v4142, %v4144
        %v4147 = vmul.f32 %v4145, %v4127
        %v4148 = vmul.f32 %v4146, %v4128
        %v4149 = vpack.c.bf16 %v4148, %v4147
        %v4151 = vunpack.c.l.b16 %v4149
        %v4152 = vunpack.c.h.b16 %v4149
        %v4153 = vpack.c.b16 %v4151, %v4151
        %v4154 = vpack.c.b16 %v4152, %v4152
        %4157 = vst.msk [vmem:[#allocation3] sm:$0xf] %vm1071, %v4153
        %4158 = vst.msk [vmem:[#allocation3 + $0x4] sm:$0xf] %vm1071, %v4154
        %v4159 = vmax.f32 %v3923, %v3931
        %v4160 = vmax.f32 %v3926, %v3934
        %v4161 = vmax.f32 %v4159, %v3939
        %v4162 = vmax.f32 %v4160, %v3942
        %v4163 = vmax.f32 %v4161, %v3947
        %v4164 = vmax.f32 %v4162, %v3950
        %v4165 = vmax.f32 %v4163, %v3955
        %v4166 = vmax.f32 %v4164, %v3958
        %v4167 = vsub.f32 %v3923, %v4165
        %v4168 = vsub.f32 %v3926, %v4166
        %v4169 = vmul.f32 %v4167, 1.442695
        %v4170 = vpow.pop %v4169
        %v4171 = vmul.f32 %v4168, 1.442695
        %v4172 = vpow.pop %v4171
        %v4173 = vsub.f32 %v3931, %v4165
        %v4174 = vsub.f32 %v3934, %v4166
        %v4175 = vmul.f32 %v4173, 1.442695
        %v4176 = vpow.pop %v4175
        %v4177 = vmul.f32 %v4174, 1.442695
        %v4178 = vpow.pop %v4177
        %v4179 = vsub.f32 %v3939, %v4165
        %v4180 = vsub.f32 %v3942, %v4166
        %v4181 = vmul.f32 %v4179, 1.442695
        %v4182 = vpow.pop %v4181
        %v4183 = vmul.f32 %v4180, 1.442695
        %v4184 = vpow.pop %v4183
        %v4185 = vsub.f32 %v3947, %v4165
        %v4186 = vsub.f32 %v3950, %v4166
        %v4187 = vmul.f32 %v4185, 1.442695
        %v4188 = vpow.pop %v4187
        %v4189 = vmul.f32 %v4186, 1.442695
        %v4190 = vpow.pop %v4189
        %v4191 = vsub.f32 %v3955, %v4165
        %v4192 = vsub.f32 %v3958, %v4166
        %v4193 = vmul.f32 %v4191, 1.442695
        %v4194 = vpow.pop %v4193
        %v4195 = vmul.f32 %v4192, 1.442695
        %v4196 = vpow.pop %v4195
        %v4197 = vadd.f32 %v4170, %v4176
        %v4198 = vadd.f32 %v4172, %v4178
        %v4199 = vadd.f32 %v4197, %v4182
        %v4200 = vadd.f32 %v4198, %v4184
        %v4201 = vadd.f32 %v4199, %v4188
        %v4202 = vadd.f32 %v4200, %v4190
        %v4203 = vadd.f32 %v4201, %v4194
        %v4204 = vadd.f32 %v4202, %v4196
        %v4205 = vrcp.pop %v4203
        %v4206 = vrcp.pop %v4204
        %v4207 = vmul.f32 %v4170, %v3212
        %v4208 = vmul.f32 %v4172, %v3216
        %v4209 = vmul.f32 %v4176, %v3222
        %v4210 = vmul.f32 %v4178, %v3226
        %v4211 = vadd.f32 %v4207, %v4209
        %v4212 = vadd.f32 %v4208, %v4210
        %v4213 = vmul.f32 %v4182, %v3232
        %v4214 = vmul.f32 %v4184, %v3236
        %v4215 = vadd.f32 %v4211, %v4213
        %v4216 = vadd.f32 %v4212, %v4214
        %v4217 = vmul.f32 %v4188, %v3242
        %v4218 = vmul.f32 %v4190, %v3246
        %v4219 = vadd.f32 %v4215, %v4217
        %v4220 = vadd.f32 %v4216, %v4218
        %v4221 = vmul.f32 %v4194, %v3252
        %v4222 = vmul.f32 %v4196, %v3256
        %v4223 = vadd.f32 %v4219, %v4221
        %v4224 = vadd.f32 %v4220, %v4222
        %v4225 = vmul.f32 %v4223, %v4205
        %v4226 = vmul.f32 %v4224, %v4206
        %v4227 = vpack.c.bf16 %v4226, %v4225
        %v4229 = vunpack.c.l.b16 %v4227
        %v4230 = vunpack.c.h.b16 %v4227
        %v4231 = vpack.c.b16 %v4229, %v4229
        %v4232 = vpack.c.b16 %v4230, %v4230
        %4235 = vst.msk [vmem:[#allocation3 + $0x8] sm:$0xf] %vm1071, %v4231
        %4236 = vst.msk [vmem:[#allocation3 + $0xc] sm:$0xf] %vm1071, %v4232
        %v4237 = vmax.f32 %v3963, %v3971
        %v4238 = vmax.f32 %v3966, %v3974
        %v4239 = vmax.f32 %v4237, %v3979
        %v4240 = vmax.f32 %v4238, %v3982
        %v4241 = vmax.f32 %v4239, %v3987
        %v4242 = vmax.f32 %v4240, %v3990
        %v4243 = vmax.f32 %v4241, %v3995
        %v4244 = vmax.f32 %v4242, %v3998
        %v4245 = vsub.f32 %v3963, %v4243
        %v4246 = vsub.f32 %v3966, %v4244
        %v4247 = vmul.f32 %v4245, 1.442695
        %v4248 = vpow.pop %v4247
        %v4249 = vmul.f32 %v4246, 1.442695
        %v4250 = vpow.pop %v4249
        %v4251 = vsub.f32 %v3971, %v4243
        %v4252 = vsub.f32 %v3974, %v4244
        %v4253 = vmul.f32 %v4251, 1.442695
        %v4254 = vpow.pop %v4253
        %v4255 = vmul.f32 %v4252, 1.442695
        %v4256 = vpow.pop %v4255
        %v4257 = vsub.f32 %v3979, %v4243
        %v4258 = vsub.f32 %v3982, %v4244
        %v4259 = vmul.f32 %v4257, 1.442695
        %v4260 = vpow.pop %v4259
        %v4261 = vmul.f32 %v4258, 1.442695
        %v4262 = vpow.pop %v4261
        %v4263 = vsub.f32 %v3987, %v4243
        %v4264 = vsub.f32 %v3990, %v4244
        %v4265 = vmul.f32 %v4263, 1.442695
        %v4266 = vpow.pop %v4265
        %v4267 = vmul.f32 %v4264, 1.442695
        %v4268 = vpow.pop %v4267
        %v4269 = vsub.f32 %v3995, %v4243
        %v4270 = vsub.f32 %v3998, %v4244
        %v4271 = vmul.f32 %v4269, 1.442695
        %v4272 = vpow.pop %v4271
        %v4273 = vmul.f32 %v4270, 1.442695
        %v4274 = vpow.pop %v4273
        %v4275 = vadd.f32 %v4248, %v4254
        %v4276 = vadd.f32 %v4250, %v4256
        %v4277 = vadd.f32 %v4275, %v4260
        %v4278 = vadd.f32 %v4276, %v4262
        %v4279 = vadd.f32 %v4277, %v4266
        %v4280 = vadd.f32 %v4278, %v4268
        %v4281 = vadd.f32 %v4279, %v4272
        %v4282 = vadd.f32 %v4280, %v4274
        %v4283 = vrcp.pop %v4281
        %v4284 = vrcp.pop %v4282
        %v4285 = vmul.f32 %v4248, %v3212
        %v4286 = vmul.f32 %v4250, %v3216
        %v4287 = vmul.f32 %v4254, %v3222
        %v4288 = vmul.f32 %v4256, %v3226
        %v4289 = vadd.f32 %v4285, %v4287
        %v4290 = vadd.f32 %v4286, %v4288
        %v4291 = vmul.f32 %v4260, %v3232
        %v4292 = vmul.f32 %v4262, %v3236
        %v4293 = vadd.f32 %v4289, %v4291
        %v4294 = vadd.f32 %v4290, %v4292
        %v4295 = vmul.f32 %v4266, %v3242
        %v4296 = vmul.f32 %v4268, %v3246
        %v4297 = vadd.f32 %v4293, %v4295
        %v4298 = vadd.f32 %v4294, %v4296
        %v4299 = vmul.f32 %v4272, %v3252
        %v4300 = vmul.f32 %v4274, %v3256
        %v4301 = vadd.f32 %v4297, %v4299
        %v4302 = vadd.f32 %v4298, %v4300
        %v4303 = vmul.f32 %v4301, %v4283
        %v4304 = vmul.f32 %v4302, %v4284
        %v4305 = vpack.c.bf16 %v4304, %v4303
        %v4307 = vunpack.c.l.b16 %v4305
        %v4308 = vunpack.c.h.b16 %v4305
        %v4309 = vpack.c.b16 %v4307, %v4307
        %v4310 = vpack.c.b16 %v4308, %v4308
        %4313 = vst.msk [vmem:[#allocation3 + $0x10] sm:$0xf] %vm1071, %v4309
        %4314 = vst.msk [vmem:[#allocation3 + $0x14] sm:$0xf] %vm1071, %v4310
        %v4315 = vmax.f32 %v4003, %v4011
        %v4316 = vmax.f32 %v4006, %v4014
        %v4317 = vmax.f32 %v4315, %v4019
        %v4318 = vmax.f32 %v4316, %v4022
        %v4319 = vmax.f32 %v4317, %v4027
        %v4320 = vmax.f32 %v4318, %v4030
        %v4321 = vmax.f32 %v4319, %v4035
        %v4322 = vmax.f32 %v4320, %v4038
        %v4323 = vsub.f32 %v4003, %v4321
        %v4324 = vsub.f32 %v4006, %v4322
        %v4325 = vmul.f32 %v4323, 1.442695
        %v4326 = vpow.pop %v4325
        %v4327 = vmul.f32 %v4324, 1.442695
        %v4328 = vpow.pop %v4327
        %v4329 = vsub.f32 %v4011, %v4321
        %v4330 = vsub.f32 %v4014, %v4322
        %v4331 = vmul.f32 %v4329, 1.442695
        %v4332 = vpow.pop %v4331
        %v4333 = vmul.f32 %v4330, 1.442695
        %v4334 = vpow.pop %v4333
        %v4335 = vsub.f32 %v4019, %v4321
        %v4336 = vsub.f32 %v4022, %v4322
        %v4337 = vmul.f32 %v4335, 1.442695
        %v4338 = vpow.pop %v4337
        %v4339 = vmul.f32 %v4336, 1.442695
        %v4340 = vpow.pop %v4339
        %v4341 = vsub.f32 %v4027, %v4321
        %v4342 = vsub.f32 %v4030, %v4322
        %v4343 = vmul.f32 %v4341, 1.442695
        %v4344 = vpow.pop %v4343
        %v4345 = vmul.f32 %v4342, 1.442695
        %v4346 = vpow.pop %v4345
        %v4347 = vsub.f32 %v4035, %v4321
        %v4348 = vsub.f32 %v4038, %v4322
        %v4349 = vmul.f32 %v4347, 1.442695
        %v4350 = vpow.pop %v4349
        %v4351 = vmul.f32 %v4348, 1.442695
        %v4352 = vpow.pop %v4351
        %v4353 = vadd.f32 %v4326, %v4332
        %v4354 = vadd.f32 %v4328, %v4334
        %v4355 = vadd.f32 %v4353, %v4338
        %v4356 = vadd.f32 %v4354, %v4340
        %v4357 = vadd.f32 %v4355, %v4344
        %v4358 = vadd.f32 %v4356, %v4346
        %v4359 = vadd.f32 %v4357, %v4350
        %v4360 = vadd.f32 %v4358, %v4352
        %v4361 = vrcp.pop %v4359
        %v4362 = vrcp.pop %v4360
        %v4363 = vmul.f32 %v4326, %v3212
        %v4364 = vmul.f32 %v4328, %v3216
        %v4365 = vmul.f32 %v4332, %v3222
        %v4366 = vmul.f32 %v4334, %v3226
        %v4367 = vadd.f32 %v4363, %v4365
        %v4368 = vadd.f32 %v4364, %v4366
        %v4369 = vmul.f32 %v4338, %v3232
        %v4370 = vmul.f32 %v4340, %v3236
        %v4371 = vadd.f32 %v4367, %v4369
        %v4372 = vadd.f32 %v4368, %v4370
        %v4373 = vmul.f32 %v4344, %v3242
        %v4374 = vmul.f32 %v4346, %v3246
        %v4375 = vadd.f32 %v4371, %v4373
        %v4376 = vadd.f32 %v4372, %v4374
        %v4377 = vmul.f32 %v4350, %v3252
        %v4378 = vmul.f32 %v4352, %v3256
        %v4379 = vadd.f32 %v4375, %v4377
        %v4380 = vadd.f32 %v4376, %v4378
        %v4381 = vmul.f32 %v4379, %v4361
        %v4382 = vmul.f32 %v4380, %v4362
        %v4383 = vpack.c.bf16 %v4382, %v4381
        %v4385 = vunpack.c.l.b16 %v4383
        %v4386 = vunpack.c.h.b16 %v4383
        %v4387 = vpack.c.b16 %v4385, %v4385
        %v4388 = vpack.c.b16 %v4386, %v4386
        %4391 = vst.msk [vmem:[#allocation3 + $0x18] sm:$0xf] %vm1071, %v4387
        %4392 = vst.msk [vmem:[#allocation3 + $0x1c] sm:$0xf] %vm1071, %v4388
        %v4393 = vmax.f32 %v4043, %v4051
        %v4394 = vmax.f32 %v4046, %v4054
        %v4395 = vmax.f32 %v4393, %v4059
        %v4396 = vmax.f32 %v4394, %v4062
        %v4397 = vmax.f32 %v4395, %v4067
        %v4398 = vmax.f32 %v4396, %v4070
        %v4399 = vmax.f32 %v4397, %v4075
        %v4400 = vmax.f32 %v4398, %v4078
        %v4401 = vsub.f32 %v4043, %v4399
        %v4402 = vsub.f32 %v4046, %v4400
        %v4403 = vmul.f32 %v4401, 1.442695
        %v4404 = vpow.pop %v4403
        %v4405 = vmul.f32 %v4402, 1.442695
        %v4406 = vpow.pop %v4405
        %v4407 = vsub.f32 %v4051, %v4399
        %v4408 = vsub.f32 %v4054, %v4400
        %v4409 = vmul.f32 %v4407, 1.442695
        %v4410 = vpow.pop %v4409
        %v4411 = vmul.f32 %v4408, 1.442695
        %v4412 = vpow.pop %v4411
        %v4413 = vsub.f32 %v4059, %v4399
        %v4414 = vsub.f32 %v4062, %v4400
        %v4415 = vmul.f32 %v4413, 1.442695
        %v4416 = vpow.pop %v4415
        %v4417 = vmul.f32 %v4414, 1.442695
        %v4418 = vpow.pop %v4417
        %v4419 = vsub.f32 %v4067, %v4399
        %v4420 = vsub.f32 %v4070, %v4400
        %v4421 = vmul.f32 %v4419, 1.442695
        %v4422 = vpow.pop %v4421
        %v4423 = vmul.f32 %v4420, 1.442695
        %v4424 = vpow.pop %v4423
        %v4425 = vsub.f32 %v4075, %v4399
        %v4426 = vsub.f32 %v4078, %v4400
        %v4427 = vmul.f32 %v4425, 1.442695
        %v4428 = vpow.pop %v4427
        %v4429 = vmul.f32 %v4426, 1.442695
        %v4430 = vpow.pop %v4429
        %v4431 = vadd.f32 %v4404, %v4410
        %v4432 = vadd.f32 %v4406, %v4412
        %v4433 = vadd.f32 %v4431, %v4416
        %v4434 = vadd.f32 %v4432, %v4418
        %v4435 = vadd.f32 %v4433, %v4422
        %v4436 = vadd.f32 %v4434, %v4424
        %v4437 = vadd.f32 %v4435, %v4428
        %v4438 = vadd.f32 %v4436, %v4430
        %v4439 = vrcp.pop %v4437
        %v4440 = vrcp.pop %v4438
        %v4441 = vmul.f32 %v4404, %v3212
        %v4442 = vmul.f32 %v4406, %v3216
        %v4443 = vmul.f32 %v4410, %v3222
        %v4444 = vmul.f32 %v4412, %v3226
        %v4445 = vadd.f32 %v4441, %v4443
        %v4446 = vadd.f32 %v4442, %v4444
        %v4447 = vmul.f32 %v4416, %v3232
        %v4448 = vmul.f32 %v4418, %v3236
        %v4449 = vadd.f32 %v4445, %v4447
        %v4450 = vadd.f32 %v4446, %v4448
        %v4451 = vmul.f32 %v4422, %v3242
        %v4452 = vmul.f32 %v4424, %v3246
        %v4453 = vadd.f32 %v4449, %v4451
        %v4454 = vadd.f32 %v4450, %v4452
        %v4455 = vmul.f32 %v4428, %v3252
        %v4456 = vmul.f32 %v4430, %v3256
        %v4457 = vadd.f32 %v4453, %v4455
        %v4458 = vadd.f32 %v4454, %v4456
        %v4459 = vmul.f32 %v4457, %v4439
        %v4460 = vmul.f32 %v4458, %v4440
        %v4461 = vpack.c.bf16 %v4460, %v4459
        %v4463 = vunpack.c.l.b16 %v4461
        %v4464 = vunpack.c.h.b16 %v4461
        %v4465 = vpack.c.b16 %v4463, %v4463
        %v4466 = vpack.c.b16 %v4464, %v4464
        %4469 = vst.msk [vmem:[#allocation3 + $0x20] sm:$0xf] %vm1071, %v4465
        %4470 = vst.msk [vmem:[#allocation3 + $0x24] sm:$0xf] %vm1071, %v4466
        %v4471 = vld [vmem:[#allocation3] sm:$0xf]
        %v4472 = vld [vmem:[#allocation3 + $0x4] sm:$0xf]
        %v4473 = vld [vmem:[#allocation3 + $0x8] sm:$0xf]
        %v4474 = vld [vmem:[#allocation3 + $0xc] sm:$0xf]
        %v4475 = vld [vmem:[#allocation3 + $0x10] sm:$0xf]
        %v4476 = vld [vmem:[#allocation3 + $0x14] sm:$0xf]
        %v4477 = vld [vmem:[#allocation3 + $0x18] sm:$0xf]
        %v4478 = vld [vmem:[#allocation3 + $0x1c] sm:$0xf]
        %v4479 = vld [vmem:[#allocation3 + $0x20] sm:$0xf]
        %v4480 = vld [vmem:[#allocation3 + $0x24] sm:$0xf]
        %s4481 = scalar_lea.vmem %s5, 32
        %v4482 = vld [vmem:[%s4481] sm:$0xf]
        %v4483 = vld [vmem:[%s4481 + $0x4] sm:$0xf]
        %v4484 = vld [vmem:[%s4481 + $0x8] sm:$0xf]
        %v4485 = vld [vmem:[%s4481 + $0xc] sm:$0xf]
        %v4486 = vld [vmem:[%s4481 + $0x10] sm:$0xf]
        %v4487 = vld [vmem:[%s4481 + $0x14] sm:$0xf]
        %v4488 = vld [vmem:[%s4481 + $0x18] sm:$0xf]
        %v4489 = vld [vmem:[%s4481 + $0x1c] sm:$0xf]
        %s4490 = scalar_lea.vmem [#allocation9], 1
        %v4491 = vld [vmem:[%s4490] sm:$0x1]
        %v4493 = vlaneseq
        %v4494 = vshrl.u32 %v4493, 7
        %v4495 = vsub.s32 0, %v4494
        %v4496 = vrot.slane %v4491, %v4495
        %v4508 = vunpack.c.l.b16 %v4471
        %v4509 = vunpack.c.l.b16 %v4472
        %v4510 = vunpack.c.l.b16 %v4473
        %v4511 = vunpack.c.l.b16 %v4474
        %v4512 = vunpack.c.l.b16 %v4475
        %v4513 = vunpack.c.l.b16 %v4476
        %v4514 = vunpack.c.l.b16 %v4477
        %v4515 = vunpack.c.l.b16 %v4478
        %v4516 = vunpack.c.l.b16 %v4479
        %v4517 = vunpack.c.l.b16 %v4480
        %v4518 = vpack.c.b16 %v4509, %v4508
        %v4519 = vpack.c.b16 %v4511, %v4510
        %v4520 = vpack.c.b16 %v4513, %v4512
        %v4521 = vpack.c.b16 %v4515, %v4514
        %v4522 = vpack.c.b16 %v4517, %v4516
        %v4531 = vunpack.c.l.b16 %v4482
        %v4532 = vunpack.c.l.b16 %v4483
        %v4533 = vunpack.c.l.b16 %v4484
        %v4534 = vunpack.c.l.b16 %v4485
        %v4535 = vunpack.c.l.b16 %v4486
        %v4536 = vunpack.c.l.b16 %v4487
        %v4537 = vunpack.c.l.b16 %v4488
        %v4538 = vunpack.c.l.b16 %v4489
        %v4539 = vpack.c.b16 %v4532, %v4531
        %v4540 = vpack.c.b16 %v4534, %v4533
        %v4541 = vpack.c.b16 %v4536, %v4535
        %v4542 = vpack.c.b16 %v4538, %v4537
        %v4548 = vsel %vm954, %v4518, 0
        %v4551 = vsel %vm954, %v4519, 0
        %v4554 = vsel %vm954, %v4520, 0
        %v4557 = vsel %vm954, %v4521, 0
        %v4560 = vsel %vm954, %v4522, 0
        %4562 = vmatprep.subr.bf16.mxu0 0
        %4563 = vmatpush1.bf16.msra.mxu0 0
        %4564 = vmatprep.subr.bf16.mxu0 0
        %4565 = vmatpush1.bf16.msra.mxu0 0
        %4566 = vmatprep.subr.bf16.mxu0 0
        %4567 = vmatpush1.bf16.msra.mxu0 0
        %4568 = vmatprep.subr.bf16.mxu0 0
        %4569 = vmatpush1.bf16.msra.mxu0 0
        %4570 = vmatprep.subr.bf16.mxu0 0
        %4571 = vmatpush1.bf16.msra.mxu0 %v4542
        %4572 = vmatprep.subr.bf16.mxu0 0
        %4573 = vmatpush1.bf16.msra.mxu0 %v4541
        %4574 = vmatprep.subr.bf16.mxu0 0
        %4575 = vmatpush1.bf16.msra.mxu0 %v4540
        %4576 = vmatprep.subr.bf16.mxu0 0
        %4577 = vmatpush1.bf16.msra.mxu0 %v4539
        %4578 = vmatprep.subr.bf16.mxu0 0
        %4579 = vmatpush2.bf16.msra.mxu0 0
        %4580 = vmatprep.subr.bf16.mxu0 0
        %4581 = vmatpush2.bf16.msra.mxu0 0
        %4582 = vmatprep.subr.bf16.mxu0 0
        %4583 = vmatpush2.bf16.msra.mxu0 0
        %4584 = vmatprep.subr.bf16.mxu0 0
        %4585 = vmatpush2.bf16.msra.mxu0 0
        %4586 = vmatprep.subr.bf16.mxu0 0
        %4587 = vmatpush2.bf16.msra.mxu0 0
        %4588 = vmatprep.subr.bf16.mxu0 0
        %4589 = vmatpush2.bf16.msra.mxu0 0
        %4590 = vmatprep.subr.bf16.mxu0 0
        %4591 = vmatpush2.bf16.msra.mxu0 0
        %4592 = vmatprep.subr.bf16.mxu0 0
        %4593 = vmatpush2.bf16.msra.mxu0 0
        %4594 = vmatprep.mubr.bf16.mxu0 0
        %4595 = vmatmul.mubr.bf16.gmra.mxu0 %v4548
        %v4596 = vpop.f32.mrf.mxu0
        %v4597 = vadd.f32 %v4496, %v4596
        %v4598 = vpop.f32.mrf.mxu0
        %v4599 = vpop.f32.mrf.mxu0
        %v4600 = vadd.f32 %v4496, %v4599
        %v4601 = vpop.f32.mrf.mxu0
        %4602 = vmatprep.mubr.bf16.mxu0 0
        %4603 = vmatmul.mubr.bf16.gmra.mxu0 %v4551
        %v4604 = vpop.f32.mrf.mxu0
        %v4605 = vadd.f32 %v4496, %v4604
        %v4606 = vpop.f32.mrf.mxu0
        %v4607 = vpop.f32.mrf.mxu0
        %v4608 = vadd.f32 %v4496, %v4607
        %v4609 = vpop.f32.mrf.mxu0
        %4610 = vmatprep.mubr.bf16.mxu0 0
        %4611 = vmatmul.mubr.bf16.gmra.mxu0 %v4554
        %v4612 = vpop.f32.mrf.mxu0
        %v4613 = vadd.f32 %v4496, %v4612
        %v4614 = vpop.f32.mrf.mxu0
        %v4615 = vpop.f32.mrf.mxu0
        %v4616 = vadd.f32 %v4496, %v4615
        %v4617 = vpop.f32.mrf.mxu0
        %4618 = vmatprep.mubr.bf16.mxu0 0
        %4619 = vmatmul.mubr.bf16.gmra.mxu0 %v4557
        %v4620 = vpop.f32.mrf.mxu0
        %v4621 = vadd.f32 %v4496, %v4620
        %v4622 = vpop.f32.mrf.mxu0
        %v4623 = vpop.f32.mrf.mxu0
        %v4624 = vadd.f32 %v4496, %v4623
        %v4625 = vpop.f32.mrf.mxu0
        %4626 = vmatprep.mubr.bf16.mxu0 0
        %4627 = vmatmul.mubr.bf16.gmra.mxu0 %v4560
        %v4628 = vpop.f32.mrf.mxu0
        %v4629 = vadd.f32 %v4496, %v4628
        %v4630 = vpop.f32.mrf.mxu0
        %v4631 = vpop.f32.mrf.mxu0
        %v4632 = vadd.f32 %v4496, %v4631
        %v4633 = vpop.f32.mrf.mxu0
        %4634 = vdwg.mxu0
        %v4635 = vadd.f32 %v3083, %v4597
        %v4636 = vadd.f32 %v3084, %v4600
        %v4637 = vadd.f32 %v3085, %v4605
        %v4638 = vadd.f32 %v3086, %v4608
        %v4639 = vadd.f32 %v3087, %v4613
        %v4640 = vadd.f32 %v3088, %v4616
        %v4641 = vadd.f32 %v3089, %v4621
        %v4642 = vadd.f32 %v3090, %v4624
        %v4643 = vadd.f32 %v3091, %v4629
        %v4644 = vadd.f32 %v3092, %v4632
        %s4645 = scalar_lea.vmem [#allocation10], 1
        %v4646 = vld [vmem:[%s4645] sm:$0x1]
        %s4647 = scalar_lea.vmem [#allocation12], 1
        %v4648 = vld [vmem:[%s4647] sm:$0x1]
        %v4649 = vsel %vm954, %v4635, 0.0
        %4650 = vadd.xlane.f32.xlu0 %v4649
        %v4651 = vpop.xlane.xlu0 %4650
        %v4652 = vsel %vm954, %v4636, 0.0
        %4653 = vadd.xlane.f32.xlu0 %v4652
        %v4654 = vpop.xlane.xlu0 %4653
        %v4655 = vsel %vm954, %v4637, 0.0
        %4656 = vadd.xlane.f32.xlu0 %v4655
        %v4657 = vpop.xlane.xlu0 %4656
        %v4658 = vsel %vm954, %v4638, 0.0
        %4659 = vadd.xlane.f32.xlu0 %v4658
        %v4660 = vpop.xlane.xlu0 %4659
        %v4661 = vsel %vm954, %v4639, 0.0
        %4662 = vadd.xlane.f32.xlu0 %v4661
        %v4663 = vpop.xlane.xlu0 %4662
        %v4664 = vsel %vm954, %v4640, 0.0
        %4665 = vadd.xlane.f32.xlu0 %v4664
        %v4666 = vpop.xlane.xlu0 %4665
        %v4667 = vsel %vm954, %v4641, 0.0
        %4668 = vadd.xlane.f32.xlu0 %v4667
        %v4669 = vpop.xlane.xlu0 %4668
        %v4670 = vsel %vm954, %v4642, 0.0
        %4671 = vadd.xlane.f32.xlu0 %v4670
        %v4672 = vpop.xlane.xlu0 %4671
        %v4673 = vsel %vm954, %v4643, 0.0
        %4674 = vadd.xlane.f32.xlu0 %v4673
        %v4675 = vpop.xlane.xlu0 %4674
        %v4676 = vsel %vm954, %v4644, 0.0
        %4677 = vadd.xlane.f32.xlu0 %v4676
        %v4678 = vpop.xlane.xlu0 %4677
        %v4679 = vmul.f32 %v4651, %v2495
        %v4680 = vmul.f32 %v4654, %v2495
        %v4681 = vmul.f32 %v4657, %v2495
        %v4682 = vmul.f32 %v4660, %v2495
        %v4683 = vmul.f32 %v4663, %v2495
        %v4684 = vmul.f32 %v4666, %v2495
        %v4685 = vmul.f32 %v4669, %v2495
        %v4686 = vmul.f32 %v4672, %v2495
        %v4687 = vmul.f32 %v4675, %v2495
        %v4688 = vmul.f32 %v4678, %v2495
        %v4689 = vsub.f32 %v4635, %v4679
        %v4690 = vsub.f32 %v4636, %v4680
        %v4691 = vsub.f32 %v4637, %v4681
        %v4692 = vsub.f32 %v4638, %v4682
        %v4693 = vsub.f32 %v4639, %v4683
        %v4694 = vsub.f32 %v4640, %v4684
        %v4695 = vsub.f32 %v4641, %v4685
        %v4696 = vsub.f32 %v4642, %v4686
        %v4697 = vsub.f32 %v4643, %v4687
        %v4698 = vsub.f32 %v4644, %v4688
        %v4699 = vmul.f32 %v4689, %v4689
        %v4700 = vmul.f32 %v4690, %v4690
        %v4701 = vmul.f32 %v4691, %v4691
        %v4702 = vmul.f32 %v4692, %v4692
        %v4703 = vmul.f32 %v4693, %v4693
        %v4704 = vmul.f32 %v4694, %v4694
        %v4705 = vmul.f32 %v4695, %v4695
        %v4706 = vmul.f32 %v4696, %v4696
        %v4707 = vmul.f32 %v4697, %v4697
        %v4708 = vmul.f32 %v4698, %v4698
        %v4709 = vsel %vm954, %v4699, 0.0
        %4710 = vadd.xlane.f32.xlu0 %v4709
        %v4711 = vpop.xlane.xlu0 %4710
        %v4712 = vsel %vm954, %v4700, 0.0
        %4713 = vadd.xlane.f32.xlu0 %v4712
        %v4714 = vpop.xlane.xlu0 %4713
        %v4715 = vsel %vm954, %v4701, 0.0
        %4716 = vadd.xlane.f32.xlu0 %v4715
        %v4717 = vpop.xlane.xlu0 %4716
        %v4718 = vsel %vm954, %v4702, 0.0
        %4719 = vadd.xlane.f32.xlu0 %v4718
        %v4720 = vpop.xlane.xlu0 %4719
        %v4721 = vsel %vm954, %v4703, 0.0
        %4722 = vadd.xlane.f32.xlu0 %v4721
        %v4723 = vpop.xlane.xlu0 %4722
        %v4724 = vsel %vm954, %v4704, 0.0
        %4725 = vadd.xlane.f32.xlu0 %v4724
        %v4726 = vpop.xlane.xlu0 %4725
        %v4727 = vsel %vm954, %v4705, 0.0
        %4728 = vadd.xlane.f32.xlu0 %v4727
        %v4729 = vpop.xlane.xlu0 %4728
        %v4730 = vsel %vm954, %v4706, 0.0
        %4731 = vadd.xlane.f32.xlu0 %v4730
        %v4732 = vpop.xlane.xlu0 %4731
        %v4733 = vsel %vm954, %v4707, 0.0
        %4734 = vadd.xlane.f32.xlu0 %v4733
        %v4735 = vpop.xlane.xlu0 %4734
        %v4736 = vsel %vm954, %v4708, 0.0
        %4737 = vadd.xlane.f32.xlu0 %v4736
        %v4738 = vpop.xlane.xlu0 %4737
        %v4739 = vmul.f32 %v4711, %v2495
        %v4740 = vmul.f32 %v4714, %v2495
        %v4741 = vmul.f32 %v4717, %v2495
        %v4742 = vmul.f32 %v4720, %v2495
        %v4743 = vmul.f32 %v4723, %v2495
        %v4744 = vmul.f32 %v4726, %v2495
        %v4745 = vmul.f32 %v4729, %v2495
        %v4746 = vmul.f32 %v4732, %v2495
        %v4747 = vmul.f32 %v4735, %v2495
        %v4748 = vmul.f32 %v4738, %v2495
        %v4749 = vadd.f32 %v4739, 1e-05
        %v4750 = vadd.f32 %v4740, 1e-05
        %v4751 = vadd.f32 %v4741, 1e-05
        %v4752 = vadd.f32 %v4742, 1e-05
        %v4753 = vadd.f32 %v4743, 1e-05
        %v4754 = vadd.f32 %v4744, 1e-05
        %v4755 = vadd.f32 %v4745, 1e-05
        %v4756 = vadd.f32 %v4746, 1e-05
        %v4757 = vadd.f32 %v4747, 1e-05
        %v4758 = vadd.f32 %v4748, 1e-05
        %v4759 = vrsqrt.pop %v4749
        %v4760 = vrsqrt.pop %v4750
        %v4761 = vrsqrt.pop %v4751
        %v4762 = vrsqrt.pop %v4752
        %v4763 = vrsqrt.pop %v4753
        %v4764 = vrsqrt.pop %v4754
        %v4765 = vrsqrt.pop %v4755
        %v4766 = vrsqrt.pop %v4756
        %v4767 = vrsqrt.pop %v4757
        %v4768 = vrsqrt.pop %v4758
        %v4769 = vmul.f32 %v4689, %v4759
        %v4770 = vmul.f32 %v4690, %v4760
        %v4771 = vmul.f32 %v4691, %v4761
        %v4772 = vmul.f32 %v4692, %v4762
        %v4773 = vmul.f32 %v4693, %v4763
        %v4774 = vmul.f32 %v4694, %v4764
        %v4775 = vmul.f32 %v4695, %v4765
        %v4776 = vmul.f32 %v4696, %v4766
        %v4777 = vmul.f32 %v4697, %v4767
        %v4778 = vmul.f32 %v4698, %v4768
        %v4780 = vlaneseq
        %v4781 = vshrl.u32 %v4780, 7
        %v4782 = vsub.s32 0, %v4781
        %v4783 = vrot.slane %v4646, %v4782
        %v4785 = vmul.f32 %v4769, %v4783
        %v4786 = vmul.f32 %v4770, %v4783
        %v4787 = vmul.f32 %v4771, %v4783
        %v4788 = vmul.f32 %v4772, %v4783
        %v4789 = vmul.f32 %v4773, %v4783
        %v4790 = vmul.f32 %v4774, %v4783
        %v4791 = vmul.f32 %v4775, %v4783
        %v4792 = vmul.f32 %v4776, %v4783
        %v4793 = vmul.f32 %v4777, %v4783
        %v4794 = vmul.f32 %v4778, %v4783
        %v4796 = vlaneseq
        %v4797 = vshrl.u32 %v4796, 7
        %v4798 = vsub.s32 0, %v4797
        %v4799 = vrot.slane %v4648, %v4798
        %v4801 = vadd.f32 %v4785, %v4799
        %v4802 = vadd.f32 %v4786, %v4799
        %v4803 = vadd.f32 %v4787, %v4799
        %v4804 = vadd.f32 %v4788, %v4799
        %v4805 = vadd.f32 %v4789, %v4799
        %v4806 = vadd.f32 %v4790, %v4799
        %v4807 = vadd.f32 %v4791, %v4799
        %v4808 = vadd.f32 %v4792, %v4799
        %v4809 = vadd.f32 %v4793, %v4799
        %v4810 = vadd.f32 %v4794, %v4799
        %s4811 = scalar_lea.vmem [#allocation16], 32
        %v4812 = vld [vmem:[%s4811] sm:$0xf]
        %v4813 = vld [vmem:[%s4811 + $0x4] sm:$0xf]
        %v4814 = vld [vmem:[%s4811 + $0x8] sm:$0xf]
        %v4815 = vld [vmem:[%s4811 + $0xc] sm:$0xf]
        %v4816 = vld [vmem:[%s4811 + $0x10] sm:$0xf]
        %v4817 = vld [vmem:[%s4811 + $0x14] sm:$0xf]
        %v4818 = vld [vmem:[%s4811 + $0x18] sm:$0xf]
        %v4819 = vld [vmem:[%s4811 + $0x1c] sm:$0xf]
        %v4820 = vpack.c.bf16 %v4802, %v4801
        %v4821 = vpack.c.bf16 %v4804, %v4803
        %v4822 = vpack.c.bf16 %v4806, %v4805
        %v4823 = vpack.c.bf16 %v4808, %v4807
        %v4824 = vpack.c.bf16 %v4810, %v4809
        %s4825 = scalar_lea.vmem [#allocation18], 1
        %v4826 = vld [vmem:[%s4825] sm:$0x1]
        %v4828 = vlaneseq
        %v4829 = vshrl.u32 %v4828, 7
        %v4830 = vsub.s32 0, %v4829
        %v4831 = vrot.slane %v4826, %v4830
        %v4841 = vunpack.c.l.b16 %v4812
        %v4842 = vunpack.c.l.b16 %v4813
        %v4843 = vunpack.c.l.b16 %v4814
        %v4844 = vunpack.c.l.b16 %v4815
        %v4845 = vunpack.c.l.b16 %v4816
        %v4846 = vunpack.c.l.b16 %v4817
        %v4847 = vunpack.c.l.b16 %v4818
        %v4848 = vunpack.c.l.b16 %v4819
        %v4849 = vpack.c.b16 %v4842, %v4841
        %v4850 = vpack.c.b16 %v4844, %v4843
        %v4851 = vpack.c.b16 %v4846, %v4845
        %v4852 = vpack.c.b16 %v4848, %v4847
        %v4858 = vsel %vm954, %v4820, 0
        %v4861 = vsel %vm954, %v4821, 0
        %v4864 = vsel %vm954, %v4822, 0
        %v4867 = vsel %vm954, %v4823, 0
        %v4870 = vsel %vm954, %v4824, 0
        %4872 = vmatprep.subr.bf16.mxu0 0
        %4873 = vmatpush1.bf16.msra.mxu0 0
        %4874 = vmatprep.subr.bf16.mxu0 0
        %4875 = vmatpush1.bf16.msra.mxu0 0
        %4876 = vmatprep.subr.bf16.mxu0 0
        %4877 = vmatpush1.bf16.msra.mxu0 0
        %4878 = vmatprep.subr.bf16.mxu0 0
        %4879 = vmatpush1.bf16.msra.mxu0 0
        %4880 = vmatprep.subr.bf16.mxu0 0
        %4881 = vmatpush1.bf16.msra.mxu0 %v4852
        %4882 = vmatprep.subr.bf16.mxu0 0
        %4883 = vmatpush1.bf16.msra.mxu0 %v4851
        %4884 = vmatprep.subr.bf16.mxu0 0
        %4885 = vmatpush1.bf16.msra.mxu0 %v4850
        %4886 = vmatprep.subr.bf16.mxu0 0
        %4887 = vmatpush1.bf16.msra.mxu0 %v4849
        %4888 = vmatprep.subr.bf16.mxu0 0
        %4889 = vmatpush2.bf16.msra.mxu0 0
        %4890 = vmatprep.subr.bf16.mxu0 0
        %4891 = vmatpush2.bf16.msra.mxu0 0
        %4892 = vmatprep.subr.bf16.mxu0 0
        %4893 = vmatpush2.bf16.msra.mxu0 0
        %4894 = vmatprep.subr.bf16.mxu0 0
        %4895 = vmatpush2.bf16.msra.mxu0 0
        %4896 = vmatprep.subr.bf16.mxu0 0
        %4897 = vmatpush2.bf16.msra.mxu0 0
        %4898 = vmatprep.subr.bf16.mxu0 0
        %4899 = vmatpush2.bf16.msra.mxu0 0
        %4900 = vmatprep.subr.bf16.mxu0 0
        %4901 = vmatpush2.bf16.msra.mxu0 0
        %4902 = vmatprep.subr.bf16.mxu0 0
        %4903 = vmatpush2.bf16.msra.mxu0 0
        %4904 = vmatprep.mubr.bf16.mxu0 0
        %4905 = vmatmul.mubr.bf16.gmra.mxu0 %v4858
        %v4906 = vpop.f32.mrf.mxu0
        %v4907 = vadd.f32 %v4831, %v4906
        %v4908 = vpop.f32.mrf.mxu0
        %v4909 = vpop.f32.mrf.mxu0
        %v4910 = vadd.f32 %v4831, %v4909
        %v4911 = vpop.f32.mrf.mxu0
        %4912 = vmatprep.mubr.bf16.mxu0 0
        %4913 = vmatmul.mubr.bf16.gmra.mxu0 %v4861
        %v4914 = vpop.f32.mrf.mxu0
        %v4915 = vadd.f32 %v4831, %v4914
        %v4916 = vpop.f32.mrf.mxu0
        %v4917 = vpop.f32.mrf.mxu0
        %v4918 = vadd.f32 %v4831, %v4917
        %v4919 = vpop.f32.mrf.mxu0
        %4920 = vmatprep.mubr.bf16.mxu0 0
        %4921 = vmatmul.mubr.bf16.gmra.mxu0 %v4864
        %v4922 = vpop.f32.mrf.mxu0
        %v4923 = vadd.f32 %v4831, %v4922
        %v4924 = vpop.f32.mrf.mxu0
        %v4925 = vpop.f32.mrf.mxu0
        %v4926 = vadd.f32 %v4831, %v4925
        %v4927 = vpop.f32.mrf.mxu0
        %4928 = vmatprep.mubr.bf16.mxu0 0
        %4929 = vmatmul.mubr.bf16.gmra.mxu0 %v4867
        %v4930 = vpop.f32.mrf.mxu0
        %v4931 = vadd.f32 %v4831, %v4930
        %v4932 = vpop.f32.mrf.mxu0
        %v4933 = vpop.f32.mrf.mxu0
        %v4934 = vadd.f32 %v4831, %v4933
        %v4935 = vpop.f32.mrf.mxu0
        %4936 = vmatprep.mubr.bf16.mxu0 0
        %4937 = vmatmul.mubr.bf16.gmra.mxu0 %v4870
        %v4938 = vpop.f32.mrf.mxu0
        %v4939 = vadd.f32 %v4831, %v4938
        %v4940 = vpop.f32.mrf.mxu0
        %v4941 = vpop.f32.mrf.mxu0
        %v4942 = vadd.f32 %v4831, %v4941
        %v4943 = vpop.f32.mrf.mxu0
        %4944 = vdwg.mxu0
        %v4945 = vmax.f32 %v4907, 0.0
        %v4946 = vmax.f32 %v4910, 0.0
        %v4947 = vmax.f32 %v4915, 0.0
        %v4948 = vmax.f32 %v4918, 0.0
        %v4949 = vmax.f32 %v4923, 0.0
        %v4950 = vmax.f32 %v4926, 0.0
        %v4951 = vmax.f32 %v4931, 0.0
        %v4952 = vmax.f32 %v4934, 0.0
        %v4953 = vmax.f32 %v4939, 0.0
        %v4954 = vmax.f32 %v4942, 0.0
        %s4955 = scalar_lea.vmem %s13, 64
        %v4956 = vld [vmem:[%s4955] sm:$0xf]
        %v4957 = vld [vmem:[%s4955 + $0x4] sm:$0xf]
        %v4958 = vld [vmem:[%s4955 + $0x8] sm:$0xf]
        %v4959 = vld [vmem:[%s4955 + $0xc] sm:$0xf]
        %v4960 = vld [vmem:[%s4955 + $0x10] sm:$0xf]
        %v4961 = vld [vmem:[%s4955 + $0x14] sm:$0xf]
        %v4962 = vld [vmem:[%s4955 + $0x18] sm:$0xf]
        %v4963 = vld [vmem:[%s4955 + $0x1c] sm:$0xf]
        %v4964 = vld [vmem:[%s4955 + $0x20] sm:$0xf]
        %v4965 = vld [vmem:[%s4955 + $0x24] sm:$0xf]
        %v4966 = vld [vmem:[%s4955 + $0x28] sm:$0xf]
        %v4967 = vld [vmem:[%s4955 + $0x2c] sm:$0xf]
        %v4968 = vld [vmem:[%s4955 + $0x30] sm:$0xf]
        %v4969 = vld [vmem:[%s4955 + $0x34] sm:$0xf]
        %v4970 = vld [vmem:[%s4955 + $0x38] sm:$0xf]
        %v4971 = vld [vmem:[%s4955 + $0x3c] sm:$0xf]
        %v4972 = vpack.c.bf16 %v4946, %v4945
        %v4973 = vpack.c.bf16 %v4948, %v4947
        %v4974 = vpack.c.bf16 %v4950, %v4949
        %v4975 = vpack.c.bf16 %v4952, %v4951
        %v4976 = vpack.c.bf16 %v4954, %v4953
        %s4977 = scalar_lea.vmem [#allocation19], 1
        %v4978 = vld [vmem:[%s4977] sm:$0x1]
        %v4980 = vlaneseq
        %v4981 = vshrl.u32 %v4980, 7
        %v4982 = vsub.s32 0, %v4981
        %v4983 = vrot.slane %v4978, %v4982
        %v5001 = vunpack.c.l.b16 %v4956
        %v5002 = vunpack.c.l.b16 %v4957
        %v5003 = vunpack.c.l.b16 %v4958
        %v5004 = vunpack.c.l.b16 %v4959
        %v5005 = vunpack.c.l.b16 %v4960
        %v5006 = vunpack.c.l.b16 %v4961
        %v5007 = vunpack.c.l.b16 %v4962
        %v5008 = vunpack.c.l.b16 %v4963
        %v5009 = vunpack.c.l.b16 %v4964
        %v5010 = vunpack.c.l.b16 %v4965
        %v5011 = vunpack.c.l.b16 %v4966
        %v5012 = vunpack.c.l.b16 %v4967
        %v5013 = vunpack.c.l.b16 %v4968
        %v5014 = vunpack.c.l.b16 %v4969
        %v5015 = vunpack.c.l.b16 %v4970
        %v5016 = vunpack.c.l.b16 %v4971
        %v5017 = vpack.c.b16 %v5002, %v5001
        %v5018 = vpack.c.b16 %v5004, %v5003
        %v5019 = vpack.c.b16 %v5006, %v5005
        %v5020 = vpack.c.b16 %v5008, %v5007
        %v5021 = vpack.c.b16 %v5010, %v5009
        %v5022 = vpack.c.b16 %v5012, %v5011
        %v5023 = vpack.c.b16 %v5014, %v5013
        %v5024 = vpack.c.b16 %v5016, %v5015
        %5033 = vmatprep.subr.bf16.mxu0 0
        %5034 = vmatpush1.bf16.msra.mxu0 %v5024
        %5035 = vmatprep.subr.bf16.mxu0 0
        %5036 = vmatpush1.bf16.msra.mxu0 %v5023
        %5037 = vmatprep.subr.bf16.mxu0 0
        %5038 = vmatpush1.bf16.msra.mxu0 %v5022
        %5039 = vmatprep.subr.bf16.mxu0 0
        %5040 = vmatpush1.bf16.msra.mxu0 %v5021
        %5041 = vmatprep.subr.bf16.mxu0 0
        %5042 = vmatpush1.bf16.msra.mxu0 %v5020
        %5043 = vmatprep.subr.bf16.mxu0 0
        %5044 = vmatpush1.bf16.msra.mxu0 %v5019
        %5045 = vmatprep.subr.bf16.mxu0 0
        %5046 = vmatpush1.bf16.msra.mxu0 %v5018
        %5047 = vmatprep.subr.bf16.mxu0 0
        %5048 = vmatpush1.bf16.msra.mxu0 %v5017
        %5049 = vmatprep.subr.bf16.mxu0 0
        %5050 = vmatpush2.bf16.msra.mxu0 0
        %5051 = vmatprep.subr.bf16.mxu0 0
        %5052 = vmatpush2.bf16.msra.mxu0 0
        %5053 = vmatprep.subr.bf16.mxu0 0
        %5054 = vmatpush2.bf16.msra.mxu0 0
        %5055 = vmatprep.subr.bf16.mxu0 0
        %5056 = vmatpush2.bf16.msra.mxu0 0
        %5057 = vmatprep.subr.bf16.mxu0 0
        %5058 = vmatpush2.bf16.msra.mxu0 0
        %5059 = vmatprep.subr.bf16.mxu0 0
        %5060 = vmatpush2.bf16.msra.mxu0 0
        %5061 = vmatprep.subr.bf16.mxu0 0
        %5062 = vmatpush2.bf16.msra.mxu0 0
        %5063 = vmatprep.subr.bf16.mxu0 0
        %5064 = vmatpush2.bf16.msra.mxu0 0
        %5065 = vmatprep.mubr.bf16.mxu0 0
        %5066 = vmatmul.mubr.bf16.gmra.mxu0 %v4972
        %v5067 = vpop.f32.mrf.mxu0
        %v5068 = vadd.f32 %v4983, %v5067
        %v5069 = vpop.f32.mrf.mxu0
        %v5070 = vpop.f32.mrf.mxu0
        %v5071 = vadd.f32 %v4983, %v5070
        %v5072 = vpop.f32.mrf.mxu0
        %5073 = vmatprep.mubr.bf16.mxu0 0
        %5074 = vmatmul.mubr.bf16.gmra.mxu0 %v4973
        %v5075 = vpop.f32.mrf.mxu0
        %v5076 = vadd.f32 %v4983, %v5075
        %v5077 = vpop.f32.mrf.mxu0
        %v5078 = vpop.f32.mrf.mxu0
        %v5079 = vadd.f32 %v4983, %v5078
        %v5080 = vpop.f32.mrf.mxu0
        %5081 = vmatprep.mubr.bf16.mxu0 0
        %5082 = vmatmul.mubr.bf16.gmra.mxu0 %v4974
        %v5083 = vpop.f32.mrf.mxu0
        %v5084 = vadd.f32 %v4983, %v5083
        %v5085 = vpop.f32.mrf.mxu0
        %v5086 = vpop.f32.mrf.mxu0
        %v5087 = vadd.f32 %v4983, %v5086
        %v5088 = vpop.f32.mrf.mxu0
        %5089 = vmatprep.mubr.bf16.mxu0 0
        %5090 = vmatmul.mubr.bf16.gmra.mxu0 %v4975
        %v5091 = vpop.f32.mrf.mxu0
        %v5092 = vadd.f32 %v4983, %v5091
        %v5093 = vpop.f32.mrf.mxu0
        %v5094 = vpop.f32.mrf.mxu0
        %v5095 = vadd.f32 %v4983, %v5094
        %v5096 = vpop.f32.mrf.mxu0
        %5097 = vmatprep.mubr.bf16.mxu0 0
        %5098 = vmatmul.mubr.bf16.gmra.mxu0 %v4976
        %v5099 = vpop.f32.mrf.mxu0
        %v5100 = vadd.f32 %v4983, %v5099
        %v5101 = vpop.f32.mrf.mxu0
        %v5102 = vpop.f32.mrf.mxu0
        %v5103 = vadd.f32 %v4983, %v5102
        %v5104 = vpop.f32.mrf.mxu0
        %5105 = vdwg.mxu0
        %v5106 = vadd.f32 %v4801, %v5068
        %v5107 = vadd.f32 %v4802, %v5071
        %v5108 = vadd.f32 %v4803, %v5076
        %v5109 = vadd.f32 %v4804, %v5079
        %v5110 = vadd.f32 %v4805, %v5084
        %v5111 = vadd.f32 %v4806, %v5087
        %v5112 = vadd.f32 %v4807, %v5092
        %v5113 = vadd.f32 %v4808, %v5095
        %v5114 = vadd.f32 %v4809, %v5100
        %v5115 = vadd.f32 %v4810, %v5103
        %s5116 = scalar_lea.vmem [#allocation13], 1
        %v5117 = vld [vmem:[%s5116] sm:$0x1]
        %s5118 = scalar_lea.vmem [#allocation15], 1
        %v5119 = vld [vmem:[%s5118] sm:$0x1]
        %v5120 = vsel %vm954, %v5106, 0.0
        %5121 = vadd.xlane.f32.xlu0 %v5120
        %v5122 = vpop.xlane.xlu0 %5121
        %v5123 = vsel %vm954, %v5107, 0.0
        %5124 = vadd.xlane.f32.xlu0 %v5123
        %v5125 = vpop.xlane.xlu0 %5124
        %v5126 = vsel %vm954, %v5108, 0.0
        %5127 = vadd.xlane.f32.xlu0 %v5126
        %v5128 = vpop.xlane.xlu0 %5127
        %v5129 = vsel %vm954, %v5109, 0.0
        %5130 = vadd.xlane.f32.xlu0 %v5129
        %v5131 = vpop.xlane.xlu0 %5130
        %v5132 = vsel %vm954, %v5110, 0.0
        %5133 = vadd.xlane.f32.xlu0 %v5132
        %v5134 = vpop.xlane.xlu0 %5133
        %v5135 = vsel %vm954, %v5111, 0.0
        %5136 = vadd.xlane.f32.xlu0 %v5135
        %v5137 = vpop.xlane.xlu0 %5136
        %v5138 = vsel %vm954, %v5112, 0.0
        %5139 = vadd.xlane.f32.xlu0 %v5138
        %v5140 = vpop.xlane.xlu0 %5139
        %v5141 = vsel %vm954, %v5113, 0.0
        %5142 = vadd.xlane.f32.xlu0 %v5141
        %v5143 = vpop.xlane.xlu0 %5142
        %v5144 = vsel %vm954, %v5114, 0.0
        %5145 = vadd.xlane.f32.xlu0 %v5144
        %v5146 = vpop.xlane.xlu0 %5145
        %v5147 = vsel %vm954, %v5115, 0.0
        %5148 = vadd.xlane.f32.xlu0 %v5147
        %v5149 = vpop.xlane.xlu0 %5148
        %v5150 = vmul.f32 %v5122, %v2495
        %v5151 = vmul.f32 %v5125, %v2495
        %v5152 = vmul.f32 %v5128, %v2495
        %v5153 = vmul.f32 %v5131, %v2495
        %v5154 = vmul.f32 %v5134, %v2495
        %v5155 = vmul.f32 %v5137, %v2495
        %v5156 = vmul.f32 %v5140, %v2495
        %v5157 = vmul.f32 %v5143, %v2495
        %v5158 = vmul.f32 %v5146, %v2495
        %v5159 = vmul.f32 %v5149, %v2495
        %v5160 = vsub.f32 %v5106, %v5150
        %v5161 = vsub.f32 %v5107, %v5151
        %v5162 = vsub.f32 %v5108, %v5152
        %v5163 = vsub.f32 %v5109, %v5153
        %v5164 = vsub.f32 %v5110, %v5154
        %v5165 = vsub.f32 %v5111, %v5155
        %v5166 = vsub.f32 %v5112, %v5156
        %v5167 = vsub.f32 %v5113, %v5157
        %v5168 = vsub.f32 %v5114, %v5158
        %v5169 = vsub.f32 %v5115, %v5159
        %v5170 = vmul.f32 %v5160, %v5160
        %v5171 = vmul.f32 %v5161, %v5161
        %v5172 = vmul.f32 %v5162, %v5162
        %v5173 = vmul.f32 %v5163, %v5163
        %v5174 = vmul.f32 %v5164, %v5164
        %v5175 = vmul.f32 %v5165, %v5165
        %v5176 = vmul.f32 %v5166, %v5166
        %v5177 = vmul.f32 %v5167, %v5167
        %v5178 = vmul.f32 %v5168, %v5168
        %v5179 = vmul.f32 %v5169, %v5169
        %v5180 = vsel %vm954, %v5170, 0.0
        %5181 = vadd.xlane.f32.xlu0 %v5180
        %v5182 = vpop.xlane.xlu0 %5181
        %v5183 = vsel %vm954, %v5171, 0.0
        %5184 = vadd.xlane.f32.xlu0 %v5183
        %v5185 = vpop.xlane.xlu0 %5184
        %v5186 = vsel %vm954, %v5172, 0.0
        %5187 = vadd.xlane.f32.xlu0 %v5186
        %v5188 = vpop.xlane.xlu0 %5187
        %v5189 = vsel %vm954, %v5173, 0.0
        %5190 = vadd.xlane.f32.xlu0 %v5189
        %v5191 = vpop.xlane.xlu0 %5190
        %v5192 = vsel %vm954, %v5174, 0.0
        %5193 = vadd.xlane.f32.xlu0 %v5192
        %v5194 = vpop.xlane.xlu0 %5193
        %v5195 = vsel %vm954, %v5175, 0.0
        %5196 = vadd.xlane.f32.xlu0 %v5195
        %v5197 = vpop.xlane.xlu0 %5196
        %v5198 = vsel %vm954, %v5176, 0.0
        %5199 = vadd.xlane.f32.xlu0 %v5198
        %v5200 = vpop.xlane.xlu0 %5199
        %v5201 = vsel %vm954, %v5177, 0.0
        %5202 = vadd.xlane.f32.xlu0 %v5201
        %v5203 = vpop.xlane.xlu0 %5202
        %v5204 = vsel %vm954, %v5178, 0.0
        %5205 = vadd.xlane.f32.xlu0 %v5204
        %v5206 = vpop.xlane.xlu0 %5205
        %v5207 = vsel %vm954, %v5179, 0.0
        %5208 = vadd.xlane.f32.xlu0 %v5207
        %v5209 = vpop.xlane.xlu0 %5208
        %v5210 = vmul.f32 %v5182, %v2495
        %v5211 = vmul.f32 %v5185, %v2495
        %v5212 = vmul.f32 %v5188, %v2495
        %v5213 = vmul.f32 %v5191, %v2495
        %v5214 = vmul.f32 %v5194, %v2495
        %v5215 = vmul.f32 %v5197, %v2495
        %v5216 = vmul.f32 %v5200, %v2495
        %v5217 = vmul.f32 %v5203, %v2495
        %v5218 = vmul.f32 %v5206, %v2495
        %v5219 = vmul.f32 %v5209, %v2495
        %v5220 = vadd.f32 %v5210, 1e-05
        %v5221 = vadd.f32 %v5211, 1e-05
        %v5222 = vadd.f32 %v5212, 1e-05
        %v5223 = vadd.f32 %v5213, 1e-05
        %v5224 = vadd.f32 %v5214, 1e-05
        %v5225 = vadd.f32 %v5215, 1e-05
        %v5226 = vadd.f32 %v5216, 1e-05
        %v5227 = vadd.f32 %v5217, 1e-05
        %v5228 = vadd.f32 %v5218, 1e-05
        %v5229 = vadd.f32 %v5219, 1e-05
        %v5230 = vrsqrt.pop %v5220
        %v5231 = vrsqrt.pop %v5221
        %v5232 = vrsqrt.pop %v5222
        %v5233 = vrsqrt.pop %v5223
        %v5234 = vrsqrt.pop %v5224
        %v5235 = vrsqrt.pop %v5225
        %v5236 = vrsqrt.pop %v5226
        %v5237 = vrsqrt.pop %v5227
        %v5238 = vrsqrt.pop %v5228
        %v5239 = vrsqrt.pop %v5229
        %v5240 = vmul.f32 %v5160, %v5230
        %v5241 = vmul.f32 %v5161, %v5231
        %v5242 = vmul.f32 %v5162, %v5232
        %v5243 = vmul.f32 %v5163, %v5233
        %v5244 = vmul.f32 %v5164, %v5234
        %v5245 = vmul.f32 %v5165, %v5235
        %v5246 = vmul.f32 %v5166, %v5236
        %v5247 = vmul.f32 %v5167, %v5237
        %v5248 = vmul.f32 %v5168, %v5238
        %v5249 = vmul.f32 %v5169, %v5239
        %v5251 = vlaneseq
        %v5252 = vshrl.u32 %v5251, 7
        %v5253 = vsub.s32 0, %v5252
        %v5254 = vrot.slane %v5117, %v5253
        %v5256 = vmul.f32 %v5240, %v5254
        %v5257 = vmul.f32 %v5241, %v5254
        %v5258 = vmul.f32 %v5242, %v5254
        %v5259 = vmul.f32 %v5243, %v5254
        %v5260 = vmul.f32 %v5244, %v5254
        %v5261 = vmul.f32 %v5245, %v5254
        %v5262 = vmul.f32 %v5246, %v5254
        %v5263 = vmul.f32 %v5247, %v5254
        %v5264 = vmul.f32 %v5248, %v5254
        %v5265 = vmul.f32 %v5249, %v5254
        %v5267 = vlaneseq
        %v5268 = vshrl.u32 %v5267, 7
        %v5269 = vsub.s32 0, %v5268
        %v5270 = vrot.slane %v5119, %v5269
        %v5272 = vadd.f32 %v5256, %v5270
        %v5273 = vadd.f32 %v5257, %v5270
        %v5274 = vadd.f32 %v5258, %v5270
        %v5275 = vadd.f32 %v5259, %v5270
        %v5276 = vadd.f32 %v5260, %v5270
        %v5277 = vadd.f32 %v5261, %v5270
        %v5278 = vadd.f32 %v5262, %v5270
        %v5279 = vadd.f32 %v5263, %v5270
        %v5280 = vadd.f32 %v5264, %v5270
        %v5281 = vadd.f32 %v5265, %v5270
        %v5282 = vpack.c.bf16 %v5273, %v5272
        %v5283 = vpack.c.bf16 %v5275, %v5274
        %v5284 = vpack.c.bf16 %v5277, %v5276
        %v5285 = vpack.c.bf16 %v5279, %v5278
        %v5286 = vpack.c.bf16 %v5281, %v5280
        %v5287 = vld [vmem:[#allocation21] sm:$0x1]
        %v5288 = vld [vmem:[%s16] sm:$0xf]
        %v5289 = vld [vmem:[%s16 + $0x4] sm:$0xf]
        %v5290 = vld [vmem:[%s16 + $0x8] sm:$0xf]
        %v5291 = vld [vmem:[%s16 + $0xc] sm:$0xf]
        %v5292 = vld [vmem:[%s16 + $0x10] sm:$0xf]
        %v5293 = vld [vmem:[%s16 + $0x14] sm:$0xf]
        %v5294 = vld [vmem:[%s16 + $0x18] sm:$0xf]
        %v5295 = vld [vmem:[%s16 + $0x1c] sm:$0xf]
        %v5304 = vunpack.c.l.b16 %v5288
        %v5305 = vunpack.c.l.b16 %v5289
        %v5306 = vunpack.c.l.b16 %v5290
        %v5307 = vunpack.c.l.b16 %v5291
        %v5308 = vunpack.c.l.b16 %v5292
        %v5309 = vunpack.c.l.b16 %v5293
        %v5310 = vunpack.c.l.b16 %v5294
        %v5311 = vunpack.c.l.b16 %v5295
        %v5312 = vpack.c.b16 %v5305, %v5304
        %v5313 = vpack.c.b16 %v5307, %v5306
        %v5314 = vpack.c.b16 %v5309, %v5308
        %v5315 = vpack.c.b16 %v5311, %v5310
        %v5321 = vsel %vm954, %v5282, 0
        %5323 = vmatprep.subr.bf16.mxu0 0
        %5324 = vmatpush1.bf16.msra.mxu0 0
        %5325 = vmatprep.subr.bf16.mxu0 0
        %5326 = vmatpush1.bf16.msra.mxu0 0
        %5327 = vmatprep.subr.bf16.mxu0 0
        %5328 = vmatpush1.bf16.msra.mxu0 0
        %5329 = vmatprep.subr.bf16.mxu0 0
        %5330 = vmatpush1.bf16.msra.mxu0 0
        %5331 = vmatprep.subr.bf16.mxu0 0
        %5332 = vmatpush1.bf16.msra.mxu0 %v5315
        %5333 = vmatprep.subr.bf16.mxu0 0
        %5334 = vmatpush1.bf16.msra.mxu0 %v5314
        %5335 = vmatprep.subr.bf16.mxu0 0
        %5336 = vmatpush1.bf16.msra.mxu0 %v5313
        %5337 = vmatprep.subr.bf16.mxu0 0
        %5338 = vmatpush1.bf16.msra.mxu0 %v5312
        %5339 = vmatprep.subr.bf16.mxu0 0
        %5340 = vmatpush2.bf16.msra.mxu0 0
        %5341 = vmatprep.subr.bf16.mxu0 0
        %5342 = vmatpush2.bf16.msra.mxu0 0
        %5343 = vmatprep.subr.bf16.mxu0 0
        %5344 = vmatpush2.bf16.msra.mxu0 0
        %5345 = vmatprep.subr.bf16.mxu0 0
        %5346 = vmatpush2.bf16.msra.mxu0 0
        %5347 = vmatprep.subr.bf16.mxu0 0
        %5348 = vmatpush2.bf16.msra.mxu0 0
        %5349 = vmatprep.subr.bf16.mxu0 0
        %5350 = vmatpush2.bf16.msra.mxu0 0
        %5351 = vmatprep.subr.bf16.mxu0 0
        %5352 = vmatpush2.bf16.msra.mxu0 0
        %5353 = vmatprep.subr.bf16.mxu0 0
        %5354 = vmatpush2.bf16.msra.mxu0 0
        %5355 = vmatprep.mubr.bf16.mxu0 0
        %5356 = vmatmul.mubr.bf16.gmra.mxu0 %v5321
        %v5357 = vpop.f32.mrf.mxu0
        %v5358 = vadd.f32 0.0, %v5357
        %v5359 = vpop.f32.mrf.mxu0
        %v5360 = vpop.f32.mrf.mxu0
        %v5361 = vadd.f32 0.0, %v5360
        %v5362 = vpop.f32.mrf.mxu0
        %5363 = vdwg.mxu0
        %v5365 = vlaneseq
        %v5366 = vshrl.u32 %v5365, 7
        %v5367 = vsub.s32 0, %v5366
        %v5368 = vrot.slane %v5287, %v5367
        %v5370 = vadd.f32 %v5368, %v5358
        %v5371 = vadd.f32 %v5368, %v5361
        %s5372 = scalar_lea.vmem %s16, 32
        %v5373 = vld [vmem:[%s5372] sm:$0xf]
        %v5374 = vld [vmem:[%s5372 + $0x4] sm:$0xf]
        %v5375 = vld [vmem:[%s5372 + $0x8] sm:$0xf]
        %v5376 = vld [vmem:[%s5372 + $0xc] sm:$0xf]
        %v5377 = vld [vmem:[%s5372 + $0x10] sm:$0xf]
        %v5378 = vld [vmem:[%s5372 + $0x14] sm:$0xf]
        %v5379 = vld [vmem:[%s5372 + $0x18] sm:$0xf]
        %v5380 = vld [vmem:[%s5372 + $0x1c] sm:$0xf]
        %v5389 = vunpack.c.l.b16 %v5373
        %v5390 = vunpack.c.l.b16 %v5374
        %v5391 = vunpack.c.l.b16 %v5375
        %v5392 = vunpack.c.l.b16 %v5376
        %v5393 = vunpack.c.l.b16 %v5377
        %v5394 = vunpack.c.l.b16 %v5378
        %v5395 = vunpack.c.l.b16 %v5379
        %v5396 = vunpack.c.l.b16 %v5380
        %v5397 = vpack.c.b16 %v5390, %v5389
        %v5398 = vpack.c.b16 %v5392, %v5391
        %v5399 = vpack.c.b16 %v5394, %v5393
        %v5400 = vpack.c.b16 %v5396, %v5395
        %v5406 = vsel %vm954, %v5283, 0
        %5408 = vmatprep.subr.bf16.mxu0 0
        %5409 = vmatpush1.bf16.msra.mxu0 0
        %5410 = vmatprep.subr.bf16.mxu0 0
        %5411 = vmatpush1.bf16.msra.mxu0 0
        %5412 = vmatprep.subr.bf16.mxu0 0
        %5413 = vmatpush1.bf16.msra.mxu0 0
        %5414 = vmatprep.subr.bf16.mxu0 0
        %5415 = vmatpush1.bf16.msra.mxu0 0
        %5416 = vmatprep.subr.bf16.mxu0 0
        %5417 = vmatpush1.bf16.msra.mxu0 %v5400
        %5418 = vmatprep.subr.bf16.mxu0 0
        %5419 = vmatpush1.bf16.msra.mxu0 %v5399
        %5420 = vmatprep.subr.bf16.mxu0 0
        %5421 = vmatpush1.bf16.msra.mxu0 %v5398
        %5422 = vmatprep.subr.bf16.mxu0 0
        %5423 = vmatpush1.bf16.msra.mxu0 %v5397
        %5424 = vmatprep.subr.bf16.mxu0 0
        %5425 = vmatpush2.bf16.msra.mxu0 0
        %5426 = vmatprep.subr.bf16.mxu0 0
        %5427 = vmatpush2.bf16.msra.mxu0 0
        %5428 = vmatprep.subr.bf16.mxu0 0
        %5429 = vmatpush2.bf16.msra.mxu0 0
        %5430 = vmatprep.subr.bf16.mxu0 0
        %5431 = vmatpush2.bf16.msra.mxu0 0
        %5432 = vmatprep.subr.bf16.mxu0 0
        %5433 = vmatpush2.bf16.msra.mxu0 0
        %5434 = vmatprep.subr.bf16.mxu0 0
        %5435 = vmatpush2.bf16.msra.mxu0 0
        %5436 = vmatprep.subr.bf16.mxu0 0
        %5437 = vmatpush2.bf16.msra.mxu0 0
        %5438 = vmatprep.subr.bf16.mxu0 0
        %5439 = vmatpush2.bf16.msra.mxu0 0
        %5440 = vmatprep.mubr.bf16.mxu0 0
        %5441 = vmatmul.mubr.bf16.gmra.mxu0 %v5406
        %v5442 = vpop.f32.mrf.mxu0
        %v5443 = vadd.f32 0.0, %v5442
        %v5444 = vpop.f32.mrf.mxu0
        %v5445 = vpop.f32.mrf.mxu0
        %v5446 = vadd.f32 0.0, %v5445
        %v5447 = vpop.f32.mrf.mxu0
        %5448 = vdwg.mxu0
        %v5449 = vadd.f32 %v5370, %v5443
        %v5450 = vadd.f32 %v5371, %v5446
        %s5451 = scalar_lea.vmem %s16, 64
        %v5452 = vld [vmem:[%s5451] sm:$0xf]
        %v5453 = vld [vmem:[%s5451 + $0x4] sm:$0xf]
        %v5454 = vld [vmem:[%s5451 + $0x8] sm:$0xf]
        %v5455 = vld [vmem:[%s5451 + $0xc] sm:$0xf]
        %v5456 = vld [vmem:[%s5451 + $0x10] sm:$0xf]
        %v5457 = vld [vmem:[%s5451 + $0x14] sm:$0xf]
        %v5458 = vld [vmem:[%s5451 + $0x18] sm:$0xf]
        %v5459 = vld [vmem:[%s5451 + $0x1c] sm:$0xf]
        %v5468 = vunpack.c.l.b16 %v5452
        %v5469 = vunpack.c.l.b16 %v5453
        %v5470 = vunpack.c.l.b16 %v5454
        %v5471 = vunpack.c.l.b16 %v5455
        %v5472 = vunpack.c.l.b16 %v5456
        %v5473 = vunpack.c.l.b16 %v5457
        %v5474 = vunpack.c.l.b16 %v5458
        %v5475 = vunpack.c.l.b16 %v5459
        %v5476 = vpack.c.b16 %v5469, %v5468
        %v5477 = vpack.c.b16 %v5471, %v5470
        %v5478 = vpack.c.b16 %v5473, %v5472
        %v5479 = vpack.c.b16 %v5475, %v5474
        %v5485 = vsel %vm954, %v5284, 0
        %5487 = vmatprep.subr.bf16.mxu0 0
        %5488 = vmatpush1.bf16.msra.mxu0 0
        %5489 = vmatprep.subr.bf16.mxu0 0
        %5490 = vmatpush1.bf16.msra.mxu0 0
        %5491 = vmatprep.subr.bf16.mxu0 0
        %5492 = vmatpush1.bf16.msra.mxu0 0
        %5493 = vmatprep.subr.bf16.mxu0 0
        %5494 = vmatpush1.bf16.msra.mxu0 0
        %5495 = vmatprep.subr.bf16.mxu0 0
        %5496 = vmatpush1.bf16.msra.mxu0 %v5479
        %5497 = vmatprep.subr.bf16.mxu0 0
        %5498 = vmatpush1.bf16.msra.mxu0 %v5478
        %5499 = vmatprep.subr.bf16.mxu0 0
        %5500 = vmatpush1.bf16.msra.mxu0 %v5477
        %5501 = vmatprep.subr.bf16.mxu0 0
        %5502 = vmatpush1.bf16.msra.mxu0 %v5476
        %5503 = vmatprep.subr.bf16.mxu0 0
        %5504 = vmatpush2.bf16.msra.mxu0 0
        %5505 = vmatprep.subr.bf16.mxu0 0
        %5506 = vmatpush2.bf16.msra.mxu0 0
        %5507 = vmatprep.subr.bf16.mxu0 0
        %5508 = vmatpush2.bf16.msra.mxu0 0
        %5509 = vmatprep.subr.bf16.mxu0 0
        %5510 = vmatpush2.bf16.msra.mxu0 0
        %5511 = vmatprep.subr.bf16.mxu0 0
        %5512 = vmatpush2.bf16.msra.mxu0 0
        %5513 = vmatprep.subr.bf16.mxu0 0
        %5514 = vmatpush2.bf16.msra.mxu0 0
        %5515 = vmatprep.subr.bf16.mxu0 0
        %5516 = vmatpush2.bf16.msra.mxu0 0
        %5517 = vmatprep.subr.bf16.mxu0 0
        %5518 = vmatpush2.bf16.msra.mxu0 0
        %5519 = vmatprep.mubr.bf16.mxu0 0
        %5520 = vmatmul.mubr.bf16.gmra.mxu0 %v5485
        %v5521 = vpop.f32.mrf.mxu0
        %v5522 = vadd.f32 0.0, %v5521
        %v5523 = vpop.f32.mrf.mxu0
        %v5524 = vpop.f32.mrf.mxu0
        %v5525 = vadd.f32 0.0, %v5524
        %v5526 = vpop.f32.mrf.mxu0
        %5527 = vdwg.mxu0
        %v5528 = vadd.f32 %v5449, %v5522
        %v5529 = vadd.f32 %v5450, %v5525
        %s5530 = scalar_lea.vmem %s16, 96
        %v5531 = vld [vmem:[%s5530] sm:$0xf]
        %v5532 = vld [vmem:[%s5530 + $0x4] sm:$0xf]
        %v5533 = vld [vmem:[%s5530 + $0x8] sm:$0xf]
        %v5534 = vld [vmem:[%s5530 + $0xc] sm:$0xf]
        %v5535 = vld [vmem:[%s5530 + $0x10] sm:$0xf]
        %v5536 = vld [vmem:[%s5530 + $0x14] sm:$0xf]
        %v5537 = vld [vmem:[%s5530 + $0x18] sm:$0xf]
        %v5538 = vld [vmem:[%s5530 + $0x1c] sm:$0xf]
        %v5547 = vunpack.c.l.b16 %v5531
        %v5548 = vunpack.c.l.b16 %v5532
        %v5549 = vunpack.c.l.b16 %v5533
        %v5550 = vunpack.c.l.b16 %v5534
        %v5551 = vunpack.c.l.b16 %v5535
        %v5552 = vunpack.c.l.b16 %v5536
        %v5553 = vunpack.c.l.b16 %v5537
        %v5554 = vunpack.c.l.b16 %v5538
        %v5555 = vpack.c.b16 %v5548, %v5547
        %v5556 = vpack.c.b16 %v5550, %v5549
        %v5557 = vpack.c.b16 %v5552, %v5551
        %v5558 = vpack.c.b16 %v5554, %v5553
        %v5564 = vsel %vm954, %v5285, 0
        %5566 = vmatprep.subr.bf16.mxu0 0
        %5567 = vmatpush1.bf16.msra.mxu0 0
        %5568 = vmatprep.subr.bf16.mxu0 0
        %5569 = vmatpush1.bf16.msra.mxu0 0
        %5570 = vmatprep.subr.bf16.mxu0 0
        %5571 = vmatpush1.bf16.msra.mxu0 0
        %5572 = vmatprep.subr.bf16.mxu0 0
        %5573 = vmatpush1.bf16.msra.mxu0 0
        %5574 = vmatprep.subr.bf16.mxu0 0
        %5575 = vmatpush1.bf16.msra.mxu0 %v5558
        %5576 = vmatprep.subr.bf16.mxu0 0
        %5577 = vmatpush1.bf16.msra.mxu0 %v5557
        %5578 = vmatprep.subr.bf16.mxu0 0
        %5579 = vmatpush1.bf16.msra.mxu0 %v5556
        %5580 = vmatprep.subr.bf16.mxu0 0
        %5581 = vmatpush1.bf16.msra.mxu0 %v5555
        %5582 = vmatprep.subr.bf16.mxu0 0
        %5583 = vmatpush2.bf16.msra.mxu0 0
        %5584 = vmatprep.subr.bf16.mxu0 0
        %5585 = vmatpush2.bf16.msra.mxu0 0
        %5586 = vmatprep.subr.bf16.mxu0 0
        %5587 = vmatpush2.bf16.msra.mxu0 0
        %5588 = vmatprep.subr.bf16.mxu0 0
        %5589 = vmatpush2.bf16.msra.mxu0 0
        %5590 = vmatprep.subr.bf16.mxu0 0
        %5591 = vmatpush2.bf16.msra.mxu0 0
        %5592 = vmatprep.subr.bf16.mxu0 0
        %5593 = vmatpush2.bf16.msra.mxu0 0
        %5594 = vmatprep.subr.bf16.mxu0 0
        %5595 = vmatpush2.bf16.msra.mxu0 0
        %5596 = vmatprep.subr.bf16.mxu0 0
        %5597 = vmatpush2.bf16.msra.mxu0 0
        %5598 = vmatprep.mubr.bf16.mxu0 0
        %5599 = vmatmul.mubr.bf16.gmra.mxu0 %v5564
        %v5600 = vpop.f32.mrf.mxu0
        %v5601 = vadd.f32 0.0, %v5600
        %v5602 = vpop.f32.mrf.mxu0
        %v5603 = vpop.f32.mrf.mxu0
        %v5604 = vadd.f32 0.0, %v5603
        %v5605 = vpop.f32.mrf.mxu0
        %5606 = vdwg.mxu0
        %v5607 = vadd.f32 %v5528, %v5601
        %v5608 = vadd.f32 %v5529, %v5604
        %s5609 = scalar_lea.vmem %s16, 128
        %v5610 = vld [vmem:[%s5609] sm:$0xf]
        %v5611 = vld [vmem:[%s5609 + $0x4] sm:$0xf]
        %v5612 = vld [vmem:[%s5609 + $0x8] sm:$0xf]
        %v5613 = vld [vmem:[%s5609 + $0xc] sm:$0xf]
        %v5614 = vld [vmem:[%s5609 + $0x10] sm:$0xf]
        %v5615 = vld [vmem:[%s5609 + $0x14] sm:$0xf]
        %v5616 = vld [vmem:[%s5609 + $0x18] sm:$0xf]
        %v5617 = vld [vmem:[%s5609 + $0x1c] sm:$0xf]
        %v5626 = vunpack.c.l.b16 %v5610
        %v5627 = vunpack.c.l.b16 %v5611
        %v5628 = vunpack.c.l.b16 %v5612
        %v5629 = vunpack.c.l.b16 %v5613
        %v5630 = vunpack.c.l.b16 %v5614
        %v5631 = vunpack.c.l.b16 %v5615
        %v5632 = vunpack.c.l.b16 %v5616
        %v5633 = vunpack.c.l.b16 %v5617
        %v5634 = vpack.c.b16 %v5627, %v5626
        %v5635 = vpack.c.b16 %v5629, %v5628
        %v5636 = vpack.c.b16 %v5631, %v5630
        %v5637 = vpack.c.b16 %v5633, %v5632
        %v5643 = vsel %vm954, %v5286, 0
        %5645 = vmatprep.subr.bf16.mxu0 0
        %5646 = vmatpush1.bf16.msra.mxu0 0
        %5647 = vmatprep.subr.bf16.mxu0 0
        %5648 = vmatpush1.bf16.msra.mxu0 0
        %5649 = vmatprep.subr.bf16.mxu0 0
        %5650 = vmatpush1.bf16.msra.mxu0 0
        %5651 = vmatprep.subr.bf16.mxu0 0
        %5652 = vmatpush1.bf16.msra.mxu0 0
        %5653 = vmatprep.subr.bf16.mxu0 0
        %5654 = vmatpush1.bf16.msra.mxu0 %v5637
        %5655 = vmatprep.subr.bf16.mxu0 0
        %5656 = vmatpush1.bf16.msra.mxu0 %v5636
        %5657 = vmatprep.subr.bf16.mxu0 0
        %5658 = vmatpush1.bf16.msra.mxu0 %v5635
        %5659 = vmatprep.subr.bf16.mxu0 0
        %5660 = vmatpush1.bf16.msra.mxu0 %v5634
        %5661 = vmatprep.subr.bf16.mxu0 0
        %5662 = vmatpush2.bf16.msra.mxu0 0
        %5663 = vmatprep.subr.bf16.mxu0 0
        %5664 = vmatpush2.bf16.msra.mxu0 0
        %5665 = vmatprep.subr.bf16.mxu0 0
        %5666 = vmatpush2.bf16.msra.mxu0 0
        %5667 = vmatprep.subr.bf16.mxu0 0
        %5668 = vmatpush2.bf16.msra.mxu0 0
        %5669 = vmatprep.subr.bf16.mxu0 0
        %5670 = vmatpush2.bf16.msra.mxu0 0
        %5671 = vmatprep.subr.bf16.mxu0 0
        %5672 = vmatpush2.bf16.msra.mxu0 0
        %5673 = vmatprep.subr.bf16.mxu0 0
        %5674 = vmatpush2.bf16.msra.mxu0 0
        %5675 = vmatprep.subr.bf16.mxu0 0
        %5676 = vmatpush2.bf16.msra.mxu0 0
        %5677 = vmatprep.mubr.bf16.mxu0 0
        %5678 = vmatmul.mubr.bf16.gmra.mxu0 %v5643
        %v5679 = vpop.f32.mrf.mxu0
        %v5680 = vadd.f32 0.0, %v5679
        %v5681 = vpop.f32.mrf.mxu0
        %v5682 = vpop.f32.mrf.mxu0
        %v5683 = vadd.f32 0.0, %v5682
        %v5684 = vpop.f32.mrf.mxu0
        %5685 = vdwg.mxu0
        %v5686 = vadd.f32 %v5607, %v5680
        %v5687 = vadd.f32 %v5608, %v5683
        %v5688 = vmax.f32 %v5686, 0.0
        %v5689 = vmax.f32 %v5687, 0.0
        %v5690 = vld [vmem:[#allocation22] sm:$0xf]
        %v5691 = vld [vmem:[#allocation22 + $0x4] sm:$0xf]
        %v5692 = vld [vmem:[#allocation22 + $0x8] sm:$0xf]
        %v5693 = vld [vmem:[#allocation22 + $0xc] sm:$0xf]
        %v5694 = vld [vmem:[#allocation22 + $0x10] sm:$0xf]
        %v5695 = vld [vmem:[#allocation22 + $0x14] sm:$0xf]
        %v5696 = vld [vmem:[#allocation22 + $0x18] sm:$0xf]
        %v5697 = vld [vmem:[#allocation22 + $0x1c] sm:$0xf]
        %v5698 = vpack.c.bf16 %v5689, %v5688
        %v5699 = vld [vmem:[%s19] sm:$0x1]
        %v5701 = vlaneseq
        %v5702 = vshrl.u32 %v5701, 7
        %v5703 = vsub.s32 0, %v5702
        %v5704 = vrot.slane %v5699, %v5703
        %v5714 = vunpack.c.l.b16 %v5690
        %v5715 = vunpack.c.l.b16 %v5691
        %v5716 = vunpack.c.l.b16 %v5692
        %v5717 = vunpack.c.l.b16 %v5693
        %v5718 = vunpack.c.l.b16 %v5694
        %v5719 = vunpack.c.l.b16 %v5695
        %v5720 = vunpack.c.l.b16 %v5696
        %v5721 = vunpack.c.l.b16 %v5697
        %v5722 = vpack.c.b16 %v5715, %v5714
        %v5723 = vpack.c.b16 %v5717, %v5716
        %v5724 = vpack.c.b16 %v5719, %v5718
        %v5725 = vpack.c.b16 %v5721, %v5720
        %v5731 = vsel %vm954, %v5698, 0
        %5733 = vmatprep.subr.bf16.mxu0 0
        %5734 = vmatpush1.bf16.msra.mxu0 0
        %5735 = vmatprep.subr.bf16.mxu0 0
        %5736 = vmatpush1.bf16.msra.mxu0 0
        %5737 = vmatprep.subr.bf16.mxu0 0
        %5738 = vmatpush1.bf16.msra.mxu0 0
        %5739 = vmatprep.subr.bf16.mxu0 0
        %5740 = vmatpush1.bf16.msra.mxu0 0
        %5741 = vmatprep.subr.bf16.mxu0 0
        %5742 = vmatpush1.bf16.msra.mxu0 %v5725
        %5743 = vmatprep.subr.bf16.mxu0 0
        %5744 = vmatpush1.bf16.msra.mxu0 %v5724
        %5745 = vmatprep.subr.bf16.mxu0 0
        %5746 = vmatpush1.bf16.msra.mxu0 %v5723
        %5747 = vmatprep.subr.bf16.mxu0 0
        %5748 = vmatpush1.bf16.msra.mxu0 %v5722
        %5749 = vmatprep.subr.bf16.mxu0 0
        %5750 = vmatpush2.bf16.msra.mxu0 0
        %5751 = vmatprep.subr.bf16.mxu0 0
        %5752 = vmatpush2.bf16.msra.mxu0 0
        %5753 = vmatprep.subr.bf16.mxu0 0
        %5754 = vmatpush2.bf16.msra.mxu0 0
        %5755 = vmatprep.subr.bf16.mxu0 0
        %5756 = vmatpush2.bf16.msra.mxu0 0
        %5757 = vmatprep.subr.bf16.mxu0 0
        %5758 = vmatpush2.bf16.msra.mxu0 0
        %5759 = vmatprep.subr.bf16.mxu0 0
        %5760 = vmatpush2.bf16.msra.mxu0 0
        %5761 = vmatprep.subr.bf16.mxu0 0
        %5762 = vmatpush2.bf16.msra.mxu0 0
        %5763 = vmatprep.subr.bf16.mxu0 0
        %5764 = vmatpush2.bf16.msra.mxu0 0
        %5765 = vmatprep.mubr.bf16.mxu0 0
        %5766 = vmatmul.mubr.bf16.gmra.mxu0 %v5731
        %v5767 = vpop.f32.mrf.mxu0
        %v5768 = vadd.f32 %v5704, %v5767
        %v5769 = vpop.f32.mrf.mxu0
        %v5770 = vpop.f32.mrf.mxu0
        %v5771 = vadd.f32 %v5704, %v5770
        %v5772 = vpop.f32.mrf.mxu0
        %5773 = vdwg.mxu0
        %5774 = vst [vmem:[%s794] sm:$0xff] %v5768
        %5775 = vst [vmem:[%s794 + $0x8] sm:$0xff] %v5771
        %s5776 = sand.u32 %s474, 1
        %s5777 = scalar_lea.sflag [#allocation6], %s5776
        %s5778 = sand.u32 %s474, 1
        %s5779 = smul.addr %s5778, 16
        %s5780 = scalar_lea.vmem [#allocation24], %s5779
        // Predicated region
        $region149: #{tpu_custom_call.1} parent=99 // pred_check
          %p5781 = pneg %p484
        $region150: #{tpu_custom_call.1} parent=99 // pred_check_branch
          %5783 = sbr.rel (%p5781) target = $region152
        $region151: #{tpu_custom_call.1} parent=99 // pred_region
          %s5784 = smul.u32 2, %s41
          %s5786 = ssub.s32 256, 256
          %5787 = vsyncadd %s5777, %s5786
          %s5788 = smul.addr %s5784, 128
          %s5789 = scalar_lea.hbm %s20, %s5788
          %s5790 = sshll.u32 %s5780, 4
          %s5791 = int_to_ptr.vmem [resolvable:$true] %s5790
          %5796 = dma.vmem_to_hbm [thread:$0]  %s5791, 256, %s5789, %s5777, 128, 128, 8
        $region152: #{tpu_custom_call.1} parent=99 // pred_fallthru
          _
      $region100: #{tpu_custom_call.1} parent=5 // pred_fallthru
        _
      %p5797 = scmp.le.s32.totalorder 2, %s36
      // Predicated region
      $region153: #{tpu_custom_call.1} parent=5 // pred_check
        %p5798 = pneg %p5797
      $region154: #{tpu_custom_call.1} parent=5 // pred_check_branch
        %5800 = sbr.rel (%p5798) target = $region156
      $region155: #{tpu_custom_call.1} parent=5 // pred_region
        %s5801 = ssub.s32 %s36, 2
        // Predicated region
        $region157: #{tpu_custom_call.1} parent=155 // pred_check
          %p5802 = pneg %p490
        $region158: #{tpu_custom_call.1} parent=155 // pred_check_branch
          %5804 = sbr.rel (%p5802) target = $region160
        $region159: #{tpu_custom_call.1} parent=155 // pred_region
          %s5805 = sand.u32 %s475, 1
          %s5806 = scalar_lea.sflag [#allocation6], %s5805
          %s5807 = sand.u32 %s475, 1
          %s5808 = smul.addr %s5807, 16
          %s5809 = scalar_lea.vmem [#allocation24], %s5808
          %5810 = dma.done %s5806, 256
        $region160: #{tpu_custom_call.1} parent=155 // pred_fallthru
          _
      $region156: #{tpu_custom_call.1} parent=5 // pred_fallthru
        _
    $region6: #{tpu_custom_call.1} parent=1 // loop_footer
      %s40 = sadd.s32 1, %s36
    $region7: #{tpu_custom_call.1} parent=1 // loop_footer_branch
      %35 = sbr.rel target = $region3
    $region8: #{tpu_custom_call.1} parent=1 // loop_exit
      _
    %5811 = vsyncpa [#allocation5], 1
    %s5812 = scalar_lea.sflag [#allocation5], 1
    %5813 = vsyncpa %s5812, 1
    %5814 = vsyncpa [#allocation8], 1
    %5815 = vsyncpa [#allocation11], 1
    %5816 = vsyncpa [#allocation14], 1
    %5817 = vsyncpa [#allocation17], 1
    %5818 = vsyncpa [#allocation20], 1
    %5819 = vsyncpa [#allocation23], 1
    %5820 = vsyncpa [#allocation6], 1
    %s5821 = scalar_lea.sflag [#allocation6], 1
    %5822 = vsyncpa %s5821, 1

</llo_original>
